<compile_context>
chip_gen: v7x
topology: tpu7x:2x2x1
jax: 0.10.0
libtpu: 0.0.40
codegen_flags: <defaults>
</compile_context>

<pallas_src>
import numpy as np
import jax
import jax.numpy as jnp
from jax.experimental import pallas as pl
from jax.experimental.pallas import tpu as pltpu


# ---------------------------------------------------------------------------
# static model configuration
# ---------------------------------------------------------------------------

BLOCKS, LAYERS, KERNEL_SIZE = 4, 2, 2
RES_CH = 16          # residual_channels == dilation_channels
SKIP_CH = 8          # skip_channels (hard coded in the module)
OUT_DIM = 12
NUM_LAYERS = LAYERS * LAYERS          # forward iterates layers*layers modules


def _derive_time_dims():
    dilations, rf = [], 1
    for _ in range(BLOCKS):
        add, nd = KERNEL_SIZE - 1, 1
        for _ in range(LAYERS):
            dilations.append(nd)
            nd *= 2
            rf += add
            add *= 2
    dilations = dilations[:NUM_LAYERS]
    touts, t = [], rf
    for d in dilations:
        t -= d
        touts.append(t)
    return rf, tuple(dilations), tuple(touts)


RECEPTIVE_FIELD, DILATIONS, TOUTS = _derive_time_dims()   # 13, (1,2,1,2), (12,10,9,7)
SKIP_TOTAL = SKIP_CH * sum(TOUTS)                         # 304 (== end_conv_1 in_channels)
_LAYER_REFS = 7                                           # packed refs per layer


# ---------------------------------------------------------------------------
# the fused Pallas kernel
# ---------------------------------------------------------------------------

def _sigmoid(z):
    # exact sigmoid via tanh: single EUP op, numerically stable, no VPU divide
    return 0.5 * (jnp.tanh(0.5 * z) + 1.0)


def fused_forward_kernel(*refs):
    """Whole DMSTGCN forward for one batch element, fully VMEM-resident.

    Working layout: node-major, lane-dense (N, T*C), column index = t*C + c.
    Every conv is a 2-D matmul against a kron-expanded block-diagonal weight,
    so all intermediates keep >=112 lanes and no in-kernel reshape is needed.
    """
    x0_ref, m_ref, p2_ref, p3t_ref, wst_ref, bst_ref = refs[:6]
    lrefs = refs[6:6 + _LAYER_REFS * NUM_LAYERS]
    eb = 6 + _LAYER_REFS * NUM_LAYERS
    wend1_ref, bend1_ref, wend2_ref, bend2_ref = refs[eb:eb + 4]
    o_ref = refs[eb + 4]
    skip_ref = refs[eb + 5]          # VMEM scratch (N, 304): lane-dense skip slab

    f32 = jnp.float32
    C, Cs = RES_CH, SKIP_CH

    # ---- dgconstruct tail: adp = softmax(relu(p2 @ m @ p3.T), axis=-1) ------
    t = jnp.dot(p2_ref[...], m_ref[0], preferred_element_type=f32)     # (N, D)
    a = jnp.dot(t, p3t_ref[...], preferred_element_type=f32)           # (N, N)
    a = jnp.maximum(a, 0.0)
    a = a - jnp.max(a, axis=-1, keepdims=True)
    e = jnp.exp(a)
    adp = e * pl.reciprocal(jnp.sum(e, axis=-1, keepdims=True), approx=True)

    # ---- start_conv (1x1, Cin=1) -> lane-dense (N, T*C) ---------------------
    x = jnp.dot(x0_ref[0], wst_ref[...], preferred_element_type=f32) + bst_ref[...]

    # ---- 4 x (gated dilated conv -> skip -> gcn(order=2) -> x2 + eval-BN) ---
    tin = RECEPTIVE_FIELD
    skip_off = 0
    for li, d in enumerate(DILATIONS):
        wfg0, wfg1, bfg, wsk, bsk, wm, bm = lrefs[_LAYER_REFS * li:_LAYER_REFS * (li + 1)]
        tout = tin - d
        TC = tout * C
        xa = x[:, :TC]                         # x[..., t,   :]  for t < tout
        xb = x[:, d * C: d * C + TC]           # x[..., t+d, :]
        fg = (jnp.dot(xa, wfg0[...], preferred_element_type=f32)
              + jnp.dot(xb, wfg1[...], preferred_element_type=f32)
              + bfg[...])                      # (N, 2*tout*C): [filter | gate]
        xg = jnp.tanh(fg[:, :TC]) * _sigmoid(fg[:, TC:])

        # skip conv written straight into the (N, 304) slab (no transposes)
        s = jnp.dot(xg, wsk[...], preferred_element_type=f32) + bsk[...]
        skip_ref[:, skip_off: skip_off + Cs * tout] = s
        skip_off += Cs * tout

        # gcn: [x, A x, A^2 x] -> fused 1x1 mlp.  The x2 residual-doubling and
        # eval-mode BatchNorm are already folded into wm / bm at prep time.
        x1 = jnp.dot(adp, xg, preferred_element_type=f32)
        x2 = jnp.dot(adp, x1, preferred_element_type=f32)
        x = (jnp.dot(xg, wm[0:TC, :], preferred_element_type=f32)
             + jnp.dot(x1, wm[TC:2 * TC, :], preferred_element_type=f32)
             + jnp.dot(x2, wm[2 * TC:3 * TC, :], preferred_element_type=f32)
             + bm[...])
        tin = tout

    # ---- relu -> end_conv_1 -> relu -> end_conv_2 ---------------------------
    h = jnp.maximum(skip_ref[...], 0.0)
    h = jnp.dot(h, wend1_ref[...], preferred_element_type=f32) + bend1_ref[...]
    h = jnp.maximum(h, 0.0)
    o_ref[0] = jnp.dot(h, wend2_ref[...], preferred_element_type=f32) + bend2_ref[...]


# ---------------------------------------------------------------------------
# pallas_call plumbing
# ---------------------------------------------------------------------------

def _batched_spec(shape):
    nd = len(shape)
    return pl.BlockSpec((1,) + tuple(shape[1:]),
                        lambda b, _nd=nd: (b,) + (0,) * (_nd - 1))


def _shared_spec(shape):
    nd = len(shape)
    return pl.BlockSpec(tuple(shape), lambda b, _nd=nd: (0,) * _nd)


def dmstgcn_forward(prep, inputs, ind):
    """inputs: (B, F, N, T) NCHW (only channel 0 is used, as in the reference);
       ind: (B,) int day indices.  Returns (B, 12, N, 1)."""
    B, _, N, T_in = inputs.shape
    assert T_in <= RECEPTIVE_FIELD, "end_conv width 304 assumes in_len <= receptive_field"
    x0 = inputs[:, 0]                                               # (B, N, T)
    if T_in < RECEPTIVE_FIELD:
        x0 = jnp.pad(x0, ((0, 0), (0, 0), (RECEPTIVE_FIELD - T_in, 0)))

    # dgconstruct head (te . pk).  Left in XLA: it is a tiny B*D^3 contraction
    # whose (D, D) result has no reshape-free 2-D form in-kernel; XLA fuses it
    # with the p1 gather and the result is a few KB.
    # TODO(synk): fold into the Pallas kernel once value reshapes are needed/safe.
    m = jnp.einsum('bi,ijk->bjk', prep["p1"][ind], prep["pk"])      # (B, D, D)

    batched = [x0, m]
    shared = [prep["p2"], prep["p3t"], prep["w_start_b"], prep["b_start_b"]]
    for lp in prep["layers"]:
        shared += [lp["wfg0"], lp["wfg1"], lp["bfg"],
                   lp["wskip"], lp["bskip"], lp["wm"], lp["bm"]]
    shared += [prep["w_end1"], prep["b_end1"], prep["w_end2"], prep["b_end2"]]

    out = pl.pallas_call(
        fused_forward_kernel,
        grid=(B,),
        in_specs=[_batched_spec(a.shape) for a in batched]
                 + [_shared_spec(a.shape) for a in shared],
        out_specs=_batched_spec((B, N, OUT_DIM)),
        out_shape=jax.ShapeDtypeStruct((B, N, OUT_DIM), jnp.float32),
        scratch_shapes=[pltpu.VMEM((N, SKIP_TOTAL), jnp.float32)],
        compiler_params=pltpu.CompilerParams(
            dimension_semantics=("parallel",),          # batch across TCs on v7x
            vmem_limit_bytes=32 * 1024 * 1024,
        ),
    )(*batched, *shared)
    return out.transpose(0, 2, 1)[..., None]                        # (B, 12, N, 1)


# ---------------------------------------------------------------------------
# parameters (PyTorch-layout "logical" params) + host-side kernel packing
# ---------------------------------------------------------------------------

def init_params(key, *, num_nodes, dims, days):
    ks = iter(jax.random.split(key, 128))

    def nrm(shape, s=0.1):
        return (s * jax.random.normal(next(ks), shape)).astype(jnp.float32)

    C, Cs = RES_CH, SKIP_CH
    p = {
        "w_start": nrm((1, C)), "b_start": nrm((1, C)),
        "p1": nrm((days, dims), 1.0), "p2": nrm((num_nodes, dims), 1.0),
        "p3": nrm((num_nodes, dims), 1.0), "pk": nrm((dims, dims, dims), 1.0),
        # end-conv weights stored as (in, out) matmul weights; w_end1 rows are
        # in the *PyTorch* skip-channel order (prepare_params permutes them).
        "w_end1": nrm((SKIP_TOTAL, SKIP_TOTAL), 0.05), "b_end1": nrm((1, SKIP_TOTAL)),
        "w_end2": nrm((SKIP_TOTAL, OUT_DIM), 0.05), "b_end2": nrm((1, OUT_DIM)),
    }
    eps = 1e-5
    layers = []
    for _ in range(NUM_LAYERS):
        layers.append(dict(
            wf0=nrm((C, C)), wf1=nrm((C, C)), bf=nrm((1, C)),
            wg0=nrm((C, C)), wg1=nrm((C, C)), bg=nrm((1, C)),
            ws=nrm((C, Cs)), bs=nrm((1, Cs)),
            w0=nrm((C, C)), w1=nrm((C, C)), w2=nrm((C, C)), bm=nrm((1, C)),
            # fresh BatchNorm2d in eval mode: gamma=1, beta=0, mean=0, var=1
            bn_scale=(jnp.ones((1, C), jnp.float32) / jnp.sqrt(1.0 + eps)),
            bn_shift=jnp.zeros((1, C), jnp.float32),
        ))
    p["layers"] = layers
    return p


def _skip_row_permutation():
    """Map kernel lane order (layers in forward order, col=t*Cs+cs) to PyTorch
    skip-channel index (later layers prepended, channel=cs*Tout+t)."""
    pt_off, off = {}, 0
    for li in reversed(range(NUM_LAYERS)):          # later layers are prepended
        pt_off[li] = off
        off += SKIP_CH * TOUTS[li]
    perm = []
    for li in range(NUM_LAYERS):
        for t in range(TOUTS[li]):
            for cs in range(SKIP_CH):
                perm.append(pt_off[li] + cs * TOUTS[li] + t)
    return np.asarray(perm, dtype=np.int32)


def prepare_params(p):
    """One-off host-side packing for the fused kernel:
       * kron-expand every 1x1 / (1,2) conv weight to a block-diagonal matrix
         acting on the lane-dense (N, T*C) layout,
       * fold the x2 residual-doubling and eval-mode BatchNorm into wm / bm,
       * permute w_end1 rows from PyTorch skip-channel order to lane order."""
    T = RECEPTIVE_FIELD
    prep = {
        "p1": p["p1"], "pk": p["pk"], "p2": p["p2"], "p3t": p["p3"].T,
        "w_start_b": jnp.kron(jnp.eye(T, dtype=jnp.float32), p["w_start"]),
        "b_start_b": jnp.tile(p["b_start"], (1, T)),
        "w_end1": p["w_end1"][_skip_row_permutation(), :],
        "b_end1": p["b_end1"], "w_end2": p["w_end2"], "b_end2": p["b_end2"],
    }
    layers = []
    for li, tout in enumerate(TOUTS):
        lp = p["layers"][li]
        eye = jnp.eye(tout, dtype=jnp.float32)
        s2 = 2.0 * lp["bn_scale"]                    # x2 residual + BN scale fold
        layers.append(dict(
            wfg0=jnp.concatenate([jnp.kron(eye, lp["wf0"]), jnp.kron(eye, lp["wg0"])], axis=1),
            wfg1=jnp.concatenate([jnp.kron(eye, lp["wf1"]), jnp.kron(eye, lp["wg1"])], axis=1),
            bfg=jnp.concatenate([jnp.tile(lp["bf"], (1, tout)), jnp.tile(lp["bg"], (1, tout))], axis=1),
            wskip=jnp.kron(eye, lp["ws"]),
            bskip=jnp.tile(lp["bs"], (1, tout)),
            wm=jnp.concatenate([jnp.kron(eye, lp["w0"] * s2),
                                jnp.kron(eye, lp["w1"] * s2),
                                jnp.kron(eye, lp["w2"] * s2)], axis=0),
            bm=jnp.tile(lp["bm"] * s2 + lp["bn_shift"], (1, tout)),
        ))
    prep["layers"] = layers
    return prep


# ---------------------------------------------------------------------------
# pure-JAX reference (mirrors the PyTorch forward) for self-validation
# ---------------------------------------------------------------------------

def reference_forward(p, inputs, ind):
    B, _, N, T_in = inputs.shape
    x0 = inputs[:, 0]
    if T_in < RECEPTIVE_FIELD:
        x0 = jnp.pad(x0, ((0, 0), (0, 0), (RECEPTIVE_FIELD - T_in, 0)))
    Cs = SKIP_CH
    x = x0[..., None] * p["w_start"][0] + p["b_start"][0]            # (B, N, T, C)

    adp = jnp.einsum('bi,ijk->bjk', p["p1"][ind], p["pk"])
    adp = jnp.einsum('wj,bjk->bwk', p["p2"], adp)
    adp = jnp.einsum('vk,bwk->bwv', p["p3"], adp)
    adp = jax.nn.softmax(jax.nn.relu(adp), axis=2)                   # (B, N, N)

    skip_blocks = []
    for li, d in enumerate(DILATIONS):
        lp = p["layers"][li]
        tout = x.shape[2] - d
        xa, xb = x[:, :, :tout, :], x[:, :, d:, :]
        filt = jnp.tanh(xa @ lp["wf0"] + xb @ lp["wf1"] + lp["bf"][0])
        gate = jax.nn.sigmoid(xa @ lp["wg0"] + xb @ lp["wg1"] + lp["bg"][0])
        xg = filt * gate
        s = xg @ lp["ws"] + lp["bs"][0]                              # (B, N, tout, Cs)
        # PyTorch skip channel index = cs*tout + t, later layers prepended
        skip_blocks.insert(0, jnp.transpose(s, (0, 1, 3, 2)).reshape(B, N, Cs * tout))
        x1 = jnp.einsum('bwv,bvtc->bwtc', adp, xg)
        x2 = jnp.einsum('bwv,bvtc->bwtc', adp, x1)
        y = xg @ lp["w0"] + x1 @ lp["w1"] + x2 @ lp["w2"] + lp["bm"][0]
        y = 2.0 * y                                                  # residual doubling (as in ref code)
        x = y * lp["bn_scale"][0] + lp["bn_shift"][0]                # BatchNorm2d eval
    skip = jnp.concatenate(skip_blocks, axis=-1)                     # (B, N, 304) PyTorch order
    h = jax.nn.relu(skip)
    h = jax.nn.relu(h @ p["w_end1"] + p["b_end1"][0])
    out = h @ p["w_end2"] + p["b_end2"][0]
    return jnp.transpose(out, (0, 2, 1))[..., None]                  # (B, 12, N, 1)


# ---------------------------------------------------------------------------

if __name__ == "__main__":
    B, N, T_in = 2, 16, 12
    DIMS, DAYS = 16, 32
    IN_DIM = 1   # the reference forward only ever uses input channel 0

    key = jax.random.PRNGKey(0)
    kp, kx, ki = jax.random.split(key, 3)
    params = init_params(kp, num_nodes=N, dims=DIMS, days=DAYS)
    prep = prepare_params(params)
    inputs = jax.random.normal(kx, (B, IN_DIM, N, T_in), jnp.float32)   # (B, F, N, T)
    ind = jax.random.randint(ki, (B,), 0, DAYS)

    fwd = jax.jit(dmstgcn_forward)
    out = jax.block_until_ready(fwd(prep, inputs, ind))
    assert out.shape == (B, OUT_DIM, N, 1), out.shape
    assert bool(jnp.all(jnp.isfinite(out)))

    # self-check the fused/packed kernel against the plain-JAX replica
    ref = jax.block_until_ready(jax.jit(reference_forward)(params, inputs, ind))
    np.testing.assert_allclose(np.asarray(out), np.asarray(ref), rtol=3e-2, atol=1e-2)
    print("KERNEL_OK")
</pallas_src>

<mosaic_0001>
module attributes {stable_mosaic.version = 11 : i64} {
  func.func @fused_forward_kernel(%arg0: i32, %arg1: memref<1x16x13xf32, #tpu.memory_space<vmem>>, %arg2: memref<1x16x16xf32, #tpu.memory_space<vmem>>, %arg3: memref<16x16xf32, #tpu.memory_space<vmem>>, %arg4: memref<16x16xf32, #tpu.memory_space<vmem>>, %arg5: memref<13x208xf32, #tpu.memory_space<vmem>>, %arg6: memref<1x208xf32, #tpu.memory_space<vmem>>, %arg7: memref<192x384xf32, #tpu.memory_space<vmem>>, %arg8: memref<192x384xf32, #tpu.memory_space<vmem>>, %arg9: memref<1x384xf32, #tpu.memory_space<vmem>>, %arg10: memref<192x96xf32, #tpu.memory_space<vmem>>, %arg11: memref<1x96xf32, #tpu.memory_space<vmem>>, %arg12: memref<576x192xf32, #tpu.memory_space<vmem>>, %arg13: memref<1x192xf32, #tpu.memory_space<vmem>>, %arg14: memref<160x320xf32, #tpu.memory_space<vmem>>, %arg15: memref<160x320xf32, #tpu.memory_space<vmem>>, %arg16: memref<1x320xf32, #tpu.memory_space<vmem>>, %arg17: memref<160x80xf32, #tpu.memory_space<vmem>>, %arg18: memref<1x80xf32, #tpu.memory_space<vmem>>, %arg19: memref<480x160xf32, #tpu.memory_space<vmem>>, %arg20: memref<1x160xf32, #tpu.memory_space<vmem>>, %arg21: memref<144x288xf32, #tpu.memory_space<vmem>>, %arg22: memref<144x288xf32, #tpu.memory_space<vmem>>, %arg23: memref<1x288xf32, #tpu.memory_space<vmem>>, %arg24: memref<144x72xf32, #tpu.memory_space<vmem>>, %arg25: memref<1x72xf32, #tpu.memory_space<vmem>>, %arg26: memref<432x144xf32, #tpu.memory_space<vmem>>, %arg27: memref<1x144xf32, #tpu.memory_space<vmem>>, %arg28: memref<112x224xf32, #tpu.memory_space<vmem>>, %arg29: memref<112x224xf32, #tpu.memory_space<vmem>>, %arg30: memref<1x224xf32, #tpu.memory_space<vmem>>, %arg31: memref<112x56xf32, #tpu.memory_space<vmem>>, %arg32: memref<1x56xf32, #tpu.memory_space<vmem>>, %arg33: memref<336x112xf32, #tpu.memory_space<vmem>>, %arg34: memref<1x112xf32, #tpu.memory_space<vmem>>, %arg35: memref<304x304xf32, #tpu.memory_space<vmem>>, %arg36: memref<1x304xf32, #tpu.memory_space<vmem>>, %arg37: memref<304x12xf32, #tpu.memory_space<vmem>>, %arg38: memref<1x12xf32, #tpu.memory_space<vmem>>, %arg39: memref<1x16x12xf32, #tpu.memory_space<vmem>>, %arg40: memref<16x304xf32, #tpu.memory_space<vmem>>) attributes {dimension_semantics = [#tpu.dimension_semantics<parallel>], iteration_bounds = array<i64: 2>, scalar_prefetch = 0 : i64, scratch_operands = 1 : i64, tpu.core_type = #tpu.core_type<tc>, window_params = [{transform_indices = @transform_0, window_bounds = array<i64: 1, 16, 13>}, {transform_indices = @transform_1, window_bounds = array<i64: 1, 16, 16>}, {pipeline_mode = #tpu.pipeline_mode<synchronous>, transform_indices = @transform_2, window_bounds = array<i64: 16, 16>}, {pipeline_mode = #tpu.pipeline_mode<synchronous>, transform_indices = @transform_3, window_bounds = array<i64: 16, 16>}, {pipeline_mode = #tpu.pipeline_mode<synchronous>, transform_indices = @transform_4, window_bounds = array<i64: 13, 208>}, {pipeline_mode = #tpu.pipeline_mode<synchronous>, transform_indices = @transform_5, window_bounds = array<i64: 1, 208>}, {pipeline_mode = #tpu.pipeline_mode<synchronous>, transform_indices = @transform_6, window_bounds = array<i64: 192, 384>}, {pipeline_mode = #tpu.pipeline_mode<synchronous>, transform_indices = @transform_7, window_bounds = array<i64: 192, 384>}, {pipeline_mode = #tpu.pipeline_mode<synchronous>, transform_indices = @transform_8, window_bounds = array<i64: 1, 384>}, {pipeline_mode = #tpu.pipeline_mode<synchronous>, transform_indices = @transform_9, window_bounds = array<i64: 192, 96>}, {pipeline_mode = #tpu.pipeline_mode<synchronous>, transform_indices = @transform_10, window_bounds = array<i64: 1, 96>}, {pipeline_mode = #tpu.pipeline_mode<synchronous>, transform_indices = @transform_11, window_bounds = array<i64: 576, 192>}, {pipeline_mode = #tpu.pipeline_mode<synchronous>, transform_indices = @transform_12, window_bounds = array<i64: 1, 192>}, {pipeline_mode = #tpu.pipeline_mode<synchronous>, transform_indices = @transform_13, window_bounds = array<i64: 160, 320>}, {pipeline_mode = #tpu.pipeline_mode<synchronous>, transform_indices = @transform_14, window_bounds = array<i64: 160, 320>}, {pipeline_mode = #tpu.pipeline_mode<synchronous>, transform_indices = @transform_15, window_bounds = array<i64: 1, 320>}, {pipeline_mode = #tpu.pipeline_mode<synchronous>, transform_indices = @transform_16, window_bounds = array<i64: 160, 80>}, {pipeline_mode = #tpu.pipeline_mode<synchronous>, transform_indices = @transform_17, window_bounds = array<i64: 1, 80>}, {pipeline_mode = #tpu.pipeline_mode<synchronous>, transform_indices = @transform_18, window_bounds = array<i64: 480, 160>}, {pipeline_mode = #tpu.pipeline_mode<synchronous>, transform_indices = @transform_19, window_bounds = array<i64: 1, 160>}, {pipeline_mode = #tpu.pipeline_mode<synchronous>, transform_indices = @transform_20, window_bounds = array<i64: 144, 288>}, {pipeline_mode = #tpu.pipeline_mode<synchronous>, transform_indices = @transform_21, window_bounds = array<i64: 144, 288>}, {pipeline_mode = #tpu.pipeline_mode<synchronous>, transform_indices = @transform_22, window_bounds = array<i64: 1, 288>}, {pipeline_mode = #tpu.pipeline_mode<synchronous>, transform_indices = @transform_23, window_bounds = array<i64: 144, 72>}, {pipeline_mode = #tpu.pipeline_mode<synchronous>, transform_indices = @transform_24, window_bounds = array<i64: 1, 72>}, {pipeline_mode = #tpu.pipeline_mode<synchronous>, transform_indices = @transform_25, window_bounds = array<i64: 432, 144>}, {pipeline_mode = #tpu.pipeline_mode<synchronous>, transform_indices = @transform_26, window_bounds = array<i64: 1, 144>}, {pipeline_mode = #tpu.pipeline_mode<synchronous>, transform_indices = @transform_27, window_bounds = array<i64: 112, 224>}, {pipeline_mode = #tpu.pipeline_mode<synchronous>, transform_indices = @transform_28, window_bounds = array<i64: 112, 224>}, {pipeline_mode = #tpu.pipeline_mode<synchronous>, transform_indices = @transform_29, window_bounds = array<i64: 1, 224>}, {pipeline_mode = #tpu.pipeline_mode<synchronous>, transform_indices = @transform_30, window_bounds = array<i64: 112, 56>}, {pipeline_mode = #tpu.pipeline_mode<synchronous>, transform_indices = @transform_31, window_bounds = array<i64: 1, 56>}, {pipeline_mode = #tpu.pipeline_mode<synchronous>, transform_indices = @transform_32, window_bounds = array<i64: 336, 112>}, {pipeline_mode = #tpu.pipeline_mode<synchronous>, transform_indices = @transform_33, window_bounds = array<i64: 1, 112>}, {pipeline_mode = #tpu.pipeline_mode<synchronous>, transform_indices = @transform_34, window_bounds = array<i64: 304, 304>}, {pipeline_mode = #tpu.pipeline_mode<synchronous>, transform_indices = @transform_35, window_bounds = array<i64: 1, 304>}, {pipeline_mode = #tpu.pipeline_mode<synchronous>, transform_indices = @transform_36, window_bounds = array<i64: 304, 12>}, {pipeline_mode = #tpu.pipeline_mode<synchronous>, transform_indices = @transform_37, window_bounds = array<i64: 1, 12>}, {transform_indices = @transform_38, window_bounds = array<i64: 1, 16, 12>}]} {
    %c0 = arith.constant 0 : index
    %c0_0 = arith.constant 0 : index
    %0 = vector.load %arg3[%c0, %c0_0] : memref<16x16xf32, #tpu.memory_space<vmem>>, vector<16x16xf32>
    %c0_1 = arith.constant 0 : index
    %c0_2 = arith.constant 0 : index
    %c0_3 = arith.constant 0 : index
    %1 = vector.load %arg2[%c0_1, %c0_2, %c0_3] : memref<1x16x16xf32, #tpu.memory_space<vmem>>, vector<1x16x16xf32>
    %2 = vector.shape_cast %1 : vector<1x16x16xf32> to vector<16x16xf32>
    %cst = arith.constant dense<0.000000e+00> : vector<16x16xf32>
    %3 = tpu.matmul %0, %2, %cst {dimension_numbers = #tpu.dot_dimension_numbers<[1], [0], [0], [1], [0, 0, 1, 1], [], []>} : vector<16x16xf32>, vector<16x16xf32>, vector<16x16xf32> -> vector<16x16xf32>
    %c0_4 = arith.constant 0 : index
    %c0_5 = arith.constant 0 : index
    %4 = vector.load %arg4[%c0_4, %c0_5] : memref<16x16xf32, #tpu.memory_space<vmem>>, vector<16x16xf32>
    %cst_6 = arith.constant dense<0.000000e+00> : vector<16x16xf32>
    %5 = tpu.matmul %3, %4, %cst_6 {dimension_numbers = #tpu.dot_dimension_numbers<[1], [0], [0], [1], [0, 0, 1, 1], [], []>} : vector<16x16xf32>, vector<16x16xf32>, vector<16x16xf32> -> vector<16x16xf32>
    %cst_7 = arith.constant 0.000000e+00 : f32
    %6 = vector.broadcast %cst_7 : f32 to vector<16x16xf32>
    %7 = arith.maximumf %5, %6 : vector<16x16xf32>
    %cst_8 = arith.constant dense<0xFF800000> : vector<16xf32>
    %8 = vector.multi_reduction <maximumf>, %7, %cst_8 [1] : vector<16x16xf32> to vector<16xf32>
    %9 = vector.shape_cast %8 : vector<16xf32> to vector<16x1xf32>
    %10 = vector.broadcast %9 : vector<16x1xf32> to vector<16x16xf32>
    %11 = arith.subf %7, %10 : vector<16x16xf32>
    %12 = math.exp %11 : vector<16x16xf32>
    %cst_9 = arith.constant dense<0.000000e+00> : vector<16xf32>
    %13 = vector.multi_reduction <add>, %12, %cst_9 [1] : vector<16x16xf32> to vector<16xf32>
    %14 = vector.shape_cast %13 : vector<16xf32> to vector<16x1xf32>
    %15 = tpu.reciprocal %14 {approx = true} : vector<16x1xf32> -> vector<16x1xf32>
    %16 = vector.broadcast %15 : vector<16x1xf32> to vector<16x16xf32>
    %17 = arith.mulf %12, %16 : vector<16x16xf32>
    %c0_10 = arith.constant 0 : index
    %c0_11 = arith.constant 0 : index
    %c0_12 = arith.constant 0 : index
    %18 = vector.load %arg1[%c0_10, %c0_11, %c0_12] : memref<1x16x13xf32, #tpu.memory_space<vmem>>, vector<1x16x13xf32>
    %19 = vector.shape_cast %18 : vector<1x16x13xf32> to vector<16x13xf32>
    %c0_13 = arith.constant 0 : index
    %c0_14 = arith.constant 0 : index
    %20 = vector.load %arg5[%c0_13, %c0_14] : memref<13x208xf32, #tpu.memory_space<vmem>>, vector<13x208xf32>
    %cst_15 = arith.constant dense<0.000000e+00> : vector<16x208xf32>
    %21 = tpu.matmul %19, %20, %cst_15 {dimension_numbers = #tpu.dot_dimension_numbers<[1], [0], [0], [1], [0, 0, 1, 1], [], []>} : vector<16x13xf32>, vector<13x208xf32>, vector<16x208xf32> -> vector<16x208xf32>
    %c0_16 = arith.constant 0 : index
    %c0_17 = arith.constant 0 : index
    %22 = vector.load %arg6[%c0_16, %c0_17] : memref<1x208xf32, #tpu.memory_space<vmem>>, vector<1x208xf32>
    %23 = vector.broadcast %22 : vector<1x208xf32> to vector<16x208xf32>
    %24 = arith.addf %21, %23 : vector<16x208xf32>
    %25 = vector.extract_strided_slice %24 {offsets = [0, 0], sizes = [16, 192], strides = [1, 1]} : vector<16x208xf32> to vector<16x192xf32>
    %26 = vector.extract_strided_slice %24 {offsets = [0, 16], sizes = [16, 192], strides = [1, 1]} : vector<16x208xf32> to vector<16x192xf32>
    %c0_18 = arith.constant 0 : index
    %c0_19 = arith.constant 0 : index
    %27 = vector.load %arg7[%c0_18, %c0_19] : memref<192x384xf32, #tpu.memory_space<vmem>>, vector<192x384xf32>
    %cst_20 = arith.constant dense<0.000000e+00> : vector<16x384xf32>
    %28 = tpu.matmul %25, %27, %cst_20 {dimension_numbers = #tpu.dot_dimension_numbers<[1], [0], [0], [1], [0, 0, 1, 1], [], []>} : vector<16x192xf32>, vector<192x384xf32>, vector<16x384xf32> -> vector<16x384xf32>
    %c0_21 = arith.constant 0 : index
    %c0_22 = arith.constant 0 : index
    %29 = vector.load %arg8[%c0_21, %c0_22] : memref<192x384xf32, #tpu.memory_space<vmem>>, vector<192x384xf32>
    %cst_23 = arith.constant dense<0.000000e+00> : vector<16x384xf32>
    %30 = tpu.matmul %26, %29, %cst_23 {dimension_numbers = #tpu.dot_dimension_numbers<[1], [0], [0], [1], [0, 0, 1, 1], [], []>} : vector<16x192xf32>, vector<192x384xf32>, vector<16x384xf32> -> vector<16x384xf32>
    %31 = arith.addf %28, %30 : vector<16x384xf32>
    %c0_24 = arith.constant 0 : index
    %c0_25 = arith.constant 0 : index
    %32 = vector.load %arg9[%c0_24, %c0_25] : memref<1x384xf32, #tpu.memory_space<vmem>>, vector<1x384xf32>
    %33 = vector.broadcast %32 : vector<1x384xf32> to vector<16x384xf32>
    %34 = arith.addf %31, %33 : vector<16x384xf32>
    %35 = vector.extract_strided_slice %34 {offsets = [0, 0], sizes = [16, 192], strides = [1, 1]} : vector<16x384xf32> to vector<16x192xf32>
    %36 = math.tanh %35 : vector<16x192xf32>
    %37 = vector.extract_strided_slice %34 {offsets = [0, 192], sizes = [16, 192], strides = [1, 1]} : vector<16x384xf32> to vector<16x192xf32>
    %cst_26 = arith.constant 5.000000e-01 : f32
    %38 = vector.broadcast %cst_26 : f32 to vector<16x192xf32>
    %39 = arith.mulf %38, %37 : vector<16x192xf32>
    %40 = math.tanh %39 : vector<16x192xf32>
    %cst_27 = arith.constant 1.000000e+00 : f32
    %41 = vector.broadcast %cst_27 : f32 to vector<16x192xf32>
    %42 = arith.addf %40, %41 : vector<16x192xf32>
    %cst_28 = arith.constant 5.000000e-01 : f32
    %43 = vector.broadcast %cst_28 : f32 to vector<16x192xf32>
    %44 = arith.mulf %43, %42 : vector<16x192xf32>
    %45 = arith.mulf %36, %44 : vector<16x192xf32>
    %c0_29 = arith.constant 0 : index
    %c0_30 = arith.constant 0 : index
    %46 = vector.load %arg10[%c0_29, %c0_30] : memref<192x96xf32, #tpu.memory_space<vmem>>, vector<192x96xf32>
    %cst_31 = arith.constant dense<0.000000e+00> : vector<16x96xf32>
    %47 = tpu.matmul %45, %46, %cst_31 {dimension_numbers = #tpu.dot_dimension_numbers<[1], [0], [0], [1], [0, 0, 1, 1], [], []>} : vector<16x192xf32>, vector<192x96xf32>, vector<16x96xf32> -> vector<16x96xf32>
    %c0_32 = arith.constant 0 : index
    %c0_33 = arith.constant 0 : index
    %48 = vector.load %arg11[%c0_32, %c0_33] : memref<1x96xf32, #tpu.memory_space<vmem>>, vector<1x96xf32>
    %49 = vector.broadcast %48 : vector<1x96xf32> to vector<16x96xf32>
    %50 = arith.addf %47, %49 : vector<16x96xf32>
    %c0_34 = arith.constant 0 : index
    %c0_35 = arith.constant 0 : index
    %51 = vector.load %arg40[%c0_34, %c0_35] : memref<16x304xf32, #tpu.memory_space<vmem>>, vector<16x96xf32>
    tpu.vector_store %arg40[%c0_34, %c0_35], %50 {strides = array<i32>} : memref<16x304xf32, #tpu.memory_space<vmem>>, vector<16x96xf32>,
    %cst_36 = arith.constant dense<0.000000e+00> : vector<16x192xf32>
    %52 = tpu.matmul %17, %45, %cst_36 {dimension_numbers = #tpu.dot_dimension_numbers<[1], [0], [0], [1], [0, 0, 1, 1], [], []>} : vector<16x16xf32>, vector<16x192xf32>, vector<16x192xf32> -> vector<16x192xf32>
    %cst_37 = arith.constant dense<0.000000e+00> : vector<16x192xf32>
    %53 = tpu.matmul %17, %52, %cst_37 {dimension_numbers = #tpu.dot_dimension_numbers<[1], [0], [0], [1], [0, 0, 1, 1], [], []>} : vector<16x16xf32>, vector<16x192xf32>, vector<16x192xf32> -> vector<16x192xf32>
    %c0_38 = arith.constant 0 : index
    %c0_39 = arith.constant 0 : index
    %54 = vector.load %arg12[%c0_38, %c0_39] : memref<576x192xf32, #tpu.memory_space<vmem>>, vector<192x192xf32>
    %cst_40 = arith.constant dense<0.000000e+00> : vector<16x192xf32>
    %55 = tpu.matmul %45, %54, %cst_40 {dimension_numbers = #tpu.dot_dimension_numbers<[1], [0], [0], [1], [0, 0, 1, 1], [], []>} : vector<16x192xf32>, vector<192x192xf32>, vector<16x192xf32> -> vector<16x192xf32>
    %c192 = arith.constant 192 : index
    %c0_41 = arith.constant 0 : index
    %56 = vector.load %arg12[%c192, %c0_41] : memref<576x192xf32, #tpu.memory_space<vmem>>, vector<192x192xf32>
    %cst_42 = arith.constant dense<0.000000e+00> : vector<16x192xf32>
    %57 = tpu.matmul %52, %56, %cst_42 {dimension_numbers = #tpu.dot_dimension_numbers<[1], [0], [0], [1], [0, 0, 1, 1], [], []>} : vector<16x192xf32>, vector<192x192xf32>, vector<16x192xf32> -> vector<16x192xf32>
    %58 = arith.addf %55, %57 : vector<16x192xf32>
    %c384 = arith.constant 384 : index
    %c0_43 = arith.constant 0 : index
    %59 = vector.load %arg12[%c384, %c0_43] : memref<576x192xf32, #tpu.memory_space<vmem>>, vector<192x192xf32>
    %cst_44 = arith.constant dense<0.000000e+00> : vector<16x192xf32>
    %60 = tpu.matmul %53, %59, %cst_44 {dimension_numbers = #tpu.dot_dimension_numbers<[1], [0], [0], [1], [0, 0, 1, 1], [], []>} : vector<16x192xf32>, vector<192x192xf32>, vector<16x192xf32> -> vector<16x192xf32>
    %61 = arith.addf %58, %60 : vector<16x192xf32>
    %c0_45 = arith.constant 0 : index
    %c0_46 = arith.constant 0 : index
    %62 = vector.load %arg13[%c0_45, %c0_46] : memref<1x192xf32, #tpu.memory_space<vmem>>, vector<1x192xf32>
    %63 = vector.broadcast %62 : vector<1x192xf32> to vector<16x192xf32>
    %64 = arith.addf %61, %63 : vector<16x192xf32>
    %65 = vector.extract_strided_slice %64 {offsets = [0, 0], sizes = [16, 160], strides = [1, 1]} : vector<16x192xf32> to vector<16x160xf32>
    %66 = vector.extract_strided_slice %64 {offsets = [0, 32], sizes = [16, 160], strides = [1, 1]} : vector<16x192xf32> to vector<16x160xf32>
    %c0_47 = arith.constant 0 : index
    %c0_48 = arith.constant 0 : index
    %67 = vector.load %arg14[%c0_47, %c0_48] : memref<160x320xf32, #tpu.memory_space<vmem>>, vector<160x320xf32>
    %cst_49 = arith.constant dense<0.000000e+00> : vector<16x320xf32>
    %68 = tpu.matmul %65, %67, %cst_49 {dimension_numbers = #tpu.dot_dimension_numbers<[1], [0], [0], [1], [0, 0, 1, 1], [], []>} : vector<16x160xf32>, vector<160x320xf32>, vector<16x320xf32> -> vector<16x320xf32>
    %c0_50 = arith.constant 0 : index
    %c0_51 = arith.constant 0 : index
    %69 = vector.load %arg15[%c0_50, %c0_51] : memref<160x320xf32, #tpu.memory_space<vmem>>, vector<160x320xf32>
    %cst_52 = arith.constant dense<0.000000e+00> : vector<16x320xf32>
    %70 = tpu.matmul %66, %69, %cst_52 {dimension_numbers = #tpu.dot_dimension_numbers<[1], [0], [0], [1], [0, 0, 1, 1], [], []>} : vector<16x160xf32>, vector<160x320xf32>, vector<16x320xf32> -> vector<16x320xf32>
    %71 = arith.addf %68, %70 : vector<16x320xf32>
    %c0_53 = arith.constant 0 : index
    %c0_54 = arith.constant 0 : index
    %72 = vector.load %arg16[%c0_53, %c0_54] : memref<1x320xf32, #tpu.memory_space<vmem>>, vector<1x320xf32>
    %73 = vector.broadcast %72 : vector<1x320xf32> to vector<16x320xf32>
    %74 = arith.addf %71, %73 : vector<16x320xf32>
    %75 = vector.extract_strided_slice %74 {offsets = [0, 0], sizes = [16, 160], strides = [1, 1]} : vector<16x320xf32> to vector<16x160xf32>
    %76 = math.tanh %75 : vector<16x160xf32>
    %77 = vector.extract_strided_slice %74 {offsets = [0, 160], sizes = [16, 160], strides = [1, 1]} : vector<16x320xf32> to vector<16x160xf32>
    %cst_55 = arith.constant 5.000000e-01 : f32
    %78 = vector.broadcast %cst_55 : f32 to vector<16x160xf32>
    %79 = arith.mulf %78, %77 : vector<16x160xf32>
    %80 = math.tanh %79 : vector<16x160xf32>
    %cst_56 = arith.constant 1.000000e+00 : f32
    %81 = vector.broadcast %cst_56 : f32 to vector<16x160xf32>
    %82 = arith.addf %80, %81 : vector<16x160xf32>
    %cst_57 = arith.constant 5.000000e-01 : f32
    %83 = vector.broadcast %cst_57 : f32 to vector<16x160xf32>
    %84 = arith.mulf %83, %82 : vector<16x160xf32>
    %85 = arith.mulf %76, %84 : vector<16x160xf32>
    %c0_58 = arith.constant 0 : index
    %c0_59 = arith.constant 0 : index
    %86 = vector.load %arg17[%c0_58, %c0_59] : memref<160x80xf32, #tpu.memory_space<vmem>>, vector<160x80xf32>
    %cst_60 = arith.constant dense<0.000000e+00> : vector<16x80xf32>
    %87 = tpu.matmul %85, %86, %cst_60 {dimension_numbers = #tpu.dot_dimension_numbers<[1], [0], [0], [1], [0, 0, 1, 1], [], []>} : vector<16x160xf32>, vector<160x80xf32>, vector<16x80xf32> -> vector<16x80xf32>
    %c0_61 = arith.constant 0 : index
    %c0_62 = arith.constant 0 : index
    %88 = vector.load %arg18[%c0_61, %c0_62] : memref<1x80xf32, #tpu.memory_space<vmem>>, vector<1x80xf32>
    %89 = vector.broadcast %88 : vector<1x80xf32> to vector<16x80xf32>
    %90 = arith.addf %87, %89 : vector<16x80xf32>
    %c0_63 = arith.constant 0 : index
    %c96 = arith.constant 96 : index
    %91 = vector.load %arg40[%c0_63, %c96] : memref<16x304xf32, #tpu.memory_space<vmem>>, vector<16x80xf32>
    tpu.vector_store %arg40[%c0_63, %c96], %90 {strides = array<i32>} : memref<16x304xf32, #tpu.memory_space<vmem>>, vector<16x80xf32>,
    %cst_64 = arith.constant dense<0.000000e+00> : vector<16x160xf32>
    %92 = tpu.matmul %17, %85, %cst_64 {dimension_numbers = #tpu.dot_dimension_numbers<[1], [0], [0], [1], [0, 0, 1, 1], [], []>} : vector<16x16xf32>, vector<16x160xf32>, vector<16x160xf32> -> vector<16x160xf32>
    %cst_65 = arith.constant dense<0.000000e+00> : vector<16x160xf32>
    %93 = tpu.matmul %17, %92, %cst_65 {dimension_numbers = #tpu.dot_dimension_numbers<[1], [0], [0], [1], [0, 0, 1, 1], [], []>} : vector<16x16xf32>, vector<16x160xf32>, vector<16x160xf32> -> vector<16x160xf32>
    %c0_66 = arith.constant 0 : index
    %c0_67 = arith.constant 0 : index
    %94 = vector.load %arg19[%c0_66, %c0_67] : memref<480x160xf32, #tpu.memory_space<vmem>>, vector<160x160xf32>
    %cst_68 = arith.constant dense<0.000000e+00> : vector<16x160xf32>
    %95 = tpu.matmul %85, %94, %cst_68 {dimension_numbers = #tpu.dot_dimension_numbers<[1], [0], [0], [1], [0, 0, 1, 1], [], []>} : vector<16x160xf32>, vector<160x160xf32>, vector<16x160xf32> -> vector<16x160xf32>
    %c160 = arith.constant 160 : index
    %c0_69 = arith.constant 0 : index
    %96 = vector.load %arg19[%c160, %c0_69] : memref<480x160xf32, #tpu.memory_space<vmem>>, vector<160x160xf32>
    %cst_70 = arith.constant dense<0.000000e+00> : vector<16x160xf32>
    %97 = tpu.matmul %92, %96, %cst_70 {dimension_numbers = #tpu.dot_dimension_numbers<[1], [0], [0], [1], [0, 0, 1, 1], [], []>} : vector<16x160xf32>, vector<160x160xf32>, vector<16x160xf32> -> vector<16x160xf32>
    %98 = arith.addf %95, %97 : vector<16x160xf32>
    %c320 = arith.constant 320 : index
    %c0_71 = arith.constant 0 : index
    %99 = vector.load %arg19[%c320, %c0_71] : memref<480x160xf32, #tpu.memory_space<vmem>>, vector<160x160xf32>
    %cst_72 = arith.constant dense<0.000000e+00> : vector<16x160xf32>
    %100 = tpu.matmul %93, %99, %cst_72 {dimension_numbers = #tpu.dot_dimension_numbers<[1], [0], [0], [1], [0, 0, 1, 1], [], []>} : vector<16x160xf32>, vector<160x160xf32>, vector<16x160xf32> -> vector<16x160xf32>
    %101 = arith.addf %98, %100 : vector<16x160xf32>
    %c0_73 = arith.constant 0 : index
    %c0_74 = arith.constant 0 : index
    %102 = vector.load %arg20[%c0_73, %c0_74] : memref<1x160xf32, #tpu.memory_space<vmem>>, vector<1x160xf32>
    %103 = vector.broadcast %102 : vector<1x160xf32> to vector<16x160xf32>
    %104 = arith.addf %101, %103 : vector<16x160xf32>
    %105 = vector.extract_strided_slice %104 {offsets = [0, 0], sizes = [16, 144], strides = [1, 1]} : vector<16x160xf32> to vector<16x144xf32>
    %106 = vector.extract_strided_slice %104 {offsets = [0, 16], sizes = [16, 144], strides = [1, 1]} : vector<16x160xf32> to vector<16x144xf32>
    %c0_75 = arith.constant 0 : index
    %c0_76 = arith.constant 0 : index
    %107 = vector.load %arg21[%c0_75, %c0_76] : memref<144x288xf32, #tpu.memory_space<vmem>>, vector<144x288xf32>
    %cst_77 = arith.constant dense<0.000000e+00> : vector<16x288xf32>
    %108 = tpu.matmul %105, %107, %cst_77 {dimension_numbers = #tpu.dot_dimension_numbers<[1], [0], [0], [1], [0, 0, 1, 1], [], []>} : vector<16x144xf32>, vector<144x288xf32>, vector<16x288xf32> -> vector<16x288xf32>
    %c0_78 = arith.constant 0 : index
    %c0_79 = arith.constant 0 : index
    %109 = vector.load %arg22[%c0_78, %c0_79] : memref<144x288xf32, #tpu.memory_space<vmem>>, vector<144x288xf32>
    %cst_80 = arith.constant dense<0.000000e+00> : vector<16x288xf32>
    %110 = tpu.matmul %106, %109, %cst_80 {dimension_numbers = #tpu.dot_dimension_numbers<[1], [0], [0], [1], [0, 0, 1, 1], [], []>} : vector<16x144xf32>, vector<144x288xf32>, vector<16x288xf32> -> vector<16x288xf32>
    %111 = arith.addf %108, %110 : vector<16x288xf32>
    %c0_81 = arith.constant 0 : index
    %c0_82 = arith.constant 0 : index
    %112 = vector.load %arg23[%c0_81, %c0_82] : memref<1x288xf32, #tpu.memory_space<vmem>>, vector<1x288xf32>
    %113 = vector.broadcast %112 : vector<1x288xf32> to vector<16x288xf32>
    %114 = arith.addf %111, %113 : vector<16x288xf32>
    %115 = vector.extract_strided_slice %114 {offsets = [0, 0], sizes = [16, 144], strides = [1, 1]} : vector<16x288xf32> to vector<16x144xf32>
    %116 = math.tanh %115 : vector<16x144xf32>
    %117 = vector.extract_strided_slice %114 {offsets = [0, 144], sizes = [16, 144], strides = [1, 1]} : vector<16x288xf32> to vector<16x144xf32>
    %cst_83 = arith.constant 5.000000e-01 : f32
    %118 = vector.broadcast %cst_83 : f32 to vector<16x144xf32>
    %119 = arith.mulf %118, %117 : vector<16x144xf32>
    %120 = math.tanh %119 : vector<16x144xf32>
    %cst_84 = arith.constant 1.000000e+00 : f32
    %121 = vector.broadcast %cst_84 : f32 to vector<16x144xf32>
    %122 = arith.addf %120, %121 : vector<16x144xf32>
    %cst_85 = arith.constant 5.000000e-01 : f32
    %123 = vector.broadcast %cst_85 : f32 to vector<16x144xf32>
    %124 = arith.mulf %123, %122 : vector<16x144xf32>
    %125 = arith.mulf %116, %124 : vector<16x144xf32>
    %c0_86 = arith.constant 0 : index
    %c0_87 = arith.constant 0 : index
    %126 = vector.load %arg24[%c0_86, %c0_87] : memref<144x72xf32, #tpu.memory_space<vmem>>, vector<144x72xf32>
    %cst_88 = arith.constant dense<0.000000e+00> : vector<16x72xf32>
    %127 = tpu.matmul %125, %126, %cst_88 {dimension_numbers = #tpu.dot_dimension_numbers<[1], [0], [0], [1], [0, 0, 1, 1], [], []>} : vector<16x144xf32>, vector<144x72xf32>, vector<16x72xf32> -> vector<16x72xf32>
    %c0_89 = arith.constant 0 : index
    %c0_90 = arith.constant 0 : index
    %128 = vector.load %arg25[%c0_89, %c0_90] : memref<1x72xf32, #tpu.memory_space<vmem>>, vector<1x72xf32>
    %129 = vector.broadcast %128 : vector<1x72xf32> to vector<16x72xf32>
    %130 = arith.addf %127, %129 : vector<16x72xf32>
    %c0_91 = arith.constant 0 : index
    %c176 = arith.constant 176 : index
    %131 = vector.load %arg40[%c0_91, %c176] : memref<16x304xf32, #tpu.memory_space<vmem>>, vector<16x72xf32>
    tpu.vector_store %arg40[%c0_91, %c176], %130 {strides = array<i32>} : memref<16x304xf32, #tpu.memory_space<vmem>>, vector<16x72xf32>,
    %cst_92 = arith.constant dense<0.000000e+00> : vector<16x144xf32>
    %132 = tpu.matmul %17, %125, %cst_92 {dimension_numbers = #tpu.dot_dimension_numbers<[1], [0], [0], [1], [0, 0, 1, 1], [], []>} : vector<16x16xf32>, vector<16x144xf32>, vector<16x144xf32> -> vector<16x144xf32>
    %cst_93 = arith.constant dense<0.000000e+00> : vector<16x144xf32>
    %133 = tpu.matmul %17, %132, %cst_93 {dimension_numbers = #tpu.dot_dimension_numbers<[1], [0], [0], [1], [0, 0, 1, 1], [], []>} : vector<16x16xf32>, vector<16x144xf32>, vector<16x144xf32> -> vector<16x144xf32>
    %c0_94 = arith.constant 0 : index
    %c0_95 = arith.constant 0 : index
    %134 = vector.load %arg26[%c0_94, %c0_95] : memref<432x144xf32, #tpu.memory_space<vmem>>, vector<144x144xf32>
    %cst_96 = arith.constant dense<0.000000e+00> : vector<16x144xf32>
    %135 = tpu.matmul %125, %134, %cst_96 {dimension_numbers = #tpu.dot_dimension_numbers<[1], [0], [0], [1], [0, 0, 1, 1], [], []>} : vector<16x144xf32>, vector<144x144xf32>, vector<16x144xf32> -> vector<16x144xf32>
    %c144 = arith.constant 144 : index
    %c0_97 = arith.constant 0 : index
    %136 = vector.load %arg26[%c144, %c0_97] : memref<432x144xf32, #tpu.memory_space<vmem>>, vector<144x144xf32>
    %cst_98 = arith.constant dense<0.000000e+00> : vector<16x144xf32>
    %137 = tpu.matmul %132, %136, %cst_98 {dimension_numbers = #tpu.dot_dimension_numbers<[1], [0], [0], [1], [0, 0, 1, 1], [], []>} : vector<16x144xf32>, vector<144x144xf32>, vector<16x144xf32> -> vector<16x144xf32>
    %138 = arith.addf %135, %137 : vector<16x144xf32>
    %c288 = arith.constant 288 : index
    %c0_99 = arith.constant 0 : index
    %139 = vector.load %arg26[%c288, %c0_99] : memref<432x144xf32, #tpu.memory_space<vmem>>, vector<144x144xf32>
    %cst_100 = arith.constant dense<0.000000e+00> : vector<16x144xf32>
    %140 = tpu.matmul %133, %139, %cst_100 {dimension_numbers = #tpu.dot_dimension_numbers<[1], [0], [0], [1], [0, 0, 1, 1], [], []>} : vector<16x144xf32>, vector<144x144xf32>, vector<16x144xf32> -> vector<16x144xf32>
    %141 = arith.addf %138, %140 : vector<16x144xf32>
    %c0_101 = arith.constant 0 : index
    %c0_102 = arith.constant 0 : index
    %142 = vector.load %arg27[%c0_101, %c0_102] : memref<1x144xf32, #tpu.memory_space<vmem>>, vector<1x144xf32>
    %143 = vector.broadcast %142 : vector<1x144xf32> to vector<16x144xf32>
    %144 = arith.addf %141, %143 : vector<16x144xf32>
    %145 = vector.extract_strided_slice %144 {offsets = [0, 0], sizes = [16, 112], strides = [1, 1]} : vector<16x144xf32> to vector<16x112xf32>
    %146 = vector.extract_strided_slice %144 {offsets = [0, 32], sizes = [16, 112], strides = [1, 1]} : vector<16x144xf32> to vector<16x112xf32>
    %c0_103 = arith.constant 0 : index
    %c0_104 = arith.constant 0 : index
    %147 = vector.load %arg28[%c0_103, %c0_104] : memref<112x224xf32, #tpu.memory_space<vmem>>, vector<112x224xf32>
    %cst_105 = arith.constant dense<0.000000e+00> : vector<16x224xf32>
    %148 = tpu.matmul %145, %147, %cst_105 {dimension_numbers = #tpu.dot_dimension_numbers<[1], [0], [0], [1], [0, 0, 1, 1], [], []>} : vector<16x112xf32>, vector<112x224xf32>, vector<16x224xf32> -> vector<16x224xf32>
    %c0_106 = arith.constant 0 : index
    %c0_107 = arith.constant 0 : index
    %149 = vector.load %arg29[%c0_106, %c0_107] : memref<112x224xf32, #tpu.memory_space<vmem>>, vector<112x224xf32>
    %cst_108 = arith.constant dense<0.000000e+00> : vector<16x224xf32>
    %150 = tpu.matmul %146, %149, %cst_108 {dimension_numbers = #tpu.dot_dimension_numbers<[1], [0], [0], [1], [0, 0, 1, 1], [], []>} : vector<16x112xf32>, vector<112x224xf32>, vector<16x224xf32> -> vector<16x224xf32>
    %151 = arith.addf %148, %150 : vector<16x224xf32>
    %c0_109 = arith.constant 0 : index
    %c0_110 = arith.constant 0 : index
    %152 = vector.load %arg30[%c0_109, %c0_110] : memref<1x224xf32, #tpu.memory_space<vmem>>, vector<1x224xf32>
    %153 = vector.broadcast %152 : vector<1x224xf32> to vector<16x224xf32>
    %154 = arith.addf %151, %153 : vector<16x224xf32>
    %155 = vector.extract_strided_slice %154 {offsets = [0, 0], sizes = [16, 112], strides = [1, 1]} : vector<16x224xf32> to vector<16x112xf32>
    %156 = math.tanh %155 : vector<16x112xf32>
    %157 = vector.extract_strided_slice %154 {offsets = [0, 112], sizes = [16, 112], strides = [1, 1]} : vector<16x224xf32> to vector<16x112xf32>
    %cst_111 = arith.constant 5.000000e-01 : f32
    %158 = vector.broadcast %cst_111 : f32 to vector<16x112xf32>
    %159 = arith.mulf %158, %157 : vector<16x112xf32>
    %160 = math.tanh %159 : vector<16x112xf32>
    %cst_112 = arith.constant 1.000000e+00 : f32
    %161 = vector.broadcast %cst_112 : f32 to vector<16x112xf32>
    %162 = arith.addf %160, %161 : vector<16x112xf32>
    %cst_113 = arith.constant 5.000000e-01 : f32
    %163 = vector.broadcast %cst_113 : f32 to vector<16x112xf32>
    %164 = arith.mulf %163, %162 : vector<16x112xf32>
    %165 = arith.mulf %156, %164 : vector<16x112xf32>
    %c0_114 = arith.constant 0 : index
    %c0_115 = arith.constant 0 : index
    %166 = vector.load %arg31[%c0_114, %c0_115] : memref<112x56xf32, #tpu.memory_space<vmem>>, vector<112x56xf32>
    %cst_116 = arith.constant dense<0.000000e+00> : vector<16x56xf32>
    %167 = tpu.matmul %165, %166, %cst_116 {dimension_numbers = #tpu.dot_dimension_numbers<[1], [0], [0], [1], [0, 0, 1, 1], [], []>} : vector<16x112xf32>, vector<112x56xf32>, vector<16x56xf32> -> vector<16x56xf32>
    %c0_117 = arith.constant 0 : index
    %c0_118 = arith.constant 0 : index
    %168 = vector.load %arg32[%c0_117, %c0_118] : memref<1x56xf32, #tpu.memory_space<vmem>>, vector<1x56xf32>
    %169 = vector.broadcast %168 : vector<1x56xf32> to vector<16x56xf32>
    %170 = arith.addf %167, %169 : vector<16x56xf32>
    %c0_119 = arith.constant 0 : index
    %c248 = arith.constant 248 : index
    %171 = vector.load %arg40[%c0_119, %c248] : memref<16x304xf32, #tpu.memory_space<vmem>>, vector<16x56xf32>
    tpu.vector_store %arg40[%c0_119, %c248], %170 {strides = array<i32>} : memref<16x304xf32, #tpu.memory_space<vmem>>, vector<16x56xf32>,
    %c0_120 = arith.constant 0 : index
    %c0_121 = arith.constant 0 : index
    %172 = vector.load %arg40[%c0_120, %c0_121] : memref<16x304xf32, #tpu.memory_space<vmem>>, vector<16x304xf32>
    %cst_122 = arith.constant 0.000000e+00 : f32
    %173 = vector.broadcast %cst_122 : f32 to vector<16x304xf32>
    %174 = arith.maximumf %172, %173 : vector<16x304xf32>
    %c0_123 = arith.constant 0 : index
    %c0_124 = arith.constant 0 : index
    %175 = vector.load %arg35[%c0_123, %c0_124] : memref<304x304xf32, #tpu.memory_space<vmem>>, vector<304x304xf32>
    %cst_125 = arith.constant dense<0.000000e+00> : vector<16x304xf32>
    %176 = tpu.matmul %174, %175, %cst_125 {dimension_numbers = #tpu.dot_dimension_numbers<[1], [0], [0], [1], [0, 0, 1, 1], [], []>} : vector<16x304xf32>, vector<304x304xf32>, vector<16x304xf32> -> vector<16x304xf32>
    %c0_126 = arith.constant 0 : index
    %c0_127 = arith.constant 0 : index
    %177 = vector.load %arg36[%c0_126, %c0_127] : memref<1x304xf32, #tpu.memory_space<vmem>>, vector<1x304xf32>
    %178 = vector.broadcast %177 : vector<1x304xf32> to vector<16x304xf32>
    %179 = arith.addf %176, %178 : vector<16x304xf32>
    %cst_128 = arith.constant 0.000000e+00 : f32
    %180 = vector.broadcast %cst_128 : f32 to vector<16x304xf32>
    %181 = arith.maximumf %179, %180 : vector<16x304xf32>
    %c0_129 = arith.constant 0 : index
    %c0_130 = arith.constant 0 : index
    %182 = vector.load %arg37[%c0_129, %c0_130] : memref<304x12xf32, #tpu.memory_space<vmem>>, vector<304x12xf32>
    %cst_131 = arith.constant dense<0.000000e+00> : vector<16x12xf32>
    %183 = tpu.matmul %181, %182, %cst_131 {dimension_numbers = #tpu.dot_dimension_numbers<[1], [0], [0], [1], [0, 0, 1, 1], [], []>} : vector<16x304xf32>, vector<304x12xf32>, vector<16x12xf32> -> vector<16x12xf32>
    %c0_132 = arith.constant 0 : index
    %c0_133 = arith.constant 0 : index
    %184 = vector.load %arg38[%c0_132, %c0_133] : memref<1x12xf32, #tpu.memory_space<vmem>>, vector<1x12xf32>
    %185 = vector.broadcast %184 : vector<1x12xf32> to vector<16x12xf32>
    %186 = arith.addf %183, %185 : vector<16x12xf32>
    %c0_134 = arith.constant 0 : index
    %c0_135 = arith.constant 0 : index
    %c0_136 = arith.constant 0 : index
    %187 = vector.load %arg39[%c0_134, %c0_135, %c0_136] : memref<1x16x12xf32, #tpu.memory_space<vmem>>, vector<1x16x12xf32>
    %188 = vector.shape_cast %187 : vector<1x16x12xf32> to vector<16x12xf32>
    %189 = vector.shape_cast %186 : vector<16x12xf32> to vector<1x16x12xf32>
    tpu.vector_store %arg39[%c0_134, %c0_135, %c0_136], %189 {strides = array<i32>} : memref<1x16x12xf32, #tpu.memory_space<vmem>>, vector<1x16x12xf32>,
    return
  }
  func.func @transform_0(%arg0: i32) -> (i32, i32, i32) {
    %c0_i32 = arith.constant 0 : i32
    %c0_i32_0 = arith.constant 0 : i32
    %c0_i32_1 = arith.constant 0 : i32
    return %arg0, %c0_i32, %c0_i32_0 : i32, i32, i32
  }
  func.func @transform_1(%arg0: i32) -> (i32, i32, i32) {
    %c0_i32 = arith.constant 0 : i32
    %c0_i32_0 = arith.constant 0 : i32
    %c0_i32_1 = arith.constant 0 : i32
    return %arg0, %c0_i32, %c0_i32_0 : i32, i32, i32
  }
  func.func @transform_2(%arg0: i32) -> (i32, i32) {
    %c0_i32 = arith.constant 0 : i32
    %c0_i32_0 = arith.constant 0 : i32
    %c0_i32_1 = arith.constant 0 : i32
    return %c0_i32, %c0_i32_0 : i32, i32
  }
  func.func @transform_3(%arg0: i32) -> (i32, i32) {
    %c0_i32 = arith.constant 0 : i32
    %c0_i32_0 = arith.constant 0 : i32
    %c0_i32_1 = arith.constant 0 : i32
    return %c0_i32, %c0_i32_0 : i32, i32
  }
  func.func @transform_4(%arg0: i32) -> (i32, i32) {
    %c0_i32 = arith.constant 0 : i32
    %c0_i32_0 = arith.constant 0 : i32
    %c0_i32_1 = arith.constant 0 : i32
    return %c0_i32, %c0_i32_0 : i32, i32
  }
  func.func @transform_5(%arg0: i32) -> (i32, i32) {
    %c0_i32 = arith.constant 0 : i32
    %c0_i32_0 = arith.constant 0 : i32
    %c0_i32_1 = arith.constant 0 : i32
    return %c0_i32, %c0_i32_0 : i32, i32
  }
  func.func @transform_6(%arg0: i32) -> (i32, i32) {
    %c0_i32 = arith.constant 0 : i32
    %c0_i32_0 = arith.constant 0 : i32
    %c0_i32_1 = arith.constant 0 : i32
    return %c0_i32, %c0_i32_0 : i32, i32
  }
  func.func @transform_7(%arg0: i32) -> (i32, i32) {
    %c0_i32 = arith.constant 0 : i32
    %c0_i32_0 = arith.constant 0 : i32
    %c0_i32_1 = arith.constant 0 : i32
    return %c0_i32, %c0_i32_0 : i32, i32
  }
  func.func @transform_8(%arg0: i32) -> (i32, i32) {
    %c0_i32 = arith.constant 0 : i32
    %c0_i32_0 = arith.constant 0 : i32
    %c0_i32_1 = arith.constant 0 : i32
    return %c0_i32, %c0_i32_0 : i32, i32
  }
  func.func @transform_9(%arg0: i32) -> (i32, i32) {
    %c0_i32 = arith.constant 0 : i32
    %c0_i32_0 = arith.constant 0 : i32
    %c0_i32_1 = arith.constant 0 : i32
    return %c0_i32, %c0_i32_0 : i32, i32
  }
  func.func @transform_10(%arg0: i32) -> (i32, i32) {
    %c0_i32 = arith.constant 0 : i32
    %c0_i32_0 = arith.constant 0 : i32
    %c0_i32_1 = arith.constant 0 : i32
    return %c0_i32, %c0_i32_0 : i32, i32
  }
  func.func @transform_11(%arg0: i32) -> (i32, i32) {
    %c0_i32 = arith.constant 0 : i32
    %c0_i32_0 = arith.constant 0 : i32
    %c0_i32_1 = arith.constant 0 : i32
    return %c0_i32, %c0_i32_0 : i32, i32
  }
  func.func @transform_12(%arg0: i32) -> (i32, i32) {
    %c0_i32 = arith.constant 0 : i32
    %c0_i32_0 = arith.constant 0 : i32
    %c0_i32_1 = arith.constant 0 : i32
    return %c0_i32, %c0_i32_0 : i32, i32
  }
  func.func @transform_13(%arg0: i32) -> (i32, i32) {
    %c0_i32 = arith.constant 0 : i32
    %c0_i32_0 = arith.constant 0 : i32
    %c0_i32_1 = arith.constant 0 : i32
    return %c0_i32, %c0_i32_0 : i32, i32
  }
  func.func @transform_14(%arg0: i32) -> (i32, i32) {
    %c0_i32 = arith.constant 0 : i32
    %c0_i32_0 = arith.constant 0 : i32
    %c0_i32_1 = arith.constant 0 : i32
    return %c0_i32, %c0_i32_0 : i32, i32
  }
  func.func @transform_15(%arg0: i32) -> (i32, i32) {
    %c0_i32 = arith.constant 0 : i32
    %c0_i32_0 = arith.constant 0 : i32
    %c0_i32_1 = arith.constant 0 : i32
    return %c0_i32, %c0_i32_0 : i32, i32
  }
  func.func @transform_16(%arg0: i32) -> (i32, i32) {
    %c0_i32 = arith.constant 0 : i32
    %c0_i32_0 = arith.constant 0 : i32
    %c0_i32_1 = arith.constant 0 : i32
    return %c0_i32, %c0_i32_0 : i32, i32
  }
  func.func @transform_17(%arg0: i32) -> (i32, i32) {
    %c0_i32 = arith.constant 0 : i32
    %c0_i32_0 = arith.constant 0 : i32
    %c0_i32_1 = arith.constant 0 : i32
    return %c0_i32, %c0_i32_0 : i32, i32
  }
  func.func @transform_18(%arg0: i32) -> (i32, i32) {
    %c0_i32 = arith.constant 0 : i32
    %c0_i32_0 = arith.constant 0 : i32
    %c0_i32_1 = arith.constant 0 : i32
    return %c0_i32, %c0_i32_0 : i32, i32
  }
  func.func @transform_19(%arg0: i32) -> (i32, i32) {
    %c0_i32 = arith.constant 0 : i32
    %c0_i32_0 = arith.constant 0 : i32
    %c0_i32_1 = arith.constant 0 : i32
    return %c0_i32, %c0_i32_0 : i32, i32
  }
  func.func @transform_20(%arg0: i32) -> (i32, i32) {
    %c0_i32 = arith.constant 0 : i32
    %c0_i32_0 = arith.constant 0 : i32
    %c0_i32_1 = arith.constant 0 : i32
    return %c0_i32, %c0_i32_0 : i32, i32
  }
  func.func @transform_21(%arg0: i32) -> (i32, i32) {
    %c0_i32 = arith.constant 0 : i32
    %c0_i32_0 = arith.constant 0 : i32
    %c0_i32_1 = arith.constant 0 : i32
    return %c0_i32, %c0_i32_0 : i32, i32
  }
  func.func @transform_22(%arg0: i32) -> (i32, i32) {
    %c0_i32 = arith.constant 0 : i32
    %c0_i32_0 = arith.constant 0 : i32
    %c0_i32_1 = arith.constant 0 : i32
    return %c0_i32, %c0_i32_0 : i32, i32
  }
  func.func @transform_23(%arg0: i32) -> (i32, i32) {
    %c0_i32 = arith.constant 0 : i32
    %c0_i32_0 = arith.constant 0 : i32
    %c0_i32_1 = arith.constant 0 : i32
    return %c0_i32, %c0_i32_0 : i32, i32
  }
  func.func @transform_24(%arg0: i32) -> (i32, i32) {
    %c0_i32 = arith.constant 0 : i32
    %c0_i32_0 = arith.constant 0 : i32
    %c0_i32_1 = arith.constant 0 : i32
    return %c0_i32, %c0_i32_0 : i32, i32
  }
  func.func @transform_25(%arg0: i32) -> (i32, i32) {
    %c0_i32 = arith.constant 0 : i32
    %c0_i32_0 = arith.constant 0 : i32
    %c0_i32_1 = arith.constant 0 : i32
    return %c0_i32, %c0_i32_0 : i32, i32
  }
  func.func @transform_26(%arg0: i32) -> (i32, i32) {
    %c0_i32 = arith.constant 0 : i32
    %c0_i32_0 = arith.constant 0 : i32
    %c0_i32_1 = arith.constant 0 : i32
    return %c0_i32, %c0_i32_0 : i32, i32
  }
  func.func @transform_27(%arg0: i32) -> (i32, i32) {
    %c0_i32 = arith.constant 0 : i32
    %c0_i32_0 = arith.constant 0 : i32
    %c0_i32_1 = arith.constant 0 : i32
    return %c0_i32, %c0_i32_0 : i32, i32
  }
  func.func @transform_28(%arg0: i32) -> (i32, i32) {
    %c0_i32 = arith.constant 0 : i32
    %c0_i32_0 = arith.constant 0 : i32
    %c0_i32_1 = arith.constant 0 : i32
    return %c0_i32, %c0_i32_0 : i32, i32
  }
  func.func @transform_29(%arg0: i32) -> (i32, i32) {
    %c0_i32 = arith.constant 0 : i32
    %c0_i32_0 = arith.constant 0 : i32
    %c0_i32_1 = arith.constant 0 : i32
    return %c0_i32, %c0_i32_0 : i32, i32
  }
  func.func @transform_30(%arg0: i32) -> (i32, i32) {
    %c0_i32 = arith.constant 0 : i32
    %c0_i32_0 = arith.constant 0 : i32
    %c0_i32_1 = arith.constant 0 : i32
    return %c0_i32, %c0_i32_0 : i32, i32
  }
  func.func @transform_31(%arg0: i32) -> (i32, i32) {
    %c0_i32 = arith.constant 0 : i32
    %c0_i32_0 = arith.constant 0 : i32
    %c0_i32_1 = arith.constant 0 : i32
    return %c0_i32, %c0_i32_0 : i32, i32
  }
  func.func @transform_32(%arg0: i32) -> (i32, i32) {
    %c0_i32 = arith.constant 0 : i32
    %c0_i32_0 = arith.constant 0 : i32
    %c0_i32_1 = arith.constant 0 : i32
    return %c0_i32, %c0_i32_0 : i32, i32
  }
  func.func @transform_33(%arg0: i32) -> (i32, i32) {
    %c0_i32 = arith.constant 0 : i32
    %c0_i32_0 = arith.constant 0 : i32
    %c0_i32_1 = arith.constant 0 : i32
    return %c0_i32, %c0_i32_0 : i32, i32
  }
  func.func @transform_34(%arg0: i32) -> (i32, i32) {
    %c0_i32 = arith.constant 0 : i32
    %c0_i32_0 = arith.constant 0 : i32
    %c0_i32_1 = arith.constant 0 : i32
    return %c0_i32, %c0_i32_0 : i32, i32
  }
  func.func @transform_35(%arg0: i32) -> (i32, i32) {
    %c0_i32 = arith.constant 0 : i32
    %c0_i32_0 = arith.constant 0 : i32
    %c0_i32_1 = arith.constant 0 : i32
    return %c0_i32, %c0_i32_0 : i32, i32
  }
  func.func @transform_36(%arg0: i32) -> (i32, i32) {
    %c0_i32 = arith.constant 0 : i32
    %c0_i32_0 = arith.constant 0 : i32
    %c0_i32_1 = arith.constant 0 : i32
    return %c0_i32, %c0_i32_0 : i32, i32
  }
  func.func @transform_37(%arg0: i32) -> (i32, i32) {
    %c0_i32 = arith.constant 0 : i32
    %c0_i32_0 = arith.constant 0 : i32
    %c0_i32_1 = arith.constant 0 : i32
    return %c0_i32, %c0_i32_0 : i32, i32
  }
  func.func @transform_38(%arg0: i32) -> (i32, i32, i32) {
    %c0_i32 = arith.constant 0 : i32
    %c0_i32_0 = arith.constant 0 : i32
    %c0_i32_1 = arith.constant 0 : i32
    return %arg0, %c0_i32, %c0_i32_0 : i32, i32, i32
  }
}

</mosaic_0001>

<llo_original>
// kernel: dmstgcn_forward.1
$region0: #{dmstgcn_forward.1}
  #allocation0 [shape = 'u32[]', space=smem, size = 0x4, offset = 0x4, fixed_abs, tag = 'smem constant byte address 0x4 - core index']
  #allocation1 [shape = 'u32[144,128]{1,0:T(1,128)}', space=vmem, size = 0x12000, scoped, tag = 'internal scratch']
  #allocation2 [shape = 'f32[16,304]{1,0:T(8,128)}', space=vmem, size = 0x6000, scoped, tag = 'scratch operand']
  %s0 = inlined_call_operand.smem [shape: u32[39], index: -1, kind: input, shape index: {}]
  %s1 = sld [smem:[%s0]]
  %s2 = scalar_lea.smem %s0, 1
  %s3 = sld [smem:[%s2]]
  %s4 = scalar_lea.smem %s0, 2
  %s5 = sld [smem:[%s4]]
  %s6 = scalar_lea.smem %s0, 3
  %s7 = sld [smem:[%s6]]
  %s8 = scalar_lea.smem %s0, 4
  %s9 = sld [smem:[%s8]]
  %s10 = scalar_lea.smem %s0, 5
  %s11 = sld [smem:[%s10]]
  %s12 = scalar_lea.smem %s0, 6
  %s13 = sld [smem:[%s12]]
  %s14 = scalar_lea.smem %s0, 7
  %s15 = sld [smem:[%s14]]
  %s16 = scalar_lea.smem %s0, 8
  %s17 = sld [smem:[%s16]]
  %s18 = scalar_lea.smem %s0, 9
  %s19 = sld [smem:[%s18]]
  %s20 = scalar_lea.smem %s0, 10
  %s21 = sld [smem:[%s20]]
  %s22 = scalar_lea.smem %s0, 11
  %s23 = sld [smem:[%s22]]
  %s24 = scalar_lea.smem %s0, 12
  %s25 = sld [smem:[%s24]]
  %s26 = scalar_lea.smem %s0, 13
  %s27 = sld [smem:[%s26]]
  %s28 = scalar_lea.smem %s0, 14
  %s29 = sld [smem:[%s28]]
  %s30 = scalar_lea.smem %s0, 15
  %s31 = sld [smem:[%s30]]
  %s32 = scalar_lea.smem %s0, 16
  %s33 = sld [smem:[%s32]]
  %s34 = scalar_lea.smem %s0, 17
  %s35 = sld [smem:[%s34]]
  %s36 = scalar_lea.smem %s0, 18
  %s37 = sld [smem:[%s36]]
  %s38 = scalar_lea.smem %s0, 19
  %s39 = sld [smem:[%s38]]
  %s40 = scalar_lea.smem %s0, 20
  %s41 = sld [smem:[%s40]]
  %s42 = scalar_lea.smem %s0, 21
  %s43 = sld [smem:[%s42]]
  %s44 = scalar_lea.smem %s0, 22
  %s45 = sld [smem:[%s44]]
  %s46 = scalar_lea.smem %s0, 23
  %s47 = sld [smem:[%s46]]
  %s48 = scalar_lea.smem %s0, 24
  %s49 = sld [smem:[%s48]]
  %s50 = scalar_lea.smem %s0, 25
  %s51 = sld [smem:[%s50]]
  %s52 = scalar_lea.smem %s0, 26
  %s53 = sld [smem:[%s52]]
  %s54 = scalar_lea.smem %s0, 27
  %s55 = sld [smem:[%s54]]
  %s56 = scalar_lea.smem %s0, 28
  %s57 = sld [smem:[%s56]]
  %s58 = scalar_lea.smem %s0, 29
  %s59 = sld [smem:[%s58]]
  %s60 = scalar_lea.smem %s0, 30
  %s61 = sld [smem:[%s60]]
  %s62 = scalar_lea.smem %s0, 31
  %s63 = sld [smem:[%s62]]
  %s64 = scalar_lea.smem %s0, 32
  %s65 = sld [smem:[%s64]]
  %s66 = scalar_lea.smem %s0, 33
  %s67 = sld [smem:[%s66]]
  %s68 = scalar_lea.smem %s0, 34
  %s69 = sld [smem:[%s68]]
  %s70 = scalar_lea.smem %s0, 35
  %s71 = sld [smem:[%s70]]
  %s72 = scalar_lea.smem %s0, 36
  %s73 = sld [smem:[%s72]]
  %s74 = scalar_lea.smem %s0, 37
  %s75 = sld [smem:[%s74]]
  %s76 = scalar_lea.smem %s0, 38
  %s77 = sld [smem:[%s76]]
  %s78 = sld [smem:[#allocation0]]
  $region273: #{dmstgcn_forward.1} parent=0
    _
  %s80 = ssub.s32 1, %s78
  %s81 = scalar_select 0, %s80, %s78
  $region1: #{dmstgcn_forward.1} parent=0
    #allocation3 [shape = 'u8[8192]{0}', space=vmem, size = 0x2000, scoped, tag = 'input window, operand 2, single buffered']
    #allocation4 [shape = 's32[2]{0}', space=sflag, size = 0x8, scoped, tag = 'scoped memory for dmstgcn_forward.1']
    #allocation5 [shape = 'u8[8192]{0}', space=vmem, size = 0x2000, scoped, tag = 'input window, operand 3, single buffered']
    #allocation6 [shape = 's32[1]{0}', space=sflag, size = 0x4, scoped, tag = 'scoped memory for dmstgcn_forward.1']
    #allocation7 [shape = 'u8[1024]{0}', space=vmem, size = 0x400, scoped, tag = 'input window, operand 5, single buffered']
    #allocation8 [shape = 'u8[98304]{0}', space=vmem, size = 0x18000, scoped, tag = 'input window, operand 9, single buffered']
    #allocation9 [shape = 's32[1]{0}', space=sflag, size = 0x4, scoped, tag = 'scoped memory for dmstgcn_forward.1']
    #allocation10 [shape = 'u8[512]{0}', space=vmem, size = 0x400, scoped, tag = 'input window, operand 10, single buffered']
    #allocation11 [shape = 'u8[1024]{0}', space=vmem, size = 0x400, scoped, tag = 'input window, operand 12, single buffered']
    #allocation12 [shape = 's32[1]{0}', space=sflag, size = 0x4, scoped, tag = 'scoped memory for dmstgcn_forward.1']
    #allocation13 [shape = 'u8[1536]{0}', space=vmem, size = 0x800, scoped, tag = 'input window, operand 15, single buffered']
    #allocation14 [shape = 'u8[81920]{0}', space=vmem, size = 0x14000, scoped, tag = 'input window, operand 16, single buffered']
    #allocation15 [shape = 's32[1]{0}', space=sflag, size = 0x4, scoped, tag = 'scoped memory for dmstgcn_forward.1']
    #allocation16 [shape = 'u8[512]{0}', space=vmem, size = 0x400, scoped, tag = 'input window, operand 17, single buffered']
    #allocation17 [shape = 'u8[1024]{0}', space=vmem, size = 0x400, scoped, tag = 'input window, operand 19, single buffered']
    #allocation18 [shape = 's32[1]{0}', space=sflag, size = 0x4, scoped, tag = 'scoped memory for dmstgcn_forward.1']
    #allocation19 [shape = 'u8[1536]{0}', space=vmem, size = 0x800, scoped, tag = 'input window, operand 22, single buffered']
    #allocation20 [shape = 'u8[73728]{0}', space=vmem, size = 0x12000, scoped, tag = 'input window, operand 23, single buffered']
    #allocation21 [shape = 's32[1]{0}', space=sflag, size = 0x4, scoped, tag = 'scoped memory for dmstgcn_forward.1']
    #allocation22 [shape = 'u8[512]{0}', space=vmem, size = 0x400, scoped, tag = 'input window, operand 24, single buffered']
    #allocation23 [shape = 'u8[1024]{0}', space=vmem, size = 0x400, scoped, tag = 'input window, operand 26, single buffered']
    #allocation24 [shape = 's32[1]{0}', space=sflag, size = 0x4, scoped, tag = 'scoped memory for dmstgcn_forward.1']
    #allocation25 [shape = 'u8[114688]{0}', space=vmem, size = 0x1c000, scoped, tag = 'input window, operand 27, single buffered']
    #allocation26 [shape = 'u8[114688]{0}', space=vmem, size = 0x1c000, scoped, tag = 'input window, operand 28, single buffered']
    #allocation27 [shape = 's32[1]{0}', space=sflag, size = 0x4, scoped, tag = 'scoped memory for dmstgcn_forward.1']
    #allocation28 [shape = 'u8[1024]{0}', space=vmem, size = 0x400, scoped, tag = 'input window, operand 29, single buffered']
    #allocation29 [shape = 'u8[512]{0}', space=vmem, size = 0x400, scoped, tag = 'input window, operand 31, single buffered']
    #allocation30 [shape = 's32[1]{0}', space=sflag, size = 0x4, scoped, tag = 'scoped memory for dmstgcn_forward.1']
    #allocation31 [shape = 'u8[172032]{0}', space=vmem, size = 0x2a000, scoped, tag = 'input window, operand 32, single buffered']
    #allocation32 [shape = 'u8[512]{0}', space=vmem, size = 0x400, scoped, tag = 'input window, operand 33, single buffered']
    #allocation33 [shape = 's32[1]{0}', space=sflag, size = 0x4, scoped, tag = 'scoped memory for dmstgcn_forward.1']
    #allocation34 [shape = 'u8[1536]{0}', space=vmem, size = 0x800, scoped, tag = 'input window, operand 35, single buffered']
    #allocation35 [shape = 'u8[512]{0}', space=vmem, size = 0x400, scoped, tag = 'input window, operand 37, single buffered']
    #allocation36 [shape = 's32[1]{0}', space=sflag, size = 0x4, scoped, tag = 'scoped memory for dmstgcn_forward.1']
    %82 = vsyncpa [#allocation4], 0
    %83 = vsyncpa [#allocation6], 0
    %84 = vsyncpa [#allocation9], 0
    %85 = vsyncpa [#allocation12], 0
    %86 = vsyncpa [#allocation15], 0
    %87 = vsyncpa [#allocation18], 0
    %88 = vsyncpa [#allocation21], 0
    %89 = vsyncpa [#allocation24], 0
    %90 = vsyncpa [#allocation27], 0
    %91 = vsyncpa [#allocation30], 0
    %92 = vsyncpa [#allocation33], 0
    %93 = vsyncpa [#allocation36], 0
    loop: start=0, step=1, limit=4
    $region2: #{dmstgcn_forward.1} parent=1 // loop_pre_header
      _
    $region3: #{dmstgcn_forward.1} parent=1 // loop_header
      %s95 = sphi 0, %s99
      %p96 = scmp.ge.s32.totalorder %s95, 4
      %s105 = sphi 0, %s107
      %s108 = sphi 0, %s105
      %s109 = sphi 0, %s108
      %s125 = sphi 0, %s109
      %s131 = sphi 0, %s133
      %s134 = sphi 0, %s131
      %s135 = sphi 0, %s134
      %s151 = sphi 0, %s135
      %s155 = sphi 0, %s155
      %s157 = sphi 0, %s155
      %s158 = sphi 0, %s157
      %s172 = sphi 0, %s158
      %s176 = sphi 0, %s176
      %s178 = sphi 0, %s176
      %s179 = sphi 0, %s178
      %s193 = sphi 0, %s179
      %s197 = sphi 0, %s197
      %s199 = sphi 0, %s197
      %s200 = sphi 0, %s199
      %s214 = sphi 0, %s200
      %s218 = sphi 0, %s218
      %s220 = sphi 0, %s218
      %s221 = sphi 0, %s220
      %s235 = sphi 0, %s221
      %s239 = sphi 0, %s239
      %s241 = sphi 0, %s239
      %s242 = sphi 0, %s241
      %s256 = sphi 0, %s242
      %s260 = sphi 0, %s260
      %s262 = sphi 0, %s260
      %s263 = sphi 0, %s262
      %s277 = sphi 0, %s263
      %s281 = sphi 0, %s281
      %s283 = sphi 0, %s281
      %s284 = sphi 0, %s283
      %s298 = sphi 0, %s284
      %s302 = sphi 0, %s302
      %s304 = sphi 0, %s302
      %s305 = sphi 0, %s304
      %s319 = sphi 0, %s305
      %s323 = sphi 0, %s323
      %s325 = sphi 0, %s323
      %s326 = sphi 0, %s325
      %s340 = sphi 0, %s326
      %s344 = sphi 0, %s344
      %s346 = sphi 0, %s344
      %s347 = sphi 0, %s346
      %s361 = sphi 0, %s347
      %s365 = sphi 0, %s365
      %s367 = sphi 0, %s365
      %s368 = sphi 0, %s367
      %s382 = sphi 0, %s368
      %s386 = sphi 0, %s386
      %s388 = sphi 0, %s386
      %s389 = sphi 0, %s388
      %s403 = sphi 0, %s389
      %s407 = sphi 0, %s407
      %s409 = sphi 0, %s407
      %s410 = sphi 0, %s409
      %s424 = sphi 0, %s410
      %s428 = sphi 0, %s428
      %s430 = sphi 0, %s428
      %s431 = sphi 0, %s430
      %s445 = sphi 0, %s431
      %s449 = sphi 0, %s449
      %s451 = sphi 0, %s449
      %s452 = sphi 0, %s451
      %s466 = sphi 0, %s452
      %s470 = sphi 0, %s470
      %s472 = sphi 0, %s470
      %s473 = sphi 0, %s472
      %s487 = sphi 0, %s473
      %s491 = sphi 0, %s491
      %s493 = sphi 0, %s491
      %s494 = sphi 0, %s493
      %s508 = sphi 0, %s494
      %s512 = sphi 0, %s512
      %s514 = sphi 0, %s512
      %s515 = sphi 0, %s514
      %s529 = sphi 0, %s515
      %s533 = sphi 0, %s533
      %s535 = sphi 0, %s533
      %s536 = sphi 0, %s535
      %s550 = sphi 0, %s536
      %s554 = sphi 0, %s554
      %s556 = sphi 0, %s554
      %s557 = sphi 0, %s556
      %s571 = sphi 0, %s557
      %s575 = sphi 0, %s575
      %s577 = sphi 0, %s575
      %s578 = sphi 0, %s577
      %s592 = sphi 0, %s578
      %s596 = sphi 0, %s596
      %s598 = sphi 0, %s596
      %s599 = sphi 0, %s598
      %s613 = sphi 0, %s599
      %s617 = sphi 0, %s617
      %s619 = sphi 0, %s617
      %s620 = sphi 0, %s619
      %s634 = sphi 0, %s620
      %s638 = sphi 0, %s638
      %s640 = sphi 0, %s638
      %s641 = sphi 0, %s640
      %s655 = sphi 0, %s641
      %s659 = sphi 0, %s659
      %s661 = sphi 0, %s659
      %s662 = sphi 0, %s661
      %s676 = sphi 0, %s662
      %s680 = sphi 0, %s680
      %s682 = sphi 0, %s680
      %s683 = sphi 0, %s682
      %s697 = sphi 0, %s683
      %s701 = sphi 0, %s701
      %s703 = sphi 0, %s701
      %s704 = sphi 0, %s703
      %s718 = sphi 0, %s704
      %s722 = sphi 0, %s722
      %s724 = sphi 0, %s722
      %s725 = sphi 0, %s724
      %s739 = sphi 0, %s725
      %s743 = sphi 0, %s743
      %s745 = sphi 0, %s743
      %s746 = sphi 0, %s745
      %s760 = sphi 0, %s746
      %s764 = sphi 0, %s764
      %s766 = sphi 0, %s764
      %s767 = sphi 0, %s766
      %s781 = sphi 0, %s767
      %s785 = sphi 0, %s785
      %s787 = sphi 0, %s785
      %s788 = sphi 0, %s787
      %s802 = sphi 0, %s788
      %s806 = sphi 0, %s806
      %s808 = sphi 0, %s806
      %s809 = sphi 0, %s808
      %s823 = sphi 0, %s809
      %s827 = sphi 0, %s827
      %s829 = sphi 0, %s827
      %s830 = sphi 0, %s829
      %s844 = sphi 0, %s830
      %s848 = sphi 0, %s848
      %s850 = sphi 0, %s848
      %s851 = sphi 0, %s850
      %s865 = sphi 0, %s851
      %s869 = sphi 0, %s869
      %s871 = sphi 0, %s869
      %s872 = sphi 0, %s871
      %s886 = sphi 0, %s872
      %s890 = sphi 0, %s890
      %s892 = sphi 0, %s890
      %s893 = sphi 0, %s892
      %s907 = sphi 0, %s893
      %s913 = sphi 0, %s915
      %s916 = sphi 0, %s913
      %s917 = sphi 0, %s916
      %s933 = sphi 0, %s917
    $region4: #{dmstgcn_forward.1} parent=1 // loop_header_branch
      %98 = sbr.rel (%p96) target = $region8
    $region5: #{dmstgcn_forward.1} parent=1 // loop_body
      %s100 = ssub.s32 %s95, 1
      %s101 = ssub.s32 %s95, 2
      %s102 = sadd.s32 %s95, 1
      %s103 = ssub.s32 %s95, %s102
      %p104 = scmp.eq.s32.totalorder %s103, 0
      %s106 = sadd.s32 %s105, 1
      %s107 = scalar_select %p104, %s105, %s106
      %p110 = pneg %p104
      %p111 = scmp.eq.s32.totalorder %s95, 1
      %p112 = por %p110, %p111
      %p113 = scmp.ne.s32.totalorder %s105, %s108
      %p114 = scmp.eq.s32.totalorder %s95, 0
      %p115 = por %p113, %p114
      %p116 = scmp.ne.s32.totalorder %s105, %s108
      %p117 = scmp.eq.s32.totalorder %s100, 1
      %p118 = por %p116, %p117
      %p119 = scmp.ne.s32.totalorder %s108, %s109
      %p120 = scmp.eq.s32.totalorder %s100, 0
      %p121 = por %p119, %p120
      %p122 = scmp.ne.s32.totalorder %s108, %s109
      %p123 = scmp.eq.s32.totalorder %s101, 1
      %p124 = por %p122, %p123
      %p126 = scmp.ne.s32.totalorder %s109, %s125
      %p127 = scmp.eq.s32.totalorder %s101, 0
      %p128 = por %p126, %p127
      %s129 = ssub.s32 %s95, %s102
      %p130 = scmp.eq.s32.totalorder %s129, 0
      %s132 = sadd.s32 %s131, 1
      %s133 = scalar_select %p130, %s131, %s132
      %p136 = pneg %p130
      %p137 = scmp.eq.s32.totalorder %s95, 1
      %p138 = por %p136, %p137
      %p139 = scmp.ne.s32.totalorder %s131, %s134
      %p140 = scmp.eq.s32.totalorder %s95, 0
      %p141 = por %p139, %p140
      %p142 = scmp.ne.s32.totalorder %s131, %s134
      %p143 = scmp.eq.s32.totalorder %s100, 1
      %p144 = por %p142, %p143
      %p145 = scmp.ne.s32.totalorder %s134, %s135
      %p146 = scmp.eq.s32.totalorder %s100, 0
      %p147 = por %p145, %p146
      %p148 = scmp.ne.s32.totalorder %s134, %s135
      %p149 = scmp.eq.s32.totalorder %s101, 1
      %p150 = por %p148, %p149
      %p152 = scmp.ne.s32.totalorder %s135, %s151
      %p153 = scmp.eq.s32.totalorder %s101, 0
      %p154 = por %p152, %p153
      %s156 = sadd.s32 %s155, 1
      %p159 = scmp.eq.s32.totalorder %s95, 1
      %p160 = scmp.ne.s32.totalorder %s155, %s157
      %p161 = scmp.eq.s32.totalorder %s95, 0
      %p162 = por %p160, %p161
      %p163 = scmp.ne.s32.totalorder %s155, %s157
      %p164 = scmp.eq.s32.totalorder %s100, 1
      %p165 = por %p163, %p164
      %p166 = scmp.ne.s32.totalorder %s157, %s158
      %p167 = scmp.eq.s32.totalorder %s100, 0
      %p168 = por %p166, %p167
      %p169 = scmp.ne.s32.totalorder %s157, %s158
      %p170 = scmp.eq.s32.totalorder %s101, 1
      %p171 = por %p169, %p170
      %p173 = scmp.ne.s32.totalorder %s158, %s172
      %p174 = scmp.eq.s32.totalorder %s101, 0
      %p175 = por %p173, %p174
      %s177 = sadd.s32 %s176, 1
      %p180 = scmp.eq.s32.totalorder %s95, 1
      %p181 = scmp.ne.s32.totalorder %s176, %s178
      %p182 = scmp.eq.s32.totalorder %s95, 0
      %p183 = por %p181, %p182
      %p184 = scmp.ne.s32.totalorder %s176, %s178
      %p185 = scmp.eq.s32.totalorder %s100, 1
      %p186 = por %p184, %p185
      %p187 = scmp.ne.s32.totalorder %s178, %s179
      %p188 = scmp.eq.s32.totalorder %s100, 0
      %p189 = por %p187, %p188
      %p190 = scmp.ne.s32.totalorder %s178, %s179
      %p191 = scmp.eq.s32.totalorder %s101, 1
      %p192 = por %p190, %p191
      %p194 = scmp.ne.s32.totalorder %s179, %s193
      %p195 = scmp.eq.s32.totalorder %s101, 0
      %p196 = por %p194, %p195
      %s198 = sadd.s32 %s197, 1
      %p201 = scmp.eq.s32.totalorder %s95, 1
      %p202 = scmp.ne.s32.totalorder %s197, %s199
      %p203 = scmp.eq.s32.totalorder %s95, 0
      %p204 = por %p202, %p203
      %p205 = scmp.ne.s32.totalorder %s197, %s199
      %p206 = scmp.eq.s32.totalorder %s100, 1
      %p207 = por %p205, %p206
      %p208 = scmp.ne.s32.totalorder %s199, %s200
      %p209 = scmp.eq.s32.totalorder %s100, 0
      %p210 = por %p208, %p209
      %p211 = scmp.ne.s32.totalorder %s199, %s200
      %p212 = scmp.eq.s32.totalorder %s101, 1
      %p213 = por %p211, %p212
      %p215 = scmp.ne.s32.totalorder %s200, %s214
      %p216 = scmp.eq.s32.totalorder %s101, 0
      %p217 = por %p215, %p216
      %s219 = sadd.s32 %s218, 1
      %p222 = scmp.eq.s32.totalorder %s95, 1
      %p223 = scmp.ne.s32.totalorder %s218, %s220
      %p224 = scmp.eq.s32.totalorder %s95, 0
      %p225 = por %p223, %p224
      %p226 = scmp.ne.s32.totalorder %s218, %s220
      %p227 = scmp.eq.s32.totalorder %s100, 1
      %p228 = por %p226, %p227
      %p229 = scmp.ne.s32.totalorder %s220, %s221
      %p230 = scmp.eq.s32.totalorder %s100, 0
      %p231 = por %p229, %p230
      %p232 = scmp.ne.s32.totalorder %s220, %s221
      %p233 = scmp.eq.s32.totalorder %s101, 1
      %p234 = por %p232, %p233
      %p236 = scmp.ne.s32.totalorder %s221, %s235
      %p237 = scmp.eq.s32.totalorder %s101, 0
      %p238 = por %p236, %p237
      %s240 = sadd.s32 %s239, 1
      %p243 = scmp.eq.s32.totalorder %s95, 1
      %p244 = scmp.ne.s32.totalorder %s239, %s241
      %p245 = scmp.eq.s32.totalorder %s95, 0
      %p246 = por %p244, %p245
      %p247 = scmp.ne.s32.totalorder %s239, %s241
      %p248 = scmp.eq.s32.totalorder %s100, 1
      %p249 = por %p247, %p248
      %p250 = scmp.ne.s32.totalorder %s241, %s242
      %p251 = scmp.eq.s32.totalorder %s100, 0
      %p252 = por %p250, %p251
      %p253 = scmp.ne.s32.totalorder %s241, %s242
      %p254 = scmp.eq.s32.totalorder %s101, 1
      %p255 = por %p253, %p254
      %p257 = scmp.ne.s32.totalorder %s242, %s256
      %p258 = scmp.eq.s32.totalorder %s101, 0
      %p259 = por %p257, %p258
      %s261 = sadd.s32 %s260, 1
      %p264 = scmp.eq.s32.totalorder %s95, 1
      %p265 = scmp.ne.s32.totalorder %s260, %s262
      %p266 = scmp.eq.s32.totalorder %s95, 0
      %p267 = por %p265, %p266
      %p268 = scmp.ne.s32.totalorder %s260, %s262
      %p269 = scmp.eq.s32.totalorder %s100, 1
      %p270 = por %p268, %p269
      %p271 = scmp.ne.s32.totalorder %s262, %s263
      %p272 = scmp.eq.s32.totalorder %s100, 0
      %p273 = por %p271, %p272
      %p274 = scmp.ne.s32.totalorder %s262, %s263
      %p275 = scmp.eq.s32.totalorder %s101, 1
      %p276 = por %p274, %p275
      %p278 = scmp.ne.s32.totalorder %s263, %s277
      %p279 = scmp.eq.s32.totalorder %s101, 0
      %p280 = por %p278, %p279
      %s282 = sadd.s32 %s281, 1
      %p285 = scmp.eq.s32.totalorder %s95, 1
      %p286 = scmp.ne.s32.totalorder %s281, %s283
      %p287 = scmp.eq.s32.totalorder %s95, 0
      %p288 = por %p286, %p287
      %p289 = scmp.ne.s32.totalorder %s281, %s283
      %p290 = scmp.eq.s32.totalorder %s100, 1
      %p291 = por %p289, %p290
      %p292 = scmp.ne.s32.totalorder %s283, %s284
      %p293 = scmp.eq.s32.totalorder %s100, 0
      %p294 = por %p292, %p293
      %p295 = scmp.ne.s32.totalorder %s283, %s284
      %p296 = scmp.eq.s32.totalorder %s101, 1
      %p297 = por %p295, %p296
      %p299 = scmp.ne.s32.totalorder %s284, %s298
      %p300 = scmp.eq.s32.totalorder %s101, 0
      %p301 = por %p299, %p300
      %s303 = sadd.s32 %s302, 1
      %p306 = scmp.eq.s32.totalorder %s95, 1
      %p307 = scmp.ne.s32.totalorder %s302, %s304
      %p308 = scmp.eq.s32.totalorder %s95, 0
      %p309 = por %p307, %p308
      %p310 = scmp.ne.s32.totalorder %s302, %s304
      %p311 = scmp.eq.s32.totalorder %s100, 1
      %p312 = por %p310, %p311
      %p313 = scmp.ne.s32.totalorder %s304, %s305
      %p314 = scmp.eq.s32.totalorder %s100, 0
      %p315 = por %p313, %p314
      %p316 = scmp.ne.s32.totalorder %s304, %s305
      %p317 = scmp.eq.s32.totalorder %s101, 1
      %p318 = por %p316, %p317
      %p320 = scmp.ne.s32.totalorder %s305, %s319
      %p321 = scmp.eq.s32.totalorder %s101, 0
      %p322 = por %p320, %p321
      %s324 = sadd.s32 %s323, 1
      %p327 = scmp.eq.s32.totalorder %s95, 1
      %p328 = scmp.ne.s32.totalorder %s323, %s325
      %p329 = scmp.eq.s32.totalorder %s95, 0
      %p330 = por %p328, %p329
      %p331 = scmp.ne.s32.totalorder %s323, %s325
      %p332 = scmp.eq.s32.totalorder %s100, 1
      %p333 = por %p331, %p332
      %p334 = scmp.ne.s32.totalorder %s325, %s326
      %p335 = scmp.eq.s32.totalorder %s100, 0
      %p336 = por %p334, %p335
      %p337 = scmp.ne.s32.totalorder %s325, %s326
      %p338 = scmp.eq.s32.totalorder %s101, 1
      %p339 = por %p337, %p338
      %p341 = scmp.ne.s32.totalorder %s326, %s340
      %p342 = scmp.eq.s32.totalorder %s101, 0
      %p343 = por %p341, %p342
      %s345 = sadd.s32 %s344, 1
      %p348 = scmp.eq.s32.totalorder %s95, 1
      %p349 = scmp.ne.s32.totalorder %s344, %s346
      %p350 = scmp.eq.s32.totalorder %s95, 0
      %p351 = por %p349, %p350
      %p352 = scmp.ne.s32.totalorder %s344, %s346
      %p353 = scmp.eq.s32.totalorder %s100, 1
      %p354 = por %p352, %p353
      %p355 = scmp.ne.s32.totalorder %s346, %s347
      %p356 = scmp.eq.s32.totalorder %s100, 0
      %p357 = por %p355, %p356
      %p358 = scmp.ne.s32.totalorder %s346, %s347
      %p359 = scmp.eq.s32.totalorder %s101, 1
      %p360 = por %p358, %p359
      %p362 = scmp.ne.s32.totalorder %s347, %s361
      %p363 = scmp.eq.s32.totalorder %s101, 0
      %p364 = por %p362, %p363
      %s366 = sadd.s32 %s365, 1
      %p369 = scmp.eq.s32.totalorder %s95, 1
      %p370 = scmp.ne.s32.totalorder %s365, %s367
      %p371 = scmp.eq.s32.totalorder %s95, 0
      %p372 = por %p370, %p371
      %p373 = scmp.ne.s32.totalorder %s365, %s367
      %p374 = scmp.eq.s32.totalorder %s100, 1
      %p375 = por %p373, %p374
      %p376 = scmp.ne.s32.totalorder %s367, %s368
      %p377 = scmp.eq.s32.totalorder %s100, 0
      %p378 = por %p376, %p377
      %p379 = scmp.ne.s32.totalorder %s367, %s368
      %p380 = scmp.eq.s32.totalorder %s101, 1
      %p381 = por %p379, %p380
      %p383 = scmp.ne.s32.totalorder %s368, %s382
      %p384 = scmp.eq.s32.totalorder %s101, 0
      %p385 = por %p383, %p384
      %s387 = sadd.s32 %s386, 1
      %p390 = scmp.eq.s32.totalorder %s95, 1
      %p391 = scmp.ne.s32.totalorder %s386, %s388
      %p392 = scmp.eq.s32.totalorder %s95, 0
      %p393 = por %p391, %p392
      %p394 = scmp.ne.s32.totalorder %s386, %s388
      %p395 = scmp.eq.s32.totalorder %s100, 1
      %p396 = por %p394, %p395
      %p397 = scmp.ne.s32.totalorder %s388, %s389
      %p398 = scmp.eq.s32.totalorder %s100, 0
      %p399 = por %p397, %p398
      %p400 = scmp.ne.s32.totalorder %s388, %s389
      %p401 = scmp.eq.s32.totalorder %s101, 1
      %p402 = por %p400, %p401
      %p404 = scmp.ne.s32.totalorder %s389, %s403
      %p405 = scmp.eq.s32.totalorder %s101, 0
      %p406 = por %p404, %p405
      %s408 = sadd.s32 %s407, 1
      %p411 = scmp.eq.s32.totalorder %s95, 1
      %p412 = scmp.ne.s32.totalorder %s407, %s409
      %p413 = scmp.eq.s32.totalorder %s95, 0
      %p414 = por %p412, %p413
      %p415 = scmp.ne.s32.totalorder %s407, %s409
      %p416 = scmp.eq.s32.totalorder %s100, 1
      %p417 = por %p415, %p416
      %p418 = scmp.ne.s32.totalorder %s409, %s410
      %p419 = scmp.eq.s32.totalorder %s100, 0
      %p420 = por %p418, %p419
      %p421 = scmp.ne.s32.totalorder %s409, %s410
      %p422 = scmp.eq.s32.totalorder %s101, 1
      %p423 = por %p421, %p422
      %p425 = scmp.ne.s32.totalorder %s410, %s424
      %p426 = scmp.eq.s32.totalorder %s101, 0
      %p427 = por %p425, %p426
      %s429 = sadd.s32 %s428, 1
      %p432 = scmp.eq.s32.totalorder %s95, 1
      %p433 = scmp.ne.s32.totalorder %s428, %s430
      %p434 = scmp.eq.s32.totalorder %s95, 0
      %p435 = por %p433, %p434
      %p436 = scmp.ne.s32.totalorder %s428, %s430
      %p437 = scmp.eq.s32.totalorder %s100, 1
      %p438 = por %p436, %p437
      %p439 = scmp.ne.s32.totalorder %s430, %s431
      %p440 = scmp.eq.s32.totalorder %s100, 0
      %p441 = por %p439, %p440
      %p442 = scmp.ne.s32.totalorder %s430, %s431
      %p443 = scmp.eq.s32.totalorder %s101, 1
      %p444 = por %p442, %p443
      %p446 = scmp.ne.s32.totalorder %s431, %s445
      %p447 = scmp.eq.s32.totalorder %s101, 0
      %p448 = por %p446, %p447
      %s450 = sadd.s32 %s449, 1
      %p453 = scmp.eq.s32.totalorder %s95, 1
      %p454 = scmp.ne.s32.totalorder %s449, %s451
      %p455 = scmp.eq.s32.totalorder %s95, 0
      %p456 = por %p454, %p455
      %p457 = scmp.ne.s32.totalorder %s449, %s451
      %p458 = scmp.eq.s32.totalorder %s100, 1
      %p459 = por %p457, %p458
      %p460 = scmp.ne.s32.totalorder %s451, %s452
      %p461 = scmp.eq.s32.totalorder %s100, 0
      %p462 = por %p460, %p461
      %p463 = scmp.ne.s32.totalorder %s451, %s452
      %p464 = scmp.eq.s32.totalorder %s101, 1
      %p465 = por %p463, %p464
      %p467 = scmp.ne.s32.totalorder %s452, %s466
      %p468 = scmp.eq.s32.totalorder %s101, 0
      %p469 = por %p467, %p468
      %s471 = sadd.s32 %s470, 1
      %p474 = scmp.eq.s32.totalorder %s95, 1
      %p475 = scmp.ne.s32.totalorder %s470, %s472
      %p476 = scmp.eq.s32.totalorder %s95, 0
      %p477 = por %p475, %p476
      %p478 = scmp.ne.s32.totalorder %s470, %s472
      %p479 = scmp.eq.s32.totalorder %s100, 1
      %p480 = por %p478, %p479
      %p481 = scmp.ne.s32.totalorder %s472, %s473
      %p482 = scmp.eq.s32.totalorder %s100, 0
      %p483 = por %p481, %p482
      %p484 = scmp.ne.s32.totalorder %s472, %s473
      %p485 = scmp.eq.s32.totalorder %s101, 1
      %p486 = por %p484, %p485
      %p488 = scmp.ne.s32.totalorder %s473, %s487
      %p489 = scmp.eq.s32.totalorder %s101, 0
      %p490 = por %p488, %p489
      %s492 = sadd.s32 %s491, 1
      %p495 = scmp.eq.s32.totalorder %s95, 1
      %p496 = scmp.ne.s32.totalorder %s491, %s493
      %p497 = scmp.eq.s32.totalorder %s95, 0
      %p498 = por %p496, %p497
      %p499 = scmp.ne.s32.totalorder %s491, %s493
      %p500 = scmp.eq.s32.totalorder %s100, 1
      %p501 = por %p499, %p500
      %p502 = scmp.ne.s32.totalorder %s493, %s494
      %p503 = scmp.eq.s32.totalorder %s100, 0
      %p504 = por %p502, %p503
      %p505 = scmp.ne.s32.totalorder %s493, %s494
      %p506 = scmp.eq.s32.totalorder %s101, 1
      %p507 = por %p505, %p506
      %p509 = scmp.ne.s32.totalorder %s494, %s508
      %p510 = scmp.eq.s32.totalorder %s101, 0
      %p511 = por %p509, %p510
      %s513 = sadd.s32 %s512, 1
      %p516 = scmp.eq.s32.totalorder %s95, 1
      %p517 = scmp.ne.s32.totalorder %s512, %s514
      %p518 = scmp.eq.s32.totalorder %s95, 0
      %p519 = por %p517, %p518
      %p520 = scmp.ne.s32.totalorder %s512, %s514
      %p521 = scmp.eq.s32.totalorder %s100, 1
      %p522 = por %p520, %p521
      %p523 = scmp.ne.s32.totalorder %s514, %s515
      %p524 = scmp.eq.s32.totalorder %s100, 0
      %p525 = por %p523, %p524
      %p526 = scmp.ne.s32.totalorder %s514, %s515
      %p527 = scmp.eq.s32.totalorder %s101, 1
      %p528 = por %p526, %p527
      %p530 = scmp.ne.s32.totalorder %s515, %s529
      %p531 = scmp.eq.s32.totalorder %s101, 0
      %p532 = por %p530, %p531
      %s534 = sadd.s32 %s533, 1
      %p537 = scmp.eq.s32.totalorder %s95, 1
      %p538 = scmp.ne.s32.totalorder %s533, %s535
      %p539 = scmp.eq.s32.totalorder %s95, 0
      %p540 = por %p538, %p539
      %p541 = scmp.ne.s32.totalorder %s533, %s535
      %p542 = scmp.eq.s32.totalorder %s100, 1
      %p543 = por %p541, %p542
      %p544 = scmp.ne.s32.totalorder %s535, %s536
      %p545 = scmp.eq.s32.totalorder %s100, 0
      %p546 = por %p544, %p545
      %p547 = scmp.ne.s32.totalorder %s535, %s536
      %p548 = scmp.eq.s32.totalorder %s101, 1
      %p549 = por %p547, %p548
      %p551 = scmp.ne.s32.totalorder %s536, %s550
      %p552 = scmp.eq.s32.totalorder %s101, 0
      %p553 = por %p551, %p552
      %s555 = sadd.s32 %s554, 1
      %p558 = scmp.eq.s32.totalorder %s95, 1
      %p559 = scmp.ne.s32.totalorder %s554, %s556
      %p560 = scmp.eq.s32.totalorder %s95, 0
      %p561 = por %p559, %p560
      %p562 = scmp.ne.s32.totalorder %s554, %s556
      %p563 = scmp.eq.s32.totalorder %s100, 1
      %p564 = por %p562, %p563
      %p565 = scmp.ne.s32.totalorder %s556, %s557
      %p566 = scmp.eq.s32.totalorder %s100, 0
      %p567 = por %p565, %p566
      %p568 = scmp.ne.s32.totalorder %s556, %s557
      %p569 = scmp.eq.s32.totalorder %s101, 1
      %p570 = por %p568, %p569
      %p572 = scmp.ne.s32.totalorder %s557, %s571
      %p573 = scmp.eq.s32.totalorder %s101, 0
      %p574 = por %p572, %p573
      %s576 = sadd.s32 %s575, 1
      %p579 = scmp.eq.s32.totalorder %s95, 1
      %p580 = scmp.ne.s32.totalorder %s575, %s577
      %p581 = scmp.eq.s32.totalorder %s95, 0
      %p582 = por %p580, %p581
      %p583 = scmp.ne.s32.totalorder %s575, %s577
      %p584 = scmp.eq.s32.totalorder %s100, 1
      %p585 = por %p583, %p584
      %p586 = scmp.ne.s32.totalorder %s577, %s578
      %p587 = scmp.eq.s32.totalorder %s100, 0
      %p588 = por %p586, %p587
      %p589 = scmp.ne.s32.totalorder %s577, %s578
      %p590 = scmp.eq.s32.totalorder %s101, 1
      %p591 = por %p589, %p590
      %p593 = scmp.ne.s32.totalorder %s578, %s592
      %p594 = scmp.eq.s32.totalorder %s101, 0
      %p595 = por %p593, %p594
      %s597 = sadd.s32 %s596, 1
      %p600 = scmp.eq.s32.totalorder %s95, 1
      %p601 = scmp.ne.s32.totalorder %s596, %s598
      %p602 = scmp.eq.s32.totalorder %s95, 0
      %p603 = por %p601, %p602
      %p604 = scmp.ne.s32.totalorder %s596, %s598
      %p605 = scmp.eq.s32.totalorder %s100, 1
      %p606 = por %p604, %p605
      %p607 = scmp.ne.s32.totalorder %s598, %s599
      %p608 = scmp.eq.s32.totalorder %s100, 0
      %p609 = por %p607, %p608
      %p610 = scmp.ne.s32.totalorder %s598, %s599
      %p611 = scmp.eq.s32.totalorder %s101, 1
      %p612 = por %p610, %p611
      %p614 = scmp.ne.s32.totalorder %s599, %s613
      %p615 = scmp.eq.s32.totalorder %s101, 0
      %p616 = por %p614, %p615
      %s618 = sadd.s32 %s617, 1
      %p621 = scmp.eq.s32.totalorder %s95, 1
      %p622 = scmp.ne.s32.totalorder %s617, %s619
      %p623 = scmp.eq.s32.totalorder %s95, 0
      %p624 = por %p622, %p623
      %p625 = scmp.ne.s32.totalorder %s617, %s619
      %p626 = scmp.eq.s32.totalorder %s100, 1
      %p627 = por %p625, %p626
      %p628 = scmp.ne.s32.totalorder %s619, %s620
      %p629 = scmp.eq.s32.totalorder %s100, 0
      %p630 = por %p628, %p629
      %p631 = scmp.ne.s32.totalorder %s619, %s620
      %p632 = scmp.eq.s32.totalorder %s101, 1
      %p633 = por %p631, %p632
      %p635 = scmp.ne.s32.totalorder %s620, %s634
      %p636 = scmp.eq.s32.totalorder %s101, 0
      %p637 = por %p635, %p636
      %s639 = sadd.s32 %s638, 1
      %p642 = scmp.eq.s32.totalorder %s95, 1
      %p643 = scmp.ne.s32.totalorder %s638, %s640
      %p644 = scmp.eq.s32.totalorder %s95, 0
      %p645 = por %p643, %p644
      %p646 = scmp.ne.s32.totalorder %s638, %s640
      %p647 = scmp.eq.s32.totalorder %s100, 1
      %p648 = por %p646, %p647
      %p649 = scmp.ne.s32.totalorder %s640, %s641
      %p650 = scmp.eq.s32.totalorder %s100, 0
      %p651 = por %p649, %p650
      %p652 = scmp.ne.s32.totalorder %s640, %s641
      %p653 = scmp.eq.s32.totalorder %s101, 1
      %p654 = por %p652, %p653
      %p656 = scmp.ne.s32.totalorder %s641, %s655
      %p657 = scmp.eq.s32.totalorder %s101, 0
      %p658 = por %p656, %p657
      %s660 = sadd.s32 %s659, 1
      %p663 = scmp.eq.s32.totalorder %s95, 1
      %p664 = scmp.ne.s32.totalorder %s659, %s661
      %p665 = scmp.eq.s32.totalorder %s95, 0
      %p666 = por %p664, %p665
      %p667 = scmp.ne.s32.totalorder %s659, %s661
      %p668 = scmp.eq.s32.totalorder %s100, 1
      %p669 = por %p667, %p668
      %p670 = scmp.ne.s32.totalorder %s661, %s662
      %p671 = scmp.eq.s32.totalorder %s100, 0
      %p672 = por %p670, %p671
      %p673 = scmp.ne.s32.totalorder %s661, %s662
      %p674 = scmp.eq.s32.totalorder %s101, 1
      %p675 = por %p673, %p674
      %p677 = scmp.ne.s32.totalorder %s662, %s676
      %p678 = scmp.eq.s32.totalorder %s101, 0
      %p679 = por %p677, %p678
      %s681 = sadd.s32 %s680, 1
      %p684 = scmp.eq.s32.totalorder %s95, 1
      %p685 = scmp.ne.s32.totalorder %s680, %s682
      %p686 = scmp.eq.s32.totalorder %s95, 0
      %p687 = por %p685, %p686
      %p688 = scmp.ne.s32.totalorder %s680, %s682
      %p689 = scmp.eq.s32.totalorder %s100, 1
      %p690 = por %p688, %p689
      %p691 = scmp.ne.s32.totalorder %s682, %s683
      %p692 = scmp.eq.s32.totalorder %s100, 0
      %p693 = por %p691, %p692
      %p694 = scmp.ne.s32.totalorder %s682, %s683
      %p695 = scmp.eq.s32.totalorder %s101, 1
      %p696 = por %p694, %p695
      %p698 = scmp.ne.s32.totalorder %s683, %s697
      %p699 = scmp.eq.s32.totalorder %s101, 0
      %p700 = por %p698, %p699
      %s702 = sadd.s32 %s701, 1
      %p705 = scmp.eq.s32.totalorder %s95, 1
      %p706 = scmp.ne.s32.totalorder %s701, %s703
      %p707 = scmp.eq.s32.totalorder %s95, 0
      %p708 = por %p706, %p707
      %p709 = scmp.ne.s32.totalorder %s701, %s703
      %p710 = scmp.eq.s32.totalorder %s100, 1
      %p711 = por %p709, %p710
      %p712 = scmp.ne.s32.totalorder %s703, %s704
      %p713 = scmp.eq.s32.totalorder %s100, 0
      %p714 = por %p712, %p713
      %p715 = scmp.ne.s32.totalorder %s703, %s704
      %p716 = scmp.eq.s32.totalorder %s101, 1
      %p717 = por %p715, %p716
      %p719 = scmp.ne.s32.totalorder %s704, %s718
      %p720 = scmp.eq.s32.totalorder %s101, 0
      %p721 = por %p719, %p720
      %s723 = sadd.s32 %s722, 1
      %p726 = scmp.eq.s32.totalorder %s95, 1
      %p727 = scmp.ne.s32.totalorder %s722, %s724
      %p728 = scmp.eq.s32.totalorder %s95, 0
      %p729 = por %p727, %p728
      %p730 = scmp.ne.s32.totalorder %s722, %s724
      %p731 = scmp.eq.s32.totalorder %s100, 1
      %p732 = por %p730, %p731
      %p733 = scmp.ne.s32.totalorder %s724, %s725
      %p734 = scmp.eq.s32.totalorder %s100, 0
      %p735 = por %p733, %p734
      %p736 = scmp.ne.s32.totalorder %s724, %s725
      %p737 = scmp.eq.s32.totalorder %s101, 1
      %p738 = por %p736, %p737
      %p740 = scmp.ne.s32.totalorder %s725, %s739
      %p741 = scmp.eq.s32.totalorder %s101, 0
      %p742 = por %p740, %p741
      %s744 = sadd.s32 %s743, 1
      %p747 = scmp.eq.s32.totalorder %s95, 1
      %p748 = scmp.ne.s32.totalorder %s743, %s745
      %p749 = scmp.eq.s32.totalorder %s95, 0
      %p750 = por %p748, %p749
      %p751 = scmp.ne.s32.totalorder %s743, %s745
      %p752 = scmp.eq.s32.totalorder %s100, 1
      %p753 = por %p751, %p752
      %p754 = scmp.ne.s32.totalorder %s745, %s746
      %p755 = scmp.eq.s32.totalorder %s100, 0
      %p756 = por %p754, %p755
      %p757 = scmp.ne.s32.totalorder %s745, %s746
      %p758 = scmp.eq.s32.totalorder %s101, 1
      %p759 = por %p757, %p758
      %p761 = scmp.ne.s32.totalorder %s746, %s760
      %p762 = scmp.eq.s32.totalorder %s101, 0
      %p763 = por %p761, %p762
      %s765 = sadd.s32 %s764, 1
      %p768 = scmp.eq.s32.totalorder %s95, 1
      %p769 = scmp.ne.s32.totalorder %s764, %s766
      %p770 = scmp.eq.s32.totalorder %s95, 0
      %p771 = por %p769, %p770
      %p772 = scmp.ne.s32.totalorder %s764, %s766
      %p773 = scmp.eq.s32.totalorder %s100, 1
      %p774 = por %p772, %p773
      %p775 = scmp.ne.s32.totalorder %s766, %s767
      %p776 = scmp.eq.s32.totalorder %s100, 0
      %p777 = por %p775, %p776
      %p778 = scmp.ne.s32.totalorder %s766, %s767
      %p779 = scmp.eq.s32.totalorder %s101, 1
      %p780 = por %p778, %p779
      %p782 = scmp.ne.s32.totalorder %s767, %s781
      %p783 = scmp.eq.s32.totalorder %s101, 0
      %p784 = por %p782, %p783
      %s786 = sadd.s32 %s785, 1
      %p789 = scmp.eq.s32.totalorder %s95, 1
      %p790 = scmp.ne.s32.totalorder %s785, %s787
      %p791 = scmp.eq.s32.totalorder %s95, 0
      %p792 = por %p790, %p791
      %p793 = scmp.ne.s32.totalorder %s785, %s787
      %p794 = scmp.eq.s32.totalorder %s100, 1
      %p795 = por %p793, %p794
      %p796 = scmp.ne.s32.totalorder %s787, %s788
      %p797 = scmp.eq.s32.totalorder %s100, 0
      %p798 = por %p796, %p797
      %p799 = scmp.ne.s32.totalorder %s787, %s788
      %p800 = scmp.eq.s32.totalorder %s101, 1
      %p801 = por %p799, %p800
      %p803 = scmp.ne.s32.totalorder %s788, %s802
      %p804 = scmp.eq.s32.totalorder %s101, 0
      %p805 = por %p803, %p804
      %s807 = sadd.s32 %s806, 1
      %p810 = scmp.eq.s32.totalorder %s95, 1
      %p811 = scmp.ne.s32.totalorder %s806, %s808
      %p812 = scmp.eq.s32.totalorder %s95, 0
      %p813 = por %p811, %p812
      %p814 = scmp.ne.s32.totalorder %s806, %s808
      %p815 = scmp.eq.s32.totalorder %s100, 1
      %p816 = por %p814, %p815
      %p817 = scmp.ne.s32.totalorder %s808, %s809
      %p818 = scmp.eq.s32.totalorder %s100, 0
      %p819 = por %p817, %p818
      %p820 = scmp.ne.s32.totalorder %s808, %s809
      %p821 = scmp.eq.s32.totalorder %s101, 1
      %p822 = por %p820, %p821
      %p824 = scmp.ne.s32.totalorder %s809, %s823
      %p825 = scmp.eq.s32.totalorder %s101, 0
      %p826 = por %p824, %p825
      %s828 = sadd.s32 %s827, 1
      %p831 = scmp.eq.s32.totalorder %s95, 1
      %p832 = scmp.ne.s32.totalorder %s827, %s829
      %p833 = scmp.eq.s32.totalorder %s95, 0
      %p834 = por %p832, %p833
      %p835 = scmp.ne.s32.totalorder %s827, %s829
      %p836 = scmp.eq.s32.totalorder %s100, 1
      %p837 = por %p835, %p836
      %p838 = scmp.ne.s32.totalorder %s829, %s830
      %p839 = scmp.eq.s32.totalorder %s100, 0
      %p840 = por %p838, %p839
      %p841 = scmp.ne.s32.totalorder %s829, %s830
      %p842 = scmp.eq.s32.totalorder %s101, 1
      %p843 = por %p841, %p842
      %p845 = scmp.ne.s32.totalorder %s830, %s844
      %p846 = scmp.eq.s32.totalorder %s101, 0
      %p847 = por %p845, %p846
      %s849 = sadd.s32 %s848, 1
      %p852 = scmp.eq.s32.totalorder %s95, 1
      %p853 = scmp.ne.s32.totalorder %s848, %s850
      %p854 = scmp.eq.s32.totalorder %s95, 0
      %p855 = por %p853, %p854
      %p856 = scmp.ne.s32.totalorder %s848, %s850
      %p857 = scmp.eq.s32.totalorder %s100, 1
      %p858 = por %p856, %p857
      %p859 = scmp.ne.s32.totalorder %s850, %s851
      %p860 = scmp.eq.s32.totalorder %s100, 0
      %p861 = por %p859, %p860
      %p862 = scmp.ne.s32.totalorder %s850, %s851
      %p863 = scmp.eq.s32.totalorder %s101, 1
      %p864 = por %p862, %p863
      %p866 = scmp.ne.s32.totalorder %s851, %s865
      %p867 = scmp.eq.s32.totalorder %s101, 0
      %p868 = por %p866, %p867
      %s870 = sadd.s32 %s869, 1
      %p873 = scmp.eq.s32.totalorder %s95, 1
      %p874 = scmp.ne.s32.totalorder %s869, %s871
      %p875 = scmp.eq.s32.totalorder %s95, 0
      %p876 = por %p874, %p875
      %p877 = scmp.ne.s32.totalorder %s869, %s871
      %p878 = scmp.eq.s32.totalorder %s100, 1
      %p879 = por %p877, %p878
      %p880 = scmp.ne.s32.totalorder %s871, %s872
      %p881 = scmp.eq.s32.totalorder %s100, 0
      %p882 = por %p880, %p881
      %p883 = scmp.ne.s32.totalorder %s871, %s872
      %p884 = scmp.eq.s32.totalorder %s101, 1
      %p885 = por %p883, %p884
      %p887 = scmp.ne.s32.totalorder %s872, %s886
      %p888 = scmp.eq.s32.totalorder %s101, 0
      %p889 = por %p887, %p888
      %s891 = sadd.s32 %s890, 1
      %p894 = scmp.eq.s32.totalorder %s95, 1
      %p895 = scmp.ne.s32.totalorder %s890, %s892
      %p896 = scmp.eq.s32.totalorder %s95, 0
      %p897 = por %p895, %p896
      %p898 = scmp.ne.s32.totalorder %s890, %s892
      %p899 = scmp.eq.s32.totalorder %s100, 1
      %p900 = por %p898, %p899
      %p901 = scmp.ne.s32.totalorder %s892, %s893
      %p902 = scmp.eq.s32.totalorder %s100, 0
      %p903 = por %p901, %p902
      %p904 = scmp.ne.s32.totalorder %s892, %s893
      %p905 = scmp.eq.s32.totalorder %s101, 1
      %p906 = por %p904, %p905
      %p908 = scmp.ne.s32.totalorder %s893, %s907
      %p909 = scmp.eq.s32.totalorder %s101, 0
      %p910 = por %p908, %p909
      %s911 = ssub.s32 %s95, %s102
      %p912 = scmp.eq.s32.totalorder %s911, 0
      %s914 = sadd.s32 %s913, 1
      %s915 = scalar_select %p912, %s913, %s914
      %p918 = pneg %p912
      %p919 = scmp.eq.s32.totalorder %s95, 1
      %p920 = por %p918, %p919
      %p921 = scmp.ne.s32.totalorder %s913, %s916
      %p922 = scmp.eq.s32.totalorder %s95, 0
      %p923 = por %p921, %p922
      %p924 = scmp.ne.s32.totalorder %s913, %s916
      %p925 = scmp.eq.s32.totalorder %s100, 1
      %p926 = por %p924, %p925
      %p927 = scmp.ne.s32.totalorder %s916, %s917
      %p928 = scmp.eq.s32.totalorder %s100, 0
      %p929 = por %p927, %p928
      %p930 = scmp.ne.s32.totalorder %s916, %s917
      %p931 = scmp.eq.s32.totalorder %s101, 1
      %p932 = por %p930, %p931
      %p934 = scmp.ne.s32.totalorder %s917, %s933
      %p935 = scmp.eq.s32.totalorder %s101, 0
      %p936 = por %p934, %p935
      %p937 = scmp.le.s32.totalorder 1, %s95
      %p938 = scmp.lt.s32.totalorder %s95, 3
      %p939 = pnand %p937, %p938
      %p940 = pneg %p939
      // Predicated region
      $region9: #{dmstgcn_forward.1} parent=5 // pred_check
        _
      $region10: #{dmstgcn_forward.1} parent=5 // pred_check_branch
        %942 = sbr.rel (%p939) target = $region12
      $region11: #{dmstgcn_forward.1} parent=5 // pred_region
        %s943 = ssub.s32 %s95, 1
        // Predicated region
        $region13: #{dmstgcn_forward.1} parent=11 // pred_check
          %p944 = pneg %p168
        $region14: #{dmstgcn_forward.1} parent=11 // pred_check_branch
          %946 = sbr.rel (%p944) target = $region16
        $region15: #{dmstgcn_forward.1} parent=11 // pred_region
          %s948 = ssub.s32 256, 256
          %949 = vsyncadd [#allocation4], %s948
          %s950 = sshll.u32 [#allocation3], 4
          %s951 = int_to_ptr.vmem [resolvable:$true] %s950
          %956 = dma.hbm_to_vmem [thread:$0]  %s5, 256, %s951, [#allocation4], 128, 128, 8
        $region16: #{dmstgcn_forward.1} parent=11 // pred_fallthru
          _
        // Predicated region
        $region17: #{dmstgcn_forward.1} parent=11 // pred_check
          %p957 = pneg %p189
        $region18: #{dmstgcn_forward.1} parent=11 // pred_check_branch
          %959 = sbr.rel (%p957) target = $region20
        $region19: #{dmstgcn_forward.1} parent=11 // pred_region
          %s961 = ssub.s32 256, 256
          %962 = vsyncadd [#allocation6], %s961
          %s963 = sshll.u32 [#allocation5], 4
          %s964 = int_to_ptr.vmem [resolvable:$true] %s963
          %969 = dma.hbm_to_vmem [thread:$0]  %s7, 256, %s964, [#allocation6], 128, 128, 8
        $region20: #{dmstgcn_forward.1} parent=11 // pred_fallthru
          _
        // Predicated region
        $region21: #{dmstgcn_forward.1} parent=11 // pred_check
          %p970 = pneg %p210
        $region22: #{dmstgcn_forward.1} parent=11 // pred_check_branch
          %972 = sbr.rel (%p970) target = $region24
        $region23: #{dmstgcn_forward.1} parent=11 // pred_region
          _
        $region24: #{dmstgcn_forward.1} parent=11 // pred_fallthru
          _
        // Predicated region
        $region25: #{dmstgcn_forward.1} parent=11 // pred_check
          %p973 = pneg %p231
        $region26: #{dmstgcn_forward.1} parent=11 // pred_check_branch
          %975 = sbr.rel (%p973) target = $region28
        $region27: #{dmstgcn_forward.1} parent=11 // pred_region
          %s977 = ssub.s32 32, 32
          %978 = vsyncadd [#allocation6], %s977
          %s980 = sshll.u32 [#allocation7], 4
          %s981 = int_to_ptr.vmem [resolvable:$true] %s980
          %983 = dma.hbm_to_vmem [thread:$0]  %s11, 32, %s981, [#allocation6]
        $region28: #{dmstgcn_forward.1} parent=11 // pred_fallthru
          _
        // Predicated region
        $region29: #{dmstgcn_forward.1} parent=11 // pred_check
          %p984 = pneg %p252
        $region30: #{dmstgcn_forward.1} parent=11 // pred_check_branch
          %986 = sbr.rel (%p984) target = $region32
        $region31: #{dmstgcn_forward.1} parent=11 // pred_region
          _
        $region32: #{dmstgcn_forward.1} parent=11 // pred_fallthru
          _
        // Predicated region
        $region33: #{dmstgcn_forward.1} parent=11 // pred_check
          %p987 = pneg %p273
        $region34: #{dmstgcn_forward.1} parent=11 // pred_check_branch
          %989 = sbr.rel (%p987) target = $region36
        $region35: #{dmstgcn_forward.1} parent=11 // pred_region
          _
        $region36: #{dmstgcn_forward.1} parent=11 // pred_fallthru
          _
        // Predicated region
        $region37: #{dmstgcn_forward.1} parent=11 // pred_check
          %p990 = pneg %p294
        $region38: #{dmstgcn_forward.1} parent=11 // pred_check_branch
          %992 = sbr.rel (%p990) target = $region40
        $region39: #{dmstgcn_forward.1} parent=11 // pred_region
          _
        $region40: #{dmstgcn_forward.1} parent=11 // pred_fallthru
          _
        // Predicated region
        $region41: #{dmstgcn_forward.1} parent=11 // pred_check
          %p993 = pneg %p315
        $region42: #{dmstgcn_forward.1} parent=11 // pred_check_branch
          %995 = sbr.rel (%p993) target = $region44
        $region43: #{dmstgcn_forward.1} parent=11 // pred_region
          %s997 = ssub.s32 3072, 3072
          %998 = vsyncadd [#allocation9], %s997
          %s999 = sshll.u32 [#allocation8], 4
          %s1000 = int_to_ptr.vmem [resolvable:$true] %s999
          %1005 = dma.hbm_to_vmem [thread:$0]  %s19, 3072, %s1000, [#allocation9], 128, 128, 8
        $region44: #{dmstgcn_forward.1} parent=11 // pred_fallthru
          _
        // Predicated region
        $region45: #{dmstgcn_forward.1} parent=11 // pred_check
          %p1006 = pneg %p336
        $region46: #{dmstgcn_forward.1} parent=11 // pred_check_branch
          %1008 = sbr.rel (%p1006) target = $region48
        $region47: #{dmstgcn_forward.1} parent=11 // pred_region
          %s1010 = ssub.s32 16, 16
          %1011 = vsyncadd [#allocation9], %s1010
          %s1013 = sshll.u32 [#allocation10], 4
          %s1014 = int_to_ptr.vmem [resolvable:$true] %s1013
          %1016 = dma.hbm_to_vmem [thread:$0]  %s21, 16, %s1014, [#allocation9]
        $region48: #{dmstgcn_forward.1} parent=11 // pred_fallthru
          _
        // Predicated region
        $region49: #{dmstgcn_forward.1} parent=11 // pred_check
          %p1017 = pneg %p357
        $region50: #{dmstgcn_forward.1} parent=11 // pred_check_branch
          %1019 = sbr.rel (%p1017) target = $region52
        $region51: #{dmstgcn_forward.1} parent=11 // pred_region
          _
        $region52: #{dmstgcn_forward.1} parent=11 // pred_fallthru
          _
        // Predicated region
        $region53: #{dmstgcn_forward.1} parent=11 // pred_check
          %p1020 = pneg %p378
        $region54: #{dmstgcn_forward.1} parent=11 // pred_check_branch
          %1022 = sbr.rel (%p1020) target = $region56
        $region55: #{dmstgcn_forward.1} parent=11 // pred_region
          %s1024 = ssub.s32 32, 32
          %1025 = vsyncadd [#allocation12], %s1024
          %s1027 = sshll.u32 [#allocation11], 4
          %s1028 = int_to_ptr.vmem [resolvable:$true] %s1027
          %1030 = dma.hbm_to_vmem [thread:$0]  %s25, 32, %s1028, [#allocation12]
        $region56: #{dmstgcn_forward.1} parent=11 // pred_fallthru
          _
        // Predicated region
        $region57: #{dmstgcn_forward.1} parent=11 // pred_check
          %p1031 = pneg %p399
        $region58: #{dmstgcn_forward.1} parent=11 // pred_check_branch
          %1033 = sbr.rel (%p1031) target = $region60
        $region59: #{dmstgcn_forward.1} parent=11 // pred_region
          _
        $region60: #{dmstgcn_forward.1} parent=11 // pred_fallthru
          _
        // Predicated region
        $region61: #{dmstgcn_forward.1} parent=11 // pred_check
          %p1034 = pneg %p420
        $region62: #{dmstgcn_forward.1} parent=11 // pred_check_branch
          %1036 = sbr.rel (%p1034) target = $region64
        $region63: #{dmstgcn_forward.1} parent=11 // pred_region
          _
        $region64: #{dmstgcn_forward.1} parent=11 // pred_fallthru
          _
        // Predicated region
        $region65: #{dmstgcn_forward.1} parent=11 // pred_check
          %p1037 = pneg %p441
        $region66: #{dmstgcn_forward.1} parent=11 // pred_check_branch
          %1039 = sbr.rel (%p1037) target = $region68
        $region67: #{dmstgcn_forward.1} parent=11 // pred_region
          %s1041 = ssub.s32 48, 48
          %1042 = vsyncadd [#allocation12], %s1041
          %s1044 = sshll.u32 [#allocation13], 4
          %s1045 = int_to_ptr.vmem [resolvable:$true] %s1044
          %1047 = dma.hbm_to_vmem [thread:$0]  %s31, 48, %s1045, [#allocation12]
        $region68: #{dmstgcn_forward.1} parent=11 // pred_fallthru
          _
        // Predicated region
        $region69: #{dmstgcn_forward.1} parent=11 // pred_check
          %p1048 = pneg %p462
        $region70: #{dmstgcn_forward.1} parent=11 // pred_check_branch
          %1050 = sbr.rel (%p1048) target = $region72
        $region71: #{dmstgcn_forward.1} parent=11 // pred_region
          %s1052 = ssub.s32 2560, 2560
          %1053 = vsyncadd [#allocation15], %s1052
          %s1054 = sshll.u32 [#allocation14], 4
          %s1055 = int_to_ptr.vmem [resolvable:$true] %s1054
          %1060 = dma.hbm_to_vmem [thread:$0]  %s33, 2560, %s1055, [#allocation15], 128, 128, 8
        $region72: #{dmstgcn_forward.1} parent=11 // pred_fallthru
          _
        // Predicated region
        $region73: #{dmstgcn_forward.1} parent=11 // pred_check
          %p1061 = pneg %p483
        $region74: #{dmstgcn_forward.1} parent=11 // pred_check_branch
          %1063 = sbr.rel (%p1061) target = $region76
        $region75: #{dmstgcn_forward.1} parent=11 // pred_region
          %s1065 = ssub.s32 16, 16
          %1066 = vsyncadd [#allocation15], %s1065
          %s1068 = sshll.u32 [#allocation16], 4
          %s1069 = int_to_ptr.vmem [resolvable:$true] %s1068
          %1071 = dma.hbm_to_vmem [thread:$0]  %s35, 16, %s1069, [#allocation15]
        $region76: #{dmstgcn_forward.1} parent=11 // pred_fallthru
          _
        // Predicated region
        $region77: #{dmstgcn_forward.1} parent=11 // pred_check
          %p1072 = pneg %p504
        $region78: #{dmstgcn_forward.1} parent=11 // pred_check_branch
          %1074 = sbr.rel (%p1072) target = $region80
        $region79: #{dmstgcn_forward.1} parent=11 // pred_region
          _
        $region80: #{dmstgcn_forward.1} parent=11 // pred_fallthru
          _
        // Predicated region
        $region81: #{dmstgcn_forward.1} parent=11 // pred_check
          %p1075 = pneg %p525
        $region82: #{dmstgcn_forward.1} parent=11 // pred_check_branch
          %1077 = sbr.rel (%p1075) target = $region84
        $region83: #{dmstgcn_forward.1} parent=11 // pred_region
          %s1079 = ssub.s32 32, 32
          %1080 = vsyncadd [#allocation18], %s1079
          %s1082 = sshll.u32 [#allocation17], 4
          %s1083 = int_to_ptr.vmem [resolvable:$true] %s1082
          %1085 = dma.hbm_to_vmem [thread:$0]  %s39, 32, %s1083, [#allocation18]
        $region84: #{dmstgcn_forward.1} parent=11 // pred_fallthru
          _
        // Predicated region
        $region85: #{dmstgcn_forward.1} parent=11 // pred_check
          %p1086 = pneg %p546
        $region86: #{dmstgcn_forward.1} parent=11 // pred_check_branch
          %1088 = sbr.rel (%p1086) target = $region88
        $region87: #{dmstgcn_forward.1} parent=11 // pred_region
          _
        $region88: #{dmstgcn_forward.1} parent=11 // pred_fallthru
          _
        // Predicated region
        $region89: #{dmstgcn_forward.1} parent=11 // pred_check
          %p1089 = pneg %p567
        $region90: #{dmstgcn_forward.1} parent=11 // pred_check_branch
          %1091 = sbr.rel (%p1089) target = $region92
        $region91: #{dmstgcn_forward.1} parent=11 // pred_region
          _
        $region92: #{dmstgcn_forward.1} parent=11 // pred_fallthru
          _
        // Predicated region
        $region93: #{dmstgcn_forward.1} parent=11 // pred_check
          %p1092 = pneg %p588
        $region94: #{dmstgcn_forward.1} parent=11 // pred_check_branch
          %1094 = sbr.rel (%p1092) target = $region96
        $region95: #{dmstgcn_forward.1} parent=11 // pred_region
          %s1096 = ssub.s32 48, 48
          %1097 = vsyncadd [#allocation18], %s1096
          %s1099 = sshll.u32 [#allocation19], 4
          %s1100 = int_to_ptr.vmem [resolvable:$true] %s1099
          %1102 = dma.hbm_to_vmem [thread:$0]  %s45, 48, %s1100, [#allocation18]
        $region96: #{dmstgcn_forward.1} parent=11 // pred_fallthru
          _
        // Predicated region
        $region97: #{dmstgcn_forward.1} parent=11 // pred_check
          %p1103 = pneg %p609
        $region98: #{dmstgcn_forward.1} parent=11 // pred_check_branch
          %1105 = sbr.rel (%p1103) target = $region100
        $region99: #{dmstgcn_forward.1} parent=11 // pred_region
          %s1107 = ssub.s32 2304, 2304
          %1108 = vsyncadd [#allocation21], %s1107
          %s1109 = sshll.u32 [#allocation20], 4
          %s1110 = int_to_ptr.vmem [resolvable:$true] %s1109
          %1115 = dma.hbm_to_vmem [thread:$0]  %s47, 2304, %s1110, [#allocation21], 128, 128, 8
        $region100: #{dmstgcn_forward.1} parent=11 // pred_fallthru
          _
        // Predicated region
        $region101: #{dmstgcn_forward.1} parent=11 // pred_check
          %p1116 = pneg %p630
        $region102: #{dmstgcn_forward.1} parent=11 // pred_check_branch
          %1118 = sbr.rel (%p1116) target = $region104
        $region103: #{dmstgcn_forward.1} parent=11 // pred_region
          %s1120 = ssub.s32 16, 16
          %1121 = vsyncadd [#allocation21], %s1120
          %s1123 = sshll.u32 [#allocation22], 4
          %s1124 = int_to_ptr.vmem [resolvable:$true] %s1123
          %1126 = dma.hbm_to_vmem [thread:$0]  %s49, 16, %s1124, [#allocation21]
        $region104: #{dmstgcn_forward.1} parent=11 // pred_fallthru
          _
        // Predicated region
        $region105: #{dmstgcn_forward.1} parent=11 // pred_check
          %p1127 = pneg %p651
        $region106: #{dmstgcn_forward.1} parent=11 // pred_check_branch
          %1129 = sbr.rel (%p1127) target = $region108
        $region107: #{dmstgcn_forward.1} parent=11 // pred_region
          _
        $region108: #{dmstgcn_forward.1} parent=11 // pred_fallthru
          _
        // Predicated region
        $region109: #{dmstgcn_forward.1} parent=11 // pred_check
          %p1130 = pneg %p672
        $region110: #{dmstgcn_forward.1} parent=11 // pred_check_branch
          %1132 = sbr.rel (%p1130) target = $region112
        $region111: #{dmstgcn_forward.1} parent=11 // pred_region
          %s1134 = ssub.s32 32, 32
          %1135 = vsyncadd [#allocation24], %s1134
          %s1137 = sshll.u32 [#allocation23], 4
          %s1138 = int_to_ptr.vmem [resolvable:$true] %s1137
          %1140 = dma.hbm_to_vmem [thread:$0]  %s53, 32, %s1138, [#allocation24]
        $region112: #{dmstgcn_forward.1} parent=11 // pred_fallthru
          _
        // Predicated region
        $region113: #{dmstgcn_forward.1} parent=11 // pred_check
          %p1141 = pneg %p693
        $region114: #{dmstgcn_forward.1} parent=11 // pred_check_branch
          %1143 = sbr.rel (%p1141) target = $region116
        $region115: #{dmstgcn_forward.1} parent=11 // pred_region
          %s1145 = ssub.s32 3584, 3584
          %1146 = vsyncadd [#allocation24], %s1145
          %s1147 = sshll.u32 [#allocation25], 4
          %s1148 = int_to_ptr.vmem [resolvable:$true] %s1147
          %1153 = dma.hbm_to_vmem [thread:$0]  %s55, 3584, %s1148, [#allocation24], 256, 256, 16
        $region116: #{dmstgcn_forward.1} parent=11 // pred_fallthru
          _
        // Predicated region
        $region117: #{dmstgcn_forward.1} parent=11 // pred_check
          %p1154 = pneg %p714
        $region118: #{dmstgcn_forward.1} parent=11 // pred_check_branch
          %1156 = sbr.rel (%p1154) target = $region120
        $region119: #{dmstgcn_forward.1} parent=11 // pred_region
          %s1158 = ssub.s32 3584, 3584
          %1159 = vsyncadd [#allocation27], %s1158
          %s1160 = sshll.u32 [#allocation26], 4
          %s1161 = int_to_ptr.vmem [resolvable:$true] %s1160
          %1166 = dma.hbm_to_vmem [thread:$0]  %s57, 3584, %s1161, [#allocation27], 256, 256, 16
        $region120: #{dmstgcn_forward.1} parent=11 // pred_fallthru
          _
        // Predicated region
        $region121: #{dmstgcn_forward.1} parent=11 // pred_check
          %p1167 = pneg %p735
        $region122: #{dmstgcn_forward.1} parent=11 // pred_check_branch
          %1169 = sbr.rel (%p1167) target = $region124
        $region123: #{dmstgcn_forward.1} parent=11 // pred_region
          %s1171 = ssub.s32 32, 32
          %1172 = vsyncadd [#allocation27], %s1171
          %s1174 = sshll.u32 [#allocation28], 4
          %s1175 = int_to_ptr.vmem [resolvable:$true] %s1174
          %1177 = dma.hbm_to_vmem [thread:$0]  %s59, 32, %s1175, [#allocation27]
        $region124: #{dmstgcn_forward.1} parent=11 // pred_fallthru
          _
        // Predicated region
        $region125: #{dmstgcn_forward.1} parent=11 // pred_check
          %p1178 = pneg %p756
        $region126: #{dmstgcn_forward.1} parent=11 // pred_check_branch
          %1180 = sbr.rel (%p1178) target = $region128
        $region127: #{dmstgcn_forward.1} parent=11 // pred_region
          _
        $region128: #{dmstgcn_forward.1} parent=11 // pred_fallthru
          _
        // Predicated region
        $region129: #{dmstgcn_forward.1} parent=11 // pred_check
          %p1181 = pneg %p777
        $region130: #{dmstgcn_forward.1} parent=11 // pred_check_branch
          %1183 = sbr.rel (%p1181) target = $region132
        $region131: #{dmstgcn_forward.1} parent=11 // pred_region
          %s1185 = ssub.s32 16, 16
          %1186 = vsyncadd [#allocation30], %s1185
          %s1188 = sshll.u32 [#allocation29], 4
          %s1189 = int_to_ptr.vmem [resolvable:$true] %s1188
          %1191 = dma.hbm_to_vmem [thread:$0]  %s63, 16, %s1189, [#allocation30]
        $region132: #{dmstgcn_forward.1} parent=11 // pred_fallthru
          _
        // Predicated region
        $region133: #{dmstgcn_forward.1} parent=11 // pred_check
          %p1192 = pneg %p798
        $region134: #{dmstgcn_forward.1} parent=11 // pred_check_branch
          %1194 = sbr.rel (%p1192) target = $region136
        $region135: #{dmstgcn_forward.1} parent=11 // pred_region
          %s1196 = ssub.s32 5376, 5376
          %1197 = vsyncadd [#allocation30], %s1196
          %s1198 = sshll.u32 [#allocation31], 4
          %s1199 = int_to_ptr.vmem [resolvable:$true] %s1198
          %1204 = dma.hbm_to_vmem [thread:$0]  %s65, 5376, %s1199, [#allocation30], 128, 128, 8
        $region136: #{dmstgcn_forward.1} parent=11 // pred_fallthru
          _
        // Predicated region
        $region137: #{dmstgcn_forward.1} parent=11 // pred_check
          %p1205 = pneg %p819
        $region138: #{dmstgcn_forward.1} parent=11 // pred_check_branch
          %1207 = sbr.rel (%p1205) target = $region140
        $region139: #{dmstgcn_forward.1} parent=11 // pred_region
          %s1209 = ssub.s32 16, 16
          %1210 = vsyncadd [#allocation33], %s1209
          %s1212 = sshll.u32 [#allocation32], 4
          %s1213 = int_to_ptr.vmem [resolvable:$true] %s1212
          %1215 = dma.hbm_to_vmem [thread:$0]  %s67, 16, %s1213, [#allocation33]
        $region140: #{dmstgcn_forward.1} parent=11 // pred_fallthru
          _
        // Predicated region
        $region141: #{dmstgcn_forward.1} parent=11 // pred_check
          %p1216 = pneg %p840
        $region142: #{dmstgcn_forward.1} parent=11 // pred_check_branch
          %1218 = sbr.rel (%p1216) target = $region144
        $region143: #{dmstgcn_forward.1} parent=11 // pred_region
          _
        $region144: #{dmstgcn_forward.1} parent=11 // pred_fallthru
          _
        // Predicated region
        $region145: #{dmstgcn_forward.1} parent=11 // pred_check
          %p1219 = pneg %p861
        $region146: #{dmstgcn_forward.1} parent=11 // pred_check_branch
          %1221 = sbr.rel (%p1219) target = $region148
        $region147: #{dmstgcn_forward.1} parent=11 // pred_region
          %s1223 = ssub.s32 48, 48
          %1224 = vsyncadd [#allocation33], %s1223
          %s1226 = sshll.u32 [#allocation34], 4
          %s1227 = int_to_ptr.vmem [resolvable:$true] %s1226
          %1229 = dma.hbm_to_vmem [thread:$0]  %s71, 48, %s1227, [#allocation33]
        $region148: #{dmstgcn_forward.1} parent=11 // pred_fallthru
          _
        // Predicated region
        $region149: #{dmstgcn_forward.1} parent=11 // pred_check
          %p1230 = pneg %p882
        $region150: #{dmstgcn_forward.1} parent=11 // pred_check_branch
          %1232 = sbr.rel (%p1230) target = $region152
        $region151: #{dmstgcn_forward.1} parent=11 // pred_region
          _
        $region152: #{dmstgcn_forward.1} parent=11 // pred_fallthru
          _
        // Predicated region
        $region153: #{dmstgcn_forward.1} parent=11 // pred_check
          %p1233 = pneg %p903
        $region154: #{dmstgcn_forward.1} parent=11 // pred_check_branch
          %1235 = sbr.rel (%p1233) target = $region156
        $region155: #{dmstgcn_forward.1} parent=11 // pred_region
          %s1237 = ssub.s32 16, 16
          %1238 = vsyncadd [#allocation36], %s1237
          %s1240 = sshll.u32 [#allocation35], 4
          %s1241 = int_to_ptr.vmem [resolvable:$true] %s1240
          %1243 = dma.hbm_to_vmem [thread:$0]  %s75, 16, %s1241, [#allocation36]
        $region156: #{dmstgcn_forward.1} parent=11 // pred_fallthru
          _
      $region12: #{dmstgcn_forward.1} parent=5 // pred_fallthru
        _
      %p1244 = scmp.lt.s32.totalorder %s95, 2
      // Predicated region
      $region157: #{dmstgcn_forward.1} parent=5 // pred_check
        %p1245 = pneg %p1244
      $region158: #{dmstgcn_forward.1} parent=5 // pred_check_branch
        %1247 = sbr.rel (%p1245) target = $region160
      $region159: #{dmstgcn_forward.1} parent=5 // pred_region
        // Predicated region
        $region161: #{dmstgcn_forward.1} parent=159 // pred_check
          %p1248 = pneg %p115
        $region162: #{dmstgcn_forward.1} parent=159 // pred_check_branch
          %1250 = sbr.rel (%p1248) target = $region164
        $region163: #{dmstgcn_forward.1} parent=159 // pred_region
          %p1251 = scmp.lt.s32.totalorder %s95, 1
          %s1252 = scalar_select %p1251, %s95, 1
          %s1253 = smul.addr %s1252, 2
          %s1254 = smul.addr %s1253, 8
          %s1255 = scalar_lea.vmem %s1, %s1254
        $region164: #{dmstgcn_forward.1} parent=159 // pred_fallthru
          _
        // Predicated region
        $region165: #{dmstgcn_forward.1} parent=159 // pred_check
          %p1256 = pneg %p141
        $region166: #{dmstgcn_forward.1} parent=159 // pred_check_branch
          %1258 = sbr.rel (%p1256) target = $region168
        $region167: #{dmstgcn_forward.1} parent=159 // pred_region
          %p1259 = scmp.lt.s32.totalorder %s95, 1
          %s1260 = scalar_select %p1259, %s95, 1
          %s1261 = smul.addr %s1260, 2
          %s1262 = smul.addr %s1261, 8
          %s1263 = scalar_lea.vmem %s3, %s1262
        $region168: #{dmstgcn_forward.1} parent=159 // pred_fallthru
          _
      $region160: #{dmstgcn_forward.1} parent=5 // pred_fallthru
        _
      %p1264 = scmp.le.s32.totalorder 1, %s95
      %p1265 = scmp.lt.s32.totalorder %s95, 3
      %p1266 = pnand %p1264, %p1265
      %p1267 = pneg %p1266
      // Predicated region
      $region169: #{dmstgcn_forward.1} parent=5 // pred_check
        _
      $region170: #{dmstgcn_forward.1} parent=5 // pred_check_branch
        %1269 = sbr.rel (%p1266) target = $region172
      $region171: #{dmstgcn_forward.1} parent=5 // pred_region
        %s1270 = ssub.s32 %s95, 1
        // Predicated region
        $region173: #{dmstgcn_forward.1} parent=171 // pred_check
          %p1271 = pneg %p168
        $region174: #{dmstgcn_forward.1} parent=171 // pred_check_branch
          %1273 = sbr.rel (%p1271) target = $region176
        $region175: #{dmstgcn_forward.1} parent=171 // pred_region
          %1274 = dma.done [#allocation4], 256
        $region176: #{dmstgcn_forward.1} parent=171 // pred_fallthru
          _
        // Predicated region
        $region177: #{dmstgcn_forward.1} parent=171 // pred_check
          %p1275 = pneg %p189
        $region178: #{dmstgcn_forward.1} parent=171 // pred_check_branch
          %1277 = sbr.rel (%p1275) target = $region180
        $region179: #{dmstgcn_forward.1} parent=171 // pred_region
          %1278 = dma.done [#allocation6], 256
        $region180: #{dmstgcn_forward.1} parent=171 // pred_fallthru
          _
        // Predicated region
        $region181: #{dmstgcn_forward.1} parent=171 // pred_check
          %p1279 = pneg %p231
        $region182: #{dmstgcn_forward.1} parent=171 // pred_check_branch
          %1281 = sbr.rel (%p1279) target = $region184
        $region183: #{dmstgcn_forward.1} parent=171 // pred_region
          %1282 = dma.done [#allocation6], 32
        $region184: #{dmstgcn_forward.1} parent=171 // pred_fallthru
          _
        // Predicated region
        $region185: #{dmstgcn_forward.1} parent=171 // pred_check
          %p1283 = pneg %p315
        $region186: #{dmstgcn_forward.1} parent=171 // pred_check_branch
          %1285 = sbr.rel (%p1283) target = $region188
        $region187: #{dmstgcn_forward.1} parent=171 // pred_region
          %1286 = dma.done [#allocation9], 3072
        $region188: #{dmstgcn_forward.1} parent=171 // pred_fallthru
          _
        // Predicated region
        $region189: #{dmstgcn_forward.1} parent=171 // pred_check
          %p1287 = pneg %p336
        $region190: #{dmstgcn_forward.1} parent=171 // pred_check_branch
          %1289 = sbr.rel (%p1287) target = $region192
        $region191: #{dmstgcn_forward.1} parent=171 // pred_region
          %1290 = dma.done [#allocation9], 16
        $region192: #{dmstgcn_forward.1} parent=171 // pred_fallthru
          _
        // Predicated region
        $region193: #{dmstgcn_forward.1} parent=171 // pred_check
          %p1291 = pneg %p378
        $region194: #{dmstgcn_forward.1} parent=171 // pred_check_branch
          %1293 = sbr.rel (%p1291) target = $region196
        $region195: #{dmstgcn_forward.1} parent=171 // pred_region
          %1294 = dma.done [#allocation12], 32
        $region196: #{dmstgcn_forward.1} parent=171 // pred_fallthru
          _
        // Predicated region
        $region197: #{dmstgcn_forward.1} parent=171 // pred_check
          %p1295 = pneg %p441
        $region198: #{dmstgcn_forward.1} parent=171 // pred_check_branch
          %1297 = sbr.rel (%p1295) target = $region200
        $region199: #{dmstgcn_forward.1} parent=171 // pred_region
          %1298 = dma.done [#allocation12], 48
        $region200: #{dmstgcn_forward.1} parent=171 // pred_fallthru
          _
        // Predicated region
        $region201: #{dmstgcn_forward.1} parent=171 // pred_check
          %p1299 = pneg %p462
        $region202: #{dmstgcn_forward.1} parent=171 // pred_check_branch
          %1301 = sbr.rel (%p1299) target = $region204
        $region203: #{dmstgcn_forward.1} parent=171 // pred_region
          %1302 = dma.done [#allocation15], 2560
        $region204: #{dmstgcn_forward.1} parent=171 // pred_fallthru
          _
        // Predicated region
        $region205: #{dmstgcn_forward.1} parent=171 // pred_check
          %p1303 = pneg %p483
        $region206: #{dmstgcn_forward.1} parent=171 // pred_check_branch
          %1305 = sbr.rel (%p1303) target = $region208
        $region207: #{dmstgcn_forward.1} parent=171 // pred_region
          %1306 = dma.done [#allocation15], 16
        $region208: #{dmstgcn_forward.1} parent=171 // pred_fallthru
          _
        // Predicated region
        $region209: #{dmstgcn_forward.1} parent=171 // pred_check
          %p1307 = pneg %p525
        $region210: #{dmstgcn_forward.1} parent=171 // pred_check_branch
          %1309 = sbr.rel (%p1307) target = $region212
        $region211: #{dmstgcn_forward.1} parent=171 // pred_region
          %1310 = dma.done [#allocation18], 32
        $region212: #{dmstgcn_forward.1} parent=171 // pred_fallthru
          _
        // Predicated region
        $region213: #{dmstgcn_forward.1} parent=171 // pred_check
          %p1311 = pneg %p588
        $region214: #{dmstgcn_forward.1} parent=171 // pred_check_branch
          %1313 = sbr.rel (%p1311) target = $region216
        $region215: #{dmstgcn_forward.1} parent=171 // pred_region
          %1314 = dma.done [#allocation18], 48
        $region216: #{dmstgcn_forward.1} parent=171 // pred_fallthru
          _
        // Predicated region
        $region217: #{dmstgcn_forward.1} parent=171 // pred_check
          %p1315 = pneg %p609
        $region218: #{dmstgcn_forward.1} parent=171 // pred_check_branch
          %1317 = sbr.rel (%p1315) target = $region220
        $region219: #{dmstgcn_forward.1} parent=171 // pred_region
          %1318 = dma.done [#allocation21], 2304
        $region220: #{dmstgcn_forward.1} parent=171 // pred_fallthru
          _
        // Predicated region
        $region221: #{dmstgcn_forward.1} parent=171 // pred_check
          %p1319 = pneg %p630
        $region222: #{dmstgcn_forward.1} parent=171 // pred_check_branch
          %1321 = sbr.rel (%p1319) target = $region224
        $region223: #{dmstgcn_forward.1} parent=171 // pred_region
          %1322 = dma.done [#allocation21], 16
        $region224: #{dmstgcn_forward.1} parent=171 // pred_fallthru
          _
        // Predicated region
        $region225: #{dmstgcn_forward.1} parent=171 // pred_check
          %p1323 = pneg %p672
        $region226: #{dmstgcn_forward.1} parent=171 // pred_check_branch
          %1325 = sbr.rel (%p1323) target = $region228
        $region227: #{dmstgcn_forward.1} parent=171 // pred_region
          %1326 = dma.done [#allocation24], 32
        $region228: #{dmstgcn_forward.1} parent=171 // pred_fallthru
          _
        // Predicated region
        $region229: #{dmstgcn_forward.1} parent=171 // pred_check
          %p1327 = pneg %p693
        $region230: #{dmstgcn_forward.1} parent=171 // pred_check_branch
          %1329 = sbr.rel (%p1327) target = $region232
        $region231: #{dmstgcn_forward.1} parent=171 // pred_region
          %1330 = dma.done [#allocation24], 3584
        $region232: #{dmstgcn_forward.1} parent=171 // pred_fallthru
          _
        // Predicated region
        $region233: #{dmstgcn_forward.1} parent=171 // pred_check
          %p1331 = pneg %p714
        $region234: #{dmstgcn_forward.1} parent=171 // pred_check_branch
          %1333 = sbr.rel (%p1331) target = $region236
        $region235: #{dmstgcn_forward.1} parent=171 // pred_region
          %1334 = dma.done [#allocation27], 3584
        $region236: #{dmstgcn_forward.1} parent=171 // pred_fallthru
          _
        // Predicated region
        $region237: #{dmstgcn_forward.1} parent=171 // pred_check
          %p1335 = pneg %p735
        $region238: #{dmstgcn_forward.1} parent=171 // pred_check_branch
          %1337 = sbr.rel (%p1335) target = $region240
        $region239: #{dmstgcn_forward.1} parent=171 // pred_region
          %1338 = dma.done [#allocation27], 32
        $region240: #{dmstgcn_forward.1} parent=171 // pred_fallthru
          _
        // Predicated region
        $region241: #{dmstgcn_forward.1} parent=171 // pred_check
          %p1339 = pneg %p777
        $region242: #{dmstgcn_forward.1} parent=171 // pred_check_branch
          %1341 = sbr.rel (%p1339) target = $region244
        $region243: #{dmstgcn_forward.1} parent=171 // pred_region
          %1342 = dma.done [#allocation30], 16
        $region244: #{dmstgcn_forward.1} parent=171 // pred_fallthru
          _
        // Predicated region
        $region245: #{dmstgcn_forward.1} parent=171 // pred_check
          %p1343 = pneg %p798
        $region246: #{dmstgcn_forward.1} parent=171 // pred_check_branch
          %1345 = sbr.rel (%p1343) target = $region248
        $region247: #{dmstgcn_forward.1} parent=171 // pred_region
          %1346 = dma.done [#allocation30], 5376
        $region248: #{dmstgcn_forward.1} parent=171 // pred_fallthru
          _
        // Predicated region
        $region249: #{dmstgcn_forward.1} parent=171 // pred_check
          %p1347 = pneg %p819
        $region250: #{dmstgcn_forward.1} parent=171 // pred_check_branch
          %1349 = sbr.rel (%p1347) target = $region252
        $region251: #{dmstgcn_forward.1} parent=171 // pred_region
          %1350 = dma.done [#allocation33], 16
        $region252: #{dmstgcn_forward.1} parent=171 // pred_fallthru
          _
        // Predicated region
        $region253: #{dmstgcn_forward.1} parent=171 // pred_check
          %p1351 = pneg %p861
        $region254: #{dmstgcn_forward.1} parent=171 // pred_check_branch
          %1353 = sbr.rel (%p1351) target = $region256
        $region255: #{dmstgcn_forward.1} parent=171 // pred_region
          %1354 = dma.done [#allocation33], 48
        $region256: #{dmstgcn_forward.1} parent=171 // pred_fallthru
          _
        // Predicated region
        $region257: #{dmstgcn_forward.1} parent=171 // pred_check
          %p1355 = pneg %p903
        $region258: #{dmstgcn_forward.1} parent=171 // pred_check_branch
          %1357 = sbr.rel (%p1355) target = $region260
        $region259: #{dmstgcn_forward.1} parent=171 // pred_region
          %1358 = dma.done [#allocation36], 16
        $region260: #{dmstgcn_forward.1} parent=171 // pred_fallthru
          _
        %p1359 = scmp.lt.s32.totalorder %s100, 1
        %s1360 = scalar_select %p1359, %s100, 1
        %s1361 = smul.addr %s1360, 2
        %s1362 = smul.addr %s1361, 8
        %s1363 = scalar_lea.vmem %s1, %s1362
        %p1364 = pneg %p121
        %p1365 = pneg %p118
        %p1366 = scmp.lt.s32.totalorder %s100, 1
        %s1367 = scalar_select %p1366, %s100, 1
        %s1368 = smul.addr %s1367, 2
        %s1369 = smul.addr %s1368, 8
        %s1370 = scalar_lea.vmem %s3, %s1369
        %p1371 = pneg %p147
        %p1372 = pneg %p144
        %p1373 = pneg %p168
        %p1374 = pneg %p165
        %p1375 = pneg %p189
        %p1376 = pneg %p186
        %p1377 = pneg %p210
        %p1378 = pneg %p207
        %p1379 = pneg %p231
        %p1380 = pneg %p228
        %p1381 = pneg %p252
        %p1382 = pneg %p249
        %p1383 = pneg %p273
        %p1384 = pneg %p270
        %p1385 = pneg %p294
        %p1386 = pneg %p291
        %p1387 = pneg %p315
        %p1388 = pneg %p312
        %p1389 = pneg %p336
        %p1390 = pneg %p333
        %p1391 = pneg %p357
        %p1392 = pneg %p354
        %p1393 = pneg %p378
        %p1394 = pneg %p375
        %p1395 = pneg %p399
        %p1396 = pneg %p396
        %p1397 = pneg %p420
        %p1398 = pneg %p417
        %p1399 = pneg %p441
        %p1400 = pneg %p438
        %p1401 = pneg %p462
        %p1402 = pneg %p459
        %p1403 = pneg %p483
        %p1404 = pneg %p480
        %p1405 = pneg %p504
        %p1406 = pneg %p501
        %p1407 = pneg %p525
        %p1408 = pneg %p522
        %p1409 = pneg %p546
        %p1410 = pneg %p543
        %p1411 = pneg %p567
        %p1412 = pneg %p564
        %p1413 = pneg %p588
        %p1414 = pneg %p585
        %p1415 = pneg %p609
        %p1416 = pneg %p606
        %p1417 = pneg %p630
        %p1418 = pneg %p627
        %p1419 = pneg %p651
        %p1420 = pneg %p648
        %p1421 = pneg %p672
        %p1422 = pneg %p669
        %p1423 = pneg %p693
        %p1424 = pneg %p690
        %p1425 = pneg %p714
        %p1426 = pneg %p711
        %p1427 = pneg %p735
        %p1428 = pneg %p732
        %p1429 = pneg %p756
        %p1430 = pneg %p753
        %p1431 = pneg %p777
        %p1432 = pneg %p774
        %p1433 = pneg %p798
        %p1434 = pneg %p795
        %p1435 = pneg %p819
        %p1436 = pneg %p816
        %p1437 = pneg %p840
        %p1438 = pneg %p837
        %p1439 = pneg %p861
        %p1440 = pneg %p858
        %p1441 = pneg %p882
        %p1442 = pneg %p879
        %p1443 = pneg %p903
        %p1444 = pneg %p900
        %p1445 = pneg %p929
        %p1446 = pneg %p926
        %p1447 = scmp.lt.s32.totalorder %s100, 1
        %s1448 = scalar_select %p1447, %s100, 1
        %s1449 = smul.addr %s1448, 2
        %s1450 = smul.addr %s1449, 8
        %s1451 = scalar_lea.vmem %s77, %s1450
        %p1452 = scmp.lt.s32.totalorder %s100, 1
        %s1453 = scalar_select %p1452, %s100, 1
        %s1454 = smul.addr %s1453, 2
        %s1455 = smul.addr %s1454, 8
        %s1456 = scalar_lea.vmem %s1, %s1455
        %p1457 = scmp.lt.s32.totalorder %s100, 1
        %s1458 = scalar_select %p1457, %s100, 1
        %s1459 = smul.addr %s1458, 2
        %s1460 = smul.addr %s1459, 8
        %s1461 = scalar_lea.vmem %s3, %s1460
        %p1462 = scmp.lt.s32.totalorder %s100, 1
        %s1463 = scalar_select %p1462, %s100, 1
        %s1464 = smul.addr %s1463, 2
        %s1465 = smul.addr %s1464, 8
        %s1466 = scalar_lea.vmem %s77, %s1465
        %v1467 = vld [vmem:[#allocation3] sm:$0xff]
        %v1468 = vld [vmem:[#allocation3 + $0x8] sm:$0xff]
        %v1469 = vld [vmem:[%s1461] sm:$0xff]
        %v1470 = vld [vmem:[%s1461 + $0x8] sm:$0xff]
        %vm1471 = vcmask 130048
        %v1473 = vsel %vm1471, %v1467, 0
        %v1476 = vsel %vm1471, %v1468, 0
        %1478 = vmatprep.subr.mxu0 0.0
        %1479 = vmatpush1.msra.mxu0 %v1469
        %1480 = vmatprep.subr.mxu0 0.0
        %1481 = vmatpush1.msra.mxu0 %v1470
        %1482 = vmatprep.subr.mxu0 0.0
        %1483 = vmatpush1.msra.mxu0 0.0
        %1484 = vmatprep.subr.mxu0 0.0
        %1485 = vmatpush1.msra.mxu0 0.0
        %1486 = vmatprep.subr.mxu0 0.0
        %1487 = vmatpush1.msra.mxu0 0.0
        %1488 = vmatprep.subr.mxu0 0.0
        %1489 = vmatpush1.msra.mxu0 0.0
        %1490 = vmatprep.subr.mxu0 0.0
        %1491 = vmatpush1.msra.mxu0 0.0
        %1492 = vmatprep.subr.mxu0 0.0
        %1493 = vmatpush1.msra.mxu0 0.0
        %1494 = vmatprep.subr.mxu0 0.0
        %1495 = vmatpush1.msra.mxu0 0.0
        %1496 = vmatprep.subr.mxu0 0.0
        %1497 = vmatpush1.msra.mxu0 0.0
        %1498 = vmatprep.subr.mxu0 0.0
        %1499 = vmatpush1.msra.mxu0 0.0
        %1500 = vmatprep.subr.mxu0 0.0
        %1501 = vmatpush1.msra.mxu0 0.0
        %1502 = vmatprep.subr.mxu0 0.0
        %1503 = vmatpush1.msra.mxu0 0.0
        %1504 = vmatprep.subr.mxu0 0.0
        %1505 = vmatpush1.msra.mxu0 0.0
        %1506 = vmatprep.subr.mxu0 0.0
        %1507 = vmatpush1.msra.mxu0 0.0
        %1508 = vmatprep.subr.mxu0 0.0
        %1509 = vmatpush1.msra.mxu0 0.0
        %1510 = vmatprep.subr.mxu0 0.0
        %1511 = vmatpush1.msra.mxu0 0.0
        %1512 = vmatprep.subr.mxu0 0.0
        %1513 = vmatpush1.msra.mxu0 0.0
        %1514 = vmatprep.subr.mxu0 0.0
        %1515 = vmatpush1.msra.mxu0 0.0
        %1516 = vmatprep.subr.mxu0 0.0
        %1517 = vmatpush1.msra.mxu0 0.0
        %1518 = vmatprep.subr.mxu0 0.0
        %1519 = vmatpush1.msra.mxu0 0.0
        %1520 = vmatprep.subr.mxu0 0.0
        %1521 = vmatpush1.msra.mxu0 0.0
        %1522 = vmatprep.subr.mxu0 0.0
        %1523 = vmatpush1.msra.mxu0 0.0
        %1524 = vmatprep.subr.mxu0 0.0
        %1525 = vmatpush1.msra.mxu0 0.0
        %1526 = vmatprep.subr.mxu0 0.0
        %1527 = vmatpush1.msra.mxu0 0.0
        %1528 = vmatprep.subr.mxu0 0.0
        %1529 = vmatpush1.msra.mxu0 0.0
        %1530 = vmatprep.subr.mxu0 0.0
        %1531 = vmatpush1.msra.mxu0 0.0
        %1532 = vmatprep.subr.mxu0 0.0
        %1533 = vmatpush1.msra.mxu0 0.0
        %1534 = vmatprep.subr.mxu0 0.0
        %1535 = vmatpush1.msra.mxu0 0.0
        %1536 = vmatprep.subr.mxu0 0.0
        %1537 = vmatpush1.msra.mxu0 0.0
        %1538 = vmatprep.subr.mxu0 0.0
        %1539 = vmatpush1.msra.mxu0 0.0
        %1540 = vmatprep.subr.mxu0 0.0
        %1541 = vmatpush1.msra.mxu0 0.0
        %1542 = vmatprep.mubr.f32.mxu0 0.0
        %1543 = vmatmul.mubr.f32.gmra.mrb[0].mxu0 %v1473
        %v1544 = vpop.f32.mrb[0].mxu0
        %v1545 = vadd.f32 0.0, %v1544
        %v1546 = vpop.f32.mrb[0].mxu0
        %1547 = vmatprep.mubr.f32.mxu0 0.0
        %1548 = vmatmul.mubr.f32.gmra.mrb[0].mxu0 %v1476
        %v1549 = vpop.f32.mrb[0].mxu0
        %v1550 = vadd.f32 0.0, %v1549
        %v1551 = vpop.f32.mrb[0].mxu0
        %1552 = vdwg.mxu0
        %v1553 = vld [vmem:[#allocation5] sm:$0xff]
        %v1554 = vld [vmem:[#allocation5 + $0x8] sm:$0xff]
        %v1556 = vsel %vm1471, %v1545, 0
        %v1559 = vsel %vm1471, %v1550, 0
        %1561 = vmatprep.subr.mxu0 0.0
        %1562 = vmatpush1.msra.mxu0 %v1553
        %1563 = vmatprep.subr.mxu0 0.0
        %1564 = vmatpush1.msra.mxu0 %v1554
        %1565 = vmatprep.subr.mxu0 0.0
        %1566 = vmatpush1.msra.mxu0 0.0
        %1567 = vmatprep.subr.mxu0 0.0
        %1568 = vmatpush1.msra.mxu0 0.0
        %1569 = vmatprep.subr.mxu0 0.0
        %1570 = vmatpush1.msra.mxu0 0.0
        %1571 = vmatprep.subr.mxu0 0.0
        %1572 = vmatpush1.msra.mxu0 0.0
        %1573 = vmatprep.subr.mxu0 0.0
        %1574 = vmatpush1.msra.mxu0 0.0
        %1575 = vmatprep.subr.mxu0 0.0
        %1576 = vmatpush1.msra.mxu0 0.0
        %1577 = vmatprep.subr.mxu0 0.0
        %1578 = vmatpush1.msra.mxu0 0.0
        %1579 = vmatprep.subr.mxu0 0.0
        %1580 = vmatpush1.msra.mxu0 0.0
        %1581 = vmatprep.subr.mxu0 0.0
        %1582 = vmatpush1.msra.mxu0 0.0
        %1583 = vmatprep.subr.mxu0 0.0
        %1584 = vmatpush1.msra.mxu0 0.0
        %1585 = vmatprep.subr.mxu0 0.0
        %1586 = vmatpush1.msra.mxu0 0.0
        %1587 = vmatprep.subr.mxu0 0.0
        %1588 = vmatpush1.msra.mxu0 0.0
        %1589 = vmatprep.subr.mxu0 0.0
        %1590 = vmatpush1.msra.mxu0 0.0
        %1591 = vmatprep.subr.mxu0 0.0
        %1592 = vmatpush1.msra.mxu0 0.0
        %1593 = vmatprep.subr.mxu0 0.0
        %1594 = vmatpush1.msra.mxu0 0.0
        %1595 = vmatprep.subr.mxu0 0.0
        %1596 = vmatpush1.msra.mxu0 0.0
        %1597 = vmatprep.subr.mxu0 0.0
        %1598 = vmatpush1.msra.mxu0 0.0
        %1599 = vmatprep.subr.mxu0 0.0
        %1600 = vmatpush1.msra.mxu0 0.0
        %1601 = vmatprep.subr.mxu0 0.0
        %1602 = vmatpush1.msra.mxu0 0.0
        %1603 = vmatprep.subr.mxu0 0.0
        %1604 = vmatpush1.msra.mxu0 0.0
        %1605 = vmatprep.subr.mxu0 0.0
        %1606 = vmatpush1.msra.mxu0 0.0
        %1607 = vmatprep.subr.mxu0 0.0
        %1608 = vmatpush1.msra.mxu0 0.0
        %1609 = vmatprep.subr.mxu0 0.0
        %1610 = vmatpush1.msra.mxu0 0.0
        %1611 = vmatprep.subr.mxu0 0.0
        %1612 = vmatpush1.msra.mxu0 0.0
        %1613 = vmatprep.subr.mxu0 0.0
        %1614 = vmatpush1.msra.mxu0 0.0
        %1615 = vmatprep.subr.mxu0 0.0
        %1616 = vmatpush1.msra.mxu0 0.0
        %1617 = vmatprep.subr.mxu0 0.0
        %1618 = vmatpush1.msra.mxu0 0.0
        %1619 = vmatprep.subr.mxu0 0.0
        %1620 = vmatpush1.msra.mxu0 0.0
        %1621 = vmatprep.subr.mxu0 0.0
        %1622 = vmatpush1.msra.mxu0 0.0
        %1623 = vmatprep.subr.mxu0 0.0
        %1624 = vmatpush1.msra.mxu0 0.0
        %1625 = vmatprep.mubr.f32.mxu0 0.0
        %1626 = vmatmul.mubr.f32.gmra.mrb[0].mxu0 %v1556
        %v1627 = vpop.f32.mrb[0].mxu0
        %v1628 = vadd.f32 0.0, %v1627
        %v1629 = vpop.f32.mrb[0].mxu0
        %1630 = vmatprep.mubr.f32.mxu0 0.0
        %1631 = vmatmul.mubr.f32.gmra.mrb[0].mxu0 %v1559
        %v1632 = vpop.f32.mrb[0].mxu0
        %v1633 = vadd.f32 0.0, %v1632
        %v1634 = vpop.f32.mrb[0].mxu0
        %1635 = vdwg.mxu0
        %v1636 = vmax.f32 %v1628, 0.0
        %v1637 = vmax.f32 %v1633, 0.0
        %v1638 = vsel %vm1471, %v1636, -inf
        %1639 = vmax.xlane.f32.xlu0 %v1638
        %v1640 = vpop.xlane.xlu0 %1639
        %v1641 = vsel %vm1471, %v1637, -inf
        %1642 = vmax.xlane.f32.xlu0 %v1641
        %v1643 = vpop.xlane.xlu0 %1642
        %v1644 = vsub.f32 %v1636, %v1640
        %v1645 = vsub.f32 %v1637, %v1643
        %v1646 = vmul.f32 %v1644, 1.442695
        %v1647 = vpow.pop %v1646
        %v1648 = vmul.f32 %v1645, 1.442695
        %v1649 = vpow.pop %v1648
        %v1650 = vsel %vm1471, %v1647, 0.0
        %1651 = vadd.xlane.f32.xlu0 %v1650
        %v1652 = vpop.xlane.xlu0 %1651
        %v1653 = vsel %vm1471, %v1649, 0.0
        %1654 = vadd.xlane.f32.xlu0 %v1653
        %v1655 = vpop.xlane.xlu0 %1654
        %v1656 = vrcp.pop %v1652
        %v1657 = vrcp.pop %v1655
        %v1658 = vmul.f32 %v1647, %v1656
        %v1659 = vmul.f32 %v1649, %v1657
        %v1660 = vld [vmem:[%s1456] sm:$0xff]
        %v1661 = vld [vmem:[%s1456 + $0x8] sm:$0xff]
        %v1662 = vld [vmem:[%s9] sm:$0xff]
        %v1663 = vld [vmem:[%s9 + $0x8] sm:$0xff]
        %v1664 = vld [vmem:[%s9 + $0x10] sm:$0x1f]
        %v1665 = vld [vmem:[%s9 + $0x18] sm:$0x1f]
        %v1666 = vld [vmem:[#allocation7] sm:$0x3]
        %v1668 = vlaneseq
        %v1669 = vshrl.u32 %v1668, 7
        %v1670 = vsub.s32 0, %v1669
        %v1671 = vrot.slane %v1666, %v1670
        %v1672 = vlaneseq
        %v1673 = vshrl.u32 %v1672, 7
        %v1674 = vsub.s32 1, %v1673
        %v1675 = vrot.slane %v1666, %v1674
        %vm1678 = vcmask 105472
        %v1680 = vsel %vm1678, %v1660, 0
        %v1683 = vsel %vm1678, %v1661, 0
        %vm1685 = vcmask 1044480
        %v1687 = vsel %vm1685, %v1664, 0
        %v1690 = vsel %vm1685, %v1665, 0
        %1692 = vmatprep.subr.mxu0 %v1663
        %1693 = vmatpush1.msra.mxu0 %v1662
        %1694 = vmatprep.subr.mxu0 %v1690
        %1695 = vmatpush1.msra.mxu0 %v1687
        %1696 = vmatprep.subr.mxu0 0.0
        %1697 = vmatpush1.msra.mxu0 0.0
        %1698 = vmatprep.subr.mxu0 0.0
        %1699 = vmatpush1.msra.mxu0 0.0
        %1700 = vmatprep.subr.mxu0 0.0
        %1701 = vmatpush1.msra.mxu0 0.0
        %1702 = vmatprep.subr.mxu0 0.0
        %1703 = vmatpush1.msra.mxu0 0.0
        %1704 = vmatprep.subr.mxu0 0.0
        %1705 = vmatpush1.msra.mxu0 0.0
        %1706 = vmatprep.subr.mxu0 0.0
        %1707 = vmatpush1.msra.mxu0 0.0
        %1708 = vmatprep.subr.mxu0 0.0
        %1709 = vmatpush1.msra.mxu0 0.0
        %1710 = vmatprep.subr.mxu0 0.0
        %1711 = vmatpush1.msra.mxu0 0.0
        %1712 = vmatprep.subr.mxu0 0.0
        %1713 = vmatpush1.msra.mxu0 0.0
        %1714 = vmatprep.subr.mxu0 0.0
        %1715 = vmatpush1.msra.mxu0 0.0
        %1716 = vmatprep.subr.mxu0 0.0
        %1717 = vmatpush1.msra.mxu0 0.0
        %1718 = vmatprep.subr.mxu0 0.0
        %1719 = vmatpush1.msra.mxu0 0.0
        %1720 = vmatprep.subr.mxu0 0.0
        %1721 = vmatpush1.msra.mxu0 0.0
        %1722 = vmatprep.subr.mxu0 0.0
        %1723 = vmatpush1.msra.mxu0 0.0
        %1724 = vmatprep.subr.mxu0 0.0
        %1725 = vmatpush1.msra.mxu0 0.0
        %1726 = vmatprep.subr.mxu0 0.0
        %1727 = vmatpush1.msra.mxu0 0.0
        %1728 = vmatprep.subr.mxu0 0.0
        %1729 = vmatpush1.msra.mxu0 0.0
        %1730 = vmatprep.subr.mxu0 0.0
        %1731 = vmatpush1.msra.mxu0 0.0
        %1732 = vmatprep.subr.mxu0 0.0
        %1733 = vmatpush1.msra.mxu0 0.0
        %1734 = vmatprep.subr.mxu0 0.0
        %1735 = vmatpush1.msra.mxu0 0.0
        %1736 = vmatprep.subr.mxu0 0.0
        %1737 = vmatpush1.msra.mxu0 0.0
        %1738 = vmatprep.subr.mxu0 0.0
        %1739 = vmatpush1.msra.mxu0 0.0
        %1740 = vmatprep.subr.mxu0 0.0
        %1741 = vmatpush1.msra.mxu0 0.0
        %1742 = vmatprep.subr.mxu0 0.0
        %1743 = vmatpush1.msra.mxu0 0.0
        %1744 = vmatprep.subr.mxu0 0.0
        %1745 = vmatpush1.msra.mxu0 0.0
        %1746 = vmatprep.subr.mxu0 0.0
        %1747 = vmatpush1.msra.mxu0 0.0
        %1748 = vmatprep.subr.mxu0 0.0
        %1749 = vmatpush1.msra.mxu0 0.0
        %1750 = vmatprep.subr.mxu0 0.0
        %1751 = vmatpush1.msra.mxu0 0.0
        %1752 = vmatprep.subr.mxu0 0.0
        %1753 = vmatpush1.msra.mxu0 0.0
        %1754 = vmatprep.subr.mxu0 0.0
        %1755 = vmatpush1.msra.mxu0 0.0
        %1756 = vmatprep.mubr.f32.mxu0 0.0
        %1757 = vmatmul.mubr.f32.gmra.mrb[0].mxu0 %v1680
        %v1758 = vpop.f32.mrb[0].mxu0
        %v1759 = vadd.f32 %v1671, %v1758
        %v1760 = vpop.f32.mrb[0].mxu0
        %v1761 = vadd.f32 %v1675, %v1760
        %1762 = vmatprep.mubr.f32.mxu0 0.0
        %1763 = vmatmul.mubr.f32.gmra.mrb[0].mxu0 %v1683
        %v1764 = vpop.f32.mrb[0].mxu0
        %v1765 = vadd.f32 %v1671, %v1764
        %v1766 = vpop.f32.mrb[0].mxu0
        %v1767 = vadd.f32 %v1675, %v1766
        %1768 = vdwg.mxu0
        %v1769 = vld [vmem:[%s13] sm:$0xff]
        %v1770 = vld [vmem:[%s13 + $0x8] sm:$0xff]
        %v1771 = vld [vmem:[%s13 + $0x10] sm:$0xff]
        %v1772 = vld [vmem:[%s13 + $0x18] sm:$0xff]
        %v1773 = vld [vmem:[%s13 + $0x20] sm:$0xff]
        %v1774 = vld [vmem:[%s13 + $0x28] sm:$0xff]
        %v1775 = vld [vmem:[%s13 + $0x30] sm:$0xff]
        %v1776 = vld [vmem:[%s13 + $0x38] sm:$0xff]
        %v1777 = vld [vmem:[%s13 + $0x40] sm:$0xff]
        %v1778 = vld [vmem:[%s13 + $0x48] sm:$0xff]
        %v1779 = vld [vmem:[%s13 + $0x50] sm:$0xff]
        %v1780 = vld [vmem:[%s13 + $0x58] sm:$0xff]
        %v1781 = vld [vmem:[%s13 + $0x60] sm:$0xff]
        %v1782 = vld [vmem:[%s13 + $0x68] sm:$0xff]
        %v1783 = vld [vmem:[%s13 + $0x70] sm:$0xff]
        %v1784 = vld [vmem:[%s13 + $0x78] sm:$0xff]
        %v1785 = vld [vmem:[%s13 + $0x80] sm:$0xff]
        %v1786 = vld [vmem:[%s13 + $0x88] sm:$0xff]
        %v1787 = vld [vmem:[%s13 + $0x90] sm:$0xff]
        %v1788 = vld [vmem:[%s13 + $0x98] sm:$0xff]
        %v1789 = vld [vmem:[%s13 + $0xa0] sm:$0xff]
        %v1790 = vld [vmem:[%s13 + $0xa8] sm:$0xff]
        %v1791 = vld [vmem:[%s13 + $0xb0] sm:$0xff]
        %v1792 = vld [vmem:[%s13 + $0xb8] sm:$0xff]
        %v1793 = vld [vmem:[%s13 + $0xc0] sm:$0xff]
        %v1794 = vld [vmem:[%s13 + $0xc8] sm:$0xff]
        %v1795 = vld [vmem:[%s13 + $0xd0] sm:$0xff]
        %v1796 = vld [vmem:[%s13 + $0xd8] sm:$0xff]
        %v1797 = vld [vmem:[%s13 + $0xe0] sm:$0xff]
        %v1798 = vld [vmem:[%s13 + $0xe8] sm:$0xff]
        %v1799 = vld [vmem:[%s13 + $0xf0] sm:$0xff]
        %v1800 = vld [vmem:[%s13 + $0xf8] sm:$0xff]
        %v1801 = vld [vmem:[%s13 + $0x100] sm:$0xff]
        %v1802 = vld [vmem:[%s13 + $0x108] sm:$0xff]
        %v1803 = vld [vmem:[%s13 + $0x110] sm:$0xff]
        %v1804 = vld [vmem:[%s13 + $0x118] sm:$0xff]
        %v1805 = vld [vmem:[%s13 + $0x120] sm:$0xff]
        %v1806 = vld [vmem:[%s13 + $0x128] sm:$0xff]
        %v1807 = vld [vmem:[%s13 + $0x130] sm:$0xff]
        %v1808 = vld [vmem:[%s13 + $0x138] sm:$0xff]
        %v1809 = vld [vmem:[%s13 + $0x140] sm:$0xff]
        %v1810 = vld [vmem:[%s13 + $0x148] sm:$0xff]
        %v1811 = vld [vmem:[%s13 + $0x150] sm:$0xff]
        %v1812 = vld [vmem:[%s13 + $0x158] sm:$0xff]
        %v1813 = vld [vmem:[%s13 + $0x160] sm:$0xff]
        %v1814 = vld [vmem:[%s13 + $0x168] sm:$0xff]
        %v1815 = vld [vmem:[%s13 + $0x170] sm:$0xff]
        %v1816 = vld [vmem:[%s13 + $0x178] sm:$0xff]
        %v1817 = vld [vmem:[%s13 + $0x180] sm:$0xff]
        %v1818 = vld [vmem:[%s13 + $0x188] sm:$0xff]
        %v1819 = vld [vmem:[%s13 + $0x190] sm:$0xff]
        %v1820 = vld [vmem:[%s13 + $0x198] sm:$0xff]
        %v1821 = vld [vmem:[%s13 + $0x1a0] sm:$0xff]
        %v1822 = vld [vmem:[%s13 + $0x1a8] sm:$0xff]
        %v1823 = vld [vmem:[%s13 + $0x1b0] sm:$0xff]
        %v1824 = vld [vmem:[%s13 + $0x1b8] sm:$0xff]
        %v1825 = vld [vmem:[%s13 + $0x1c0] sm:$0xff]
        %v1826 = vld [vmem:[%s13 + $0x1c8] sm:$0xff]
        %v1827 = vld [vmem:[%s13 + $0x1d0] sm:$0xff]
        %v1828 = vld [vmem:[%s13 + $0x1d8] sm:$0xff]
        %v1829 = vld [vmem:[%s13 + $0x1e0] sm:$0xff]
        %v1830 = vld [vmem:[%s13 + $0x1e8] sm:$0xff]
        %v1831 = vld [vmem:[%s13 + $0x1f0] sm:$0xff]
        %v1832 = vld [vmem:[%s13 + $0x1f8] sm:$0xff]
        %v1833 = vld [vmem:[%s13 + $0x200] sm:$0xff]
        %v1834 = vld [vmem:[%s13 + $0x208] sm:$0xff]
        %v1835 = vld [vmem:[%s13 + $0x210] sm:$0xff]
        %v1836 = vld [vmem:[%s13 + $0x218] sm:$0xff]
        %v1837 = vld [vmem:[%s13 + $0x220] sm:$0xff]
        %v1838 = vld [vmem:[%s13 + $0x228] sm:$0xff]
        %v1839 = vld [vmem:[%s13 + $0x230] sm:$0xff]
        %v1840 = vld [vmem:[%s13 + $0x238] sm:$0xff]
        %v1841 = vld [vmem:[%s15] sm:$0xff]
        %v1842 = vld [vmem:[%s15 + $0x8] sm:$0xff]
        %v1843 = vld [vmem:[%s15 + $0x10] sm:$0xff]
        %v1844 = vld [vmem:[%s15 + $0x18] sm:$0xff]
        %v1845 = vld [vmem:[%s15 + $0x20] sm:$0xff]
        %v1846 = vld [vmem:[%s15 + $0x28] sm:$0xff]
        %v1847 = vld [vmem:[%s15 + $0x30] sm:$0xff]
        %v1848 = vld [vmem:[%s15 + $0x38] sm:$0xff]
        %v1849 = vld [vmem:[%s15 + $0x40] sm:$0xff]
        %v1850 = vld [vmem:[%s15 + $0x48] sm:$0xff]
        %v1851 = vld [vmem:[%s15 + $0x50] sm:$0xff]
        %v1852 = vld [vmem:[%s15 + $0x58] sm:$0xff]
        %v1853 = vld [vmem:[%s15 + $0x60] sm:$0xff]
        %v1854 = vld [vmem:[%s15 + $0x68] sm:$0xff]
        %v1855 = vld [vmem:[%s15 + $0x70] sm:$0xff]
        %v1856 = vld [vmem:[%s15 + $0x78] sm:$0xff]
        %v1857 = vld [vmem:[%s15 + $0x80] sm:$0xff]
        %v1858 = vld [vmem:[%s15 + $0x88] sm:$0xff]
        %v1859 = vld [vmem:[%s15 + $0x90] sm:$0xff]
        %v1860 = vld [vmem:[%s15 + $0x98] sm:$0xff]
        %v1861 = vld [vmem:[%s15 + $0xa0] sm:$0xff]
        %v1862 = vld [vmem:[%s15 + $0xa8] sm:$0xff]
        %v1863 = vld [vmem:[%s15 + $0xb0] sm:$0xff]
        %v1864 = vld [vmem:[%s15 + $0xb8] sm:$0xff]
        %v1865 = vld [vmem:[%s15 + $0xc0] sm:$0xff]
        %v1866 = vld [vmem:[%s15 + $0xc8] sm:$0xff]
        %v1867 = vld [vmem:[%s15 + $0xd0] sm:$0xff]
        %v1868 = vld [vmem:[%s15 + $0xd8] sm:$0xff]
        %v1869 = vld [vmem:[%s15 + $0xe0] sm:$0xff]
        %v1870 = vld [vmem:[%s15 + $0xe8] sm:$0xff]
        %v1871 = vld [vmem:[%s15 + $0xf0] sm:$0xff]
        %v1872 = vld [vmem:[%s15 + $0xf8] sm:$0xff]
        %v1873 = vld [vmem:[%s15 + $0x100] sm:$0xff]
        %v1874 = vld [vmem:[%s15 + $0x108] sm:$0xff]
        %v1875 = vld [vmem:[%s15 + $0x110] sm:$0xff]
        %v1876 = vld [vmem:[%s15 + $0x118] sm:$0xff]
        %v1877 = vld [vmem:[%s15 + $0x120] sm:$0xff]
        %v1878 = vld [vmem:[%s15 + $0x128] sm:$0xff]
        %v1879 = vld [vmem:[%s15 + $0x130] sm:$0xff]
        %v1880 = vld [vmem:[%s15 + $0x138] sm:$0xff]
        %v1881 = vld [vmem:[%s15 + $0x140] sm:$0xff]
        %v1882 = vld [vmem:[%s15 + $0x148] sm:$0xff]
        %v1883 = vld [vmem:[%s15 + $0x150] sm:$0xff]
        %v1884 = vld [vmem:[%s15 + $0x158] sm:$0xff]
        %v1885 = vld [vmem:[%s15 + $0x160] sm:$0xff]
        %v1886 = vld [vmem:[%s15 + $0x168] sm:$0xff]
        %v1887 = vld [vmem:[%s15 + $0x170] sm:$0xff]
        %v1888 = vld [vmem:[%s15 + $0x178] sm:$0xff]
        %v1889 = vld [vmem:[%s15 + $0x180] sm:$0xff]
        %v1890 = vld [vmem:[%s15 + $0x188] sm:$0xff]
        %v1891 = vld [vmem:[%s15 + $0x190] sm:$0xff]
        %v1892 = vld [vmem:[%s15 + $0x198] sm:$0xff]
        %v1893 = vld [vmem:[%s15 + $0x1a0] sm:$0xff]
        %v1894 = vld [vmem:[%s15 + $0x1a8] sm:$0xff]
        %v1895 = vld [vmem:[%s15 + $0x1b0] sm:$0xff]
        %v1896 = vld [vmem:[%s15 + $0x1b8] sm:$0xff]
        %v1897 = vld [vmem:[%s15 + $0x1c0] sm:$0xff]
        %v1898 = vld [vmem:[%s15 + $0x1c8] sm:$0xff]
        %v1899 = vld [vmem:[%s15 + $0x1d0] sm:$0xff]
        %v1900 = vld [vmem:[%s15 + $0x1d8] sm:$0xff]
        %v1901 = vld [vmem:[%s15 + $0x1e0] sm:$0xff]
        %v1902 = vld [vmem:[%s15 + $0x1e8] sm:$0xff]
        %v1903 = vld [vmem:[%s15 + $0x1f0] sm:$0xff]
        %v1904 = vld [vmem:[%s15 + $0x1f8] sm:$0xff]
        %v1905 = vld [vmem:[%s15 + $0x200] sm:$0xff]
        %v1906 = vld [vmem:[%s15 + $0x208] sm:$0xff]
        %v1907 = vld [vmem:[%s15 + $0x210] sm:$0xff]
        %v1908 = vld [vmem:[%s15 + $0x218] sm:$0xff]
        %v1909 = vld [vmem:[%s15 + $0x220] sm:$0xff]
        %v1910 = vld [vmem:[%s15 + $0x228] sm:$0xff]
        %v1911 = vld [vmem:[%s15 + $0x230] sm:$0xff]
        %v1912 = vld [vmem:[%s15 + $0x238] sm:$0xff]
        %1917 = vrot.lane.b32.xlu0 %v1759, 112
        %v1918 = vpop.permute.xlu0 %1917
        %1919 = vrot.lane.b32.xlu0 %v1761, 112
        %v1920 = vpop.permute.xlu0 %1919
        %1921 = vrot.lane.b32.xlu0 %v1765, 112
        %v1922 = vpop.permute.xlu0 %1921
        %1923 = vrot.lane.b32.xlu0 %v1767, 112
        %v1924 = vpop.permute.xlu0 %1923
        %vm1925 = vcmask 916480
        %v1926 = vsel %vm1925, %v1918, %v1920
        %v1927 = vsel %vm1925, %v1922, %v1924
        %vm1930 = vcmask 523264
        %v1931 = vsel %vm1930, %v1920, 0
        %v1933 = vsel %vm1930, %v1924, 0
        %1935 = vmatprep.subr.mxu0 %v1842
        %1936 = vmatpush1.msra.mxu0 %v1841
        %1937 = vmatprep.subr.mxu0 %v1845
        %1938 = vmatpush1.msra.mxu0 %v1844
        %1939 = vmatprep.subr.mxu0 %v1848
        %1940 = vmatpush1.msra.mxu0 %v1847
        %1941 = vmatprep.subr.mxu0 %v1851
        %1942 = vmatpush1.msra.mxu0 %v1850
        %1943 = vmatprep.subr.mxu0 %v1854
        %1944 = vmatpush1.msra.mxu0 %v1853
        %1945 = vmatprep.subr.mxu0 %v1857
        %1946 = vmatpush1.msra.mxu0 %v1856
        %1947 = vmatprep.subr.mxu0 %v1860
        %1948 = vmatpush1.msra.mxu0 %v1859
        %1949 = vmatprep.subr.mxu0 %v1863
        %1950 = vmatpush1.msra.mxu0 %v1862
        %1951 = vmatprep.subr.mxu0 %v1866
        %1952 = vmatpush1.msra.mxu0 %v1865
        %1953 = vmatprep.subr.mxu0 %v1869
        %1954 = vmatpush1.msra.mxu0 %v1868
        %1955 = vmatprep.subr.mxu0 %v1872
        %1956 = vmatpush1.msra.mxu0 %v1871
        %1957 = vmatprep.subr.mxu0 %v1875
        %1958 = vmatpush1.msra.mxu0 %v1874
        %1959 = vmatprep.subr.mxu0 %v1878
        %1960 = vmatpush1.msra.mxu0 %v1877
        %1961 = vmatprep.subr.mxu0 %v1881
        %1962 = vmatpush1.msra.mxu0 %v1880
        %1963 = vmatprep.subr.mxu0 %v1884
        %1964 = vmatpush1.msra.mxu0 %v1883
        %1965 = vmatprep.subr.mxu0 %v1887
        %1966 = vmatpush1.msra.mxu0 %v1886
        %1967 = vmatprep.subr.mxu0 %v1890
        %1968 = vmatpush1.msra.mxu0 %v1889
        %1969 = vmatprep.subr.mxu0 %v1893
        %1970 = vmatpush1.msra.mxu0 %v1892
        %1971 = vmatprep.subr.mxu0 %v1896
        %1972 = vmatpush1.msra.mxu0 %v1895
        %1973 = vmatprep.subr.mxu0 %v1899
        %1974 = vmatpush1.msra.mxu0 %v1898
        %1975 = vmatprep.subr.mxu0 %v1902
        %1976 = vmatpush1.msra.mxu0 %v1901
        %1977 = vmatprep.subr.mxu0 %v1905
        %1978 = vmatpush1.msra.mxu0 %v1904
        %1979 = vmatprep.subr.mxu0 %v1908
        %1980 = vmatpush1.msra.mxu0 %v1907
        %1981 = vmatprep.subr.mxu0 %v1911
        %1982 = vmatpush1.msra.mxu0 %v1910
        %1983 = vmatprep.subr.mxu0 0.0
        %1984 = vmatpush1.msra.mxu0 0.0
        %1985 = vmatprep.subr.mxu0 0.0
        %1986 = vmatpush1.msra.mxu0 0.0
        %1987 = vmatprep.subr.mxu0 0.0
        %1988 = vmatpush1.msra.mxu0 0.0
        %1989 = vmatprep.subr.mxu0 0.0
        %1990 = vmatpush1.msra.mxu0 0.0
        %1991 = vmatprep.subr.mxu0 0.0
        %1992 = vmatpush1.msra.mxu0 0.0
        %1993 = vmatprep.subr.mxu0 0.0
        %1994 = vmatpush1.msra.mxu0 0.0
        %1995 = vmatprep.subr.mxu0 0.0
        %1996 = vmatpush1.msra.mxu0 0.0
        %1997 = vmatprep.subr.mxu0 0.0
        %1998 = vmatpush1.msra.mxu0 0.0
        %1999 = vmatprep.mubr.f32.mxu0 %v1931
        %2000 = vmatmul.mubr.f32.gmra.mrb[0].mxu0 %v1926
        %v2001 = vpop.f32.mrb[0].mxu0
        %v2002 = vadd.f32 0.0, %v2001
        %v2003 = vpop.f32.mrb[0].mxu0
        %v2004 = vadd.f32 0.0, %v2003
        %2005 = vmatprep.mubr.f32.mxu0 %v1933
        %2006 = vmatmul.mubr.f32.gmra.mrb[0].mxu0 %v1927
        %v2007 = vpop.f32.mrb[0].mxu0
        %v2008 = vadd.f32 0.0, %v2007
        %v2009 = vpop.f32.mrb[0].mxu0
        %v2010 = vadd.f32 0.0, %v2009
        %2011 = vdwg.mxu0
        %2012 = vmatprep.subr.mxu0 0.0
        %2013 = vmatpush1.msra.mxu0 %v1843
        %2014 = vmatprep.subr.mxu0 0.0
        %2015 = vmatpush1.msra.mxu0 %v1846
        %2016 = vmatprep.subr.mxu0 0.0
        %2017 = vmatpush1.msra.mxu0 %v1849
        %2018 = vmatprep.subr.mxu0 0.0
        %2019 = vmatpush1.msra.mxu0 %v1852
        %2020 = vmatprep.subr.mxu0 0.0
        %2021 = vmatpush1.msra.mxu0 %v1855
        %2022 = vmatprep.subr.mxu0 0.0
        %2023 = vmatpush1.msra.mxu0 %v1858
        %2024 = vmatprep.subr.mxu0 0.0
        %2025 = vmatpush1.msra.mxu0 %v1861
        %2026 = vmatprep.subr.mxu0 0.0
        %2027 = vmatpush1.msra.mxu0 %v1864
        %2028 = vmatprep.subr.mxu0 0.0
        %2029 = vmatpush1.msra.mxu0 %v1867
        %2030 = vmatprep.subr.mxu0 0.0
        %2031 = vmatpush1.msra.mxu0 %v1870
        %2032 = vmatprep.subr.mxu0 0.0
        %2033 = vmatpush1.msra.mxu0 %v1873
        %2034 = vmatprep.subr.mxu0 0.0
        %2035 = vmatpush1.msra.mxu0 %v1876
        %2036 = vmatprep.subr.mxu0 0.0
        %2037 = vmatpush1.msra.mxu0 %v1879
        %2038 = vmatprep.subr.mxu0 0.0
        %2039 = vmatpush1.msra.mxu0 %v1882
        %2040 = vmatprep.subr.mxu0 0.0
        %2041 = vmatpush1.msra.mxu0 %v1885
        %2042 = vmatprep.subr.mxu0 0.0
        %2043 = vmatpush1.msra.mxu0 %v1888
        %2044 = vmatprep.subr.mxu0 0.0
        %2045 = vmatpush1.msra.mxu0 %v1891
        %2046 = vmatprep.subr.mxu0 0.0
        %2047 = vmatpush1.msra.mxu0 %v1894
        %2048 = vmatprep.subr.mxu0 0.0
        %2049 = vmatpush1.msra.mxu0 %v1897
        %2050 = vmatprep.subr.mxu0 0.0
        %2051 = vmatpush1.msra.mxu0 %v1900
        %2052 = vmatprep.subr.mxu0 0.0
        %2053 = vmatpush1.msra.mxu0 %v1903
        %2054 = vmatprep.subr.mxu0 0.0
        %2055 = vmatpush1.msra.mxu0 %v1906
        %2056 = vmatprep.subr.mxu0 0.0
        %2057 = vmatpush1.msra.mxu0 %v1909
        %2058 = vmatprep.subr.mxu0 0.0
        %2059 = vmatpush1.msra.mxu0 %v1912
        %2060 = vmatprep.subr.mxu0 0.0
        %2061 = vmatpush1.msra.mxu0 0.0
        %2062 = vmatprep.subr.mxu0 0.0
        %2063 = vmatpush1.msra.mxu0 0.0
        %2064 = vmatprep.subr.mxu0 0.0
        %2065 = vmatpush1.msra.mxu0 0.0
        %2066 = vmatprep.subr.mxu0 0.0
        %2067 = vmatpush1.msra.mxu0 0.0
        %2068 = vmatprep.subr.mxu0 0.0
        %2069 = vmatpush1.msra.mxu0 0.0
        %2070 = vmatprep.subr.mxu0 0.0
        %2071 = vmatpush1.msra.mxu0 0.0
        %2072 = vmatprep.subr.mxu0 0.0
        %2073 = vmatpush1.msra.mxu0 0.0
        %2074 = vmatprep.subr.mxu0 0.0
        %2075 = vmatpush1.msra.mxu0 0.0
        %2076 = vmatprep.mubr.f32.mxu0 %v1931
        %2077 = vmatmul.mubr.f32.gmra.mrb[0].mxu0 %v1926
        %v2078 = vpop.f32.mrb[0].mxu0
        %v2079 = vadd.f32 0.0, %v2078
        %v2080 = vpop.f32.mrb[0].mxu0
        %2081 = vmatprep.mubr.f32.mxu0 %v1933
        %2082 = vmatmul.mubr.f32.gmra.mrb[0].mxu0 %v1927
        %v2083 = vpop.f32.mrb[0].mxu0
        %v2084 = vadd.f32 0.0, %v2083
        %v2085 = vpop.f32.mrb[0].mxu0
        %2086 = vdwg.mxu0
        %v2087 = vsel %vm1930, %v1761, 0
        %v2089 = vsel %vm1930, %v1767, 0
        %2091 = vmatprep.subr.mxu0 %v1770
        %2092 = vmatpush1.msra.mxu0 %v1769
        %2093 = vmatprep.subr.mxu0 %v1773
        %2094 = vmatpush1.msra.mxu0 %v1772
        %2095 = vmatprep.subr.mxu0 %v1776
        %2096 = vmatpush1.msra.mxu0 %v1775
        %2097 = vmatprep.subr.mxu0 %v1779
        %2098 = vmatpush1.msra.mxu0 %v1778
        %2099 = vmatprep.subr.mxu0 %v1782
        %2100 = vmatpush1.msra.mxu0 %v1781
        %2101 = vmatprep.subr.mxu0 %v1785
        %2102 = vmatpush1.msra.mxu0 %v1784
        %2103 = vmatprep.subr.mxu0 %v1788
        %2104 = vmatpush1.msra.mxu0 %v1787
        %2105 = vmatprep.subr.mxu0 %v1791
        %2106 = vmatpush1.msra.mxu0 %v1790
        %2107 = vmatprep.subr.mxu0 %v1794
        %2108 = vmatpush1.msra.mxu0 %v1793
        %2109 = vmatprep.subr.mxu0 %v1797
        %2110 = vmatpush1.msra.mxu0 %v1796
        %2111 = vmatprep.subr.mxu0 %v1800
        %2112 = vmatpush1.msra.mxu0 %v1799
        %2113 = vmatprep.subr.mxu0 %v1803
        %2114 = vmatpush1.msra.mxu0 %v1802
        %2115 = vmatprep.subr.mxu0 %v1806
        %2116 = vmatpush1.msra.mxu0 %v1805
        %2117 = vmatprep.subr.mxu0 %v1809
        %2118 = vmatpush1.msra.mxu0 %v1808
        %2119 = vmatprep.subr.mxu0 %v1812
        %2120 = vmatpush1.msra.mxu0 %v1811
        %2121 = vmatprep.subr.mxu0 %v1815
        %2122 = vmatpush1.msra.mxu0 %v1814
        %2123 = vmatprep.subr.mxu0 %v1818
        %2124 = vmatpush1.msra.mxu0 %v1817
        %2125 = vmatprep.subr.mxu0 %v1821
        %2126 = vmatpush1.msra.mxu0 %v1820
        %2127 = vmatprep.subr.mxu0 %v1824
        %2128 = vmatpush1.msra.mxu0 %v1823
        %2129 = vmatprep.subr.mxu0 %v1827
        %2130 = vmatpush1.msra.mxu0 %v1826
        %2131 = vmatprep.subr.mxu0 %v1830
        %2132 = vmatpush1.msra.mxu0 %v1829
        %2133 = vmatprep.subr.mxu0 %v1833
        %2134 = vmatpush1.msra.mxu0 %v1832
        %2135 = vmatprep.subr.mxu0 %v1836
        %2136 = vmatpush1.msra.mxu0 %v1835
        %2137 = vmatprep.subr.mxu0 %v1839
        %2138 = vmatpush1.msra.mxu0 %v1838
        %2139 = vmatprep.subr.mxu0 0.0
        %2140 = vmatpush1.msra.mxu0 0.0
        %2141 = vmatprep.subr.mxu0 0.0
        %2142 = vmatpush1.msra.mxu0 0.0
        %2143 = vmatprep.subr.mxu0 0.0
        %2144 = vmatpush1.msra.mxu0 0.0
        %2145 = vmatprep.subr.mxu0 0.0
        %2146 = vmatpush1.msra.mxu0 0.0
        %2147 = vmatprep.subr.mxu0 0.0
        %2148 = vmatpush1.msra.mxu0 0.0
        %2149 = vmatprep.subr.mxu0 0.0
        %2150 = vmatpush1.msra.mxu0 0.0
        %2151 = vmatprep.subr.mxu0 0.0
        %2152 = vmatpush1.msra.mxu0 0.0
        %2153 = vmatprep.subr.mxu0 0.0
        %2154 = vmatpush1.msra.mxu0 0.0
        %2155 = vmatprep.mubr.f32.mxu0 %v2087
        %2156 = vmatmul.mubr.f32.gmra.mrb[0].mxu0 %v1759
        %v2157 = vpop.f32.mrb[0].mxu0
        %v2158 = vadd.f32 %v2002, %v2157
        %v2159 = vpop.f32.mrb[0].mxu0
        %v2160 = vadd.f32 %v2004, %v2159
        %2161 = vmatprep.mubr.f32.mxu0 %v2089
        %2162 = vmatmul.mubr.f32.gmra.mrb[0].mxu0 %v1765
        %v2163 = vpop.f32.mrb[0].mxu0
        %v2164 = vadd.f32 %v2008, %v2163
        %v2165 = vpop.f32.mrb[0].mxu0
        %v2166 = vadd.f32 %v2010, %v2165
        %2167 = vdwg.mxu0
        %2168 = vmatprep.subr.mxu0 0.0
        %2169 = vmatpush1.msra.mxu0 %v1771
        %2170 = vmatprep.subr.mxu0 0.0
        %2171 = vmatpush1.msra.mxu0 %v1774
        %2172 = vmatprep.subr.mxu0 0.0
        %2173 = vmatpush1.msra.mxu0 %v1777
        %2174 = vmatprep.subr.mxu0 0.0
        %2175 = vmatpush1.msra.mxu0 %v1780
        %2176 = vmatprep.subr.mxu0 0.0
        %2177 = vmatpush1.msra.mxu0 %v1783
        %2178 = vmatprep.subr.mxu0 0.0
        %2179 = vmatpush1.msra.mxu0 %v1786
        %2180 = vmatprep.subr.mxu0 0.0
        %2181 = vmatpush1.msra.mxu0 %v1789
        %2182 = vmatprep.subr.mxu0 0.0
        %2183 = vmatpush1.msra.mxu0 %v1792
        %2184 = vmatprep.subr.mxu0 0.0
        %2185 = vmatpush1.msra.mxu0 %v1795
        %2186 = vmatprep.subr.mxu0 0.0
        %2187 = vmatpush1.msra.mxu0 %v1798
        %2188 = vmatprep.subr.mxu0 0.0
        %2189 = vmatpush1.msra.mxu0 %v1801
        %2190 = vmatprep.subr.mxu0 0.0
        %2191 = vmatpush1.msra.mxu0 %v1804
        %2192 = vmatprep.subr.mxu0 0.0
        %2193 = vmatpush1.msra.mxu0 %v1807
        %2194 = vmatprep.subr.mxu0 0.0
        %2195 = vmatpush1.msra.mxu0 %v1810
        %2196 = vmatprep.subr.mxu0 0.0
        %2197 = vmatpush1.msra.mxu0 %v1813
        %2198 = vmatprep.subr.mxu0 0.0
        %2199 = vmatpush1.msra.mxu0 %v1816
        %2200 = vmatprep.subr.mxu0 0.0
        %2201 = vmatpush1.msra.mxu0 %v1819
        %2202 = vmatprep.subr.mxu0 0.0
        %2203 = vmatpush1.msra.mxu0 %v1822
        %2204 = vmatprep.subr.mxu0 0.0
        %2205 = vmatpush1.msra.mxu0 %v1825
        %2206 = vmatprep.subr.mxu0 0.0
        %2207 = vmatpush1.msra.mxu0 %v1828
        %2208 = vmatprep.subr.mxu0 0.0
        %2209 = vmatpush1.msra.mxu0 %v1831
        %2210 = vmatprep.subr.mxu0 0.0
        %2211 = vmatpush1.msra.mxu0 %v1834
        %2212 = vmatprep.subr.mxu0 0.0
        %2213 = vmatpush1.msra.mxu0 %v1837
        %2214 = vmatprep.subr.mxu0 0.0
        %2215 = vmatpush1.msra.mxu0 %v1840
        %2216 = vmatprep.subr.mxu0 0.0
        %2217 = vmatpush1.msra.mxu0 0.0
        %2218 = vmatprep.subr.mxu0 0.0
        %2219 = vmatpush1.msra.mxu0 0.0
        %2220 = vmatprep.subr.mxu0 0.0
        %2221 = vmatpush1.msra.mxu0 0.0
        %2222 = vmatprep.subr.mxu0 0.0
        %2223 = vmatpush1.msra.mxu0 0.0
        %2224 = vmatprep.subr.mxu0 0.0
        %2225 = vmatpush1.msra.mxu0 0.0
        %2226 = vmatprep.subr.mxu0 0.0
        %2227 = vmatpush1.msra.mxu0 0.0
        %2228 = vmatprep.subr.mxu0 0.0
        %2229 = vmatpush1.msra.mxu0 0.0
        %2230 = vmatprep.subr.mxu0 0.0
        %2231 = vmatpush1.msra.mxu0 0.0
        %2232 = vmatprep.mubr.f32.mxu0 %v2087
        %2233 = vmatmul.mubr.f32.gmra.mrb[0].mxu0 %v1759
        %v2234 = vpop.f32.mrb[0].mxu0
        %v2235 = vadd.f32 %v2079, %v2234
        %v2236 = vpop.f32.mrb[0].mxu0
        %2237 = vmatprep.mubr.f32.mxu0 %v2089
        %2238 = vmatmul.mubr.f32.gmra.mrb[0].mxu0 %v1765
        %v2239 = vpop.f32.mrb[0].mxu0
        %v2240 = vadd.f32 %v2084, %v2239
        %v2241 = vpop.f32.mrb[0].mxu0
        %2242 = vdwg.mxu0
        %v2243 = vld [vmem:[%s17] sm:$0x7]
        %v2245 = vlaneseq
        %v2246 = vshrl.u32 %v2245, 7
        %v2247 = vsub.s32 0, %v2246
        %v2248 = vrot.slane %v2243, %v2247
        %v2249 = vlaneseq
        %v2250 = vshrl.u32 %v2249, 7
        %v2251 = vsub.s32 1, %v2250
        %v2252 = vrot.slane %v2243, %v2251
        %v2253 = vlaneseq
        %v2254 = vshrl.u32 %v2253, 7
        %v2255 = vsub.s32 2, %v2254
        %v2256 = vrot.slane %v2243, %v2255
        %v2260 = vadd.f32 %v2158, %v2248
        %v2261 = vadd.f32 %v2160, %v2252
        %v2262 = vadd.f32 %v2235, %v2256
        %v2263 = vadd.f32 %v2164, %v2248
        %v2264 = vadd.f32 %v2166, %v2252
        %v2265 = vadd.f32 %v2240, %v2256
        %v2266 = vtanh.pop %v2260
        %v2267 = vtanh.pop %v2261
        %v2268 = vtanh.pop %v2263
        %v2269 = vtanh.pop %v2264
        %v2270 = vmul.f32 %v2261, 0.5
        %v2271 = vmul.f32 %v2262, 0.5
        %v2272 = vmul.f32 %v2264, 0.5
        %v2273 = vmul.f32 %v2265, 0.5
        %v2274 = vtanh.pop %v2270
        %v2275 = vtanh.pop %v2271
        %v2276 = vtanh.pop %v2272
        %v2277 = vtanh.pop %v2273
        %v2278 = vadd.f32 %v2274, 1.0
        %v2279 = vadd.f32 %v2275, 1.0
        %v2280 = vadd.f32 %v2276, 1.0
        %v2281 = vadd.f32 %v2277, 1.0
        %v2282 = vmul.f32 %v2278, 0.5
        %v2283 = vmul.f32 %v2279, 0.5
        %v2284 = vmul.f32 %v2280, 0.5
        %v2285 = vmul.f32 %v2281, 0.5
        %2290 = vrot.lane.b32.xlu0 %v2282, 64
        %v2291 = vpop.permute.xlu0 %2290
        %2292 = vrot.lane.b32.xlu0 %v2283, 64
        %v2293 = vpop.permute.xlu0 %2292
        %2294 = vrot.lane.b32.xlu0 %v2284, 64
        %v2295 = vpop.permute.xlu0 %2294
        %2296 = vrot.lane.b32.xlu0 %v2285, 64
        %v2297 = vpop.permute.xlu0 %2296
        %v2298 = vsel %vm1930, %v2291, %v2293
        %v2299 = vsel %vm1930, %v2295, %v2297
        %v2304 = vmul.f32 %v2266, %v2298
        %v2305 = vmul.f32 %v2267, %v2293
        %v2306 = vmul.f32 %v2268, %v2299
        %v2307 = vmul.f32 %v2269, %v2297
        %v2308 = vld [vmem:[#allocation8] sm:$0xff]
        %v2309 = vld [vmem:[#allocation8 + $0x8] sm:$0xff]
        %v2310 = vld [vmem:[#allocation8 + $0x10] sm:$0xff]
        %v2311 = vld [vmem:[#allocation8 + $0x18] sm:$0xff]
        %v2312 = vld [vmem:[#allocation8 + $0x20] sm:$0xff]
        %v2313 = vld [vmem:[#allocation8 + $0x28] sm:$0xff]
        %v2314 = vld [vmem:[#allocation8 + $0x30] sm:$0xff]
        %v2315 = vld [vmem:[#allocation8 + $0x38] sm:$0xff]
        %v2316 = vld [vmem:[#allocation8 + $0x40] sm:$0xff]
        %v2317 = vld [vmem:[#allocation8 + $0x48] sm:$0xff]
        %v2318 = vld [vmem:[#allocation8 + $0x50] sm:$0xff]
        %v2319 = vld [vmem:[#allocation8 + $0x58] sm:$0xff]
        %v2320 = vld [vmem:[#allocation8 + $0x60] sm:$0xff]
        %v2321 = vld [vmem:[#allocation8 + $0x68] sm:$0xff]
        %v2322 = vld [vmem:[#allocation8 + $0x70] sm:$0xff]
        %v2323 = vld [vmem:[#allocation8 + $0x78] sm:$0xff]
        %v2324 = vld [vmem:[#allocation8 + $0x80] sm:$0xff]
        %v2325 = vld [vmem:[#allocation8 + $0x88] sm:$0xff]
        %v2326 = vld [vmem:[#allocation8 + $0x90] sm:$0xff]
        %v2327 = vld [vmem:[#allocation8 + $0x98] sm:$0xff]
        %v2328 = vld [vmem:[#allocation8 + $0xa0] sm:$0xff]
        %v2329 = vld [vmem:[#allocation8 + $0xa8] sm:$0xff]
        %v2330 = vld [vmem:[#allocation8 + $0xb0] sm:$0xff]
        %v2331 = vld [vmem:[#allocation8 + $0xb8] sm:$0xff]
        %v2332 = vld [vmem:[#allocation10] sm:$0x1]
        %v2334 = vlaneseq
        %v2335 = vshrl.u32 %v2334, 7
        %v2336 = vsub.s32 0, %v2335
        %v2337 = vrot.slane %v2332, %v2336
        %v2340 = vsel %vm1930, %v2305, 0
        %v2343 = vsel %vm1930, %v2307, 0
        %2345 = vmatprep.subr.mxu0 0.0
        %2346 = vmatpush1.msra.mxu0 %v2308
        %2347 = vmatprep.subr.mxu0 0.0
        %2348 = vmatpush1.msra.mxu0 %v2309
        %2349 = vmatprep.subr.mxu0 0.0
        %2350 = vmatpush1.msra.mxu0 %v2310
        %2351 = vmatprep.subr.mxu0 0.0
        %2352 = vmatpush1.msra.mxu0 %v2311
        %2353 = vmatprep.subr.mxu0 0.0
        %2354 = vmatpush1.msra.mxu0 %v2312
        %2355 = vmatprep.subr.mxu0 0.0
        %2356 = vmatpush1.msra.mxu0 %v2313
        %2357 = vmatprep.subr.mxu0 0.0
        %2358 = vmatpush1.msra.mxu0 %v2314
        %2359 = vmatprep.subr.mxu0 0.0
        %2360 = vmatpush1.msra.mxu0 %v2315
        %2361 = vmatprep.subr.mxu0 0.0
        %2362 = vmatpush1.msra.mxu0 %v2316
        %2363 = vmatprep.subr.mxu0 0.0
        %2364 = vmatpush1.msra.mxu0 %v2317
        %2365 = vmatprep.subr.mxu0 0.0
        %2366 = vmatpush1.msra.mxu0 %v2318
        %2367 = vmatprep.subr.mxu0 0.0
        %2368 = vmatpush1.msra.mxu0 %v2319
        %2369 = vmatprep.subr.mxu0 0.0
        %2370 = vmatpush1.msra.mxu0 %v2320
        %2371 = vmatprep.subr.mxu0 0.0
        %2372 = vmatpush1.msra.mxu0 %v2321
        %2373 = vmatprep.subr.mxu0 0.0
        %2374 = vmatpush1.msra.mxu0 %v2322
        %2375 = vmatprep.subr.mxu0 0.0
        %2376 = vmatpush1.msra.mxu0 %v2323
        %2377 = vmatprep.subr.mxu0 0.0
        %2378 = vmatpush1.msra.mxu0 %v2324
        %2379 = vmatprep.subr.mxu0 0.0
        %2380 = vmatpush1.msra.mxu0 %v2325
        %2381 = vmatprep.subr.mxu0 0.0
        %2382 = vmatpush1.msra.mxu0 %v2326
        %2383 = vmatprep.subr.mxu0 0.0
        %2384 = vmatpush1.msra.mxu0 %v2327
        %2385 = vmatprep.subr.mxu0 0.0
        %2386 = vmatpush1.msra.mxu0 %v2328
        %2387 = vmatprep.subr.mxu0 0.0
        %2388 = vmatpush1.msra.mxu0 %v2329
        %2389 = vmatprep.subr.mxu0 0.0
        %2390 = vmatpush1.msra.mxu0 %v2330
        %2391 = vmatprep.subr.mxu0 0.0
        %2392 = vmatpush1.msra.mxu0 %v2331
        %2393 = vmatprep.subr.mxu0 0.0
        %2394 = vmatpush1.msra.mxu0 0.0
        %2395 = vmatprep.subr.mxu0 0.0
        %2396 = vmatpush1.msra.mxu0 0.0
        %2397 = vmatprep.subr.mxu0 0.0
        %2398 = vmatpush1.msra.mxu0 0.0
        %2399 = vmatprep.subr.mxu0 0.0
        %2400 = vmatpush1.msra.mxu0 0.0
        %2401 = vmatprep.subr.mxu0 0.0
        %2402 = vmatpush1.msra.mxu0 0.0
        %2403 = vmatprep.subr.mxu0 0.0
        %2404 = vmatpush1.msra.mxu0 0.0
        %2405 = vmatprep.subr.mxu0 0.0
        %2406 = vmatpush1.msra.mxu0 0.0
        %2407 = vmatprep.subr.mxu0 0.0
        %2408 = vmatpush1.msra.mxu0 0.0
        %2409 = vmatprep.mubr.f32.mxu0 %v2340
        %2410 = vmatmul.mubr.f32.gmra.mrb[0].mxu0 %v2304
        %v2411 = vpop.f32.mrb[0].mxu0
        %v2412 = vadd.f32 %v2337, %v2411
        %v2413 = vpop.f32.mrb[0].mxu0
        %2414 = vmatprep.mubr.f32.mxu0 %v2343
        %2415 = vmatmul.mubr.f32.gmra.mrb[0].mxu0 %v2306
        %v2416 = vpop.f32.mrb[0].mxu0
        %v2417 = vadd.f32 %v2337, %v2416
        %v2418 = vpop.f32.mrb[0].mxu0
        %2419 = vdwg.mxu0
        %vm2420 = vcmask 785408
        %2421 = vst.msk [vmem:[#allocation2] sm:$0xff] %vm2420, %v2412
        %2422 = vst.msk [vmem:[#allocation2 + $0x18] sm:$0xff] %vm2420, %v2417
        %v2424 = vsel %vm1471, %v1658, 0
        %v2427 = vsel %vm1471, %v1659, 0
        %2429 = vmatprep.subr.mxu0 %v2305
        %2430 = vmatpush1.msra.mxu0 %v2304
        %2431 = vmatprep.subr.mxu0 %v2307
        %2432 = vmatpush1.msra.mxu0 %v2306
        %2433 = vmatprep.subr.mxu0 0.0
        %2434 = vmatpush1.msra.mxu0 0.0
        %2435 = vmatprep.subr.mxu0 0.0
        %2436 = vmatpush1.msra.mxu0 0.0
        %2437 = vmatprep.subr.mxu0 0.0
        %2438 = vmatpush1.msra.mxu0 0.0
        %2439 = vmatprep.subr.mxu0 0.0
        %2440 = vmatpush1.msra.mxu0 0.0
        %2441 = vmatprep.subr.mxu0 0.0
        %2442 = vmatpush1.msra.mxu0 0.0
        %2443 = vmatprep.subr.mxu0 0.0
        %2444 = vmatpush1.msra.mxu0 0.0
        %2445 = vmatprep.subr.mxu0 0.0
        %2446 = vmatpush1.msra.mxu0 0.0
        %2447 = vmatprep.subr.mxu0 0.0
        %2448 = vmatpush1.msra.mxu0 0.0
        %2449 = vmatprep.subr.mxu0 0.0
        %2450 = vmatpush1.msra.mxu0 0.0
        %2451 = vmatprep.subr.mxu0 0.0
        %2452 = vmatpush1.msra.mxu0 0.0
        %2453 = vmatprep.subr.mxu0 0.0
        %2454 = vmatpush1.msra.mxu0 0.0
        %2455 = vmatprep.subr.mxu0 0.0
        %2456 = vmatpush1.msra.mxu0 0.0
        %2457 = vmatprep.subr.mxu0 0.0
        %2458 = vmatpush1.msra.mxu0 0.0
        %2459 = vmatprep.subr.mxu0 0.0
        %2460 = vmatpush1.msra.mxu0 0.0
        %2461 = vmatprep.subr.mxu0 0.0
        %2462 = vmatpush1.msra.mxu0 0.0
        %2463 = vmatprep.subr.mxu0 0.0
        %2464 = vmatpush1.msra.mxu0 0.0
        %2465 = vmatprep.subr.mxu0 0.0
        %2466 = vmatpush1.msra.mxu0 0.0
        %2467 = vmatprep.subr.mxu0 0.0
        %2468 = vmatpush1.msra.mxu0 0.0
        %2469 = vmatprep.subr.mxu0 0.0
        %2470 = vmatpush1.msra.mxu0 0.0
        %2471 = vmatprep.subr.mxu0 0.0
        %2472 = vmatpush1.msra.mxu0 0.0
        %2473 = vmatprep.subr.mxu0 0.0
        %2474 = vmatpush1.msra.mxu0 0.0
        %2475 = vmatprep.subr.mxu0 0.0
        %2476 = vmatpush1.msra.mxu0 0.0
        %2477 = vmatprep.subr.mxu0 0.0
        %2478 = vmatpush1.msra.mxu0 0.0
        %2479 = vmatprep.subr.mxu0 0.0
        %2480 = vmatpush1.msra.mxu0 0.0
        %2481 = vmatprep.subr.mxu0 0.0
        %2482 = vmatpush1.msra.mxu0 0.0
        %2483 = vmatprep.subr.mxu0 0.0
        %2484 = vmatpush1.msra.mxu0 0.0
        %2485 = vmatprep.subr.mxu0 0.0
        %2486 = vmatpush1.msra.mxu0 0.0
        %2487 = vmatprep.subr.mxu0 0.0
        %2488 = vmatpush1.msra.mxu0 0.0
        %2489 = vmatprep.subr.mxu0 0.0
        %2490 = vmatpush1.msra.mxu0 0.0
        %2491 = vmatprep.subr.mxu0 0.0
        %2492 = vmatpush1.msra.mxu0 0.0
        %2493 = vmatprep.mubr.f32.mxu0 0.0
        %2494 = vmatmul.mubr.f32.gmra.mrb[0].mxu0 %v2424
        %v2495 = vpop.f32.mrb[0].mxu0
        %v2496 = vadd.f32 0.0, %v2495
        %v2497 = vpop.f32.mrb[0].mxu0
        %v2498 = vadd.f32 0.0, %v2497
        %2499 = vmatprep.mubr.f32.mxu0 0.0
        %2500 = vmatmul.mubr.f32.gmra.mrb[0].mxu0 %v2427
        %v2501 = vpop.f32.mrb[0].mxu0
        %v2502 = vadd.f32 0.0, %v2501
        %v2503 = vpop.f32.mrb[0].mxu0
        %v2504 = vadd.f32 0.0, %v2503
        %2505 = vdwg.mxu0
        %2506 = vmatprep.subr.mxu0 %v2498
        %2507 = vmatpush1.msra.mxu0 %v2496
        %2508 = vmatprep.subr.mxu0 %v2504
        %2509 = vmatpush1.msra.mxu0 %v2502
        %2510 = vmatprep.subr.mxu0 0.0
        %2511 = vmatpush1.msra.mxu0 0.0
        %2512 = vmatprep.subr.mxu0 0.0
        %2513 = vmatpush1.msra.mxu0 0.0
        %2514 = vmatprep.subr.mxu0 0.0
        %2515 = vmatpush1.msra.mxu0 0.0
        %2516 = vmatprep.subr.mxu0 0.0
        %2517 = vmatpush1.msra.mxu0 0.0
        %2518 = vmatprep.subr.mxu0 0.0
        %2519 = vmatpush1.msra.mxu0 0.0
        %2520 = vmatprep.subr.mxu0 0.0
        %2521 = vmatpush1.msra.mxu0 0.0
        %2522 = vmatprep.subr.mxu0 0.0
        %2523 = vmatpush1.msra.mxu0 0.0
        %2524 = vmatprep.subr.mxu0 0.0
        %2525 = vmatpush1.msra.mxu0 0.0
        %2526 = vmatprep.subr.mxu0 0.0
        %2527 = vmatpush1.msra.mxu0 0.0
        %2528 = vmatprep.subr.mxu0 0.0
        %2529 = vmatpush1.msra.mxu0 0.0
        %2530 = vmatprep.subr.mxu0 0.0
        %2531 = vmatpush1.msra.mxu0 0.0
        %2532 = vmatprep.subr.mxu0 0.0
        %2533 = vmatpush1.msra.mxu0 0.0
        %2534 = vmatprep.subr.mxu0 0.0
        %2535 = vmatpush1.msra.mxu0 0.0
        %2536 = vmatprep.subr.mxu0 0.0
        %2537 = vmatpush1.msra.mxu0 0.0
        %2538 = vmatprep.subr.mxu0 0.0
        %2539 = vmatpush1.msra.mxu0 0.0
        %2540 = vmatprep.subr.mxu0 0.0
        %2541 = vmatpush1.msra.mxu0 0.0
        %2542 = vmatprep.subr.mxu0 0.0
        %2543 = vmatpush1.msra.mxu0 0.0
        %2544 = vmatprep.subr.mxu0 0.0
        %2545 = vmatpush1.msra.mxu0 0.0
        %2546 = vmatprep.subr.mxu0 0.0
        %2547 = vmatpush1.msra.mxu0 0.0
        %2548 = vmatprep.subr.mxu0 0.0
        %2549 = vmatpush1.msra.mxu0 0.0
        %2550 = vmatprep.subr.mxu0 0.0
        %2551 = vmatpush1.msra.mxu0 0.0
        %2552 = vmatprep.subr.mxu0 0.0
        %2553 = vmatpush1.msra.mxu0 0.0
        %2554 = vmatprep.subr.mxu0 0.0
        %2555 = vmatpush1.msra.mxu0 0.0
        %2556 = vmatprep.subr.mxu0 0.0
        %2557 = vmatpush1.msra.mxu0 0.0
        %2558 = vmatprep.subr.mxu0 0.0
        %2559 = vmatpush1.msra.mxu0 0.0
        %2560 = vmatprep.subr.mxu0 0.0
        %2561 = vmatpush1.msra.mxu0 0.0
        %2562 = vmatprep.subr.mxu0 0.0
        %2563 = vmatpush1.msra.mxu0 0.0
        %2564 = vmatprep.subr.mxu0 0.0
        %2565 = vmatpush1.msra.mxu0 0.0
        %2566 = vmatprep.subr.mxu0 0.0
        %2567 = vmatpush1.msra.mxu0 0.0
        %2568 = vmatprep.subr.mxu0 0.0
        %2569 = vmatpush1.msra.mxu0 0.0
        %2570 = vmatprep.mubr.f32.mxu0 0.0
        %2571 = vmatmul.mubr.f32.gmra.mrb[0].mxu0 %v2424
        %v2572 = vpop.f32.mrb[0].mxu0
        %v2573 = vadd.f32 0.0, %v2572
        %v2574 = vpop.f32.mrb[0].mxu0
        %v2575 = vadd.f32 0.0, %v2574
        %2576 = vmatprep.mubr.f32.mxu0 0.0
        %2577 = vmatmul.mubr.f32.gmra.mrb[0].mxu0 %v2427
        %v2578 = vpop.f32.mrb[0].mxu0
        %v2579 = vadd.f32 0.0, %v2578
        %v2580 = vpop.f32.mrb[0].mxu0
        %v2581 = vadd.f32 0.0, %v2580
        %2582 = vdwg.mxu0
        %v2583 = vld [vmem:[%s23] sm:$0xff]
        %v2584 = vld [vmem:[%s23 + $0x8] sm:$0xff]
        %v2585 = vld [vmem:[%s23 + $0x10] sm:$0xff]
        %v2586 = vld [vmem:[%s23 + $0x18] sm:$0xff]
        %v2587 = vld [vmem:[%s23 + $0x20] sm:$0xff]
        %v2588 = vld [vmem:[%s23 + $0x28] sm:$0xff]
        %v2589 = vld [vmem:[%s23 + $0x30] sm:$0xff]
        %v2590 = vld [vmem:[%s23 + $0x38] sm:$0xff]
        %v2591 = vld [vmem:[%s23 + $0x40] sm:$0xff]
        %v2592 = vld [vmem:[%s23 + $0x48] sm:$0xff]
        %v2593 = vld [vmem:[%s23 + $0x50] sm:$0xff]
        %v2594 = vld [vmem:[%s23 + $0x58] sm:$0xff]
        %v2595 = vld [vmem:[%s23 + $0x60] sm:$0xff]
        %v2596 = vld [vmem:[%s23 + $0x68] sm:$0xff]
        %v2597 = vld [vmem:[%s23 + $0x70] sm:$0xff]
        %v2598 = vld [vmem:[%s23 + $0x78] sm:$0xff]
        %v2599 = vld [vmem:[%s23 + $0x80] sm:$0xff]
        %v2600 = vld [vmem:[%s23 + $0x88] sm:$0xff]
        %v2601 = vld [vmem:[%s23 + $0x90] sm:$0xff]
        %v2602 = vld [vmem:[%s23 + $0x98] sm:$0xff]
        %v2603 = vld [vmem:[%s23 + $0xa0] sm:$0xff]
        %v2604 = vld [vmem:[%s23 + $0xa8] sm:$0xff]
        %v2605 = vld [vmem:[%s23 + $0xb0] sm:$0xff]
        %v2606 = vld [vmem:[%s23 + $0xb8] sm:$0xff]
        %v2607 = vld [vmem:[%s23 + $0xc0] sm:$0xff]
        %v2608 = vld [vmem:[%s23 + $0xc8] sm:$0xff]
        %v2609 = vld [vmem:[%s23 + $0xd0] sm:$0xff]
        %v2610 = vld [vmem:[%s23 + $0xd8] sm:$0xff]
        %v2611 = vld [vmem:[%s23 + $0xe0] sm:$0xff]
        %v2612 = vld [vmem:[%s23 + $0xe8] sm:$0xff]
        %v2613 = vld [vmem:[%s23 + $0xf0] sm:$0xff]
        %v2614 = vld [vmem:[%s23 + $0xf8] sm:$0xff]
        %v2615 = vld [vmem:[%s23 + $0x100] sm:$0xff]
        %v2616 = vld [vmem:[%s23 + $0x108] sm:$0xff]
        %v2617 = vld [vmem:[%s23 + $0x110] sm:$0xff]
        %v2618 = vld [vmem:[%s23 + $0x118] sm:$0xff]
        %v2619 = vld [vmem:[%s23 + $0x120] sm:$0xff]
        %v2620 = vld [vmem:[%s23 + $0x128] sm:$0xff]
        %v2621 = vld [vmem:[%s23 + $0x130] sm:$0xff]
        %v2622 = vld [vmem:[%s23 + $0x138] sm:$0xff]
        %v2623 = vld [vmem:[%s23 + $0x140] sm:$0xff]
        %v2624 = vld [vmem:[%s23 + $0x148] sm:$0xff]
        %v2625 = vld [vmem:[%s23 + $0x150] sm:$0xff]
        %v2626 = vld [vmem:[%s23 + $0x158] sm:$0xff]
        %v2627 = vld [vmem:[%s23 + $0x160] sm:$0xff]
        %v2628 = vld [vmem:[%s23 + $0x168] sm:$0xff]
        %v2629 = vld [vmem:[%s23 + $0x170] sm:$0xff]
        %v2630 = vld [vmem:[%s23 + $0x178] sm:$0xff]
        %v2631 = vld [vmem:[%s23 + $0x180] sm:$0xff]
        %v2632 = vld [vmem:[%s23 + $0x188] sm:$0xff]
        %v2633 = vld [vmem:[%s23 + $0x190] sm:$0xff]
        %v2634 = vld [vmem:[%s23 + $0x198] sm:$0xff]
        %v2635 = vld [vmem:[%s23 + $0x1a0] sm:$0xff]
        %v2636 = vld [vmem:[%s23 + $0x1a8] sm:$0xff]
        %v2637 = vld [vmem:[%s23 + $0x1b0] sm:$0xff]
        %v2638 = vld [vmem:[%s23 + $0x1b8] sm:$0xff]
        %v2639 = vld [vmem:[%s23 + $0x1c0] sm:$0xff]
        %v2640 = vld [vmem:[%s23 + $0x1c8] sm:$0xff]
        %v2641 = vld [vmem:[%s23 + $0x1d0] sm:$0xff]
        %v2642 = vld [vmem:[%s23 + $0x1d8] sm:$0xff]
        %v2643 = vld [vmem:[%s23 + $0x1e0] sm:$0xff]
        %v2644 = vld [vmem:[%s23 + $0x1e8] sm:$0xff]
        %v2645 = vld [vmem:[%s23 + $0x1f0] sm:$0xff]
        %v2646 = vld [vmem:[%s23 + $0x1f8] sm:$0xff]
        %v2647 = vld [vmem:[%s23 + $0x200] sm:$0xff]
        %v2648 = vld [vmem:[%s23 + $0x208] sm:$0xff]
        %v2649 = vld [vmem:[%s23 + $0x210] sm:$0xff]
        %v2650 = vld [vmem:[%s23 + $0x218] sm:$0xff]
        %v2651 = vld [vmem:[%s23 + $0x220] sm:$0xff]
        %v2652 = vld [vmem:[%s23 + $0x228] sm:$0xff]
        %v2653 = vld [vmem:[%s23 + $0x230] sm:$0xff]
        %v2654 = vld [vmem:[%s23 + $0x238] sm:$0xff]
        %v2655 = vld [vmem:[%s23 + $0x240] sm:$0xff]
        %v2656 = vld [vmem:[%s23 + $0x248] sm:$0xff]
        %v2657 = vld [vmem:[%s23 + $0x250] sm:$0xff]
        %v2658 = vld [vmem:[%s23 + $0x258] sm:$0xff]
        %v2659 = vld [vmem:[%s23 + $0x260] sm:$0xff]
        %v2660 = vld [vmem:[%s23 + $0x268] sm:$0xff]
        %v2661 = vld [vmem:[%s23 + $0x270] sm:$0xff]
        %v2662 = vld [vmem:[%s23 + $0x278] sm:$0xff]
        %v2663 = vld [vmem:[%s23 + $0x280] sm:$0xff]
        %v2664 = vld [vmem:[%s23 + $0x288] sm:$0xff]
        %v2665 = vld [vmem:[%s23 + $0x290] sm:$0xff]
        %v2666 = vld [vmem:[%s23 + $0x298] sm:$0xff]
        %v2667 = vld [vmem:[%s23 + $0x2a0] sm:$0xff]
        %v2668 = vld [vmem:[%s23 + $0x2a8] sm:$0xff]
        %v2669 = vld [vmem:[%s23 + $0x2b0] sm:$0xff]
        %v2670 = vld [vmem:[%s23 + $0x2b8] sm:$0xff]
        %v2671 = vld [vmem:[%s23 + $0x2c0] sm:$0xff]
        %v2672 = vld [vmem:[%s23 + $0x2c8] sm:$0xff]
        %v2673 = vld [vmem:[%s23 + $0x2d0] sm:$0xff]
        %v2674 = vld [vmem:[%s23 + $0x2d8] sm:$0xff]
        %v2675 = vld [vmem:[%s23 + $0x2e0] sm:$0xff]
        %v2676 = vld [vmem:[%s23 + $0x2e8] sm:$0xff]
        %v2677 = vld [vmem:[%s23 + $0x2f0] sm:$0xff]
        %v2678 = vld [vmem:[%s23 + $0x2f8] sm:$0xff]
        %v2680 = vsel %vm1930, %v2498, 0
        %v2683 = vsel %vm1930, %v2504, 0
        %2685 = vmatprep.subr.mxu0 %v2632
        %2686 = vmatpush1.msra.mxu0 %v2631
        %2687 = vmatprep.subr.mxu0 %v2634
        %2688 = vmatpush1.msra.mxu0 %v2633
        %2689 = vmatprep.subr.mxu0 %v2636
        %2690 = vmatpush1.msra.mxu0 %v2635
        %2691 = vmatprep.subr.mxu0 %v2638
        %2692 = vmatpush1.msra.mxu0 %v2637
        %2693 = vmatprep.subr.mxu0 %v2640
        %2694 = vmatpush1.msra.mxu0 %v2639
        %2695 = vmatprep.subr.mxu0 %v2642
        %2696 = vmatpush1.msra.mxu0 %v2641
        %2697 = vmatprep.subr.mxu0 %v2644
        %2698 = vmatpush1.msra.mxu0 %v2643
        %2699 = vmatprep.subr.mxu0 %v2646
        %2700 = vmatpush1.msra.mxu0 %v2645
        %2701 = vmatprep.subr.mxu0 %v2648
        %2702 = vmatpush1.msra.mxu0 %v2647
        %2703 = vmatprep.subr.mxu0 %v2650
        %2704 = vmatpush1.msra.mxu0 %v2649
        %2705 = vmatprep.subr.mxu0 %v2652
        %2706 = vmatpush1.msra.mxu0 %v2651
        %2707 = vmatprep.subr.mxu0 %v2654
        %2708 = vmatpush1.msra.mxu0 %v2653
        %2709 = vmatprep.subr.mxu0 %v2656
        %2710 = vmatpush1.msra.mxu0 %v2655
        %2711 = vmatprep.subr.mxu0 %v2658
        %2712 = vmatpush1.msra.mxu0 %v2657
        %2713 = vmatprep.subr.mxu0 %v2660
        %2714 = vmatpush1.msra.mxu0 %v2659
        %2715 = vmatprep.subr.mxu0 %v2662
        %2716 = vmatpush1.msra.mxu0 %v2661
        %2717 = vmatprep.subr.mxu0 %v2664
        %2718 = vmatpush1.msra.mxu0 %v2663
        %2719 = vmatprep.subr.mxu0 %v2666
        %2720 = vmatpush1.msra.mxu0 %v2665
        %2721 = vmatprep.subr.mxu0 %v2668
        %2722 = vmatpush1.msra.mxu0 %v2667
        %2723 = vmatprep.subr.mxu0 %v2670
        %2724 = vmatpush1.msra.mxu0 %v2669
        %2725 = vmatprep.subr.mxu0 %v2672
        %2726 = vmatpush1.msra.mxu0 %v2671
        %2727 = vmatprep.subr.mxu0 %v2674
        %2728 = vmatpush1.msra.mxu0 %v2673
        %2729 = vmatprep.subr.mxu0 %v2676
        %2730 = vmatpush1.msra.mxu0 %v2675
        %2731 = vmatprep.subr.mxu0 %v2678
        %2732 = vmatpush1.msra.mxu0 %v2677
        %2733 = vmatprep.subr.mxu0 0.0
        %2734 = vmatpush1.msra.mxu0 0.0
        %2735 = vmatprep.subr.mxu0 0.0
        %2736 = vmatpush1.msra.mxu0 0.0
        %2737 = vmatprep.subr.mxu0 0.0
        %2738 = vmatpush1.msra.mxu0 0.0
        %2739 = vmatprep.subr.mxu0 0.0
        %2740 = vmatpush1.msra.mxu0 0.0
        %2741 = vmatprep.subr.mxu0 0.0
        %2742 = vmatpush1.msra.mxu0 0.0
        %2743 = vmatprep.subr.mxu0 0.0
        %2744 = vmatpush1.msra.mxu0 0.0
        %2745 = vmatprep.subr.mxu0 0.0
        %2746 = vmatpush1.msra.mxu0 0.0
        %2747 = vmatprep.subr.mxu0 0.0
        %2748 = vmatpush1.msra.mxu0 0.0
        %2749 = vmatprep.mubr.f32.mxu0 %v2680
        %2750 = vmatmul.mubr.f32.gmra.mrb[0].mxu0 %v2496
        %v2751 = vpop.f32.mrb[0].mxu0
        %v2752 = vadd.f32 0.0, %v2751
        %v2753 = vpop.f32.mrb[0].mxu0
        %v2754 = vadd.f32 0.0, %v2753
        %2755 = vmatprep.mubr.f32.mxu0 %v2683
        %2756 = vmatmul.mubr.f32.gmra.mrb[0].mxu0 %v2502
        %v2757 = vpop.f32.mrb[0].mxu0
        %v2758 = vadd.f32 0.0, %v2757
        %v2759 = vpop.f32.mrb[0].mxu0
        %v2760 = vadd.f32 0.0, %v2759
        %2761 = vdwg.mxu0
        %2762 = vmatprep.subr.mxu0 %v2584
        %2763 = vmatpush1.msra.mxu0 %v2583
        %2764 = vmatprep.subr.mxu0 %v2586
        %2765 = vmatpush1.msra.mxu0 %v2585
        %2766 = vmatprep.subr.mxu0 %v2588
        %2767 = vmatpush1.msra.mxu0 %v2587
        %2768 = vmatprep.subr.mxu0 %v2590
        %2769 = vmatpush1.msra.mxu0 %v2589
        %2770 = vmatprep.subr.mxu0 %v2592
        %2771 = vmatpush1.msra.mxu0 %v2591
        %2772 = vmatprep.subr.mxu0 %v2594
        %2773 = vmatpush1.msra.mxu0 %v2593
        %2774 = vmatprep.subr.mxu0 %v2596
        %2775 = vmatpush1.msra.mxu0 %v2595
        %2776 = vmatprep.subr.mxu0 %v2598
        %2777 = vmatpush1.msra.mxu0 %v2597
        %2778 = vmatprep.subr.mxu0 %v2600
        %2779 = vmatpush1.msra.mxu0 %v2599
        %2780 = vmatprep.subr.mxu0 %v2602
        %2781 = vmatpush1.msra.mxu0 %v2601
        %2782 = vmatprep.subr.mxu0 %v2604
        %2783 = vmatpush1.msra.mxu0 %v2603
        %2784 = vmatprep.subr.mxu0 %v2606
        %2785 = vmatpush1.msra.mxu0 %v2605
        %2786 = vmatprep.subr.mxu0 %v2608
        %2787 = vmatpush1.msra.mxu0 %v2607
        %2788 = vmatprep.subr.mxu0 %v2610
        %2789 = vmatpush1.msra.mxu0 %v2609
        %2790 = vmatprep.subr.mxu0 %v2612
        %2791 = vmatpush1.msra.mxu0 %v2611
        %2792 = vmatprep.subr.mxu0 %v2614
        %2793 = vmatpush1.msra.mxu0 %v2613
        %2794 = vmatprep.subr.mxu0 %v2616
        %2795 = vmatpush1.msra.mxu0 %v2615
        %2796 = vmatprep.subr.mxu0 %v2618
        %2797 = vmatpush1.msra.mxu0 %v2617
        %2798 = vmatprep.subr.mxu0 %v2620
        %2799 = vmatpush1.msra.mxu0 %v2619
        %2800 = vmatprep.subr.mxu0 %v2622
        %2801 = vmatpush1.msra.mxu0 %v2621
        %2802 = vmatprep.subr.mxu0 %v2624
        %2803 = vmatpush1.msra.mxu0 %v2623
        %2804 = vmatprep.subr.mxu0 %v2626
        %2805 = vmatpush1.msra.mxu0 %v2625
        %2806 = vmatprep.subr.mxu0 %v2628
        %2807 = vmatpush1.msra.mxu0 %v2627
        %2808 = vmatprep.subr.mxu0 %v2630
        %2809 = vmatpush1.msra.mxu0 %v2629
        %2810 = vmatprep.subr.mxu0 0.0
        %2811 = vmatpush1.msra.mxu0 0.0
        %2812 = vmatprep.subr.mxu0 0.0
        %2813 = vmatpush1.msra.mxu0 0.0
        %2814 = vmatprep.subr.mxu0 0.0
        %2815 = vmatpush1.msra.mxu0 0.0
        %2816 = vmatprep.subr.mxu0 0.0
        %2817 = vmatpush1.msra.mxu0 0.0
        %2818 = vmatprep.subr.mxu0 0.0
        %2819 = vmatpush1.msra.mxu0 0.0
        %2820 = vmatprep.subr.mxu0 0.0
        %2821 = vmatpush1.msra.mxu0 0.0
        %2822 = vmatprep.subr.mxu0 0.0
        %2823 = vmatpush1.msra.mxu0 0.0
        %2824 = vmatprep.subr.mxu0 0.0
        %2825 = vmatpush1.msra.mxu0 0.0
        %2826 = vmatprep.mubr.f32.mxu0 %v2340
        %2827 = vmatmul.mubr.f32.gmra.mrb[0].mxu0 %v2304
        %v2828 = vpop.f32.mrb[0].mxu0
        %v2829 = vadd.f32 %v2752, %v2828
        %v2830 = vpop.f32.mrb[0].mxu0
        %v2831 = vadd.f32 %v2754, %v2830
        %2832 = vmatprep.mubr.f32.mxu0 %v2343
        %2833 = vmatmul.mubr.f32.gmra.mrb[0].mxu0 %v2306
        %v2834 = vpop.f32.mrb[0].mxu0
        %v2835 = vadd.f32 %v2758, %v2834
        %v2836 = vpop.f32.mrb[0].mxu0
        %v2837 = vadd.f32 %v2760, %v2836
        %2838 = vdwg.mxu0
        %v2839 = vld [vmem:[%s23 + $0x300] sm:$0xff]
        %v2840 = vld [vmem:[%s23 + $0x308] sm:$0xff]
        %v2841 = vld [vmem:[%s23 + $0x310] sm:$0xff]
        %v2842 = vld [vmem:[%s23 + $0x318] sm:$0xff]
        %v2843 = vld [vmem:[%s23 + $0x320] sm:$0xff]
        %v2844 = vld [vmem:[%s23 + $0x328] sm:$0xff]
        %v2845 = vld [vmem:[%s23 + $0x330] sm:$0xff]
        %v2846 = vld [vmem:[%s23 + $0x338] sm:$0xff]
        %v2847 = vld [vmem:[%s23 + $0x340] sm:$0xff]
        %v2848 = vld [vmem:[%s23 + $0x348] sm:$0xff]
        %v2849 = vld [vmem:[%s23 + $0x350] sm:$0xff]
        %v2850 = vld [vmem:[%s23 + $0x358] sm:$0xff]
        %v2851 = vld [vmem:[%s23 + $0x360] sm:$0xff]
        %v2852 = vld [vmem:[%s23 + $0x368] sm:$0xff]
        %v2853 = vld [vmem:[%s23 + $0x370] sm:$0xff]
        %v2854 = vld [vmem:[%s23 + $0x378] sm:$0xff]
        %v2855 = vld [vmem:[%s23 + $0x380] sm:$0xff]
        %v2856 = vld [vmem:[%s23 + $0x388] sm:$0xff]
        %v2857 = vld [vmem:[%s23 + $0x390] sm:$0xff]
        %v2858 = vld [vmem:[%s23 + $0x398] sm:$0xff]
        %v2859 = vld [vmem:[%s23 + $0x3a0] sm:$0xff]
        %v2860 = vld [vmem:[%s23 + $0x3a8] sm:$0xff]
        %v2861 = vld [vmem:[%s23 + $0x3b0] sm:$0xff]
        %v2862 = vld [vmem:[%s23 + $0x3b8] sm:$0xff]
        %v2863 = vld [vmem:[%s23 + $0x3c0] sm:$0xff]
        %v2864 = vld [vmem:[%s23 + $0x3c8] sm:$0xff]
        %v2865 = vld [vmem:[%s23 + $0x3d0] sm:$0xff]
        %v2866 = vld [vmem:[%s23 + $0x3d8] sm:$0xff]
        %v2867 = vld [vmem:[%s23 + $0x3e0] sm:$0xff]
        %v2868 = vld [vmem:[%s23 + $0x3e8] sm:$0xff]
        %v2869 = vld [vmem:[%s23 + $0x3f0] sm:$0xff]
        %v2870 = vld [vmem:[%s23 + $0x3f8] sm:$0xff]
        %v2871 = vld [vmem:[%s23 + $0x400] sm:$0xff]
        %v2872 = vld [vmem:[%s23 + $0x408] sm:$0xff]
        %v2873 = vld [vmem:[%s23 + $0x410] sm:$0xff]
        %v2874 = vld [vmem:[%s23 + $0x418] sm:$0xff]
        %v2875 = vld [vmem:[%s23 + $0x420] sm:$0xff]
        %v2876 = vld [vmem:[%s23 + $0x428] sm:$0xff]
        %v2877 = vld [vmem:[%s23 + $0x430] sm:$0xff]
        %v2878 = vld [vmem:[%s23 + $0x438] sm:$0xff]
        %v2879 = vld [vmem:[%s23 + $0x440] sm:$0xff]
        %v2880 = vld [vmem:[%s23 + $0x448] sm:$0xff]
        %v2881 = vld [vmem:[%s23 + $0x450] sm:$0xff]
        %v2882 = vld [vmem:[%s23 + $0x458] sm:$0xff]
        %v2883 = vld [vmem:[%s23 + $0x460] sm:$0xff]
        %v2884 = vld [vmem:[%s23 + $0x468] sm:$0xff]
        %v2885 = vld [vmem:[%s23 + $0x470] sm:$0xff]
        %v2886 = vld [vmem:[%s23 + $0x478] sm:$0xff]
        %v2888 = vsel %vm1930, %v2575, 0
        %v2891 = vsel %vm1930, %v2581, 0
        %2893 = vmatprep.subr.mxu0 %v2840
        %2894 = vmatpush1.msra.mxu0 %v2839
        %2895 = vmatprep.subr.mxu0 %v2842
        %2896 = vmatpush1.msra.mxu0 %v2841
        %2897 = vmatprep.subr.mxu0 %v2844
        %2898 = vmatpush1.msra.mxu0 %v2843
        %2899 = vmatprep.subr.mxu0 %v2846
        %2900 = vmatpush1.msra.mxu0 %v2845
        %2901 = vmatprep.subr.mxu0 %v2848
        %2902 = vmatpush1.msra.mxu0 %v2847
        %2903 = vmatprep.subr.mxu0 %v2850
        %2904 = vmatpush1.msra.mxu0 %v2849
        %2905 = vmatprep.subr.mxu0 %v2852
        %2906 = vmatpush1.msra.mxu0 %v2851
        %2907 = vmatprep.subr.mxu0 %v2854
        %2908 = vmatpush1.msra.mxu0 %v2853
        %2909 = vmatprep.subr.mxu0 %v2856
        %2910 = vmatpush1.msra.mxu0 %v2855
        %2911 = vmatprep.subr.mxu0 %v2858
        %2912 = vmatpush1.msra.mxu0 %v2857
        %2913 = vmatprep.subr.mxu0 %v2860
        %2914 = vmatpush1.msra.mxu0 %v2859
        %2915 = vmatprep.subr.mxu0 %v2862
        %2916 = vmatpush1.msra.mxu0 %v2861
        %2917 = vmatprep.subr.mxu0 %v2864
        %2918 = vmatpush1.msra.mxu0 %v2863
        %2919 = vmatprep.subr.mxu0 %v2866
        %2920 = vmatpush1.msra.mxu0 %v2865
        %2921 = vmatprep.subr.mxu0 %v2868
        %2922 = vmatpush1.msra.mxu0 %v2867
        %2923 = vmatprep.subr.mxu0 %v2870
        %2924 = vmatpush1.msra.mxu0 %v2869
        %2925 = vmatprep.subr.mxu0 %v2872
        %2926 = vmatpush1.msra.mxu0 %v2871
        %2927 = vmatprep.subr.mxu0 %v2874
        %2928 = vmatpush1.msra.mxu0 %v2873
        %2929 = vmatprep.subr.mxu0 %v2876
        %2930 = vmatpush1.msra.mxu0 %v2875
        %2931 = vmatprep.subr.mxu0 %v2878
        %2932 = vmatpush1.msra.mxu0 %v2877
        %2933 = vmatprep.subr.mxu0 %v2880
        %2934 = vmatpush1.msra.mxu0 %v2879
        %2935 = vmatprep.subr.mxu0 %v2882
        %2936 = vmatpush1.msra.mxu0 %v2881
        %2937 = vmatprep.subr.mxu0 %v2884
        %2938 = vmatpush1.msra.mxu0 %v2883
        %2939 = vmatprep.subr.mxu0 %v2886
        %2940 = vmatpush1.msra.mxu0 %v2885
        %2941 = vmatprep.subr.mxu0 0.0
        %2942 = vmatpush1.msra.mxu0 0.0
        %2943 = vmatprep.subr.mxu0 0.0
        %2944 = vmatpush1.msra.mxu0 0.0
        %2945 = vmatprep.subr.mxu0 0.0
        %2946 = vmatpush1.msra.mxu0 0.0
        %2947 = vmatprep.subr.mxu0 0.0
        %2948 = vmatpush1.msra.mxu0 0.0
        %2949 = vmatprep.subr.mxu0 0.0
        %2950 = vmatpush1.msra.mxu0 0.0
        %2951 = vmatprep.subr.mxu0 0.0
        %2952 = vmatpush1.msra.mxu0 0.0
        %2953 = vmatprep.subr.mxu0 0.0
        %2954 = vmatpush1.msra.mxu0 0.0
        %2955 = vmatprep.subr.mxu0 0.0
        %2956 = vmatpush1.msra.mxu0 0.0
        %2957 = vmatprep.mubr.f32.mxu0 %v2888
        %2958 = vmatmul.mubr.f32.gmra.mrb[0].mxu0 %v2573
        %v2959 = vpop.f32.mrb[0].mxu0
        %v2960 = vadd.f32 0.0, %v2959
        %v2961 = vpop.f32.mrb[0].mxu0
        %v2962 = vadd.f32 0.0, %v2961
        %2963 = vmatprep.mubr.f32.mxu0 %v2891
        %2964 = vmatmul.mubr.f32.gmra.mrb[0].mxu0 %v2579
        %v2965 = vpop.f32.mrb[0].mxu0
        %v2966 = vadd.f32 0.0, %v2965
        %v2967 = vpop.f32.mrb[0].mxu0
        %v2968 = vadd.f32 0.0, %v2967
        %2969 = vdwg.mxu0
        %v2970 = vadd.f32 %v2829, %v2960
        %v2971 = vadd.f32 %v2831, %v2962
        %v2972 = vadd.f32 %v2835, %v2966
        %v2973 = vadd.f32 %v2837, %v2968
        %v2974 = vld [vmem:[#allocation11] sm:$0x3]
        %v2976 = vlaneseq
        %v2977 = vshrl.u32 %v2976, 7
        %v2978 = vsub.s32 0, %v2977
        %v2979 = vrot.slane %v2974, %v2978
        %v2980 = vlaneseq
        %v2981 = vshrl.u32 %v2980, 7
        %v2982 = vsub.s32 1, %v2981
        %v2983 = vrot.slane %v2974, %v2982
        %v2986 = vadd.f32 %v2970, %v2979
        %v2987 = vadd.f32 %v2971, %v2983
        %v2988 = vadd.f32 %v2972, %v2979
        %v2989 = vadd.f32 %v2973, %v2983
        %v2990 = vld [vmem:[%s27] sm:$0xff]
        %v2991 = vld [vmem:[%s27 + $0x8] sm:$0xff]
        %v2992 = vld [vmem:[%s27 + $0x10] sm:$0xff]
        %v2993 = vld [vmem:[%s27 + $0x18] sm:$0xff]
        %v2994 = vld [vmem:[%s27 + $0x20] sm:$0xff]
        %v2995 = vld [vmem:[%s27 + $0x28] sm:$0xff]
        %v2996 = vld [vmem:[%s27 + $0x30] sm:$0xff]
        %v2997 = vld [vmem:[%s27 + $0x38] sm:$0xff]
        %v2998 = vld [vmem:[%s27 + $0x40] sm:$0xff]
        %v2999 = vld [vmem:[%s27 + $0x48] sm:$0xff]
        %v3000 = vld [vmem:[%s27 + $0x50] sm:$0xff]
        %v3001 = vld [vmem:[%s27 + $0x58] sm:$0xff]
        %v3002 = vld [vmem:[%s27 + $0x60] sm:$0xff]
        %v3003 = vld [vmem:[%s27 + $0x68] sm:$0xff]
        %v3004 = vld [vmem:[%s27 + $0x70] sm:$0xff]
        %v3005 = vld [vmem:[%s27 + $0x78] sm:$0xff]
        %v3006 = vld [vmem:[%s27 + $0x80] sm:$0xff]
        %v3007 = vld [vmem:[%s27 + $0x88] sm:$0xff]
        %v3008 = vld [vmem:[%s27 + $0x90] sm:$0xff]
        %v3009 = vld [vmem:[%s27 + $0x98] sm:$0xff]
        %v3010 = vld [vmem:[%s27 + $0xa0] sm:$0xff]
        %v3011 = vld [vmem:[%s27 + $0xa8] sm:$0xff]
        %v3012 = vld [vmem:[%s27 + $0xb0] sm:$0xff]
        %v3013 = vld [vmem:[%s27 + $0xb8] sm:$0xff]
        %v3014 = vld [vmem:[%s27 + $0xc0] sm:$0xff]
        %v3015 = vld [vmem:[%s27 + $0xc8] sm:$0xff]
        %v3016 = vld [vmem:[%s27 + $0xd0] sm:$0xff]
        %v3017 = vld [vmem:[%s27 + $0xd8] sm:$0xff]
        %v3018 = vld [vmem:[%s27 + $0xe0] sm:$0xff]
        %v3019 = vld [vmem:[%s27 + $0xe8] sm:$0xff]
        %v3020 = vld [vmem:[%s27 + $0xf0] sm:$0xff]
        %v3021 = vld [vmem:[%s27 + $0xf8] sm:$0xff]
        %v3022 = vld [vmem:[%s27 + $0x100] sm:$0xff]
        %v3023 = vld [vmem:[%s27 + $0x108] sm:$0xff]
        %v3024 = vld [vmem:[%s27 + $0x110] sm:$0xff]
        %v3025 = vld [vmem:[%s27 + $0x118] sm:$0xff]
        %v3026 = vld [vmem:[%s27 + $0x120] sm:$0xff]
        %v3027 = vld [vmem:[%s27 + $0x128] sm:$0xff]
        %v3028 = vld [vmem:[%s27 + $0x130] sm:$0xff]
        %v3029 = vld [vmem:[%s27 + $0x138] sm:$0xff]
        %v3030 = vld [vmem:[%s27 + $0x140] sm:$0xff]
        %v3031 = vld [vmem:[%s27 + $0x148] sm:$0xff]
        %v3032 = vld [vmem:[%s27 + $0x150] sm:$0xff]
        %v3033 = vld [vmem:[%s27 + $0x158] sm:$0xff]
        %v3034 = vld [vmem:[%s27 + $0x160] sm:$0xff]
        %v3035 = vld [vmem:[%s27 + $0x168] sm:$0xff]
        %v3036 = vld [vmem:[%s27 + $0x170] sm:$0xff]
        %v3037 = vld [vmem:[%s27 + $0x178] sm:$0xff]
        %v3038 = vld [vmem:[%s27 + $0x180] sm:$0xff]
        %v3039 = vld [vmem:[%s27 + $0x188] sm:$0xff]
        %v3040 = vld [vmem:[%s27 + $0x190] sm:$0xff]
        %v3041 = vld [vmem:[%s27 + $0x198] sm:$0xff]
        %v3042 = vld [vmem:[%s27 + $0x1a0] sm:$0xff]
        %v3043 = vld [vmem:[%s27 + $0x1a8] sm:$0xff]
        %v3044 = vld [vmem:[%s27 + $0x1b0] sm:$0xff]
        %v3045 = vld [vmem:[%s27 + $0x1b8] sm:$0xff]
        %v3046 = vld [vmem:[%s27 + $0x1c0] sm:$0xff]
        %v3047 = vld [vmem:[%s27 + $0x1c8] sm:$0xff]
        %v3048 = vld [vmem:[%s27 + $0x1d0] sm:$0xff]
        %v3049 = vld [vmem:[%s27 + $0x1d8] sm:$0xff]
        %v3050 = vld [vmem:[%s29] sm:$0xff]
        %v3051 = vld [vmem:[%s29 + $0x8] sm:$0xff]
        %v3052 = vld [vmem:[%s29 + $0x10] sm:$0xff]
        %v3053 = vld [vmem:[%s29 + $0x18] sm:$0xff]
        %v3054 = vld [vmem:[%s29 + $0x20] sm:$0xff]
        %v3055 = vld [vmem:[%s29 + $0x28] sm:$0xff]
        %v3056 = vld [vmem:[%s29 + $0x30] sm:$0xff]
        %v3057 = vld [vmem:[%s29 + $0x38] sm:$0xff]
        %v3058 = vld [vmem:[%s29 + $0x40] sm:$0xff]
        %v3059 = vld [vmem:[%s29 + $0x48] sm:$0xff]
        %v3060 = vld [vmem:[%s29 + $0x50] sm:$0xff]
        %v3061 = vld [vmem:[%s29 + $0x58] sm:$0xff]
        %v3062 = vld [vmem:[%s29 + $0x60] sm:$0xff]
        %v3063 = vld [vmem:[%s29 + $0x68] sm:$0xff]
        %v3064 = vld [vmem:[%s29 + $0x70] sm:$0xff]
        %v3065 = vld [vmem:[%s29 + $0x78] sm:$0xff]
        %v3066 = vld [vmem:[%s29 + $0x80] sm:$0xff]
        %v3067 = vld [vmem:[%s29 + $0x88] sm:$0xff]
        %v3068 = vld [vmem:[%s29 + $0x90] sm:$0xff]
        %v3069 = vld [vmem:[%s29 + $0x98] sm:$0xff]
        %v3070 = vld [vmem:[%s29 + $0xa0] sm:$0xff]
        %v3071 = vld [vmem:[%s29 + $0xa8] sm:$0xff]
        %v3072 = vld [vmem:[%s29 + $0xb0] sm:$0xff]
        %v3073 = vld [vmem:[%s29 + $0xb8] sm:$0xff]
        %v3074 = vld [vmem:[%s29 + $0xc0] sm:$0xff]
        %v3075 = vld [vmem:[%s29 + $0xc8] sm:$0xff]
        %v3076 = vld [vmem:[%s29 + $0xd0] sm:$0xff]
        %v3077 = vld [vmem:[%s29 + $0xd8] sm:$0xff]
        %v3078 = vld [vmem:[%s29 + $0xe0] sm:$0xff]
        %v3079 = vld [vmem:[%s29 + $0xe8] sm:$0xff]
        %v3080 = vld [vmem:[%s29 + $0xf0] sm:$0xff]
        %v3081 = vld [vmem:[%s29 + $0xf8] sm:$0xff]
        %v3082 = vld [vmem:[%s29 + $0x100] sm:$0xff]
        %v3083 = vld [vmem:[%s29 + $0x108] sm:$0xff]
        %v3084 = vld [vmem:[%s29 + $0x110] sm:$0xff]
        %v3085 = vld [vmem:[%s29 + $0x118] sm:$0xff]
        %v3086 = vld [vmem:[%s29 + $0x120] sm:$0xff]
        %v3087 = vld [vmem:[%s29 + $0x128] sm:$0xff]
        %v3088 = vld [vmem:[%s29 + $0x130] sm:$0xff]
        %v3089 = vld [vmem:[%s29 + $0x138] sm:$0xff]
        %v3090 = vld [vmem:[%s29 + $0x140] sm:$0xff]
        %v3091 = vld [vmem:[%s29 + $0x148] sm:$0xff]
        %v3092 = vld [vmem:[%s29 + $0x150] sm:$0xff]
        %v3093 = vld [vmem:[%s29 + $0x158] sm:$0xff]
        %v3094 = vld [vmem:[%s29 + $0x160] sm:$0xff]
        %v3095 = vld [vmem:[%s29 + $0x168] sm:$0xff]
        %v3096 = vld [vmem:[%s29 + $0x170] sm:$0xff]
        %v3097 = vld [vmem:[%s29 + $0x178] sm:$0xff]
        %v3098 = vld [vmem:[%s29 + $0x180] sm:$0xff]
        %v3099 = vld [vmem:[%s29 + $0x188] sm:$0xff]
        %v3100 = vld [vmem:[%s29 + $0x190] sm:$0xff]
        %v3101 = vld [vmem:[%s29 + $0x198] sm:$0xff]
        %v3102 = vld [vmem:[%s29 + $0x1a0] sm:$0xff]
        %v3103 = vld [vmem:[%s29 + $0x1a8] sm:$0xff]
        %v3104 = vld [vmem:[%s29 + $0x1b0] sm:$0xff]
        %v3105 = vld [vmem:[%s29 + $0x1b8] sm:$0xff]
        %v3106 = vld [vmem:[%s29 + $0x1c0] sm:$0xff]
        %v3107 = vld [vmem:[%s29 + $0x1c8] sm:$0xff]
        %v3108 = vld [vmem:[%s29 + $0x1d0] sm:$0xff]
        %v3109 = vld [vmem:[%s29 + $0x1d8] sm:$0xff]
        %3114 = vrot.lane.b32.xlu0 %v2986, 96
        %v3115 = vpop.permute.xlu0 %3114
        %3116 = vrot.lane.b32.xlu0 %v2987, 96
        %v3117 = vpop.permute.xlu0 %3116
        %3118 = vrot.lane.b32.xlu0 %v2988, 96
        %v3119 = vpop.permute.xlu0 %3118
        %3120 = vrot.lane.b32.xlu0 %v2989, 96
        %v3121 = vpop.permute.xlu0 %3120
        %v3122 = vsel %vm2420, %v3115, %v3117
        %v3123 = vsel %vm2420, %v3119, %v3121
        %vm3126 = vcmask 261120
        %v3127 = vsel %vm3126, %v3117, 0
        %v3129 = vsel %vm3126, %v3121, 0
        %3131 = vmatprep.subr.mxu0 %v3051
        %3132 = vmatpush1.msra.mxu0 %v3050
        %3133 = vmatprep.subr.mxu0 %v3054
        %3134 = vmatpush1.msra.mxu0 %v3053
        %3135 = vmatprep.subr.mxu0 %v3057
        %3136 = vmatpush1.msra.mxu0 %v3056
        %3137 = vmatprep.subr.mxu0 %v3060
        %3138 = vmatpush1.msra.mxu0 %v3059
        %3139 = vmatprep.subr.mxu0 %v3063
        %3140 = vmatpush1.msra.mxu0 %v3062
        %3141 = vmatprep.subr.mxu0 %v3066
        %3142 = vmatpush1.msra.mxu0 %v3065
        %3143 = vmatprep.subr.mxu0 %v3069
        %3144 = vmatpush1.msra.mxu0 %v3068
        %3145 = vmatprep.subr.mxu0 %v3072
        %3146 = vmatpush1.msra.mxu0 %v3071
        %3147 = vmatprep.subr.mxu0 %v3075
        %3148 = vmatpush1.msra.mxu0 %v3074
        %3149 = vmatprep.subr.mxu0 %v3078
        %3150 = vmatpush1.msra.mxu0 %v3077
        %3151 = vmatprep.subr.mxu0 %v3081
        %3152 = vmatpush1.msra.mxu0 %v3080
        %3153 = vmatprep.subr.mxu0 %v3084
        %3154 = vmatpush1.msra.mxu0 %v3083
        %3155 = vmatprep.subr.mxu0 %v3087
        %3156 = vmatpush1.msra.mxu0 %v3086
        %3157 = vmatprep.subr.mxu0 %v3090
        %3158 = vmatpush1.msra.mxu0 %v3089
        %3159 = vmatprep.subr.mxu0 %v3093
        %3160 = vmatpush1.msra.mxu0 %v3092
        %3161 = vmatprep.subr.mxu0 %v3096
        %3162 = vmatpush1.msra.mxu0 %v3095
        %3163 = vmatprep.subr.mxu0 %v3099
        %3164 = vmatpush1.msra.mxu0 %v3098
        %3165 = vmatprep.subr.mxu0 %v3102
        %3166 = vmatpush1.msra.mxu0 %v3101
        %3167 = vmatprep.subr.mxu0 %v3105
        %3168 = vmatpush1.msra.mxu0 %v3104
        %3169 = vmatprep.subr.mxu0 %v3108
        %3170 = vmatpush1.msra.mxu0 %v3107
        %3171 = vmatprep.subr.mxu0 0.0
        %3172 = vmatpush1.msra.mxu0 0.0
        %3173 = vmatprep.subr.mxu0 0.0
        %3174 = vmatpush1.msra.mxu0 0.0
        %3175 = vmatprep.subr.mxu0 0.0
        %3176 = vmatpush1.msra.mxu0 0.0
        %3177 = vmatprep.subr.mxu0 0.0
        %3178 = vmatpush1.msra.mxu0 0.0
        %3179 = vmatprep.subr.mxu0 0.0
        %3180 = vmatpush1.msra.mxu0 0.0
        %3181 = vmatprep.subr.mxu0 0.0
        %3182 = vmatpush1.msra.mxu0 0.0
        %3183 = vmatprep.subr.mxu0 0.0
        %3184 = vmatpush1.msra.mxu0 0.0
        %3185 = vmatprep.subr.mxu0 0.0
        %3186 = vmatpush1.msra.mxu0 0.0
        %3187 = vmatprep.subr.mxu0 0.0
        %3188 = vmatpush1.msra.mxu0 0.0
        %3189 = vmatprep.subr.mxu0 0.0
        %3190 = vmatpush1.msra.mxu0 0.0
        %3191 = vmatprep.subr.mxu0 0.0
        %3192 = vmatpush1.msra.mxu0 0.0
        %3193 = vmatprep.subr.mxu0 0.0
        %3194 = vmatpush1.msra.mxu0 0.0
        %3195 = vmatprep.mubr.f32.mxu0 %v3127
        %3196 = vmatmul.mubr.f32.gmra.mrb[0].mxu0 %v3122
        %v3197 = vpop.f32.mrb[0].mxu0
        %v3198 = vadd.f32 0.0, %v3197
        %v3199 = vpop.f32.mrb[0].mxu0
        %v3200 = vadd.f32 0.0, %v3199
        %3201 = vmatprep.mubr.f32.mxu0 %v3129
        %3202 = vmatmul.mubr.f32.gmra.mrb[0].mxu0 %v3123
        %v3203 = vpop.f32.mrb[0].mxu0
        %v3204 = vadd.f32 0.0, %v3203
        %v3205 = vpop.f32.mrb[0].mxu0
        %v3206 = vadd.f32 0.0, %v3205
        %3207 = vdwg.mxu0
        %3208 = vmatprep.subr.mxu0 0.0
        %3209 = vmatpush1.msra.mxu0 %v3052
        %3210 = vmatprep.subr.mxu0 0.0
        %3211 = vmatpush1.msra.mxu0 %v3055
        %3212 = vmatprep.subr.mxu0 0.0
        %3213 = vmatpush1.msra.mxu0 %v3058
        %3214 = vmatprep.subr.mxu0 0.0
        %3215 = vmatpush1.msra.mxu0 %v3061
        %3216 = vmatprep.subr.mxu0 0.0
        %3217 = vmatpush1.msra.mxu0 %v3064
        %3218 = vmatprep.subr.mxu0 0.0
        %3219 = vmatpush1.msra.mxu0 %v3067
        %3220 = vmatprep.subr.mxu0 0.0
        %3221 = vmatpush1.msra.mxu0 %v3070
        %3222 = vmatprep.subr.mxu0 0.0
        %3223 = vmatpush1.msra.mxu0 %v3073
        %3224 = vmatprep.subr.mxu0 0.0
        %3225 = vmatpush1.msra.mxu0 %v3076
        %3226 = vmatprep.subr.mxu0 0.0
        %3227 = vmatpush1.msra.mxu0 %v3079
        %3228 = vmatprep.subr.mxu0 0.0
        %3229 = vmatpush1.msra.mxu0 %v3082
        %3230 = vmatprep.subr.mxu0 0.0
        %3231 = vmatpush1.msra.mxu0 %v3085
        %3232 = vmatprep.subr.mxu0 0.0
        %3233 = vmatpush1.msra.mxu0 %v3088
        %3234 = vmatprep.subr.mxu0 0.0
        %3235 = vmatpush1.msra.mxu0 %v3091
        %3236 = vmatprep.subr.mxu0 0.0
        %3237 = vmatpush1.msra.mxu0 %v3094
        %3238 = vmatprep.subr.mxu0 0.0
        %3239 = vmatpush1.msra.mxu0 %v3097
        %3240 = vmatprep.subr.mxu0 0.0
        %3241 = vmatpush1.msra.mxu0 %v3100
        %3242 = vmatprep.subr.mxu0 0.0
        %3243 = vmatpush1.msra.mxu0 %v3103
        %3244 = vmatprep.subr.mxu0 0.0
        %3245 = vmatpush1.msra.mxu0 %v3106
        %3246 = vmatprep.subr.mxu0 0.0
        %3247 = vmatpush1.msra.mxu0 %v3109
        %3248 = vmatprep.subr.mxu0 0.0
        %3249 = vmatpush1.msra.mxu0 0.0
        %3250 = vmatprep.subr.mxu0 0.0
        %3251 = vmatpush1.msra.mxu0 0.0
        %3252 = vmatprep.subr.mxu0 0.0
        %3253 = vmatpush1.msra.mxu0 0.0
        %3254 = vmatprep.subr.mxu0 0.0
        %3255 = vmatpush1.msra.mxu0 0.0
        %3256 = vmatprep.subr.mxu0 0.0
        %3257 = vmatpush1.msra.mxu0 0.0
        %3258 = vmatprep.subr.mxu0 0.0
        %3259 = vmatpush1.msra.mxu0 0.0
        %3260 = vmatprep.subr.mxu0 0.0
        %3261 = vmatpush1.msra.mxu0 0.0
        %3262 = vmatprep.subr.mxu0 0.0
        %3263 = vmatpush1.msra.mxu0 0.0
        %3264 = vmatprep.subr.mxu0 0.0
        %3265 = vmatpush1.msra.mxu0 0.0
        %3266 = vmatprep.subr.mxu0 0.0
        %3267 = vmatpush1.msra.mxu0 0.0
        %3268 = vmatprep.subr.mxu0 0.0
        %3269 = vmatpush1.msra.mxu0 0.0
        %3270 = vmatprep.subr.mxu0 0.0
        %3271 = vmatpush1.msra.mxu0 0.0
        %3272 = vmatprep.mubr.f32.mxu0 %v3127
        %3273 = vmatmul.mubr.f32.gmra.mrb[0].mxu0 %v3122
        %v3274 = vpop.f32.mrb[0].mxu0
        %v3275 = vadd.f32 0.0, %v3274
        %v3276 = vpop.f32.mrb[0].mxu0
        %3277 = vmatprep.mubr.f32.mxu0 %v3129
        %3278 = vmatmul.mubr.f32.gmra.mrb[0].mxu0 %v3123
        %v3279 = vpop.f32.mrb[0].mxu0
        %v3280 = vadd.f32 0.0, %v3279
        %v3281 = vpop.f32.mrb[0].mxu0
        %3282 = vdwg.mxu0
        %v3283 = vsel %vm3126, %v2987, 0
        %v3285 = vsel %vm3126, %v2989, 0
        %3287 = vmatprep.subr.mxu0 %v2991
        %3288 = vmatpush1.msra.mxu0 %v2990
        %3289 = vmatprep.subr.mxu0 %v2994
        %3290 = vmatpush1.msra.mxu0 %v2993
        %3291 = vmatprep.subr.mxu0 %v2997
        %3292 = vmatpush1.msra.mxu0 %v2996
        %3293 = vmatprep.subr.mxu0 %v3000
        %3294 = vmatpush1.msra.mxu0 %v2999
        %3295 = vmatprep.subr.mxu0 %v3003
        %3296 = vmatpush1.msra.mxu0 %v3002
        %3297 = vmatprep.subr.mxu0 %v3006
        %3298 = vmatpush1.msra.mxu0 %v3005
        %3299 = vmatprep.subr.mxu0 %v3009
        %3300 = vmatpush1.msra.mxu0 %v3008
        %3301 = vmatprep.subr.mxu0 %v3012
        %3302 = vmatpush1.msra.mxu0 %v3011
        %3303 = vmatprep.subr.mxu0 %v3015
        %3304 = vmatpush1.msra.mxu0 %v3014
        %3305 = vmatprep.subr.mxu0 %v3018
        %3306 = vmatpush1.msra.mxu0 %v3017
        %3307 = vmatprep.subr.mxu0 %v3021
        %3308 = vmatpush1.msra.mxu0 %v3020
        %3309 = vmatprep.subr.mxu0 %v3024
        %3310 = vmatpush1.msra.mxu0 %v3023
        %3311 = vmatprep.subr.mxu0 %v3027
        %3312 = vmatpush1.msra.mxu0 %v3026
        %3313 = vmatprep.subr.mxu0 %v3030
        %3314 = vmatpush1.msra.mxu0 %v3029
        %3315 = vmatprep.subr.mxu0 %v3033
        %3316 = vmatpush1.msra.mxu0 %v3032
        %3317 = vmatprep.subr.mxu0 %v3036
        %3318 = vmatpush1.msra.mxu0 %v3035
        %3319 = vmatprep.subr.mxu0 %v3039
        %3320 = vmatpush1.msra.mxu0 %v3038
        %3321 = vmatprep.subr.mxu0 %v3042
        %3322 = vmatpush1.msra.mxu0 %v3041
        %3323 = vmatprep.subr.mxu0 %v3045
        %3324 = vmatpush1.msra.mxu0 %v3044
        %3325 = vmatprep.subr.mxu0 %v3048
        %3326 = vmatpush1.msra.mxu0 %v3047
        %3327 = vmatprep.subr.mxu0 0.0
        %3328 = vmatpush1.msra.mxu0 0.0
        %3329 = vmatprep.subr.mxu0 0.0
        %3330 = vmatpush1.msra.mxu0 0.0
        %3331 = vmatprep.subr.mxu0 0.0
        %3332 = vmatpush1.msra.mxu0 0.0
        %3333 = vmatprep.subr.mxu0 0.0
        %3334 = vmatpush1.msra.mxu0 0.0
        %3335 = vmatprep.subr.mxu0 0.0
        %3336 = vmatpush1.msra.mxu0 0.0
        %3337 = vmatprep.subr.mxu0 0.0
        %3338 = vmatpush1.msra.mxu0 0.0
        %3339 = vmatprep.subr.mxu0 0.0
        %3340 = vmatpush1.msra.mxu0 0.0
        %3341 = vmatprep.subr.mxu0 0.0
        %3342 = vmatpush1.msra.mxu0 0.0
        %3343 = vmatprep.subr.mxu0 0.0
        %3344 = vmatpush1.msra.mxu0 0.0
        %3345 = vmatprep.subr.mxu0 0.0
        %3346 = vmatpush1.msra.mxu0 0.0
        %3347 = vmatprep.subr.mxu0 0.0
        %3348 = vmatpush1.msra.mxu0 0.0
        %3349 = vmatprep.subr.mxu0 0.0
        %3350 = vmatpush1.msra.mxu0 0.0
        %3351 = vmatprep.mubr.f32.mxu0 %v3283
        %3352 = vmatmul.mubr.f32.gmra.mrb[0].mxu0 %v2986
        %v3353 = vpop.f32.mrb[0].mxu0
        %v3354 = vadd.f32 %v3198, %v3353
        %v3355 = vpop.f32.mrb[0].mxu0
        %v3356 = vadd.f32 %v3200, %v3355
        %3357 = vmatprep.mubr.f32.mxu0 %v3285
        %3358 = vmatmul.mubr.f32.gmra.mrb[0].mxu0 %v2988
        %v3359 = vpop.f32.mrb[0].mxu0
        %v3360 = vadd.f32 %v3204, %v3359
        %v3361 = vpop.f32.mrb[0].mxu0
        %v3362 = vadd.f32 %v3206, %v3361
        %3363 = vdwg.mxu0
        %3364 = vmatprep.subr.mxu0 0.0
        %3365 = vmatpush1.msra.mxu0 %v2992
        %3366 = vmatprep.subr.mxu0 0.0
        %3367 = vmatpush1.msra.mxu0 %v2995
        %3368 = vmatprep.subr.mxu0 0.0
        %3369 = vmatpush1.msra.mxu0 %v2998
        %3370 = vmatprep.subr.mxu0 0.0
        %3371 = vmatpush1.msra.mxu0 %v3001
        %3372 = vmatprep.subr.mxu0 0.0
        %3373 = vmatpush1.msra.mxu0 %v3004
        %3374 = vmatprep.subr.mxu0 0.0
        %3375 = vmatpush1.msra.mxu0 %v3007
        %3376 = vmatprep.subr.mxu0 0.0
        %3377 = vmatpush1.msra.mxu0 %v3010
        %3378 = vmatprep.subr.mxu0 0.0
        %3379 = vmatpush1.msra.mxu0 %v3013
        %3380 = vmatprep.subr.mxu0 0.0
        %3381 = vmatpush1.msra.mxu0 %v3016
        %3382 = vmatprep.subr.mxu0 0.0
        %3383 = vmatpush1.msra.mxu0 %v3019
        %3384 = vmatprep.subr.mxu0 0.0
        %3385 = vmatpush1.msra.mxu0 %v3022
        %3386 = vmatprep.subr.mxu0 0.0
        %3387 = vmatpush1.msra.mxu0 %v3025
        %3388 = vmatprep.subr.mxu0 0.0
        %3389 = vmatpush1.msra.mxu0 %v3028
        %3390 = vmatprep.subr.mxu0 0.0
        %3391 = vmatpush1.msra.mxu0 %v3031
        %3392 = vmatprep.subr.mxu0 0.0
        %3393 = vmatpush1.msra.mxu0 %v3034
        %3394 = vmatprep.subr.mxu0 0.0
        %3395 = vmatpush1.msra.mxu0 %v3037
        %3396 = vmatprep.subr.mxu0 0.0
        %3397 = vmatpush1.msra.mxu0 %v3040
        %3398 = vmatprep.subr.mxu0 0.0
        %3399 = vmatpush1.msra.mxu0 %v3043
        %3400 = vmatprep.subr.mxu0 0.0
        %3401 = vmatpush1.msra.mxu0 %v3046
        %3402 = vmatprep.subr.mxu0 0.0
        %3403 = vmatpush1.msra.mxu0 %v3049
        %3404 = vmatprep.subr.mxu0 0.0
        %3405 = vmatpush1.msra.mxu0 0.0
        %3406 = vmatprep.subr.mxu0 0.0
        %3407 = vmatpush1.msra.mxu0 0.0
        %3408 = vmatprep.subr.mxu0 0.0
        %3409 = vmatpush1.msra.mxu0 0.0
        %3410 = vmatprep.subr.mxu0 0.0
        %3411 = vmatpush1.msra.mxu0 0.0
        %3412 = vmatprep.subr.mxu0 0.0
        %3413 = vmatpush1.msra.mxu0 0.0
        %3414 = vmatprep.subr.mxu0 0.0
        %3415 = vmatpush1.msra.mxu0 0.0
        %3416 = vmatprep.subr.mxu0 0.0
        %3417 = vmatpush1.msra.mxu0 0.0
        %3418 = vmatprep.subr.mxu0 0.0
        %3419 = vmatpush1.msra.mxu0 0.0
        %3420 = vmatprep.subr.mxu0 0.0
        %3421 = vmatpush1.msra.mxu0 0.0
        %3422 = vmatprep.subr.mxu0 0.0
        %3423 = vmatpush1.msra.mxu0 0.0
        %3424 = vmatprep.subr.mxu0 0.0
        %3425 = vmatpush1.msra.mxu0 0.0
        %3426 = vmatprep.subr.mxu0 0.0
        %3427 = vmatpush1.msra.mxu0 0.0
        %3428 = vmatprep.mubr.f32.mxu0 %v3283
        %3429 = vmatmul.mubr.f32.gmra.mrb[0].mxu0 %v2986
        %v3430 = vpop.f32.mrb[0].mxu0
        %v3431 = vadd.f32 %v3275, %v3430
        %v3432 = vpop.f32.mrb[0].mxu0
        %3433 = vmatprep.mubr.f32.mxu0 %v3285
        %3434 = vmatmul.mubr.f32.gmra.mrb[0].mxu0 %v2988
        %v3435 = vpop.f32.mrb[0].mxu0
        %v3436 = vadd.f32 %v3280, %v3435
        %v3437 = vpop.f32.mrb[0].mxu0
        %3438 = vdwg.mxu0
        %v3439 = vld [vmem:[#allocation13] sm:$0x7]
        %v3441 = vlaneseq
        %v3442 = vshrl.u32 %v3441, 7
        %v3443 = vsub.s32 0, %v3442
        %v3444 = vrot.slane %v3439, %v3443
        %v3445 = vlaneseq
        %v3446 = vshrl.u32 %v3445, 7
        %v3447 = vsub.s32 1, %v3446
        %v3448 = vrot.slane %v3439, %v3447
        %v3449 = vlaneseq
        %v3450 = vshrl.u32 %v3449, 7
        %v3451 = vsub.s32 2, %v3450
        %v3452 = vrot.slane %v3439, %v3451
        %v3456 = vadd.f32 %v3354, %v3444
        %v3457 = vadd.f32 %v3356, %v3448
        %v3458 = vadd.f32 %v3431, %v3452
        %v3459 = vadd.f32 %v3360, %v3444
        %v3460 = vadd.f32 %v3362, %v3448
        %v3461 = vadd.f32 %v3436, %v3452
        %v3462 = vtanh.pop %v3456
        %v3463 = vtanh.pop %v3457
        %v3464 = vtanh.pop %v3459
        %v3465 = vtanh.pop %v3460
        %v3466 = vmul.f32 %v3457, 0.5
        %v3467 = vmul.f32 %v3458, 0.5
        %v3468 = vmul.f32 %v3460, 0.5
        %v3469 = vmul.f32 %v3461, 0.5
        %v3470 = vtanh.pop %v3466
        %v3471 = vtanh.pop %v3467
        %v3472 = vtanh.pop %v3468
        %v3473 = vtanh.pop %v3469
        %v3474 = vadd.f32 %v3470, 1.0
        %v3475 = vadd.f32 %v3471, 1.0
        %v3476 = vadd.f32 %v3472, 1.0
        %v3477 = vadd.f32 %v3473, 1.0
        %v3478 = vmul.f32 %v3474, 0.5
        %v3479 = vmul.f32 %v3475, 0.5
        %v3480 = vmul.f32 %v3476, 0.5
        %v3481 = vmul.f32 %v3477, 0.5
        %3486 = vrot.lane.b32.xlu0 %v3478, 96
        %v3487 = vpop.permute.xlu0 %3486
        %3488 = vrot.lane.b32.xlu0 %v3479, 96
        %v3489 = vpop.permute.xlu0 %3488
        %3490 = vrot.lane.b32.xlu0 %v3480, 96
        %v3491 = vpop.permute.xlu0 %3490
        %3492 = vrot.lane.b32.xlu0 %v3481, 96
        %v3493 = vpop.permute.xlu0 %3492
        %v3494 = vsel %vm2420, %v3487, %v3489
        %v3495 = vsel %vm2420, %v3491, %v3493
        %v3500 = vmul.f32 %v3462, %v3494
        %v3501 = vmul.f32 %v3463, %v3489
        %v3502 = vmul.f32 %v3464, %v3495
        %v3503 = vmul.f32 %v3465, %v3493
        %v3504 = vld [vmem:[#allocation14] sm:$0xff]
        %v3505 = vld [vmem:[#allocation14 + $0x8] sm:$0xff]
        %v3506 = vld [vmem:[#allocation14 + $0x10] sm:$0xff]
        %v3507 = vld [vmem:[#allocation14 + $0x18] sm:$0xff]
        %v3508 = vld [vmem:[#allocation14 + $0x20] sm:$0xff]
        %v3509 = vld [vmem:[#allocation14 + $0x28] sm:$0xff]
        %v3510 = vld [vmem:[#allocation14 + $0x30] sm:$0xff]
        %v3511 = vld [vmem:[#allocation14 + $0x38] sm:$0xff]
        %v3512 = vld [vmem:[#allocation14 + $0x40] sm:$0xff]
        %v3513 = vld [vmem:[#allocation14 + $0x48] sm:$0xff]
        %v3514 = vld [vmem:[#allocation14 + $0x50] sm:$0xff]
        %v3515 = vld [vmem:[#allocation14 + $0x58] sm:$0xff]
        %v3516 = vld [vmem:[#allocation14 + $0x60] sm:$0xff]
        %v3517 = vld [vmem:[#allocation14 + $0x68] sm:$0xff]
        %v3518 = vld [vmem:[#allocation14 + $0x70] sm:$0xff]
        %v3519 = vld [vmem:[#allocation14 + $0x78] sm:$0xff]
        %v3520 = vld [vmem:[#allocation14 + $0x80] sm:$0xff]
        %v3521 = vld [vmem:[#allocation14 + $0x88] sm:$0xff]
        %v3522 = vld [vmem:[#allocation14 + $0x90] sm:$0xff]
        %v3523 = vld [vmem:[#allocation14 + $0x98] sm:$0xff]
        %v3524 = vld [vmem:[#allocation16] sm:$0x1]
        %v3526 = vlaneseq
        %v3527 = vshrl.u32 %v3526, 7
        %v3528 = vsub.s32 0, %v3527
        %v3529 = vrot.slane %v3524, %v3528
        %v3532 = vsel %vm3126, %v3501, 0
        %v3535 = vsel %vm3126, %v3503, 0
        %3537 = vmatprep.subr.mxu0 0.0
        %3538 = vmatpush1.msra.mxu0 %v3504
        %3539 = vmatprep.subr.mxu0 0.0
        %3540 = vmatpush1.msra.mxu0 %v3505
        %3541 = vmatprep.subr.mxu0 0.0
        %3542 = vmatpush1.msra.mxu0 %v3506
        %3543 = vmatprep.subr.mxu0 0.0
        %3544 = vmatpush1.msra.mxu0 %v3507
        %3545 = vmatprep.subr.mxu0 0.0
        %3546 = vmatpush1.msra.mxu0 %v3508
        %3547 = vmatprep.subr.mxu0 0.0
        %3548 = vmatpush1.msra.mxu0 %v3509
        %3549 = vmatprep.subr.mxu0 0.0
        %3550 = vmatpush1.msra.mxu0 %v3510
        %3551 = vmatprep.subr.mxu0 0.0
        %3552 = vmatpush1.msra.mxu0 %v3511
        %3553 = vmatprep.subr.mxu0 0.0
        %3554 = vmatpush1.msra.mxu0 %v3512
        %3555 = vmatprep.subr.mxu0 0.0
        %3556 = vmatpush1.msra.mxu0 %v3513
        %3557 = vmatprep.subr.mxu0 0.0
        %3558 = vmatpush1.msra.mxu0 %v3514
        %3559 = vmatprep.subr.mxu0 0.0
        %3560 = vmatpush1.msra.mxu0 %v3515
        %3561 = vmatprep.subr.mxu0 0.0
        %3562 = vmatpush1.msra.mxu0 %v3516
        %3563 = vmatprep.subr.mxu0 0.0
        %3564 = vmatpush1.msra.mxu0 %v3517
        %3565 = vmatprep.subr.mxu0 0.0
        %3566 = vmatpush1.msra.mxu0 %v3518
        %3567 = vmatprep.subr.mxu0 0.0
        %3568 = vmatpush1.msra.mxu0 %v3519
        %3569 = vmatprep.subr.mxu0 0.0
        %3570 = vmatpush1.msra.mxu0 %v3520
        %3571 = vmatprep.subr.mxu0 0.0
        %3572 = vmatpush1.msra.mxu0 %v3521
        %3573 = vmatprep.subr.mxu0 0.0
        %3574 = vmatpush1.msra.mxu0 %v3522
        %3575 = vmatprep.subr.mxu0 0.0
        %3576 = vmatpush1.msra.mxu0 %v3523
        %3577 = vmatprep.subr.mxu0 0.0
        %3578 = vmatpush1.msra.mxu0 0.0
        %3579 = vmatprep.subr.mxu0 0.0
        %3580 = vmatpush1.msra.mxu0 0.0
        %3581 = vmatprep.subr.mxu0 0.0
        %3582 = vmatpush1.msra.mxu0 0.0
        %3583 = vmatprep.subr.mxu0 0.0
        %3584 = vmatpush1.msra.mxu0 0.0
        %3585 = vmatprep.subr.mxu0 0.0
        %3586 = vmatpush1.msra.mxu0 0.0
        %3587 = vmatprep.subr.mxu0 0.0
        %3588 = vmatpush1.msra.mxu0 0.0
        %3589 = vmatprep.subr.mxu0 0.0
        %3590 = vmatpush1.msra.mxu0 0.0
        %3591 = vmatprep.subr.mxu0 0.0
        %3592 = vmatpush1.msra.mxu0 0.0
        %3593 = vmatprep.subr.mxu0 0.0
        %3594 = vmatpush1.msra.mxu0 0.0
        %3595 = vmatprep.subr.mxu0 0.0
        %3596 = vmatpush1.msra.mxu0 0.0
        %3597 = vmatprep.subr.mxu0 0.0
        %3598 = vmatpush1.msra.mxu0 0.0
        %3599 = vmatprep.subr.mxu0 0.0
        %3600 = vmatpush1.msra.mxu0 0.0
        %3601 = vmatprep.mubr.f32.mxu0 %v3532
        %3602 = vmatmul.mubr.f32.gmra.mrb[0].mxu0 %v3500
        %v3603 = vpop.f32.mrb[0].mxu0
        %v3604 = vadd.f32 %v3529, %v3603
        %v3605 = vpop.f32.mrb[0].mxu0
        %3606 = vmatprep.mubr.f32.mxu0 %v3535
        %3607 = vmatmul.mubr.f32.gmra.mrb[0].mxu0 %v3502
        %v3608 = vpop.f32.mrb[0].mxu0
        %v3609 = vadd.f32 %v3529, %v3608
        %v3610 = vpop.f32.mrb[0].mxu0
        %3611 = vdwg.mxu0
        %3614 = vrot.lane.b32.xlu0 %v3604, 96
        %v3615 = vpop.permute.xlu0 %3614
        %3616 = vrot.lane.b32.xlu0 %v3609, 96
        %v3617 = vpop.permute.xlu0 %3616
        %vm3620 = vcmask 1048320
        %3621 = vst.msk [vmem:[#allocation2] sm:$0xff] %vm3620, %v3615
        %vm3622 = vcmask 392192
        %3623 = vst.msk [vmem:[#allocation2 + $0x8] sm:$0xff] %vm3622, %v3615
        %3624 = vst.msk [vmem:[#allocation2 + $0x18] sm:$0xff] %vm3620, %v3617
        %3625 = vst.msk [vmem:[#allocation2 + $0x20] sm:$0xff] %vm3622, %v3617
        %3626 = vmatprep.subr.mxu0 %v3501
        %3627 = vmatpush1.msra.mxu0 %v3500
        %3628 = vmatprep.subr.mxu0 %v3503
        %3629 = vmatpush1.msra.mxu0 %v3502
        %3630 = vmatprep.subr.mxu0 0.0
        %3631 = vmatpush1.msra.mxu0 0.0
        %3632 = vmatprep.subr.mxu0 0.0
        %3633 = vmatpush1.msra.mxu0 0.0
        %3634 = vmatprep.subr.mxu0 0.0
        %3635 = vmatpush1.msra.mxu0 0.0
        %3636 = vmatprep.subr.mxu0 0.0
        %3637 = vmatpush1.msra.mxu0 0.0
        %3638 = vmatprep.subr.mxu0 0.0
        %3639 = vmatpush1.msra.mxu0 0.0
        %3640 = vmatprep.subr.mxu0 0.0
        %3641 = vmatpush1.msra.mxu0 0.0
        %3642 = vmatprep.subr.mxu0 0.0
        %3643 = vmatpush1.msra.mxu0 0.0
        %3644 = vmatprep.subr.mxu0 0.0
        %3645 = vmatpush1.msra.mxu0 0.0
        %3646 = vmatprep.subr.mxu0 0.0
        %3647 = vmatpush1.msra.mxu0 0.0
        %3648 = vmatprep.subr.mxu0 0.0
        %3649 = vmatpush1.msra.mxu0 0.0
        %3650 = vmatprep.subr.mxu0 0.0
        %3651 = vmatpush1.msra.mxu0 0.0
        %3652 = vmatprep.subr.mxu0 0.0
        %3653 = vmatpush1.msra.mxu0 0.0
        %3654 = vmatprep.subr.mxu0 0.0
        %3655 = vmatpush1.msra.mxu0 0.0
        %3656 = vmatprep.subr.mxu0 0.0
        %3657 = vmatpush1.msra.mxu0 0.0
        %3658 = vmatprep.subr.mxu0 0.0
        %3659 = vmatpush1.msra.mxu0 0.0
        %3660 = vmatprep.subr.mxu0 0.0
        %3661 = vmatpush1.msra.mxu0 0.0
        %3662 = vmatprep.subr.mxu0 0.0
        %3663 = vmatpush1.msra.mxu0 0.0
        %3664 = vmatprep.subr.mxu0 0.0
        %3665 = vmatpush1.msra.mxu0 0.0
        %3666 = vmatprep.subr.mxu0 0.0
        %3667 = vmatpush1.msra.mxu0 0.0
        %3668 = vmatprep.subr.mxu0 0.0
        %3669 = vmatpush1.msra.mxu0 0.0
        %3670 = vmatprep.subr.mxu0 0.0
        %3671 = vmatpush1.msra.mxu0 0.0
        %3672 = vmatprep.subr.mxu0 0.0
        %3673 = vmatpush1.msra.mxu0 0.0
        %3674 = vmatprep.subr.mxu0 0.0
        %3675 = vmatpush1.msra.mxu0 0.0
        %3676 = vmatprep.subr.mxu0 0.0
        %3677 = vmatpush1.msra.mxu0 0.0
        %3678 = vmatprep.subr.mxu0 0.0
        %3679 = vmatpush1.msra.mxu0 0.0
        %3680 = vmatprep.subr.mxu0 0.0
        %3681 = vmatpush1.msra.mxu0 0.0
        %3682 = vmatprep.subr.mxu0 0.0
        %3683 = vmatpush1.msra.mxu0 0.0
        %3684 = vmatprep.subr.mxu0 0.0
        %3685 = vmatpush1.msra.mxu0 0.0
        %3686 = vmatprep.subr.mxu0 0.0
        %3687 = vmatpush1.msra.mxu0 0.0
        %3688 = vmatprep.subr.mxu0 0.0
        %3689 = vmatpush1.msra.mxu0 0.0
        %3690 = vmatprep.mubr.f32.mxu0 0.0
        %3691 = vmatmul.mubr.f32.gmra.mrb[0].mxu0 %v2424
        %v3692 = vpop.f32.mrb[0].mxu0
        %v3693 = vadd.f32 0.0, %v3692
        %v3694 = vpop.f32.mrb[0].mxu0
        %v3695 = vadd.f32 0.0, %v3694
        %3696 = vmatprep.mubr.f32.mxu0 0.0
        %3697 = vmatmul.mubr.f32.gmra.mrb[0].mxu0 %v2427
        %v3698 = vpop.f32.mrb[0].mxu0
        %v3699 = vadd.f32 0.0, %v3698
        %v3700 = vpop.f32.mrb[0].mxu0
        %v3701 = vadd.f32 0.0, %v3700
        %3702 = vdwg.mxu0
        %3703 = vmatprep.subr.mxu0 %v3695
        %3704 = vmatpush1.msra.mxu0 %v3693
        %3705 = vmatprep.subr.mxu0 %v3701
        %3706 = vmatpush1.msra.mxu0 %v3699
        %3707 = vmatprep.subr.mxu0 0.0
        %3708 = vmatpush1.msra.mxu0 0.0
        %3709 = vmatprep.subr.mxu0 0.0
        %3710 = vmatpush1.msra.mxu0 0.0
        %3711 = vmatprep.subr.mxu0 0.0
        %3712 = vmatpush1.msra.mxu0 0.0
        %3713 = vmatprep.subr.mxu0 0.0
        %3714 = vmatpush1.msra.mxu0 0.0
        %3715 = vmatprep.subr.mxu0 0.0
        %3716 = vmatpush1.msra.mxu0 0.0
        %3717 = vmatprep.subr.mxu0 0.0
        %3718 = vmatpush1.msra.mxu0 0.0
        %3719 = vmatprep.subr.mxu0 0.0
        %3720 = vmatpush1.msra.mxu0 0.0
        %3721 = vmatprep.subr.mxu0 0.0
        %3722 = vmatpush1.msra.mxu0 0.0
        %3723 = vmatprep.subr.mxu0 0.0
        %3724 = vmatpush1.msra.mxu0 0.0
        %3725 = vmatprep.subr.mxu0 0.0
        %3726 = vmatpush1.msra.mxu0 0.0
        %3727 = vmatprep.subr.mxu0 0.0
        %3728 = vmatpush1.msra.mxu0 0.0
        %3729 = vmatprep.subr.mxu0 0.0
        %3730 = vmatpush1.msra.mxu0 0.0
        %3731 = vmatprep.subr.mxu0 0.0
        %3732 = vmatpush1.msra.mxu0 0.0
        %3733 = vmatprep.subr.mxu0 0.0
        %3734 = vmatpush1.msra.mxu0 0.0
        %3735 = vmatprep.subr.mxu0 0.0
        %3736 = vmatpush1.msra.mxu0 0.0
        %3737 = vmatprep.subr.mxu0 0.0
        %3738 = vmatpush1.msra.mxu0 0.0
        %3739 = vmatprep.subr.mxu0 0.0
        %3740 = vmatpush1.msra.mxu0 0.0
        %3741 = vmatprep.subr.mxu0 0.0
        %3742 = vmatpush1.msra.mxu0 0.0
        %3743 = vmatprep.subr.mxu0 0.0
        %3744 = vmatpush1.msra.mxu0 0.0
        %3745 = vmatprep.subr.mxu0 0.0
        %3746 = vmatpush1.msra.mxu0 0.0
        %3747 = vmatprep.subr.mxu0 0.0
        %3748 = vmatpush1.msra.mxu0 0.0
        %3749 = vmatprep.subr.mxu0 0.0
        %3750 = vmatpush1.msra.mxu0 0.0
        %3751 = vmatprep.subr.mxu0 0.0
        %3752 = vmatpush1.msra.mxu0 0.0
        %3753 = vmatprep.subr.mxu0 0.0
        %3754 = vmatpush1.msra.mxu0 0.0
        %3755 = vmatprep.subr.mxu0 0.0
        %3756 = vmatpush1.msra.mxu0 0.0
        %3757 = vmatprep.subr.mxu0 0.0
        %3758 = vmatpush1.msra.mxu0 0.0
        %3759 = vmatprep.subr.mxu0 0.0
        %3760 = vmatpush1.msra.mxu0 0.0
        %3761 = vmatprep.subr.mxu0 0.0
        %3762 = vmatpush1.msra.mxu0 0.0
        %3763 = vmatprep.subr.mxu0 0.0
        %3764 = vmatpush1.msra.mxu0 0.0
        %3765 = vmatprep.subr.mxu0 0.0
        %3766 = vmatpush1.msra.mxu0 0.0
        %3767 = vmatprep.mubr.f32.mxu0 0.0
        %3768 = vmatmul.mubr.f32.gmra.mrb[0].mxu0 %v2424
        %v3769 = vpop.f32.mrb[0].mxu0
        %v3770 = vadd.f32 0.0, %v3769
        %v3771 = vpop.f32.mrb[0].mxu0
        %v3772 = vadd.f32 0.0, %v3771
        %3773 = vmatprep.mubr.f32.mxu0 0.0
        %3774 = vmatmul.mubr.f32.gmra.mrb[0].mxu0 %v2427
        %v3775 = vpop.f32.mrb[0].mxu0
        %v3776 = vadd.f32 0.0, %v3775
        %v3777 = vpop.f32.mrb[0].mxu0
        %v3778 = vadd.f32 0.0, %v3777
        %3779 = vdwg.mxu0
        %v3780 = vld [vmem:[%s37] sm:$0xff]
        %v3781 = vld [vmem:[%s37 + $0x8] sm:$0xff]
        %v3782 = vld [vmem:[%s37 + $0x10] sm:$0xff]
        %v3783 = vld [vmem:[%s37 + $0x18] sm:$0xff]
        %v3784 = vld [vmem:[%s37 + $0x20] sm:$0xff]
        %v3785 = vld [vmem:[%s37 + $0x28] sm:$0xff]
        %v3786 = vld [vmem:[%s37 + $0x30] sm:$0xff]
        %v3787 = vld [vmem:[%s37 + $0x38] sm:$0xff]
        %v3788 = vld [vmem:[%s37 + $0x40] sm:$0xff]
        %v3789 = vld [vmem:[%s37 + $0x48] sm:$0xff]
        %v3790 = vld [vmem:[%s37 + $0x50] sm:$0xff]
        %v3791 = vld [vmem:[%s37 + $0x58] sm:$0xff]
        %v3792 = vld [vmem:[%s37 + $0x60] sm:$0xff]
        %v3793 = vld [vmem:[%s37 + $0x68] sm:$0xff]
        %v3794 = vld [vmem:[%s37 + $0x70] sm:$0xff]
        %v3795 = vld [vmem:[%s37 + $0x78] sm:$0xff]
        %v3796 = vld [vmem:[%s37 + $0x80] sm:$0xff]
        %v3797 = vld [vmem:[%s37 + $0x88] sm:$0xff]
        %v3798 = vld [vmem:[%s37 + $0x90] sm:$0xff]
        %v3799 = vld [vmem:[%s37 + $0x98] sm:$0xff]
        %v3800 = vld [vmem:[%s37 + $0xa0] sm:$0xff]
        %v3801 = vld [vmem:[%s37 + $0xa8] sm:$0xff]
        %v3802 = vld [vmem:[%s37 + $0xb0] sm:$0xff]
        %v3803 = vld [vmem:[%s37 + $0xb8] sm:$0xff]
        %v3804 = vld [vmem:[%s37 + $0xc0] sm:$0xff]
        %v3805 = vld [vmem:[%s37 + $0xc8] sm:$0xff]
        %v3806 = vld [vmem:[%s37 + $0xd0] sm:$0xff]
        %v3807 = vld [vmem:[%s37 + $0xd8] sm:$0xff]
        %v3808 = vld [vmem:[%s37 + $0xe0] sm:$0xff]
        %v3809 = vld [vmem:[%s37 + $0xe8] sm:$0xff]
        %v3810 = vld [vmem:[%s37 + $0xf0] sm:$0xff]
        %v3811 = vld [vmem:[%s37 + $0xf8] sm:$0xff]
        %v3812 = vld [vmem:[%s37 + $0x100] sm:$0xff]
        %v3813 = vld [vmem:[%s37 + $0x108] sm:$0xff]
        %v3814 = vld [vmem:[%s37 + $0x110] sm:$0xff]
        %v3815 = vld [vmem:[%s37 + $0x118] sm:$0xff]
        %v3816 = vld [vmem:[%s37 + $0x120] sm:$0xff]
        %v3817 = vld [vmem:[%s37 + $0x128] sm:$0xff]
        %v3818 = vld [vmem:[%s37 + $0x130] sm:$0xff]
        %v3819 = vld [vmem:[%s37 + $0x138] sm:$0xff]
        %v3820 = vld [vmem:[%s37 + $0x140] sm:$0xff]
        %v3821 = vld [vmem:[%s37 + $0x148] sm:$0xff]
        %v3822 = vld [vmem:[%s37 + $0x150] sm:$0xff]
        %v3823 = vld [vmem:[%s37 + $0x158] sm:$0xff]
        %v3824 = vld [vmem:[%s37 + $0x160] sm:$0xff]
        %v3825 = vld [vmem:[%s37 + $0x168] sm:$0xff]
        %v3826 = vld [vmem:[%s37 + $0x170] sm:$0xff]
        %v3827 = vld [vmem:[%s37 + $0x178] sm:$0xff]
        %v3828 = vld [vmem:[%s37 + $0x180] sm:$0xff]
        %v3829 = vld [vmem:[%s37 + $0x188] sm:$0xff]
        %v3830 = vld [vmem:[%s37 + $0x190] sm:$0xff]
        %v3831 = vld [vmem:[%s37 + $0x198] sm:$0xff]
        %v3832 = vld [vmem:[%s37 + $0x1a0] sm:$0xff]
        %v3833 = vld [vmem:[%s37 + $0x1a8] sm:$0xff]
        %v3834 = vld [vmem:[%s37 + $0x1b0] sm:$0xff]
        %v3835 = vld [vmem:[%s37 + $0x1b8] sm:$0xff]
        %v3836 = vld [vmem:[%s37 + $0x1c0] sm:$0xff]
        %v3837 = vld [vmem:[%s37 + $0x1c8] sm:$0xff]
        %v3838 = vld [vmem:[%s37 + $0x1d0] sm:$0xff]
        %v3839 = vld [vmem:[%s37 + $0x1d8] sm:$0xff]
        %v3840 = vld [vmem:[%s37 + $0x1e0] sm:$0xff]
        %v3841 = vld [vmem:[%s37 + $0x1e8] sm:$0xff]
        %v3842 = vld [vmem:[%s37 + $0x1f0] sm:$0xff]
        %v3843 = vld [vmem:[%s37 + $0x1f8] sm:$0xff]
        %v3844 = vld [vmem:[%s37 + $0x200] sm:$0xff]
        %v3845 = vld [vmem:[%s37 + $0x208] sm:$0xff]
        %v3846 = vld [vmem:[%s37 + $0x210] sm:$0xff]
        %v3847 = vld [vmem:[%s37 + $0x218] sm:$0xff]
        %v3848 = vld [vmem:[%s37 + $0x220] sm:$0xff]
        %v3849 = vld [vmem:[%s37 + $0x228] sm:$0xff]
        %v3850 = vld [vmem:[%s37 + $0x230] sm:$0xff]
        %v3851 = vld [vmem:[%s37 + $0x238] sm:$0xff]
        %v3852 = vld [vmem:[%s37 + $0x240] sm:$0xff]
        %v3853 = vld [vmem:[%s37 + $0x248] sm:$0xff]
        %v3854 = vld [vmem:[%s37 + $0x250] sm:$0xff]
        %v3855 = vld [vmem:[%s37 + $0x258] sm:$0xff]
        %v3856 = vld [vmem:[%s37 + $0x260] sm:$0xff]
        %v3857 = vld [vmem:[%s37 + $0x268] sm:$0xff]
        %v3858 = vld [vmem:[%s37 + $0x270] sm:$0xff]
        %v3859 = vld [vmem:[%s37 + $0x278] sm:$0xff]
        %v3861 = vsel %vm3126, %v3695, 0
        %v3864 = vsel %vm3126, %v3701, 0
        %3866 = vmatprep.subr.mxu0 %v3821
        %3867 = vmatpush1.msra.mxu0 %v3820
        %3868 = vmatprep.subr.mxu0 %v3823
        %3869 = vmatpush1.msra.mxu0 %v3822
        %3870 = vmatprep.subr.mxu0 %v3825
        %3871 = vmatpush1.msra.mxu0 %v3824
        %3872 = vmatprep.subr.mxu0 %v3827
        %3873 = vmatpush1.msra.mxu0 %v3826
        %3874 = vmatprep.subr.mxu0 %v3829
        %3875 = vmatpush1.msra.mxu0 %v3828
        %3876 = vmatprep.subr.mxu0 %v3831
        %3877 = vmatpush1.msra.mxu0 %v3830
        %3878 = vmatprep.subr.mxu0 %v3833
        %3879 = vmatpush1.msra.mxu0 %v3832
        %3880 = vmatprep.subr.mxu0 %v3835
        %3881 = vmatpush1.msra.mxu0 %v3834
        %3882 = vmatprep.subr.mxu0 %v3837
        %3883 = vmatpush1.msra.mxu0 %v3836
        %3884 = vmatprep.subr.mxu0 %v3839
        %3885 = vmatpush1.msra.mxu0 %v3838
        %3886 = vmatprep.subr.mxu0 %v3841
        %3887 = vmatpush1.msra.mxu0 %v3840
        %3888 = vmatprep.subr.mxu0 %v3843
        %3889 = vmatpush1.msra.mxu0 %v3842
        %3890 = vmatprep.subr.mxu0 %v3845
        %3891 = vmatpush1.msra.mxu0 %v3844
        %3892 = vmatprep.subr.mxu0 %v3847
        %3893 = vmatpush1.msra.mxu0 %v3846
        %3894 = vmatprep.subr.mxu0 %v3849
        %3895 = vmatpush1.msra.mxu0 %v3848
        %3896 = vmatprep.subr.mxu0 %v3851
        %3897 = vmatpush1.msra.mxu0 %v3850
        %3898 = vmatprep.subr.mxu0 %v3853
        %3899 = vmatpush1.msra.mxu0 %v3852
        %3900 = vmatprep.subr.mxu0 %v3855
        %3901 = vmatpush1.msra.mxu0 %v3854
        %3902 = vmatprep.subr.mxu0 %v3857
        %3903 = vmatpush1.msra.mxu0 %v3856
        %3904 = vmatprep.subr.mxu0 %v3859
        %3905 = vmatpush1.msra.mxu0 %v3858
        %3906 = vmatprep.subr.mxu0 0.0
        %3907 = vmatpush1.msra.mxu0 0.0
        %3908 = vmatprep.subr.mxu0 0.0
        %3909 = vmatpush1.msra.mxu0 0.0
        %3910 = vmatprep.subr.mxu0 0.0
        %3911 = vmatpush1.msra.mxu0 0.0
        %3912 = vmatprep.subr.mxu0 0.0
        %3913 = vmatpush1.msra.mxu0 0.0
        %3914 = vmatprep.subr.mxu0 0.0
        %3915 = vmatpush1.msra.mxu0 0.0
        %3916 = vmatprep.subr.mxu0 0.0
        %3917 = vmatpush1.msra.mxu0 0.0
        %3918 = vmatprep.subr.mxu0 0.0
        %3919 = vmatpush1.msra.mxu0 0.0
        %3920 = vmatprep.subr.mxu0 0.0
        %3921 = vmatpush1.msra.mxu0 0.0
        %3922 = vmatprep.subr.mxu0 0.0
        %3923 = vmatpush1.msra.mxu0 0.0
        %3924 = vmatprep.subr.mxu0 0.0
        %3925 = vmatpush1.msra.mxu0 0.0
        %3926 = vmatprep.subr.mxu0 0.0
        %3927 = vmatpush1.msra.mxu0 0.0
        %3928 = vmatprep.subr.mxu0 0.0
        %3929 = vmatpush1.msra.mxu0 0.0
        %3930 = vmatprep.mubr.f32.mxu0 %v3861
        %3931 = vmatmul.mubr.f32.gmra.mrb[0].mxu0 %v3693
        %v3932 = vpop.f32.mrb[0].mxu0
        %v3933 = vadd.f32 0.0, %v3932
        %v3934 = vpop.f32.mrb[0].mxu0
        %v3935 = vadd.f32 0.0, %v3934
        %3936 = vmatprep.mubr.f32.mxu0 %v3864
        %3937 = vmatmul.mubr.f32.gmra.mrb[0].mxu0 %v3699
        %v3938 = vpop.f32.mrb[0].mxu0
        %v3939 = vadd.f32 0.0, %v3938
        %v3940 = vpop.f32.mrb[0].mxu0
        %v3941 = vadd.f32 0.0, %v3940
        %3942 = vdwg.mxu0
        %3943 = vmatprep.subr.mxu0 %v3781
        %3944 = vmatpush1.msra.mxu0 %v3780
        %3945 = vmatprep.subr.mxu0 %v3783
        %3946 = vmatpush1.msra.mxu0 %v3782
        %3947 = vmatprep.subr.mxu0 %v3785
        %3948 = vmatpush1.msra.mxu0 %v3784
        %3949 = vmatprep.subr.mxu0 %v3787
        %3950 = vmatpush1.msra.mxu0 %v3786
        %3951 = vmatprep.subr.mxu0 %v3789
        %3952 = vmatpush1.msra.mxu0 %v3788
        %3953 = vmatprep.subr.mxu0 %v3791
        %3954 = vmatpush1.msra.mxu0 %v3790
        %3955 = vmatprep.subr.mxu0 %v3793
        %3956 = vmatpush1.msra.mxu0 %v3792
        %3957 = vmatprep.subr.mxu0 %v3795
        %3958 = vmatpush1.msra.mxu0 %v3794
        %3959 = vmatprep.subr.mxu0 %v3797
        %3960 = vmatpush1.msra.mxu0 %v3796
        %3961 = vmatprep.subr.mxu0 %v3799
        %3962 = vmatpush1.msra.mxu0 %v3798
        %3963 = vmatprep.subr.mxu0 %v3801
        %3964 = vmatpush1.msra.mxu0 %v3800
        %3965 = vmatprep.subr.mxu0 %v3803
        %3966 = vmatpush1.msra.mxu0 %v3802
        %3967 = vmatprep.subr.mxu0 %v3805
        %3968 = vmatpush1.msra.mxu0 %v3804
        %3969 = vmatprep.subr.mxu0 %v3807
        %3970 = vmatpush1.msra.mxu0 %v3806
        %3971 = vmatprep.subr.mxu0 %v3809
        %3972 = vmatpush1.msra.mxu0 %v3808
        %3973 = vmatprep.subr.mxu0 %v3811
        %3974 = vmatpush1.msra.mxu0 %v3810
        %3975 = vmatprep.subr.mxu0 %v3813
        %3976 = vmatpush1.msra.mxu0 %v3812
        %3977 = vmatprep.subr.mxu0 %v3815
        %3978 = vmatpush1.msra.mxu0 %v3814
        %3979 = vmatprep.subr.mxu0 %v3817
        %3980 = vmatpush1.msra.mxu0 %v3816
        %3981 = vmatprep.subr.mxu0 %v3819
        %3982 = vmatpush1.msra.mxu0 %v3818
        %3983 = vmatprep.subr.mxu0 0.0
        %3984 = vmatpush1.msra.mxu0 0.0
        %3985 = vmatprep.subr.mxu0 0.0
        %3986 = vmatpush1.msra.mxu0 0.0
        %3987 = vmatprep.subr.mxu0 0.0
        %3988 = vmatpush1.msra.mxu0 0.0
        %3989 = vmatprep.subr.mxu0 0.0
        %3990 = vmatpush1.msra.mxu0 0.0
        %3991 = vmatprep.subr.mxu0 0.0
        %3992 = vmatpush1.msra.mxu0 0.0
        %3993 = vmatprep.subr.mxu0 0.0
        %3994 = vmatpush1.msra.mxu0 0.0
        %3995 = vmatprep.subr.mxu0 0.0
        %3996 = vmatpush1.msra.mxu0 0.0
        %3997 = vmatprep.subr.mxu0 0.0
        %3998 = vmatpush1.msra.mxu0 0.0
        %3999 = vmatprep.subr.mxu0 0.0
        %4000 = vmatpush1.msra.mxu0 0.0
        %4001 = vmatprep.subr.mxu0 0.0
        %4002 = vmatpush1.msra.mxu0 0.0
        %4003 = vmatprep.subr.mxu0 0.0
        %4004 = vmatpush1.msra.mxu0 0.0
        %4005 = vmatprep.subr.mxu0 0.0
        %4006 = vmatpush1.msra.mxu0 0.0
        %4007 = vmatprep.mubr.f32.mxu0 %v3532
        %4008 = vmatmul.mubr.f32.gmra.mrb[0].mxu0 %v3500
        %v4009 = vpop.f32.mrb[0].mxu0
        %v4010 = vadd.f32 %v3933, %v4009
        %v4011 = vpop.f32.mrb[0].mxu0
        %v4012 = vadd.f32 %v3935, %v4011
        %4013 = vmatprep.mubr.f32.mxu0 %v3535
        %4014 = vmatmul.mubr.f32.gmra.mrb[0].mxu0 %v3502
        %v4015 = vpop.f32.mrb[0].mxu0
        %v4016 = vadd.f32 %v3939, %v4015
        %v4017 = vpop.f32.mrb[0].mxu0
        %v4018 = vadd.f32 %v3941, %v4017
        %4019 = vdwg.mxu0
        %v4020 = vld [vmem:[%s37 + $0x280] sm:$0xff]
        %v4021 = vld [vmem:[%s37 + $0x288] sm:$0xff]
        %v4022 = vld [vmem:[%s37 + $0x290] sm:$0xff]
        %v4023 = vld [vmem:[%s37 + $0x298] sm:$0xff]
        %v4024 = vld [vmem:[%s37 + $0x2a0] sm:$0xff]
        %v4025 = vld [vmem:[%s37 + $0x2a8] sm:$0xff]
        %v4026 = vld [vmem:[%s37 + $0x2b0] sm:$0xff]
        %v4027 = vld [vmem:[%s37 + $0x2b8] sm:$0xff]
        %v4028 = vld [vmem:[%s37 + $0x2c0] sm:$0xff]
        %v4029 = vld [vmem:[%s37 + $0x2c8] sm:$0xff]
        %v4030 = vld [vmem:[%s37 + $0x2d0] sm:$0xff]
        %v4031 = vld [vmem:[%s37 + $0x2d8] sm:$0xff]
        %v4032 = vld [vmem:[%s37 + $0x2e0] sm:$0xff]
        %v4033 = vld [vmem:[%s37 + $0x2e8] sm:$0xff]
        %v4034 = vld [vmem:[%s37 + $0x2f0] sm:$0xff]
        %v4035 = vld [vmem:[%s37 + $0x2f8] sm:$0xff]
        %v4036 = vld [vmem:[%s37 + $0x300] sm:$0xff]
        %v4037 = vld [vmem:[%s37 + $0x308] sm:$0xff]
        %v4038 = vld [vmem:[%s37 + $0x310] sm:$0xff]
        %v4039 = vld [vmem:[%s37 + $0x318] sm:$0xff]
        %v4040 = vld [vmem:[%s37 + $0x320] sm:$0xff]
        %v4041 = vld [vmem:[%s37 + $0x328] sm:$0xff]
        %v4042 = vld [vmem:[%s37 + $0x330] sm:$0xff]
        %v4043 = vld [vmem:[%s37 + $0x338] sm:$0xff]
        %v4044 = vld [vmem:[%s37 + $0x340] sm:$0xff]
        %v4045 = vld [vmem:[%s37 + $0x348] sm:$0xff]
        %v4046 = vld [vmem:[%s37 + $0x350] sm:$0xff]
        %v4047 = vld [vmem:[%s37 + $0x358] sm:$0xff]
        %v4048 = vld [vmem:[%s37 + $0x360] sm:$0xff]
        %v4049 = vld [vmem:[%s37 + $0x368] sm:$0xff]
        %v4050 = vld [vmem:[%s37 + $0x370] sm:$0xff]
        %v4051 = vld [vmem:[%s37 + $0x378] sm:$0xff]
        %v4052 = vld [vmem:[%s37 + $0x380] sm:$0xff]
        %v4053 = vld [vmem:[%s37 + $0x388] sm:$0xff]
        %v4054 = vld [vmem:[%s37 + $0x390] sm:$0xff]
        %v4055 = vld [vmem:[%s37 + $0x398] sm:$0xff]
        %v4056 = vld [vmem:[%s37 + $0x3a0] sm:$0xff]
        %v4057 = vld [vmem:[%s37 + $0x3a8] sm:$0xff]
        %v4058 = vld [vmem:[%s37 + $0x3b0] sm:$0xff]
        %v4059 = vld [vmem:[%s37 + $0x3b8] sm:$0xff]
        %v4061 = vsel %vm3126, %v3772, 0
        %v4064 = vsel %vm3126, %v3778, 0
        %4066 = vmatprep.subr.mxu0 %v4021
        %4067 = vmatpush1.msra.mxu0 %v4020
        %4068 = vmatprep.subr.mxu0 %v4023
        %4069 = vmatpush1.msra.mxu0 %v4022
        %4070 = vmatprep.subr.mxu0 %v4025
        %4071 = vmatpush1.msra.mxu0 %v4024
        %4072 = vmatprep.subr.mxu0 %v4027
        %4073 = vmatpush1.msra.mxu0 %v4026
        %4074 = vmatprep.subr.mxu0 %v4029
        %4075 = vmatpush1.msra.mxu0 %v4028
        %4076 = vmatprep.subr.mxu0 %v4031
        %4077 = vmatpush1.msra.mxu0 %v4030
        %4078 = vmatprep.subr.mxu0 %v4033
        %4079 = vmatpush1.msra.mxu0 %v4032
        %4080 = vmatprep.subr.mxu0 %v4035
        %4081 = vmatpush1.msra.mxu0 %v4034
        %4082 = vmatprep.subr.mxu0 %v4037
        %4083 = vmatpush1.msra.mxu0 %v4036
        %4084 = vmatprep.subr.mxu0 %v4039
        %4085 = vmatpush1.msra.mxu0 %v4038
        %4086 = vmatprep.subr.mxu0 %v4041
        %4087 = vmatpush1.msra.mxu0 %v4040
        %4088 = vmatprep.subr.mxu0 %v4043
        %4089 = vmatpush1.msra.mxu0 %v4042
        %4090 = vmatprep.subr.mxu0 %v4045
        %4091 = vmatpush1.msra.mxu0 %v4044
        %4092 = vmatprep.subr.mxu0 %v4047
        %4093 = vmatpush1.msra.mxu0 %v4046
        %4094 = vmatprep.subr.mxu0 %v4049
        %4095 = vmatpush1.msra.mxu0 %v4048
        %4096 = vmatprep.subr.mxu0 %v4051
        %4097 = vmatpush1.msra.mxu0 %v4050
        %4098 = vmatprep.subr.mxu0 %v4053
        %4099 = vmatpush1.msra.mxu0 %v4052
        %4100 = vmatprep.subr.mxu0 %v4055
        %4101 = vmatpush1.msra.mxu0 %v4054
        %4102 = vmatprep.subr.mxu0 %v4057
        %4103 = vmatpush1.msra.mxu0 %v4056
        %4104 = vmatprep.subr.mxu0 %v4059
        %4105 = vmatpush1.msra.mxu0 %v4058
        %4106 = vmatprep.subr.mxu0 0.0
        %4107 = vmatpush1.msra.mxu0 0.0
        %4108 = vmatprep.subr.mxu0 0.0
        %4109 = vmatpush1.msra.mxu0 0.0
        %4110 = vmatprep.subr.mxu0 0.0
        %4111 = vmatpush1.msra.mxu0 0.0
        %4112 = vmatprep.subr.mxu0 0.0
        %4113 = vmatpush1.msra.mxu0 0.0
        %4114 = vmatprep.subr.mxu0 0.0
        %4115 = vmatpush1.msra.mxu0 0.0
        %4116 = vmatprep.subr.mxu0 0.0
        %4117 = vmatpush1.msra.mxu0 0.0
        %4118 = vmatprep.subr.mxu0 0.0
        %4119 = vmatpush1.msra.mxu0 0.0
        %4120 = vmatprep.subr.mxu0 0.0
        %4121 = vmatpush1.msra.mxu0 0.0
        %4122 = vmatprep.subr.mxu0 0.0
        %4123 = vmatpush1.msra.mxu0 0.0
        %4124 = vmatprep.subr.mxu0 0.0
        %4125 = vmatpush1.msra.mxu0 0.0
        %4126 = vmatprep.subr.mxu0 0.0
        %4127 = vmatpush1.msra.mxu0 0.0
        %4128 = vmatprep.subr.mxu0 0.0
        %4129 = vmatpush1.msra.mxu0 0.0
        %4130 = vmatprep.mubr.f32.mxu0 %v4061
        %4131 = vmatmul.mubr.f32.gmra.mrb[0].mxu0 %v3770
        %v4132 = vpop.f32.mrb[0].mxu0
        %v4133 = vadd.f32 0.0, %v4132
        %v4134 = vpop.f32.mrb[0].mxu0
        %v4135 = vadd.f32 0.0, %v4134
        %4136 = vmatprep.mubr.f32.mxu0 %v4064
        %4137 = vmatmul.mubr.f32.gmra.mrb[0].mxu0 %v3776
        %v4138 = vpop.f32.mrb[0].mxu0
        %v4139 = vadd.f32 0.0, %v4138
        %v4140 = vpop.f32.mrb[0].mxu0
        %v4141 = vadd.f32 0.0, %v4140
        %4142 = vdwg.mxu0
        %v4143 = vadd.f32 %v4010, %v4133
        %v4144 = vadd.f32 %v4012, %v4135
        %v4145 = vadd.f32 %v4016, %v4139
        %v4146 = vadd.f32 %v4018, %v4141
        %v4147 = vld [vmem:[#allocation17] sm:$0x3]
        %v4149 = vlaneseq
        %v4150 = vshrl.u32 %v4149, 7
        %v4151 = vsub.s32 0, %v4150
        %v4152 = vrot.slane %v4147, %v4151
        %v4153 = vlaneseq
        %v4154 = vshrl.u32 %v4153, 7
        %v4155 = vsub.s32 1, %v4154
        %v4156 = vrot.slane %v4147, %v4155
        %v4159 = vadd.f32 %v4143, %v4152
        %v4160 = vadd.f32 %v4144, %v4156
        %v4161 = vadd.f32 %v4145, %v4152
        %v4162 = vadd.f32 %v4146, %v4156
        %v4163 = vld [vmem:[%s41] sm:$0xff]
        %v4164 = vld [vmem:[%s41 + $0x8] sm:$0xff]
        %v4165 = vld [vmem:[%s41 + $0x10] sm:$0xff]
        %v4166 = vld [vmem:[%s41 + $0x18] sm:$0xff]
        %v4167 = vld [vmem:[%s41 + $0x20] sm:$0xff]
        %v4168 = vld [vmem:[%s41 + $0x28] sm:$0xff]
        %v4169 = vld [vmem:[%s41 + $0x30] sm:$0xff]
        %v4170 = vld [vmem:[%s41 + $0x38] sm:$0xff]
        %v4171 = vld [vmem:[%s41 + $0x40] sm:$0xff]
        %v4172 = vld [vmem:[%s41 + $0x48] sm:$0xff]
        %v4173 = vld [vmem:[%s41 + $0x50] sm:$0xff]
        %v4174 = vld [vmem:[%s41 + $0x58] sm:$0xff]
        %v4175 = vld [vmem:[%s41 + $0x60] sm:$0xff]
        %v4176 = vld [vmem:[%s41 + $0x68] sm:$0xff]
        %v4177 = vld [vmem:[%s41 + $0x70] sm:$0xff]
        %v4178 = vld [vmem:[%s41 + $0x78] sm:$0xff]
        %v4179 = vld [vmem:[%s41 + $0x80] sm:$0xff]
        %v4180 = vld [vmem:[%s41 + $0x88] sm:$0xff]
        %v4181 = vld [vmem:[%s41 + $0x90] sm:$0xff]
        %v4182 = vld [vmem:[%s41 + $0x98] sm:$0xff]
        %v4183 = vld [vmem:[%s41 + $0xa0] sm:$0xff]
        %v4184 = vld [vmem:[%s41 + $0xa8] sm:$0xff]
        %v4185 = vld [vmem:[%s41 + $0xb0] sm:$0xff]
        %v4186 = vld [vmem:[%s41 + $0xb8] sm:$0xff]
        %v4187 = vld [vmem:[%s41 + $0xc0] sm:$0xff]
        %v4188 = vld [vmem:[%s41 + $0xc8] sm:$0xff]
        %v4189 = vld [vmem:[%s41 + $0xd0] sm:$0xff]
        %v4190 = vld [vmem:[%s41 + $0xd8] sm:$0xff]
        %v4191 = vld [vmem:[%s41 + $0xe0] sm:$0xff]
        %v4192 = vld [vmem:[%s41 + $0xe8] sm:$0xff]
        %v4193 = vld [vmem:[%s41 + $0xf0] sm:$0xff]
        %v4194 = vld [vmem:[%s41 + $0xf8] sm:$0xff]
        %v4195 = vld [vmem:[%s41 + $0x100] sm:$0xff]
        %v4196 = vld [vmem:[%s41 + $0x108] sm:$0xff]
        %v4197 = vld [vmem:[%s41 + $0x110] sm:$0xff]
        %v4198 = vld [vmem:[%s41 + $0x118] sm:$0xff]
        %v4199 = vld [vmem:[%s41 + $0x120] sm:$0xff]
        %v4200 = vld [vmem:[%s41 + $0x128] sm:$0xff]
        %v4201 = vld [vmem:[%s41 + $0x130] sm:$0xff]
        %v4202 = vld [vmem:[%s41 + $0x138] sm:$0xff]
        %v4203 = vld [vmem:[%s41 + $0x140] sm:$0xff]
        %v4204 = vld [vmem:[%s41 + $0x148] sm:$0xff]
        %v4205 = vld [vmem:[%s41 + $0x150] sm:$0xff]
        %v4206 = vld [vmem:[%s41 + $0x158] sm:$0xff]
        %v4207 = vld [vmem:[%s41 + $0x160] sm:$0xff]
        %v4208 = vld [vmem:[%s41 + $0x168] sm:$0xff]
        %v4209 = vld [vmem:[%s41 + $0x170] sm:$0xff]
        %v4210 = vld [vmem:[%s41 + $0x178] sm:$0xff]
        %v4211 = vld [vmem:[%s41 + $0x180] sm:$0xff]
        %v4212 = vld [vmem:[%s41 + $0x188] sm:$0xff]
        %v4213 = vld [vmem:[%s41 + $0x190] sm:$0xff]
        %v4214 = vld [vmem:[%s41 + $0x198] sm:$0xff]
        %v4215 = vld [vmem:[%s41 + $0x1a0] sm:$0xff]
        %v4216 = vld [vmem:[%s41 + $0x1a8] sm:$0xff]
        %v4217 = vld [vmem:[%s43] sm:$0xff]
        %v4218 = vld [vmem:[%s43 + $0x8] sm:$0xff]
        %v4219 = vld [vmem:[%s43 + $0x10] sm:$0xff]
        %v4220 = vld [vmem:[%s43 + $0x18] sm:$0xff]
        %v4221 = vld [vmem:[%s43 + $0x20] sm:$0xff]
        %v4222 = vld [vmem:[%s43 + $0x28] sm:$0xff]
        %v4223 = vld [vmem:[%s43 + $0x30] sm:$0xff]
        %v4224 = vld [vmem:[%s43 + $0x38] sm:$0xff]
        %v4225 = vld [vmem:[%s43 + $0x40] sm:$0xff]
        %v4226 = vld [vmem:[%s43 + $0x48] sm:$0xff]
        %v4227 = vld [vmem:[%s43 + $0x50] sm:$0xff]
        %v4228 = vld [vmem:[%s43 + $0x58] sm:$0xff]
        %v4229 = vld [vmem:[%s43 + $0x60] sm:$0xff]
        %v4230 = vld [vmem:[%s43 + $0x68] sm:$0xff]
        %v4231 = vld [vmem:[%s43 + $0x70] sm:$0xff]
        %v4232 = vld [vmem:[%s43 + $0x78] sm:$0xff]
        %v4233 = vld [vmem:[%s43 + $0x80] sm:$0xff]
        %v4234 = vld [vmem:[%s43 + $0x88] sm:$0xff]
        %v4235 = vld [vmem:[%s43 + $0x90] sm:$0xff]
        %v4236 = vld [vmem:[%s43 + $0x98] sm:$0xff]
        %v4237 = vld [vmem:[%s43 + $0xa0] sm:$0xff]
        %v4238 = vld [vmem:[%s43 + $0xa8] sm:$0xff]
        %v4239 = vld [vmem:[%s43 + $0xb0] sm:$0xff]
        %v4240 = vld [vmem:[%s43 + $0xb8] sm:$0xff]
        %v4241 = vld [vmem:[%s43 + $0xc0] sm:$0xff]
        %v4242 = vld [vmem:[%s43 + $0xc8] sm:$0xff]
        %v4243 = vld [vmem:[%s43 + $0xd0] sm:$0xff]
        %v4244 = vld [vmem:[%s43 + $0xd8] sm:$0xff]
        %v4245 = vld [vmem:[%s43 + $0xe0] sm:$0xff]
        %v4246 = vld [vmem:[%s43 + $0xe8] sm:$0xff]
        %v4247 = vld [vmem:[%s43 + $0xf0] sm:$0xff]
        %v4248 = vld [vmem:[%s43 + $0xf8] sm:$0xff]
        %v4249 = vld [vmem:[%s43 + $0x100] sm:$0xff]
        %v4250 = vld [vmem:[%s43 + $0x108] sm:$0xff]
        %v4251 = vld [vmem:[%s43 + $0x110] sm:$0xff]
        %v4252 = vld [vmem:[%s43 + $0x118] sm:$0xff]
        %v4253 = vld [vmem:[%s43 + $0x120] sm:$0xff]
        %v4254 = vld [vmem:[%s43 + $0x128] sm:$0xff]
        %v4255 = vld [vmem:[%s43 + $0x130] sm:$0xff]
        %v4256 = vld [vmem:[%s43 + $0x138] sm:$0xff]
        %v4257 = vld [vmem:[%s43 + $0x140] sm:$0xff]
        %v4258 = vld [vmem:[%s43 + $0x148] sm:$0xff]
        %v4259 = vld [vmem:[%s43 + $0x150] sm:$0xff]
        %v4260 = vld [vmem:[%s43 + $0x158] sm:$0xff]
        %v4261 = vld [vmem:[%s43 + $0x160] sm:$0xff]
        %v4262 = vld [vmem:[%s43 + $0x168] sm:$0xff]
        %v4263 = vld [vmem:[%s43 + $0x170] sm:$0xff]
        %v4264 = vld [vmem:[%s43 + $0x178] sm:$0xff]
        %v4265 = vld [vmem:[%s43 + $0x180] sm:$0xff]
        %v4266 = vld [vmem:[%s43 + $0x188] sm:$0xff]
        %v4267 = vld [vmem:[%s43 + $0x190] sm:$0xff]
        %v4268 = vld [vmem:[%s43 + $0x198] sm:$0xff]
        %v4269 = vld [vmem:[%s43 + $0x1a0] sm:$0xff]
        %v4270 = vld [vmem:[%s43 + $0x1a8] sm:$0xff]
        %4275 = vrot.lane.b32.xlu0 %v4159, 112
        %v4276 = vpop.permute.xlu0 %4275
        %4277 = vrot.lane.b32.xlu0 %v4160, 112
        %v4278 = vpop.permute.xlu0 %4277
        %4279 = vrot.lane.b32.xlu0 %v4161, 112
        %v4280 = vpop.permute.xlu0 %4279
        %4281 = vrot.lane.b32.xlu0 %v4162, 112
        %v4282 = vpop.permute.xlu0 %4281
        %v4283 = vsel %vm1925, %v4276, %v4278
        %v4284 = vsel %vm1925, %v4280, %v4282
        %v4287 = vsel %vm1471, %v4278, 0
        %v4289 = vsel %vm1471, %v4282, 0
        %4291 = vmatprep.subr.mxu0 %v4218
        %4292 = vmatpush1.msra.mxu0 %v4217
        %4293 = vmatprep.subr.mxu0 %v4221
        %4294 = vmatpush1.msra.mxu0 %v4220
        %4295 = vmatprep.subr.mxu0 %v4224
        %4296 = vmatpush1.msra.mxu0 %v4223
        %4297 = vmatprep.subr.mxu0 %v4227
        %4298 = vmatpush1.msra.mxu0 %v4226
        %4299 = vmatprep.subr.mxu0 %v4230
        %4300 = vmatpush1.msra.mxu0 %v4229
        %4301 = vmatprep.subr.mxu0 %v4233
        %4302 = vmatpush1.msra.mxu0 %v4232
        %4303 = vmatprep.subr.mxu0 %v4236
        %4304 = vmatpush1.msra.mxu0 %v4235
        %4305 = vmatprep.subr.mxu0 %v4239
        %4306 = vmatpush1.msra.mxu0 %v4238
        %4307 = vmatprep.subr.mxu0 %v4242
        %4308 = vmatpush1.msra.mxu0 %v4241
        %4309 = vmatprep.subr.mxu0 %v4245
        %4310 = vmatpush1.msra.mxu0 %v4244
        %4311 = vmatprep.subr.mxu0 %v4248
        %4312 = vmatpush1.msra.mxu0 %v4247
        %4313 = vmatprep.subr.mxu0 %v4251
        %4314 = vmatpush1.msra.mxu0 %v4250
        %4315 = vmatprep.subr.mxu0 %v4254
        %4316 = vmatpush1.msra.mxu0 %v4253
        %4317 = vmatprep.subr.mxu0 %v4257
        %4318 = vmatpush1.msra.mxu0 %v4256
        %4319 = vmatprep.subr.mxu0 %v4260
        %4320 = vmatpush1.msra.mxu0 %v4259
        %4321 = vmatprep.subr.mxu0 %v4263
        %4322 = vmatpush1.msra.mxu0 %v4262
        %4323 = vmatprep.subr.mxu0 %v4266
        %4324 = vmatpush1.msra.mxu0 %v4265
        %4325 = vmatprep.subr.mxu0 %v4269
        %4326 = vmatpush1.msra.mxu0 %v4268
        %4327 = vmatprep.subr.mxu0 0.0
        %4328 = vmatpush1.msra.mxu0 0.0
        %4329 = vmatprep.subr.mxu0 0.0
        %4330 = vmatpush1.msra.mxu0 0.0
        %4331 = vmatprep.subr.mxu0 0.0
        %4332 = vmatpush1.msra.mxu0 0.0
        %4333 = vmatprep.subr.mxu0 0.0
        %4334 = vmatpush1.msra.mxu0 0.0
        %4335 = vmatprep.subr.mxu0 0.0
        %4336 = vmatpush1.msra.mxu0 0.0
        %4337 = vmatprep.subr.mxu0 0.0
        %4338 = vmatpush1.msra.mxu0 0.0
        %4339 = vmatprep.subr.mxu0 0.0
        %4340 = vmatpush1.msra.mxu0 0.0
        %4341 = vmatprep.subr.mxu0 0.0
        %4342 = vmatpush1.msra.mxu0 0.0
        %4343 = vmatprep.subr.mxu0 0.0
        %4344 = vmatpush1.msra.mxu0 0.0
        %4345 = vmatprep.subr.mxu0 0.0
        %4346 = vmatpush1.msra.mxu0 0.0
        %4347 = vmatprep.subr.mxu0 0.0
        %4348 = vmatpush1.msra.mxu0 0.0
        %4349 = vmatprep.subr.mxu0 0.0
        %4350 = vmatpush1.msra.mxu0 0.0
        %4351 = vmatprep.subr.mxu0 0.0
        %4352 = vmatpush1.msra.mxu0 0.0
        %4353 = vmatprep.subr.mxu0 0.0
        %4354 = vmatpush1.msra.mxu0 0.0
        %4355 = vmatprep.mubr.f32.mxu0 %v4287
        %4356 = vmatmul.mubr.f32.gmra.mrb[0].mxu0 %v4283
        %v4357 = vpop.f32.mrb[0].mxu0
        %v4358 = vadd.f32 0.0, %v4357
        %v4359 = vpop.f32.mrb[0].mxu0
        %v4360 = vadd.f32 0.0, %v4359
        %4361 = vmatprep.mubr.f32.mxu0 %v4289
        %4362 = vmatmul.mubr.f32.gmra.mrb[0].mxu0 %v4284
        %v4363 = vpop.f32.mrb[0].mxu0
        %v4364 = vadd.f32 0.0, %v4363
        %v4365 = vpop.f32.mrb[0].mxu0
        %v4366 = vadd.f32 0.0, %v4365
        %4367 = vdwg.mxu0
        %4368 = vmatprep.subr.mxu0 0.0
        %4369 = vmatpush1.msra.mxu0 %v4219
        %4370 = vmatprep.subr.mxu0 0.0
        %4371 = vmatpush1.msra.mxu0 %v4222
        %4372 = vmatprep.subr.mxu0 0.0
        %4373 = vmatpush1.msra.mxu0 %v4225
        %4374 = vmatprep.subr.mxu0 0.0
        %4375 = vmatpush1.msra.mxu0 %v4228
        %4376 = vmatprep.subr.mxu0 0.0
        %4377 = vmatpush1.msra.mxu0 %v4231
        %4378 = vmatprep.subr.mxu0 0.0
        %4379 = vmatpush1.msra.mxu0 %v4234
        %4380 = vmatprep.subr.mxu0 0.0
        %4381 = vmatpush1.msra.mxu0 %v4237
        %4382 = vmatprep.subr.mxu0 0.0
        %4383 = vmatpush1.msra.mxu0 %v4240
        %4384 = vmatprep.subr.mxu0 0.0
        %4385 = vmatpush1.msra.mxu0 %v4243
        %4386 = vmatprep.subr.mxu0 0.0
        %4387 = vmatpush1.msra.mxu0 %v4246
        %4388 = vmatprep.subr.mxu0 0.0
        %4389 = vmatpush1.msra.mxu0 %v4249
        %4390 = vmatprep.subr.mxu0 0.0
        %4391 = vmatpush1.msra.mxu0 %v4252
        %4392 = vmatprep.subr.mxu0 0.0
        %4393 = vmatpush1.msra.mxu0 %v4255
        %4394 = vmatprep.subr.mxu0 0.0
        %4395 = vmatpush1.msra.mxu0 %v4258
        %4396 = vmatprep.subr.mxu0 0.0
        %4397 = vmatpush1.msra.mxu0 %v4261
        %4398 = vmatprep.subr.mxu0 0.0
        %4399 = vmatpush1.msra.mxu0 %v4264
        %4400 = vmatprep.subr.mxu0 0.0
        %4401 = vmatpush1.msra.mxu0 %v4267
        %4402 = vmatprep.subr.mxu0 0.0
        %4403 = vmatpush1.msra.mxu0 %v4270
        %4404 = vmatprep.subr.mxu0 0.0
        %4405 = vmatpush1.msra.mxu0 0.0
        %4406 = vmatprep.subr.mxu0 0.0
        %4407 = vmatpush1.msra.mxu0 0.0
        %4408 = vmatprep.subr.mxu0 0.0
        %4409 = vmatpush1.msra.mxu0 0.0
        %4410 = vmatprep.subr.mxu0 0.0
        %4411 = vmatpush1.msra.mxu0 0.0
        %4412 = vmatprep.subr.mxu0 0.0
        %4413 = vmatpush1.msra.mxu0 0.0
        %4414 = vmatprep.subr.mxu0 0.0
        %4415 = vmatpush1.msra.mxu0 0.0
        %4416 = vmatprep.subr.mxu0 0.0
        %4417 = vmatpush1.msra.mxu0 0.0
        %4418 = vmatprep.subr.mxu0 0.0
        %4419 = vmatpush1.msra.mxu0 0.0
        %4420 = vmatprep.subr.mxu0 0.0
        %4421 = vmatpush1.msra.mxu0 0.0
        %4422 = vmatprep.subr.mxu0 0.0
        %4423 = vmatpush1.msra.mxu0 0.0
        %4424 = vmatprep.subr.mxu0 0.0
        %4425 = vmatpush1.msra.mxu0 0.0
        %4426 = vmatprep.subr.mxu0 0.0
        %4427 = vmatpush1.msra.mxu0 0.0
        %4428 = vmatprep.subr.mxu0 0.0
        %4429 = vmatpush1.msra.mxu0 0.0
        %4430 = vmatprep.subr.mxu0 0.0
        %4431 = vmatpush1.msra.mxu0 0.0
        %4432 = vmatprep.mubr.f32.mxu0 %v4287
        %4433 = vmatmul.mubr.f32.gmra.mrb[0].mxu0 %v4283
        %v4434 = vpop.f32.mrb[0].mxu0
        %v4435 = vadd.f32 0.0, %v4434
        %v4436 = vpop.f32.mrb[0].mxu0
        %4437 = vmatprep.mubr.f32.mxu0 %v4289
        %4438 = vmatmul.mubr.f32.gmra.mrb[0].mxu0 %v4284
        %v4439 = vpop.f32.mrb[0].mxu0
        %v4440 = vadd.f32 0.0, %v4439
        %v4441 = vpop.f32.mrb[0].mxu0
        %4442 = vdwg.mxu0
        %v4443 = vsel %vm1471, %v4160, 0
        %v4445 = vsel %vm1471, %v4162, 0
        %4447 = vmatprep.subr.mxu0 %v4164
        %4448 = vmatpush1.msra.mxu0 %v4163
        %4449 = vmatprep.subr.mxu0 %v4167
        %4450 = vmatpush1.msra.mxu0 %v4166
        %4451 = vmatprep.subr.mxu0 %v4170
        %4452 = vmatpush1.msra.mxu0 %v4169
        %4453 = vmatprep.subr.mxu0 %v4173
        %4454 = vmatpush1.msra.mxu0 %v4172
        %4455 = vmatprep.subr.mxu0 %v4176
        %4456 = vmatpush1.msra.mxu0 %v4175
        %4457 = vmatprep.subr.mxu0 %v4179
        %4458 = vmatpush1.msra.mxu0 %v4178
        %4459 = vmatprep.subr.mxu0 %v4182
        %4460 = vmatpush1.msra.mxu0 %v4181
        %4461 = vmatprep.subr.mxu0 %v4185
        %4462 = vmatpush1.msra.mxu0 %v4184
        %4463 = vmatprep.subr.mxu0 %v4188
        %4464 = vmatpush1.msra.mxu0 %v4187
        %4465 = vmatprep.subr.mxu0 %v4191
        %4466 = vmatpush1.msra.mxu0 %v4190
        %4467 = vmatprep.subr.mxu0 %v4194
        %4468 = vmatpush1.msra.mxu0 %v4193
        %4469 = vmatprep.subr.mxu0 %v4197
        %4470 = vmatpush1.msra.mxu0 %v4196
        %4471 = vmatprep.subr.mxu0 %v4200
        %4472 = vmatpush1.msra.mxu0 %v4199
        %4473 = vmatprep.subr.mxu0 %v4203
        %4474 = vmatpush1.msra.mxu0 %v4202
        %4475 = vmatprep.subr.mxu0 %v4206
        %4476 = vmatpush1.msra.mxu0 %v4205
        %4477 = vmatprep.subr.mxu0 %v4209
        %4478 = vmatpush1.msra.mxu0 %v4208
        %4479 = vmatprep.subr.mxu0 %v4212
        %4480 = vmatpush1.msra.mxu0 %v4211
        %4481 = vmatprep.subr.mxu0 %v4215
        %4482 = vmatpush1.msra.mxu0 %v4214
        %4483 = vmatprep.subr.mxu0 0.0
        %4484 = vmatpush1.msra.mxu0 0.0
        %4485 = vmatprep.subr.mxu0 0.0
        %4486 = vmatpush1.msra.mxu0 0.0
        %4487 = vmatprep.subr.mxu0 0.0
        %4488 = vmatpush1.msra.mxu0 0.0
        %4489 = vmatprep.subr.mxu0 0.0
        %4490 = vmatpush1.msra.mxu0 0.0
        %4491 = vmatprep.subr.mxu0 0.0
        %4492 = vmatpush1.msra.mxu0 0.0
        %4493 = vmatprep.subr.mxu0 0.0
        %4494 = vmatpush1.msra.mxu0 0.0
        %4495 = vmatprep.subr.mxu0 0.0
        %4496 = vmatpush1.msra.mxu0 0.0
        %4497 = vmatprep.subr.mxu0 0.0
        %4498 = vmatpush1.msra.mxu0 0.0
        %4499 = vmatprep.subr.mxu0 0.0
        %4500 = vmatpush1.msra.mxu0 0.0
        %4501 = vmatprep.subr.mxu0 0.0
        %4502 = vmatpush1.msra.mxu0 0.0
        %4503 = vmatprep.subr.mxu0 0.0
        %4504 = vmatpush1.msra.mxu0 0.0
        %4505 = vmatprep.subr.mxu0 0.0
        %4506 = vmatpush1.msra.mxu0 0.0
        %4507 = vmatprep.subr.mxu0 0.0
        %4508 = vmatpush1.msra.mxu0 0.0
        %4509 = vmatprep.subr.mxu0 0.0
        %4510 = vmatpush1.msra.mxu0 0.0
        %4511 = vmatprep.mubr.f32.mxu0 %v4443
        %4512 = vmatmul.mubr.f32.gmra.mrb[0].mxu0 %v4159
        %v4513 = vpop.f32.mrb[0].mxu0
        %v4514 = vadd.f32 %v4358, %v4513
        %v4515 = vpop.f32.mrb[0].mxu0
        %v4516 = vadd.f32 %v4360, %v4515
        %4517 = vmatprep.mubr.f32.mxu0 %v4445
        %4518 = vmatmul.mubr.f32.gmra.mrb[0].mxu0 %v4161
        %v4519 = vpop.f32.mrb[0].mxu0
        %v4520 = vadd.f32 %v4364, %v4519
        %v4521 = vpop.f32.mrb[0].mxu0
        %v4522 = vadd.f32 %v4366, %v4521
        %4523 = vdwg.mxu0
        %4524 = vmatprep.subr.mxu0 0.0
        %4525 = vmatpush1.msra.mxu0 %v4165
        %4526 = vmatprep.subr.mxu0 0.0
        %4527 = vmatpush1.msra.mxu0 %v4168
        %4528 = vmatprep.subr.mxu0 0.0
        %4529 = vmatpush1.msra.mxu0 %v4171
        %4530 = vmatprep.subr.mxu0 0.0
        %4531 = vmatpush1.msra.mxu0 %v4174
        %4532 = vmatprep.subr.mxu0 0.0
        %4533 = vmatpush1.msra.mxu0 %v4177
        %4534 = vmatprep.subr.mxu0 0.0
        %4535 = vmatpush1.msra.mxu0 %v4180
        %4536 = vmatprep.subr.mxu0 0.0
        %4537 = vmatpush1.msra.mxu0 %v4183
        %4538 = vmatprep.subr.mxu0 0.0
        %4539 = vmatpush1.msra.mxu0 %v4186
        %4540 = vmatprep.subr.mxu0 0.0
        %4541 = vmatpush1.msra.mxu0 %v4189
        %4542 = vmatprep.subr.mxu0 0.0
        %4543 = vmatpush1.msra.mxu0 %v4192
        %4544 = vmatprep.subr.mxu0 0.0
        %4545 = vmatpush1.msra.mxu0 %v4195
        %4546 = vmatprep.subr.mxu0 0.0
        %4547 = vmatpush1.msra.mxu0 %v4198
        %4548 = vmatprep.subr.mxu0 0.0
        %4549 = vmatpush1.msra.mxu0 %v4201
        %4550 = vmatprep.subr.mxu0 0.0
        %4551 = vmatpush1.msra.mxu0 %v4204
        %4552 = vmatprep.subr.mxu0 0.0
        %4553 = vmatpush1.msra.mxu0 %v4207
        %4554 = vmatprep.subr.mxu0 0.0
        %4555 = vmatpush1.msra.mxu0 %v4210
        %4556 = vmatprep.subr.mxu0 0.0
        %4557 = vmatpush1.msra.mxu0 %v4213
        %4558 = vmatprep.subr.mxu0 0.0
        %4559 = vmatpush1.msra.mxu0 %v4216
        %4560 = vmatprep.subr.mxu0 0.0
        %4561 = vmatpush1.msra.mxu0 0.0
        %4562 = vmatprep.subr.mxu0 0.0
        %4563 = vmatpush1.msra.mxu0 0.0
        %4564 = vmatprep.subr.mxu0 0.0
        %4565 = vmatpush1.msra.mxu0 0.0
        %4566 = vmatprep.subr.mxu0 0.0
        %4567 = vmatpush1.msra.mxu0 0.0
        %4568 = vmatprep.subr.mxu0 0.0
        %4569 = vmatpush1.msra.mxu0 0.0
        %4570 = vmatprep.subr.mxu0 0.0
        %4571 = vmatpush1.msra.mxu0 0.0
        %4572 = vmatprep.subr.mxu0 0.0
        %4573 = vmatpush1.msra.mxu0 0.0
        %4574 = vmatprep.subr.mxu0 0.0
        %4575 = vmatpush1.msra.mxu0 0.0
        %4576 = vmatprep.subr.mxu0 0.0
        %4577 = vmatpush1.msra.mxu0 0.0
        %4578 = vmatprep.subr.mxu0 0.0
        %4579 = vmatpush1.msra.mxu0 0.0
        %4580 = vmatprep.subr.mxu0 0.0
        %4581 = vmatpush1.msra.mxu0 0.0
        %4582 = vmatprep.subr.mxu0 0.0
        %4583 = vmatpush1.msra.mxu0 0.0
        %4584 = vmatprep.subr.mxu0 0.0
        %4585 = vmatpush1.msra.mxu0 0.0
        %4586 = vmatprep.subr.mxu0 0.0
        %4587 = vmatpush1.msra.mxu0 0.0
        %4588 = vmatprep.mubr.f32.mxu0 %v4443
        %4589 = vmatmul.mubr.f32.gmra.mrb[0].mxu0 %v4159
        %v4590 = vpop.f32.mrb[0].mxu0
        %v4591 = vadd.f32 %v4435, %v4590
        %v4592 = vpop.f32.mrb[0].mxu0
        %4593 = vmatprep.mubr.f32.mxu0 %v4445
        %4594 = vmatmul.mubr.f32.gmra.mrb[0].mxu0 %v4161
        %v4595 = vpop.f32.mrb[0].mxu0
        %v4596 = vadd.f32 %v4440, %v4595
        %v4597 = vpop.f32.mrb[0].mxu0
        %4598 = vdwg.mxu0
        %v4599 = vld [vmem:[#allocation19] sm:$0x7]
        %v4601 = vlaneseq
        %v4602 = vshrl.u32 %v4601, 7
        %v4603 = vsub.s32 0, %v4602
        %v4604 = vrot.slane %v4599, %v4603
        %v4605 = vlaneseq
        %v4606 = vshrl.u32 %v4605, 7
        %v4607 = vsub.s32 1, %v4606
        %v4608 = vrot.slane %v4599, %v4607
        %v4609 = vlaneseq
        %v4610 = vshrl.u32 %v4609, 7
        %v4611 = vsub.s32 2, %v4610
        %v4612 = vrot.slane %v4599, %v4611
        %v4616 = vadd.f32 %v4514, %v4604
        %v4617 = vadd.f32 %v4516, %v4608
        %v4618 = vadd.f32 %v4591, %v4612
        %v4619 = vadd.f32 %v4520, %v4604
        %v4620 = vadd.f32 %v4522, %v4608
        %v4621 = vadd.f32 %v4596, %v4612
        %v4622 = vtanh.pop %v4616
        %v4623 = vtanh.pop %v4617
        %v4624 = vtanh.pop %v4619
        %v4625 = vtanh.pop %v4620
        %v4626 = vmul.f32 %v4617, 0.5
        %v4627 = vmul.f32 %v4618, 0.5
        %v4628 = vmul.f32 %v4620, 0.5
        %v4629 = vmul.f32 %v4621, 0.5
        %v4630 = vtanh.pop %v4626
        %v4631 = vtanh.pop %v4627
        %v4632 = vtanh.pop %v4628
        %v4633 = vtanh.pop %v4629
        %v4634 = vadd.f32 %v4630, 1.0
        %v4635 = vadd.f32 %v4631, 1.0
        %v4636 = vadd.f32 %v4632, 1.0
        %v4637 = vadd.f32 %v4633, 1.0
        %v4638 = vmul.f32 %v4634, 0.5
        %v4639 = vmul.f32 %v4635, 0.5
        %v4640 = vmul.f32 %v4636, 0.5
        %v4641 = vmul.f32 %v4637, 0.5
        %4646 = vrot.lane.b32.xlu0 %v4638, 112
        %v4647 = vpop.permute.xlu0 %4646
        %4648 = vrot.lane.b32.xlu0 %v4639, 112
        %v4649 = vpop.permute.xlu0 %4648
        %4650 = vrot.lane.b32.xlu0 %v4640, 112
        %v4651 = vpop.permute.xlu0 %4650
        %4652 = vrot.lane.b32.xlu0 %v4641, 112
        %v4653 = vpop.permute.xlu0 %4652
        %v4654 = vsel %vm1925, %v4647, %v4649
        %v4655 = vsel %vm1925, %v4651, %v4653
        %v4660 = vmul.f32 %v4622, %v4654
        %v4661 = vmul.f32 %v4623, %v4649
        %v4662 = vmul.f32 %v4624, %v4655
        %v4663 = vmul.f32 %v4625, %v4653
        %v4664 = vld [vmem:[#allocation20] sm:$0xff]
        %v4665 = vld [vmem:[#allocation20 + $0x8] sm:$0xff]
        %v4666 = vld [vmem:[#allocation20 + $0x10] sm:$0xff]
        %v4667 = vld [vmem:[#allocation20 + $0x18] sm:$0xff]
        %v4668 = vld [vmem:[#allocation20 + $0x20] sm:$0xff]
        %v4669 = vld [vmem:[#allocation20 + $0x28] sm:$0xff]
        %v4670 = vld [vmem:[#allocation20 + $0x30] sm:$0xff]
        %v4671 = vld [vmem:[#allocation20 + $0x38] sm:$0xff]
        %v4672 = vld [vmem:[#allocation20 + $0x40] sm:$0xff]
        %v4673 = vld [vmem:[#allocation20 + $0x48] sm:$0xff]
        %v4674 = vld [vmem:[#allocation20 + $0x50] sm:$0xff]
        %v4675 = vld [vmem:[#allocation20 + $0x58] sm:$0xff]
        %v4676 = vld [vmem:[#allocation20 + $0x60] sm:$0xff]
        %v4677 = vld [vmem:[#allocation20 + $0x68] sm:$0xff]
        %v4678 = vld [vmem:[#allocation20 + $0x70] sm:$0xff]
        %v4679 = vld [vmem:[#allocation20 + $0x78] sm:$0xff]
        %v4680 = vld [vmem:[#allocation20 + $0x80] sm:$0xff]
        %v4681 = vld [vmem:[#allocation20 + $0x88] sm:$0xff]
        %v4682 = vld [vmem:[#allocation22] sm:$0x1]
        %v4684 = vlaneseq
        %v4685 = vshrl.u32 %v4684, 7
        %v4686 = vsub.s32 0, %v4685
        %v4687 = vrot.slane %v4682, %v4686
        %v4690 = vsel %vm1471, %v4661, 0
        %v4693 = vsel %vm1471, %v4663, 0
        %4695 = vmatprep.subr.mxu0 0.0
        %4696 = vmatpush1.msra.mxu0 %v4664
        %4697 = vmatprep.subr.mxu0 0.0
        %4698 = vmatpush1.msra.mxu0 %v4665
        %4699 = vmatprep.subr.mxu0 0.0
        %4700 = vmatpush1.msra.mxu0 %v4666
        %4701 = vmatprep.subr.mxu0 0.0
        %4702 = vmatpush1.msra.mxu0 %v4667
        %4703 = vmatprep.subr.mxu0 0.0
        %4704 = vmatpush1.msra.mxu0 %v4668
        %4705 = vmatprep.subr.mxu0 0.0
        %4706 = vmatpush1.msra.mxu0 %v4669
        %4707 = vmatprep.subr.mxu0 0.0
        %4708 = vmatpush1.msra.mxu0 %v4670
        %4709 = vmatprep.subr.mxu0 0.0
        %4710 = vmatpush1.msra.mxu0 %v4671
        %4711 = vmatprep.subr.mxu0 0.0
        %4712 = vmatpush1.msra.mxu0 %v4672
        %4713 = vmatprep.subr.mxu0 0.0
        %4714 = vmatpush1.msra.mxu0 %v4673
        %4715 = vmatprep.subr.mxu0 0.0
        %4716 = vmatpush1.msra.mxu0 %v4674
        %4717 = vmatprep.subr.mxu0 0.0
        %4718 = vmatpush1.msra.mxu0 %v4675
        %4719 = vmatprep.subr.mxu0 0.0
        %4720 = vmatpush1.msra.mxu0 %v4676
        %4721 = vmatprep.subr.mxu0 0.0
        %4722 = vmatpush1.msra.mxu0 %v4677
        %4723 = vmatprep.subr.mxu0 0.0
        %4724 = vmatpush1.msra.mxu0 %v4678
        %4725 = vmatprep.subr.mxu0 0.0
        %4726 = vmatpush1.msra.mxu0 %v4679
        %4727 = vmatprep.subr.mxu0 0.0
        %4728 = vmatpush1.msra.mxu0 %v4680
        %4729 = vmatprep.subr.mxu0 0.0
        %4730 = vmatpush1.msra.mxu0 %v4681
        %4731 = vmatprep.subr.mxu0 0.0
        %4732 = vmatpush1.msra.mxu0 0.0
        %4733 = vmatprep.subr.mxu0 0.0
        %4734 = vmatpush1.msra.mxu0 0.0
        %4735 = vmatprep.subr.mxu0 0.0
        %4736 = vmatpush1.msra.mxu0 0.0
        %4737 = vmatprep.subr.mxu0 0.0
        %4738 = vmatpush1.msra.mxu0 0.0
        %4739 = vmatprep.subr.mxu0 0.0
        %4740 = vmatpush1.msra.mxu0 0.0
        %4741 = vmatprep.subr.mxu0 0.0
        %4742 = vmatpush1.msra.mxu0 0.0
        %4743 = vmatprep.subr.mxu0 0.0
        %4744 = vmatpush1.msra.mxu0 0.0
        %4745 = vmatprep.subr.mxu0 0.0
        %4746 = vmatpush1.msra.mxu0 0.0
        %4747 = vmatprep.subr.mxu0 0.0
        %4748 = vmatpush1.msra.mxu0 0.0
        %4749 = vmatprep.subr.mxu0 0.0
        %4750 = vmatpush1.msra.mxu0 0.0
        %4751 = vmatprep.subr.mxu0 0.0
        %4752 = vmatpush1.msra.mxu0 0.0
        %4753 = vmatprep.subr.mxu0 0.0
        %4754 = vmatpush1.msra.mxu0 0.0
        %4755 = vmatprep.subr.mxu0 0.0
        %4756 = vmatpush1.msra.mxu0 0.0
        %4757 = vmatprep.subr.mxu0 0.0
        %4758 = vmatpush1.msra.mxu0 0.0
        %4759 = vmatprep.mubr.f32.mxu0 %v4690
        %4760 = vmatmul.mubr.f32.gmra.mrb[0].mxu0 %v4660
        %v4761 = vpop.f32.mrb[0].mxu0
        %v4762 = vadd.f32 %v4687, %v4761
        %v4763 = vpop.f32.mrb[0].mxu0
        %4764 = vmatprep.mubr.f32.mxu0 %v4693
        %4765 = vmatmul.mubr.f32.gmra.mrb[0].mxu0 %v4662
        %v4766 = vpop.f32.mrb[0].mxu0
        %v4767 = vadd.f32 %v4687, %v4766
        %v4768 = vpop.f32.mrb[0].mxu0
        %4769 = vdwg.mxu0
        %4772 = vrot.lane.b32.xlu0 %v4762, 48
        %v4773 = vpop.permute.xlu0 %4772
        %4774 = vrot.lane.b32.xlu0 %v4767, 48
        %v4775 = vpop.permute.xlu0 %4774
        %vm4778 = vcmask 982400
        %4779 = vst.msk [vmem:[#allocation2 + $0x8] sm:$0xff] %vm4778, %v4773
        %4780 = vst.msk [vmem:[#allocation2 + $0x20] sm:$0xff] %vm4778, %v4775
        %4781 = vmatprep.subr.mxu0 %v4661
        %4782 = vmatpush1.msra.mxu0 %v4660
        %4783 = vmatprep.subr.mxu0 %v4663
        %4784 = vmatpush1.msra.mxu0 %v4662
        %4785 = vmatprep.subr.mxu0 0.0
        %4786 = vmatpush1.msra.mxu0 0.0
        %4787 = vmatprep.subr.mxu0 0.0
        %4788 = vmatpush1.msra.mxu0 0.0
        %4789 = vmatprep.subr.mxu0 0.0
        %4790 = vmatpush1.msra.mxu0 0.0
        %4791 = vmatprep.subr.mxu0 0.0
        %4792 = vmatpush1.msra.mxu0 0.0
        %4793 = vmatprep.subr.mxu0 0.0
        %4794 = vmatpush1.msra.mxu0 0.0
        %4795 = vmatprep.subr.mxu0 0.0
        %4796 = vmatpush1.msra.mxu0 0.0
        %4797 = vmatprep.subr.mxu0 0.0
        %4798 = vmatpush1.msra.mxu0 0.0
        %4799 = vmatprep.subr.mxu0 0.0
        %4800 = vmatpush1.msra.mxu0 0.0
        %4801 = vmatprep.subr.mxu0 0.0
        %4802 = vmatpush1.msra.mxu0 0.0
        %4803 = vmatprep.subr.mxu0 0.0
        %4804 = vmatpush1.msra.mxu0 0.0
        %4805 = vmatprep.subr.mxu0 0.0
        %4806 = vmatpush1.msra.mxu0 0.0
        %4807 = vmatprep.subr.mxu0 0.0
        %4808 = vmatpush1.msra.mxu0 0.0
        %4809 = vmatprep.subr.mxu0 0.0
        %4810 = vmatpush1.msra.mxu0 0.0
        %4811 = vmatprep.subr.mxu0 0.0
        %4812 = vmatpush1.msra.mxu0 0.0
        %4813 = vmatprep.subr.mxu0 0.0
        %4814 = vmatpush1.msra.mxu0 0.0
        %4815 = vmatprep.subr.mxu0 0.0
        %4816 = vmatpush1.msra.mxu0 0.0
        %4817 = vmatprep.subr.mxu0 0.0
        %4818 = vmatpush1.msra.mxu0 0.0
        %4819 = vmatprep.subr.mxu0 0.0
        %4820 = vmatpush1.msra.mxu0 0.0
        %4821 = vmatprep.subr.mxu0 0.0
        %4822 = vmatpush1.msra.mxu0 0.0
        %4823 = vmatprep.subr.mxu0 0.0
        %4824 = vmatpush1.msra.mxu0 0.0
        %4825 = vmatprep.subr.mxu0 0.0
        %4826 = vmatpush1.msra.mxu0 0.0
        %4827 = vmatprep.subr.mxu0 0.0
        %4828 = vmatpush1.msra.mxu0 0.0
        %4829 = vmatprep.subr.mxu0 0.0
        %4830 = vmatpush1.msra.mxu0 0.0
        %4831 = vmatprep.subr.mxu0 0.0
        %4832 = vmatpush1.msra.mxu0 0.0
        %4833 = vmatprep.subr.mxu0 0.0
        %4834 = vmatpush1.msra.mxu0 0.0
        %4835 = vmatprep.subr.mxu0 0.0
        %4836 = vmatpush1.msra.mxu0 0.0
        %4837 = vmatprep.subr.mxu0 0.0
        %4838 = vmatpush1.msra.mxu0 0.0
        %4839 = vmatprep.subr.mxu0 0.0
        %4840 = vmatpush1.msra.mxu0 0.0
        %4841 = vmatprep.subr.mxu0 0.0
        %4842 = vmatpush1.msra.mxu0 0.0
        %4843 = vmatprep.subr.mxu0 0.0
        %4844 = vmatpush1.msra.mxu0 0.0
        %4845 = vmatprep.mubr.f32.mxu0 0.0
        %4846 = vmatmul.mubr.f32.gmra.mrb[0].mxu0 %v2424
        %v4847 = vpop.f32.mrb[0].mxu0
        %v4848 = vadd.f32 0.0, %v4847
        %v4849 = vpop.f32.mrb[0].mxu0
        %v4850 = vadd.f32 0.0, %v4849
        %4851 = vmatprep.mubr.f32.mxu0 0.0
        %4852 = vmatmul.mubr.f32.gmra.mrb[0].mxu0 %v2427
        %v4853 = vpop.f32.mrb[0].mxu0
        %v4854 = vadd.f32 0.0, %v4853
        %v4855 = vpop.f32.mrb[0].mxu0
        %v4856 = vadd.f32 0.0, %v4855
        %4857 = vdwg.mxu0
        %4858 = vmatprep.subr.mxu0 %v4850
        %4859 = vmatpush1.msra.mxu0 %v4848
        %4860 = vmatprep.subr.mxu0 %v4856
        %4861 = vmatpush1.msra.mxu0 %v4854
        %4862 = vmatprep.subr.mxu0 0.0
        %4863 = vmatpush1.msra.mxu0 0.0
        %4864 = vmatprep.subr.mxu0 0.0
        %4865 = vmatpush1.msra.mxu0 0.0
        %4866 = vmatprep.subr.mxu0 0.0
        %4867 = vmatpush1.msra.mxu0 0.0
        %4868 = vmatprep.subr.mxu0 0.0
        %4869 = vmatpush1.msra.mxu0 0.0
        %4870 = vmatprep.subr.mxu0 0.0
        %4871 = vmatpush1.msra.mxu0 0.0
        %4872 = vmatprep.subr.mxu0 0.0
        %4873 = vmatpush1.msra.mxu0 0.0
        %4874 = vmatprep.subr.mxu0 0.0
        %4875 = vmatpush1.msra.mxu0 0.0
        %4876 = vmatprep.subr.mxu0 0.0
        %4877 = vmatpush1.msra.mxu0 0.0
        %4878 = vmatprep.subr.mxu0 0.0
        %4879 = vmatpush1.msra.mxu0 0.0
        %4880 = vmatprep.subr.mxu0 0.0
        %4881 = vmatpush1.msra.mxu0 0.0
        %4882 = vmatprep.subr.mxu0 0.0
        %4883 = vmatpush1.msra.mxu0 0.0
        %4884 = vmatprep.subr.mxu0 0.0
        %4885 = vmatpush1.msra.mxu0 0.0
        %4886 = vmatprep.subr.mxu0 0.0
        %4887 = vmatpush1.msra.mxu0 0.0
        %4888 = vmatprep.subr.mxu0 0.0
        %4889 = vmatpush1.msra.mxu0 0.0
        %4890 = vmatprep.subr.mxu0 0.0
        %4891 = vmatpush1.msra.mxu0 0.0
        %4892 = vmatprep.subr.mxu0 0.0
        %4893 = vmatpush1.msra.mxu0 0.0
        %4894 = vmatprep.subr.mxu0 0.0
        %4895 = vmatpush1.msra.mxu0 0.0
        %4896 = vmatprep.subr.mxu0 0.0
        %4897 = vmatpush1.msra.mxu0 0.0
        %4898 = vmatprep.subr.mxu0 0.0
        %4899 = vmatpush1.msra.mxu0 0.0
        %4900 = vmatprep.subr.mxu0 0.0
        %4901 = vmatpush1.msra.mxu0 0.0
        %4902 = vmatprep.subr.mxu0 0.0
        %4903 = vmatpush1.msra.mxu0 0.0
        %4904 = vmatprep.subr.mxu0 0.0
        %4905 = vmatpush1.msra.mxu0 0.0
        %4906 = vmatprep.subr.mxu0 0.0
        %4907 = vmatpush1.msra.mxu0 0.0
        %4908 = vmatprep.subr.mxu0 0.0
        %4909 = vmatpush1.msra.mxu0 0.0
        %4910 = vmatprep.subr.mxu0 0.0
        %4911 = vmatpush1.msra.mxu0 0.0
        %4912 = vmatprep.subr.mxu0 0.0
        %4913 = vmatpush1.msra.mxu0 0.0
        %4914 = vmatprep.subr.mxu0 0.0
        %4915 = vmatpush1.msra.mxu0 0.0
        %4916 = vmatprep.subr.mxu0 0.0
        %4917 = vmatpush1.msra.mxu0 0.0
        %4918 = vmatprep.subr.mxu0 0.0
        %4919 = vmatpush1.msra.mxu0 0.0
        %4920 = vmatprep.subr.mxu0 0.0
        %4921 = vmatpush1.msra.mxu0 0.0
        %4922 = vmatprep.mubr.f32.mxu0 0.0
        %4923 = vmatmul.mubr.f32.gmra.mrb[0].mxu0 %v2424
        %v4924 = vpop.f32.mrb[0].mxu0
        %v4925 = vadd.f32 0.0, %v4924
        %v4926 = vpop.f32.mrb[0].mxu0
        %v4927 = vadd.f32 0.0, %v4926
        %4928 = vmatprep.mubr.f32.mxu0 0.0
        %4929 = vmatmul.mubr.f32.gmra.mrb[0].mxu0 %v2427
        %v4930 = vpop.f32.mrb[0].mxu0
        %v4931 = vadd.f32 0.0, %v4930
        %v4932 = vpop.f32.mrb[0].mxu0
        %v4933 = vadd.f32 0.0, %v4932
        %4934 = vdwg.mxu0
        %v4935 = vld [vmem:[%s51] sm:$0xff]
        %v4936 = vld [vmem:[%s51 + $0x8] sm:$0xff]
        %v4937 = vld [vmem:[%s51 + $0x10] sm:$0xff]
        %v4938 = vld [vmem:[%s51 + $0x18] sm:$0xff]
        %v4939 = vld [vmem:[%s51 + $0x20] sm:$0xff]
        %v4940 = vld [vmem:[%s51 + $0x28] sm:$0xff]
        %v4941 = vld [vmem:[%s51 + $0x30] sm:$0xff]
        %v4942 = vld [vmem:[%s51 + $0x38] sm:$0xff]
        %v4943 = vld [vmem:[%s51 + $0x40] sm:$0xff]
        %v4944 = vld [vmem:[%s51 + $0x48] sm:$0xff]
        %v4945 = vld [vmem:[%s51 + $0x50] sm:$0xff]
        %v4946 = vld [vmem:[%s51 + $0x58] sm:$0xff]
        %v4947 = vld [vmem:[%s51 + $0x60] sm:$0xff]
        %v4948 = vld [vmem:[%s51 + $0x68] sm:$0xff]
        %v4949 = vld [vmem:[%s51 + $0x70] sm:$0xff]
        %v4950 = vld [vmem:[%s51 + $0x78] sm:$0xff]
        %v4951 = vld [vmem:[%s51 + $0x80] sm:$0xff]
        %v4952 = vld [vmem:[%s51 + $0x88] sm:$0xff]
        %v4953 = vld [vmem:[%s51 + $0x90] sm:$0xff]
        %v4954 = vld [vmem:[%s51 + $0x98] sm:$0xff]
        %v4955 = vld [vmem:[%s51 + $0xa0] sm:$0xff]
        %v4956 = vld [vmem:[%s51 + $0xa8] sm:$0xff]
        %v4957 = vld [vmem:[%s51 + $0xb0] sm:$0xff]
        %v4958 = vld [vmem:[%s51 + $0xb8] sm:$0xff]
        %v4959 = vld [vmem:[%s51 + $0xc0] sm:$0xff]
        %v4960 = vld [vmem:[%s51 + $0xc8] sm:$0xff]
        %v4961 = vld [vmem:[%s51 + $0xd0] sm:$0xff]
        %v4962 = vld [vmem:[%s51 + $0xd8] sm:$0xff]
        %v4963 = vld [vmem:[%s51 + $0xe0] sm:$0xff]
        %v4964 = vld [vmem:[%s51 + $0xe8] sm:$0xff]
        %v4965 = vld [vmem:[%s51 + $0xf0] sm:$0xff]
        %v4966 = vld [vmem:[%s51 + $0xf8] sm:$0xff]
        %v4967 = vld [vmem:[%s51 + $0x100] sm:$0xff]
        %v4968 = vld [vmem:[%s51 + $0x108] sm:$0xff]
        %v4969 = vld [vmem:[%s51 + $0x110] sm:$0xff]
        %v4970 = vld [vmem:[%s51 + $0x118] sm:$0xff]
        %v4971 = vld [vmem:[%s51 + $0x120] sm:$0xff]
        %v4972 = vld [vmem:[%s51 + $0x128] sm:$0xff]
        %v4973 = vld [vmem:[%s51 + $0x130] sm:$0xff]
        %v4974 = vld [vmem:[%s51 + $0x138] sm:$0xff]
        %v4975 = vld [vmem:[%s51 + $0x140] sm:$0xff]
        %v4976 = vld [vmem:[%s51 + $0x148] sm:$0xff]
        %v4977 = vld [vmem:[%s51 + $0x150] sm:$0xff]
        %v4978 = vld [vmem:[%s51 + $0x158] sm:$0xff]
        %v4979 = vld [vmem:[%s51 + $0x160] sm:$0xff]
        %v4980 = vld [vmem:[%s51 + $0x168] sm:$0xff]
        %v4981 = vld [vmem:[%s51 + $0x170] sm:$0xff]
        %v4982 = vld [vmem:[%s51 + $0x178] sm:$0xff]
        %v4983 = vld [vmem:[%s51 + $0x180] sm:$0xff]
        %v4984 = vld [vmem:[%s51 + $0x188] sm:$0xff]
        %v4985 = vld [vmem:[%s51 + $0x190] sm:$0xff]
        %v4986 = vld [vmem:[%s51 + $0x198] sm:$0xff]
        %v4987 = vld [vmem:[%s51 + $0x1a0] sm:$0xff]
        %v4988 = vld [vmem:[%s51 + $0x1a8] sm:$0xff]
        %v4989 = vld [vmem:[%s51 + $0x1b0] sm:$0xff]
        %v4990 = vld [vmem:[%s51 + $0x1b8] sm:$0xff]
        %v4991 = vld [vmem:[%s51 + $0x1c0] sm:$0xff]
        %v4992 = vld [vmem:[%s51 + $0x1c8] sm:$0xff]
        %v4993 = vld [vmem:[%s51 + $0x1d0] sm:$0xff]
        %v4994 = vld [vmem:[%s51 + $0x1d8] sm:$0xff]
        %v4995 = vld [vmem:[%s51 + $0x1e0] sm:$0xff]
        %v4996 = vld [vmem:[%s51 + $0x1e8] sm:$0xff]
        %v4997 = vld [vmem:[%s51 + $0x1f0] sm:$0xff]
        %v4998 = vld [vmem:[%s51 + $0x1f8] sm:$0xff]
        %v4999 = vld [vmem:[%s51 + $0x200] sm:$0xff]
        %v5000 = vld [vmem:[%s51 + $0x208] sm:$0xff]
        %v5001 = vld [vmem:[%s51 + $0x210] sm:$0xff]
        %v5002 = vld [vmem:[%s51 + $0x218] sm:$0xff]
        %v5003 = vld [vmem:[%s51 + $0x220] sm:$0xff]
        %v5004 = vld [vmem:[%s51 + $0x228] sm:$0xff]
        %v5005 = vld [vmem:[%s51 + $0x230] sm:$0xff]
        %v5006 = vld [vmem:[%s51 + $0x238] sm:$0xff]
        %v5008 = vsel %vm1471, %v4850, 0
        %v5011 = vsel %vm1471, %v4856, 0
        %5013 = vmatprep.subr.mxu0 %v4972
        %5014 = vmatpush1.msra.mxu0 %v4971
        %5015 = vmatprep.subr.mxu0 %v4974
        %5016 = vmatpush1.msra.mxu0 %v4973
        %5017 = vmatprep.subr.mxu0 %v4976
        %5018 = vmatpush1.msra.mxu0 %v4975
        %5019 = vmatprep.subr.mxu0 %v4978
        %5020 = vmatpush1.msra.mxu0 %v4977
        %5021 = vmatprep.subr.mxu0 %v4980
        %5022 = vmatpush1.msra.mxu0 %v4979
        %5023 = vmatprep.subr.mxu0 %v4982
        %5024 = vmatpush1.msra.mxu0 %v4981
        %5025 = vmatprep.subr.mxu0 %v4984
        %5026 = vmatpush1.msra.mxu0 %v4983
        %5027 = vmatprep.subr.mxu0 %v4986
        %5028 = vmatpush1.msra.mxu0 %v4985
        %5029 = vmatprep.subr.mxu0 %v4988
        %5030 = vmatpush1.msra.mxu0 %v4987
        %5031 = vmatprep.subr.mxu0 %v4990
        %5032 = vmatpush1.msra.mxu0 %v4989
        %5033 = vmatprep.subr.mxu0 %v4992
        %5034 = vmatpush1.msra.mxu0 %v4991
        %5035 = vmatprep.subr.mxu0 %v4994
        %5036 = vmatpush1.msra.mxu0 %v4993
        %5037 = vmatprep.subr.mxu0 %v4996
        %5038 = vmatpush1.msra.mxu0 %v4995
        %5039 = vmatprep.subr.mxu0 %v4998
        %5040 = vmatpush1.msra.mxu0 %v4997
        %5041 = vmatprep.subr.mxu0 %v5000
        %5042 = vmatpush1.msra.mxu0 %v4999
        %5043 = vmatprep.subr.mxu0 %v5002
        %5044 = vmatpush1.msra.mxu0 %v5001
        %5045 = vmatprep.subr.mxu0 %v5004
        %5046 = vmatpush1.msra.mxu0 %v5003
        %5047 = vmatprep.subr.mxu0 %v5006
        %5048 = vmatpush1.msra.mxu0 %v5005
        %5049 = vmatprep.subr.mxu0 0.0
        %5050 = vmatpush1.msra.mxu0 0.0
        %5051 = vmatprep.subr.mxu0 0.0
        %5052 = vmatpush1.msra.mxu0 0.0
        %5053 = vmatprep.subr.mxu0 0.0
        %5054 = vmatpush1.msra.mxu0 0.0
        %5055 = vmatprep.subr.mxu0 0.0
        %5056 = vmatpush1.msra.mxu0 0.0
        %5057 = vmatprep.subr.mxu0 0.0
        %5058 = vmatpush1.msra.mxu0 0.0
        %5059 = vmatprep.subr.mxu0 0.0
        %5060 = vmatpush1.msra.mxu0 0.0
        %5061 = vmatprep.subr.mxu0 0.0
        %5062 = vmatpush1.msra.mxu0 0.0
        %5063 = vmatprep.subr.mxu0 0.0
        %5064 = vmatpush1.msra.mxu0 0.0
        %5065 = vmatprep.subr.mxu0 0.0
        %5066 = vmatpush1.msra.mxu0 0.0
        %5067 = vmatprep.subr.mxu0 0.0
        %5068 = vmatpush1.msra.mxu0 0.0
        %5069 = vmatprep.subr.mxu0 0.0
        %5070 = vmatpush1.msra.mxu0 0.0
        %5071 = vmatprep.subr.mxu0 0.0
        %5072 = vmatpush1.msra.mxu0 0.0
        %5073 = vmatprep.subr.mxu0 0.0
        %5074 = vmatpush1.msra.mxu0 0.0
        %5075 = vmatprep.subr.mxu0 0.0
        %5076 = vmatpush1.msra.mxu0 0.0
        %5077 = vmatprep.mubr.f32.mxu0 %v5008
        %5078 = vmatmul.mubr.f32.gmra.mrb[0].mxu0 %v4848
        %v5079 = vpop.f32.mrb[0].mxu0
        %v5080 = vadd.f32 0.0, %v5079
        %v5081 = vpop.f32.mrb[0].mxu0
        %v5082 = vadd.f32 0.0, %v5081
        %5083 = vmatprep.mubr.f32.mxu0 %v5011
        %5084 = vmatmul.mubr.f32.gmra.mrb[0].mxu0 %v4854
        %v5085 = vpop.f32.mrb[0].mxu0
        %v5086 = vadd.f32 0.0, %v5085
        %v5087 = vpop.f32.mrb[0].mxu0
        %v5088 = vadd.f32 0.0, %v5087
        %5089 = vdwg.mxu0
        %5090 = vmatprep.subr.mxu0 %v4936
        %5091 = vmatpush1.msra.mxu0 %v4935
        %5092 = vmatprep.subr.mxu0 %v4938
        %5093 = vmatpush1.msra.mxu0 %v4937
        %5094 = vmatprep.subr.mxu0 %v4940
        %5095 = vmatpush1.msra.mxu0 %v4939
        %5096 = vmatprep.subr.mxu0 %v4942
        %5097 = vmatpush1.msra.mxu0 %v4941
        %5098 = vmatprep.subr.mxu0 %v4944
        %5099 = vmatpush1.msra.mxu0 %v4943
        %5100 = vmatprep.subr.mxu0 %v4946
        %5101 = vmatpush1.msra.mxu0 %v4945
        %5102 = vmatprep.subr.mxu0 %v4948
        %5103 = vmatpush1.msra.mxu0 %v4947
        %5104 = vmatprep.subr.mxu0 %v4950
        %5105 = vmatpush1.msra.mxu0 %v4949
        %5106 = vmatprep.subr.mxu0 %v4952
        %5107 = vmatpush1.msra.mxu0 %v4951
        %5108 = vmatprep.subr.mxu0 %v4954
        %5109 = vmatpush1.msra.mxu0 %v4953
        %5110 = vmatprep.subr.mxu0 %v4956
        %5111 = vmatpush1.msra.mxu0 %v4955
        %5112 = vmatprep.subr.mxu0 %v4958
        %5113 = vmatpush1.msra.mxu0 %v4957
        %5114 = vmatprep.subr.mxu0 %v4960
        %5115 = vmatpush1.msra.mxu0 %v4959
        %5116 = vmatprep.subr.mxu0 %v4962
        %5117 = vmatpush1.msra.mxu0 %v4961
        %5118 = vmatprep.subr.mxu0 %v4964
        %5119 = vmatpush1.msra.mxu0 %v4963
        %5120 = vmatprep.subr.mxu0 %v4966
        %5121 = vmatpush1.msra.mxu0 %v4965
        %5122 = vmatprep.subr.mxu0 %v4968
        %5123 = vmatpush1.msra.mxu0 %v4967
        %5124 = vmatprep.subr.mxu0 %v4970
        %5125 = vmatpush1.msra.mxu0 %v4969
        %5126 = vmatprep.subr.mxu0 0.0
        %5127 = vmatpush1.msra.mxu0 0.0
        %5128 = vmatprep.subr.mxu0 0.0
        %5129 = vmatpush1.msra.mxu0 0.0
        %5130 = vmatprep.subr.mxu0 0.0
        %5131 = vmatpush1.msra.mxu0 0.0
        %5132 = vmatprep.subr.mxu0 0.0
        %5133 = vmatpush1.msra.mxu0 0.0
        %5134 = vmatprep.subr.mxu0 0.0
        %5135 = vmatpush1.msra.mxu0 0.0
        %5136 = vmatprep.subr.mxu0 0.0
        %5137 = vmatpush1.msra.mxu0 0.0
        %5138 = vmatprep.subr.mxu0 0.0
        %5139 = vmatpush1.msra.mxu0 0.0
        %5140 = vmatprep.subr.mxu0 0.0
        %5141 = vmatpush1.msra.mxu0 0.0
        %5142 = vmatprep.subr.mxu0 0.0
        %5143 = vmatpush1.msra.mxu0 0.0
        %5144 = vmatprep.subr.mxu0 0.0
        %5145 = vmatpush1.msra.mxu0 0.0
        %5146 = vmatprep.subr.mxu0 0.0
        %5147 = vmatpush1.msra.mxu0 0.0
        %5148 = vmatprep.subr.mxu0 0.0
        %5149 = vmatpush1.msra.mxu0 0.0
        %5150 = vmatprep.subr.mxu0 0.0
        %5151 = vmatpush1.msra.mxu0 0.0
        %5152 = vmatprep.subr.mxu0 0.0
        %5153 = vmatpush1.msra.mxu0 0.0
        %5154 = vmatprep.mubr.f32.mxu0 %v4690
        %5155 = vmatmul.mubr.f32.gmra.mrb[0].mxu0 %v4660
        %v5156 = vpop.f32.mrb[0].mxu0
        %v5157 = vadd.f32 %v5080, %v5156
        %v5158 = vpop.f32.mrb[0].mxu0
        %v5159 = vadd.f32 %v5082, %v5158
        %5160 = vmatprep.mubr.f32.mxu0 %v4693
        %5161 = vmatmul.mubr.f32.gmra.mrb[0].mxu0 %v4662
        %v5162 = vpop.f32.mrb[0].mxu0
        %v5163 = vadd.f32 %v5086, %v5162
        %v5164 = vpop.f32.mrb[0].mxu0
        %v5165 = vadd.f32 %v5088, %v5164
        %5166 = vdwg.mxu0
        %v5167 = vld [vmem:[%s51 + $0x240] sm:$0xff]
        %v5168 = vld [vmem:[%s51 + $0x248] sm:$0xff]
        %v5169 = vld [vmem:[%s51 + $0x250] sm:$0xff]
        %v5170 = vld [vmem:[%s51 + $0x258] sm:$0xff]
        %v5171 = vld [vmem:[%s51 + $0x260] sm:$0xff]
        %v5172 = vld [vmem:[%s51 + $0x268] sm:$0xff]
        %v5173 = vld [vmem:[%s51 + $0x270] sm:$0xff]
        %v5174 = vld [vmem:[%s51 + $0x278] sm:$0xff]
        %v5175 = vld [vmem:[%s51 + $0x280] sm:$0xff]
        %v5176 = vld [vmem:[%s51 + $0x288] sm:$0xff]
        %v5177 = vld [vmem:[%s51 + $0x290] sm:$0xff]
        %v5178 = vld [vmem:[%s51 + $0x298] sm:$0xff]
        %v5179 = vld [vmem:[%s51 + $0x2a0] sm:$0xff]
        %v5180 = vld [vmem:[%s51 + $0x2a8] sm:$0xff]
        %v5181 = vld [vmem:[%s51 + $0x2b0] sm:$0xff]
        %v5182 = vld [vmem:[%s51 + $0x2b8] sm:$0xff]
        %v5183 = vld [vmem:[%s51 + $0x2c0] sm:$0xff]
        %v5184 = vld [vmem:[%s51 + $0x2c8] sm:$0xff]
        %v5185 = vld [vmem:[%s51 + $0x2d0] sm:$0xff]
        %v5186 = vld [vmem:[%s51 + $0x2d8] sm:$0xff]
        %v5187 = vld [vmem:[%s51 + $0x2e0] sm:$0xff]
        %v5188 = vld [vmem:[%s51 + $0x2e8] sm:$0xff]
        %v5189 = vld [vmem:[%s51 + $0x2f0] sm:$0xff]
        %v5190 = vld [vmem:[%s51 + $0x2f8] sm:$0xff]
        %v5191 = vld [vmem:[%s51 + $0x300] sm:$0xff]
        %v5192 = vld [vmem:[%s51 + $0x308] sm:$0xff]
        %v5193 = vld [vmem:[%s51 + $0x310] sm:$0xff]
        %v5194 = vld [vmem:[%s51 + $0x318] sm:$0xff]
        %v5195 = vld [vmem:[%s51 + $0x320] sm:$0xff]
        %v5196 = vld [vmem:[%s51 + $0x328] sm:$0xff]
        %v5197 = vld [vmem:[%s51 + $0x330] sm:$0xff]
        %v5198 = vld [vmem:[%s51 + $0x338] sm:$0xff]
        %v5199 = vld [vmem:[%s51 + $0x340] sm:$0xff]
        %v5200 = vld [vmem:[%s51 + $0x348] sm:$0xff]
        %v5201 = vld [vmem:[%s51 + $0x350] sm:$0xff]
        %v5202 = vld [vmem:[%s51 + $0x358] sm:$0xff]
        %v5204 = vsel %vm1471, %v4927, 0
        %v5207 = vsel %vm1471, %v4933, 0
        %5209 = vmatprep.subr.mxu0 %v5168
        %5210 = vmatpush1.msra.mxu0 %v5167
        %5211 = vmatprep.subr.mxu0 %v5170
        %5212 = vmatpush1.msra.mxu0 %v5169
        %5213 = vmatprep.subr.mxu0 %v5172
        %5214 = vmatpush1.msra.mxu0 %v5171
        %5215 = vmatprep.subr.mxu0 %v5174
        %5216 = vmatpush1.msra.mxu0 %v5173
        %5217 = vmatprep.subr.mxu0 %v5176
        %5218 = vmatpush1.msra.mxu0 %v5175
        %5219 = vmatprep.subr.mxu0 %v5178
        %5220 = vmatpush1.msra.mxu0 %v5177
        %5221 = vmatprep.subr.mxu0 %v5180
        %5222 = vmatpush1.msra.mxu0 %v5179
        %5223 = vmatprep.subr.mxu0 %v5182
        %5224 = vmatpush1.msra.mxu0 %v5181
        %5225 = vmatprep.subr.mxu0 %v5184
        %5226 = vmatpush1.msra.mxu0 %v5183
        %5227 = vmatprep.subr.mxu0 %v5186
        %5228 = vmatpush1.msra.mxu0 %v5185
        %5229 = vmatprep.subr.mxu0 %v5188
        %5230 = vmatpush1.msra.mxu0 %v5187
        %5231 = vmatprep.subr.mxu0 %v5190
        %5232 = vmatpush1.msra.mxu0 %v5189
        %5233 = vmatprep.subr.mxu0 %v5192
        %5234 = vmatpush1.msra.mxu0 %v5191
        %5235 = vmatprep.subr.mxu0 %v5194
        %5236 = vmatpush1.msra.mxu0 %v5193
        %5237 = vmatprep.subr.mxu0 %v5196
        %5238 = vmatpush1.msra.mxu0 %v5195
        %5239 = vmatprep.subr.mxu0 %v5198
        %5240 = vmatpush1.msra.mxu0 %v5197
        %5241 = vmatprep.subr.mxu0 %v5200
        %5242 = vmatpush1.msra.mxu0 %v5199
        %5243 = vmatprep.subr.mxu0 %v5202
        %5244 = vmatpush1.msra.mxu0 %v5201
        %5245 = vmatprep.subr.mxu0 0.0
        %5246 = vmatpush1.msra.mxu0 0.0
        %5247 = vmatprep.subr.mxu0 0.0
        %5248 = vmatpush1.msra.mxu0 0.0
        %5249 = vmatprep.subr.mxu0 0.0
        %5250 = vmatpush1.msra.mxu0 0.0
        %5251 = vmatprep.subr.mxu0 0.0
        %5252 = vmatpush1.msra.mxu0 0.0
        %5253 = vmatprep.subr.mxu0 0.0
        %5254 = vmatpush1.msra.mxu0 0.0
        %5255 = vmatprep.subr.mxu0 0.0
        %5256 = vmatpush1.msra.mxu0 0.0
        %5257 = vmatprep.subr.mxu0 0.0
        %5258 = vmatpush1.msra.mxu0 0.0
        %5259 = vmatprep.subr.mxu0 0.0
        %5260 = vmatpush1.msra.mxu0 0.0
        %5261 = vmatprep.subr.mxu0 0.0
        %5262 = vmatpush1.msra.mxu0 0.0
        %5263 = vmatprep.subr.mxu0 0.0
        %5264 = vmatpush1.msra.mxu0 0.0
        %5265 = vmatprep.subr.mxu0 0.0
        %5266 = vmatpush1.msra.mxu0 0.0
        %5267 = vmatprep.subr.mxu0 0.0
        %5268 = vmatpush1.msra.mxu0 0.0
        %5269 = vmatprep.subr.mxu0 0.0
        %5270 = vmatpush1.msra.mxu0 0.0
        %5271 = vmatprep.subr.mxu0 0.0
        %5272 = vmatpush1.msra.mxu0 0.0
        %5273 = vmatprep.mubr.f32.mxu0 %v5204
        %5274 = vmatmul.mubr.f32.gmra.mrb[0].mxu0 %v4925
        %v5275 = vpop.f32.mrb[0].mxu0
        %v5276 = vadd.f32 0.0, %v5275
        %v5277 = vpop.f32.mrb[0].mxu0
        %v5278 = vadd.f32 0.0, %v5277
        %5279 = vmatprep.mubr.f32.mxu0 %v5207
        %5280 = vmatmul.mubr.f32.gmra.mrb[0].mxu0 %v4931
        %v5281 = vpop.f32.mrb[0].mxu0
        %v5282 = vadd.f32 0.0, %v5281
        %v5283 = vpop.f32.mrb[0].mxu0
        %v5284 = vadd.f32 0.0, %v5283
        %5285 = vdwg.mxu0
        %v5286 = vadd.f32 %v5157, %v5276
        %v5287 = vadd.f32 %v5159, %v5278
        %v5288 = vadd.f32 %v5163, %v5282
        %v5289 = vadd.f32 %v5165, %v5284
        %v5290 = vld [vmem:[#allocation23] sm:$0x3]
        %v5292 = vlaneseq
        %v5293 = vshrl.u32 %v5292, 7
        %v5294 = vsub.s32 0, %v5293
        %v5295 = vrot.slane %v5290, %v5294
        %v5296 = vlaneseq
        %v5297 = vshrl.u32 %v5296, 7
        %v5298 = vsub.s32 1, %v5297
        %v5299 = vrot.slane %v5290, %v5298
        %v5302 = vadd.f32 %v5286, %v5295
        %v5303 = vadd.f32 %v5287, %v5299
        %v5304 = vadd.f32 %v5288, %v5295
        %v5305 = vadd.f32 %v5289, %v5299
        %v5306 = vld [vmem:[#allocation25] sm:$0xff]
        %v5307 = vld [vmem:[#allocation25 + $0x8] sm:$0xff]
        %v5308 = vld [vmem:[#allocation25 + $0x10] sm:$0xff]
        %v5309 = vld [vmem:[#allocation25 + $0x18] sm:$0xff]
        %v5310 = vld [vmem:[#allocation25 + $0x20] sm:$0xff]
        %v5311 = vld [vmem:[#allocation25 + $0x28] sm:$0xff]
        %v5312 = vld [vmem:[#allocation25 + $0x30] sm:$0xff]
        %v5313 = vld [vmem:[#allocation25 + $0x38] sm:$0xff]
        %v5314 = vld [vmem:[#allocation25 + $0x40] sm:$0xff]
        %v5315 = vld [vmem:[#allocation25 + $0x48] sm:$0xff]
        %v5316 = vld [vmem:[#allocation25 + $0x50] sm:$0xff]
        %v5317 = vld [vmem:[#allocation25 + $0x58] sm:$0xff]
        %v5318 = vld [vmem:[#allocation25 + $0x60] sm:$0xff]
        %v5319 = vld [vmem:[#allocation25 + $0x68] sm:$0xff]
        %v5320 = vld [vmem:[#allocation25 + $0x70] sm:$0xff]
        %v5321 = vld [vmem:[#allocation25 + $0x78] sm:$0xff]
        %v5322 = vld [vmem:[#allocation25 + $0x80] sm:$0xff]
        %v5323 = vld [vmem:[#allocation25 + $0x88] sm:$0xff]
        %v5324 = vld [vmem:[#allocation25 + $0x90] sm:$0xff]
        %v5325 = vld [vmem:[#allocation25 + $0x98] sm:$0xff]
        %v5326 = vld [vmem:[#allocation25 + $0xa0] sm:$0xff]
        %v5327 = vld [vmem:[#allocation25 + $0xa8] sm:$0xff]
        %v5328 = vld [vmem:[#allocation25 + $0xb0] sm:$0xff]
        %v5329 = vld [vmem:[#allocation25 + $0xb8] sm:$0xff]
        %v5330 = vld [vmem:[#allocation25 + $0xc0] sm:$0xff]
        %v5331 = vld [vmem:[#allocation25 + $0xc8] sm:$0xff]
        %v5332 = vld [vmem:[#allocation25 + $0xd0] sm:$0xff]
        %v5333 = vld [vmem:[#allocation25 + $0xd8] sm:$0xff]
        %v5334 = vld [vmem:[#allocation26] sm:$0xff]
        %v5335 = vld [vmem:[#allocation26 + $0x8] sm:$0xff]
        %v5336 = vld [vmem:[#allocation26 + $0x10] sm:$0xff]
        %v5337 = vld [vmem:[#allocation26 + $0x18] sm:$0xff]
        %v5338 = vld [vmem:[#allocation26 + $0x20] sm:$0xff]
        %v5339 = vld [vmem:[#allocation26 + $0x28] sm:$0xff]
        %v5340 = vld [vmem:[#allocation26 + $0x30] sm:$0xff]
        %v5341 = vld [vmem:[#allocation26 + $0x38] sm:$0xff]
        %v5342 = vld [vmem:[#allocation26 + $0x40] sm:$0xff]
        %v5343 = vld [vmem:[#allocation26 + $0x48] sm:$0xff]
        %v5344 = vld [vmem:[#allocation26 + $0x50] sm:$0xff]
        %v5345 = vld [vmem:[#allocation26 + $0x58] sm:$0xff]
        %v5346 = vld [vmem:[#allocation26 + $0x60] sm:$0xff]
        %v5347 = vld [vmem:[#allocation26 + $0x68] sm:$0xff]
        %v5348 = vld [vmem:[#allocation26 + $0x70] sm:$0xff]
        %v5349 = vld [vmem:[#allocation26 + $0x78] sm:$0xff]
        %v5350 = vld [vmem:[#allocation26 + $0x80] sm:$0xff]
        %v5351 = vld [vmem:[#allocation26 + $0x88] sm:$0xff]
        %v5352 = vld [vmem:[#allocation26 + $0x90] sm:$0xff]
        %v5353 = vld [vmem:[#allocation26 + $0x98] sm:$0xff]
        %v5354 = vld [vmem:[#allocation26 + $0xa0] sm:$0xff]
        %v5355 = vld [vmem:[#allocation26 + $0xa8] sm:$0xff]
        %v5356 = vld [vmem:[#allocation26 + $0xb0] sm:$0xff]
        %v5357 = vld [vmem:[#allocation26 + $0xb8] sm:$0xff]
        %v5358 = vld [vmem:[#allocation26 + $0xc0] sm:$0xff]
        %v5359 = vld [vmem:[#allocation26 + $0xc8] sm:$0xff]
        %v5360 = vld [vmem:[#allocation26 + $0xd0] sm:$0xff]
        %v5361 = vld [vmem:[#allocation26 + $0xd8] sm:$0xff]
        %5366 = vrot.lane.b32.xlu0 %v5302, 96
        %v5367 = vpop.permute.xlu0 %5366
        %5368 = vrot.lane.b32.xlu0 %v5303, 96
        %v5369 = vpop.permute.xlu0 %5368
        %5370 = vrot.lane.b32.xlu0 %v5304, 96
        %v5371 = vpop.permute.xlu0 %5370
        %5372 = vrot.lane.b32.xlu0 %v5305, 96
        %v5373 = vpop.permute.xlu0 %5372
        %v5374 = vsel %vm2420, %v5367, %v5369
        %v5375 = vsel %vm2420, %v5371, %v5373
        %v5376 = vsel %vm1925, %v5374, 0
        %v5378 = vsel %vm1925, %v5375, 0
        %5380 = vmatprep.subr.mxu0 %v5335
        %5381 = vmatpush1.msra.mxu0 %v5334
        %5382 = vmatprep.subr.mxu0 %v5337
        %5383 = vmatpush1.msra.mxu0 %v5336
        %5384 = vmatprep.subr.mxu0 %v5339
        %5385 = vmatpush1.msra.mxu0 %v5338
        %5386 = vmatprep.subr.mxu0 %v5341
        %5387 = vmatpush1.msra.mxu0 %v5340
        %5388 = vmatprep.subr.mxu0 %v5343
        %5389 = vmatpush1.msra.mxu0 %v5342
        %5390 = vmatprep.subr.mxu0 %v5345
        %5391 = vmatpush1.msra.mxu0 %v5344
        %5392 = vmatprep.subr.mxu0 %v5347
        %5393 = vmatpush1.msra.mxu0 %v5346
        %5394 = vmatprep.subr.mxu0 %v5349
        %5395 = vmatpush1.msra.mxu0 %v5348
        %5396 = vmatprep.subr.mxu0 %v5351
        %5397 = vmatpush1.msra.mxu0 %v5350
        %5398 = vmatprep.subr.mxu0 %v5353
        %5399 = vmatpush1.msra.mxu0 %v5352
        %5400 = vmatprep.subr.mxu0 %v5355
        %5401 = vmatpush1.msra.mxu0 %v5354
        %5402 = vmatprep.subr.mxu0 %v5357
        %5403 = vmatpush1.msra.mxu0 %v5356
        %5404 = vmatprep.subr.mxu0 %v5359
        %5405 = vmatpush1.msra.mxu0 %v5358
        %5406 = vmatprep.subr.mxu0 %v5361
        %5407 = vmatpush1.msra.mxu0 %v5360
        %5408 = vmatprep.subr.mxu0 0.0
        %5409 = vmatpush1.msra.mxu0 0.0
        %5410 = vmatprep.subr.mxu0 0.0
        %5411 = vmatpush1.msra.mxu0 0.0
        %5412 = vmatprep.subr.mxu0 0.0
        %5413 = vmatpush1.msra.mxu0 0.0
        %5414 = vmatprep.subr.mxu0 0.0
        %5415 = vmatpush1.msra.mxu0 0.0
        %5416 = vmatprep.subr.mxu0 0.0
        %5417 = vmatpush1.msra.mxu0 0.0
        %5418 = vmatprep.subr.mxu0 0.0
        %5419 = vmatpush1.msra.mxu0 0.0
        %5420 = vmatprep.subr.mxu0 0.0
        %5421 = vmatpush1.msra.mxu0 0.0
        %5422 = vmatprep.subr.mxu0 0.0
        %5423 = vmatpush1.msra.mxu0 0.0
        %5424 = vmatprep.subr.mxu0 0.0
        %5425 = vmatpush1.msra.mxu0 0.0
        %5426 = vmatprep.subr.mxu0 0.0
        %5427 = vmatpush1.msra.mxu0 0.0
        %5428 = vmatprep.subr.mxu0 0.0
        %5429 = vmatpush1.msra.mxu0 0.0
        %5430 = vmatprep.subr.mxu0 0.0
        %5431 = vmatpush1.msra.mxu0 0.0
        %5432 = vmatprep.subr.mxu0 0.0
        %5433 = vmatpush1.msra.mxu0 0.0
        %5434 = vmatprep.subr.mxu0 0.0
        %5435 = vmatpush1.msra.mxu0 0.0
        %5436 = vmatprep.subr.mxu0 0.0
        %5437 = vmatpush1.msra.mxu0 0.0
        %5438 = vmatprep.subr.mxu0 0.0
        %5439 = vmatpush1.msra.mxu0 0.0
        %5440 = vmatprep.subr.mxu0 0.0
        %5441 = vmatpush1.msra.mxu0 0.0
        %5442 = vmatprep.subr.mxu0 0.0
        %5443 = vmatpush1.msra.mxu0 0.0
        %5444 = vmatprep.mubr.f32.mxu0 0.0
        %5445 = vmatmul.mubr.f32.gmra.mrb[0].mxu0 %v5376
        %v5446 = vpop.f32.mrb[0].mxu0
        %v5447 = vadd.f32 0.0, %v5446
        %v5448 = vpop.f32.mrb[0].mxu0
        %v5449 = vadd.f32 0.0, %v5448
        %5450 = vmatprep.mubr.f32.mxu0 0.0
        %5451 = vmatmul.mubr.f32.gmra.mrb[0].mxu0 %v5378
        %v5452 = vpop.f32.mrb[0].mxu0
        %v5453 = vadd.f32 0.0, %v5452
        %v5454 = vpop.f32.mrb[0].mxu0
        %v5455 = vadd.f32 0.0, %v5454
        %5456 = vdwg.mxu0
        %v5457 = vsel %vm1925, %v5302, 0
        %v5459 = vsel %vm1925, %v5304, 0
        %5461 = vmatprep.subr.mxu0 %v5307
        %5462 = vmatpush1.msra.mxu0 %v5306
        %5463 = vmatprep.subr.mxu0 %v5309
        %5464 = vmatpush1.msra.mxu0 %v5308
        %5465 = vmatprep.subr.mxu0 %v5311
        %5466 = vmatpush1.msra.mxu0 %v5310
        %5467 = vmatprep.subr.mxu0 %v5313
        %5468 = vmatpush1.msra.mxu0 %v5312
        %5469 = vmatprep.subr.mxu0 %v5315
        %5470 = vmatpush1.msra.mxu0 %v5314
        %5471 = vmatprep.subr.mxu0 %v5317
        %5472 = vmatpush1.msra.mxu0 %v5316
        %5473 = vmatprep.subr.mxu0 %v5319
        %5474 = vmatpush1.msra.mxu0 %v5318
        %5475 = vmatprep.subr.mxu0 %v5321
        %5476 = vmatpush1.msra.mxu0 %v5320
        %5477 = vmatprep.subr.mxu0 %v5323
        %5478 = vmatpush1.msra.mxu0 %v5322
        %5479 = vmatprep.subr.mxu0 %v5325
        %5480 = vmatpush1.msra.mxu0 %v5324
        %5481 = vmatprep.subr.mxu0 %v5327
        %5482 = vmatpush1.msra.mxu0 %v5326
        %5483 = vmatprep.subr.mxu0 %v5329
        %5484 = vmatpush1.msra.mxu0 %v5328
        %5485 = vmatprep.subr.mxu0 %v5331
        %5486 = vmatpush1.msra.mxu0 %v5330
        %5487 = vmatprep.subr.mxu0 %v5333
        %5488 = vmatpush1.msra.mxu0 %v5332
        %5489 = vmatprep.subr.mxu0 0.0
        %5490 = vmatpush1.msra.mxu0 0.0
        %5491 = vmatprep.subr.mxu0 0.0
        %5492 = vmatpush1.msra.mxu0 0.0
        %5493 = vmatprep.subr.mxu0 0.0
        %5494 = vmatpush1.msra.mxu0 0.0
        %5495 = vmatprep.subr.mxu0 0.0
        %5496 = vmatpush1.msra.mxu0 0.0
        %5497 = vmatprep.subr.mxu0 0.0
        %5498 = vmatpush1.msra.mxu0 0.0
        %5499 = vmatprep.subr.mxu0 0.0
        %5500 = vmatpush1.msra.mxu0 0.0
        %5501 = vmatprep.subr.mxu0 0.0
        %5502 = vmatpush1.msra.mxu0 0.0
        %5503 = vmatprep.subr.mxu0 0.0
        %5504 = vmatpush1.msra.mxu0 0.0
        %5505 = vmatprep.subr.mxu0 0.0
        %5506 = vmatpush1.msra.mxu0 0.0
        %5507 = vmatprep.subr.mxu0 0.0
        %5508 = vmatpush1.msra.mxu0 0.0
        %5509 = vmatprep.subr.mxu0 0.0
        %5510 = vmatpush1.msra.mxu0 0.0
        %5511 = vmatprep.subr.mxu0 0.0
        %5512 = vmatpush1.msra.mxu0 0.0
        %5513 = vmatprep.subr.mxu0 0.0
        %5514 = vmatpush1.msra.mxu0 0.0
        %5515 = vmatprep.subr.mxu0 0.0
        %5516 = vmatpush1.msra.mxu0 0.0
        %5517 = vmatprep.subr.mxu0 0.0
        %5518 = vmatpush1.msra.mxu0 0.0
        %5519 = vmatprep.subr.mxu0 0.0
        %5520 = vmatpush1.msra.mxu0 0.0
        %5521 = vmatprep.subr.mxu0 0.0
        %5522 = vmatpush1.msra.mxu0 0.0
        %5523 = vmatprep.subr.mxu0 0.0
        %5524 = vmatpush1.msra.mxu0 0.0
        %5525 = vmatprep.mubr.f32.mxu0 0.0
        %5526 = vmatmul.mubr.f32.gmra.mrb[0].mxu0 %v5457
        %v5527 = vpop.f32.mrb[0].mxu0
        %v5528 = vadd.f32 %v5447, %v5527
        %v5529 = vpop.f32.mrb[0].mxu0
        %v5530 = vadd.f32 %v5449, %v5529
        %5531 = vmatprep.mubr.f32.mxu0 0.0
        %5532 = vmatmul.mubr.f32.gmra.mrb[0].mxu0 %v5459
        %v5533 = vpop.f32.mrb[0].mxu0
        %v5534 = vadd.f32 %v5453, %v5533
        %v5535 = vpop.f32.mrb[0].mxu0
        %v5536 = vadd.f32 %v5455, %v5535
        %5537 = vdwg.mxu0
        %v5538 = vld [vmem:[#allocation28] sm:$0x3]
        %v5540 = vlaneseq
        %v5541 = vshrl.u32 %v5540, 7
        %v5542 = vsub.s32 0, %v5541
        %v5543 = vrot.slane %v5538, %v5542
        %v5544 = vlaneseq
        %v5545 = vshrl.u32 %v5544, 7
        %v5546 = vsub.s32 1, %v5545
        %v5547 = vrot.slane %v5538, %v5546
        %v5550 = vadd.f32 %v5528, %v5543
        %v5551 = vadd.f32 %v5530, %v5547
        %v5552 = vadd.f32 %v5534, %v5543
        %v5553 = vadd.f32 %v5536, %v5547
        %v5554 = vtanh.pop %v5550
        %v5555 = vtanh.pop %v5552
        %v5556 = vmul.f32 %v5550, 0.5
        %v5557 = vmul.f32 %v5551, 0.5
        %v5558 = vmul.f32 %v5552, 0.5
        %v5559 = vmul.f32 %v5553, 0.5
        %v5560 = vtanh.pop %v5556
        %v5561 = vtanh.pop %v5557
        %v5562 = vtanh.pop %v5558
        %v5563 = vtanh.pop %v5559
        %v5564 = vadd.f32 %v5560, 1.0
        %v5565 = vadd.f32 %v5561, 1.0
        %v5566 = vadd.f32 %v5562, 1.0
        %v5567 = vadd.f32 %v5563, 1.0
        %v5568 = vmul.f32 %v5564, 0.5
        %v5569 = vmul.f32 %v5565, 0.5
        %v5570 = vmul.f32 %v5566, 0.5
        %v5571 = vmul.f32 %v5567, 0.5
        %5576 = vrot.lane.b32.xlu0 %v5568, 16
        %v5577 = vpop.permute.xlu0 %5576
        %5578 = vrot.lane.b32.xlu0 %v5569, 16
        %v5579 = vpop.permute.xlu0 %5578
        %5580 = vrot.lane.b32.xlu0 %v5570, 16
        %v5581 = vpop.permute.xlu0 %5580
        %5582 = vrot.lane.b32.xlu0 %v5571, 16
        %v5583 = vpop.permute.xlu0 %5582
        %v5584 = vsel %vm1471, %v5577, %v5579
        %v5585 = vsel %vm1471, %v5581, %v5583
        %v5588 = vmul.f32 %v5554, %v5584
        %v5589 = vmul.f32 %v5555, %v5585
        %v5590 = vld [vmem:[%s61] sm:$0xff]
        %v5591 = vld [vmem:[%s61 + $0x8] sm:$0xff]
        %v5592 = vld [vmem:[%s61 + $0x10] sm:$0xff]
        %v5593 = vld [vmem:[%s61 + $0x18] sm:$0xff]
        %v5594 = vld [vmem:[%s61 + $0x20] sm:$0xff]
        %v5595 = vld [vmem:[%s61 + $0x28] sm:$0xff]
        %v5596 = vld [vmem:[%s61 + $0x30] sm:$0xff]
        %v5597 = vld [vmem:[%s61 + $0x38] sm:$0xff]
        %v5598 = vld [vmem:[%s61 + $0x40] sm:$0xff]
        %v5599 = vld [vmem:[%s61 + $0x48] sm:$0xff]
        %v5600 = vld [vmem:[%s61 + $0x50] sm:$0xff]
        %v5601 = vld [vmem:[%s61 + $0x58] sm:$0xff]
        %v5602 = vld [vmem:[%s61 + $0x60] sm:$0xff]
        %v5603 = vld [vmem:[%s61 + $0x68] sm:$0xff]
        %v5604 = vld [vmem:[#allocation29] sm:$0x1]
        %v5606 = vlaneseq
        %v5607 = vshrl.u32 %v5606, 7
        %v5608 = vsub.s32 0, %v5607
        %v5609 = vrot.slane %v5604, %v5608
        %v5612 = vsel %vm1925, %v5588, 0
        %v5615 = vsel %vm1925, %v5589, 0
        %5617 = vmatprep.subr.mxu0 0.0
        %5618 = vmatpush1.msra.mxu0 %v5590
        %5619 = vmatprep.subr.mxu0 0.0
        %5620 = vmatpush1.msra.mxu0 %v5591
        %5621 = vmatprep.subr.mxu0 0.0
        %5622 = vmatpush1.msra.mxu0 %v5592
        %5623 = vmatprep.subr.mxu0 0.0
        %5624 = vmatpush1.msra.mxu0 %v5593
        %5625 = vmatprep.subr.mxu0 0.0
        %5626 = vmatpush1.msra.mxu0 %v5594
        %5627 = vmatprep.subr.mxu0 0.0
        %5628 = vmatpush1.msra.mxu0 %v5595
        %5629 = vmatprep.subr.mxu0 0.0
        %5630 = vmatpush1.msra.mxu0 %v5596
        %5631 = vmatprep.subr.mxu0 0.0
        %5632 = vmatpush1.msra.mxu0 %v5597
        %5633 = vmatprep.subr.mxu0 0.0
        %5634 = vmatpush1.msra.mxu0 %v5598
        %5635 = vmatprep.subr.mxu0 0.0
        %5636 = vmatpush1.msra.mxu0 %v5599
        %5637 = vmatprep.subr.mxu0 0.0
        %5638 = vmatpush1.msra.mxu0 %v5600
        %5639 = vmatprep.subr.mxu0 0.0
        %5640 = vmatpush1.msra.mxu0 %v5601
        %5641 = vmatprep.subr.mxu0 0.0
        %5642 = vmatpush1.msra.mxu0 %v5602
        %5643 = vmatprep.subr.mxu0 0.0
        %5644 = vmatpush1.msra.mxu0 %v5603
        %5645 = vmatprep.subr.mxu0 0.0
        %5646 = vmatpush1.msra.mxu0 0.0
        %5647 = vmatprep.subr.mxu0 0.0
        %5648 = vmatpush1.msra.mxu0 0.0
        %5649 = vmatprep.subr.mxu0 0.0
        %5650 = vmatpush1.msra.mxu0 0.0
        %5651 = vmatprep.subr.mxu0 0.0
        %5652 = vmatpush1.msra.mxu0 0.0
        %5653 = vmatprep.subr.mxu0 0.0
        %5654 = vmatpush1.msra.mxu0 0.0
        %5655 = vmatprep.subr.mxu0 0.0
        %5656 = vmatpush1.msra.mxu0 0.0
        %5657 = vmatprep.subr.mxu0 0.0
        %5658 = vmatpush1.msra.mxu0 0.0
        %5659 = vmatprep.subr.mxu0 0.0
        %5660 = vmatpush1.msra.mxu0 0.0
        %5661 = vmatprep.subr.mxu0 0.0
        %5662 = vmatpush1.msra.mxu0 0.0
        %5663 = vmatprep.subr.mxu0 0.0
        %5664 = vmatpush1.msra.mxu0 0.0
        %5665 = vmatprep.subr.mxu0 0.0
        %5666 = vmatpush1.msra.mxu0 0.0
        %5667 = vmatprep.subr.mxu0 0.0
        %5668 = vmatpush1.msra.mxu0 0.0
        %5669 = vmatprep.subr.mxu0 0.0
        %5670 = vmatpush1.msra.mxu0 0.0
        %5671 = vmatprep.subr.mxu0 0.0
        %5672 = vmatpush1.msra.mxu0 0.0
        %5673 = vmatprep.subr.mxu0 0.0
        %5674 = vmatpush1.msra.mxu0 0.0
        %5675 = vmatprep.subr.mxu0 0.0
        %5676 = vmatpush1.msra.mxu0 0.0
        %5677 = vmatprep.subr.mxu0 0.0
        %5678 = vmatpush1.msra.mxu0 0.0
        %5679 = vmatprep.subr.mxu0 0.0
        %5680 = vmatpush1.msra.mxu0 0.0
        %5681 = vmatprep.mubr.f32.mxu0 0.0
        %5682 = vmatmul.mubr.f32.gmra.mrb[0].mxu0 %v5612
        %v5683 = vpop.f32.mrb[0].mxu0
        %v5684 = vadd.f32 %v5609, %v5683
        %v5685 = vpop.f32.mrb[0].mxu0
        %5686 = vmatprep.mubr.f32.mxu0 0.0
        %5687 = vmatmul.mubr.f32.gmra.mrb[0].mxu0 %v5615
        %v5688 = vpop.f32.mrb[0].mxu0
        %v5689 = vadd.f32 %v5609, %v5688
        %v5690 = vpop.f32.mrb[0].mxu0
        %5691 = vdwg.mxu0
        %5694 = vrot.lane.b32.xlu0 %v5684, 120
        %v5695 = vpop.permute.xlu0 %5694
        %5696 = vrot.lane.b32.xlu0 %v5689, 120
        %v5697 = vpop.permute.xlu0 %5696
        %vm5700 = vcmask 1048512
        %5701 = vst.msk [vmem:[#allocation2 + $0x8] sm:$0xff] %vm5700, %v5695
        %5702 = vst.msk [vmem:[#allocation2 + $0x10] sm:$0xff] %vm3622, %v5695
        %5703 = vst.msk [vmem:[#allocation2 + $0x20] sm:$0xff] %vm5700, %v5697
        %5704 = vst.msk [vmem:[#allocation2 + $0x28] sm:$0xff] %vm3622, %v5697
        %v5705 = vld [vmem:[#allocation2] sm:$0xff]
        %v5706 = vld [vmem:[#allocation2 + $0x8] sm:$0xff]
        %v5707 = vld [vmem:[#allocation2 + $0x10] sm:$0xff]
        %v5708 = vld [vmem:[#allocation2 + $0x18] sm:$0xff]
        %v5709 = vld [vmem:[#allocation2 + $0x20] sm:$0xff]
        %v5710 = vld [vmem:[#allocation2 + $0x28] sm:$0xff]
        %v5711 = vmax.f32 %v5705, 0.0
        %v5712 = vmax.f32 %v5706, 0.0
        %v5713 = vmax.f32 %v5707, 0.0
        %v5714 = vmax.f32 %v5708, 0.0
        %v5715 = vmax.f32 %v5709, 0.0
        %v5716 = vmax.f32 %v5710, 0.0
        %v5717 = vld [vmem:[%s69] sm:$0xff]
        %v5718 = vld [vmem:[%s69 + $0x8] sm:$0xff]
        %v5719 = vld [vmem:[%s69 + $0x10] sm:$0xff]
        %v5720 = vld [vmem:[%s69 + $0x18] sm:$0xff]
        %v5721 = vld [vmem:[%s69 + $0x20] sm:$0xff]
        %v5722 = vld [vmem:[%s69 + $0x28] sm:$0xff]
        %v5723 = vld [vmem:[%s69 + $0x30] sm:$0xff]
        %v5724 = vld [vmem:[%s69 + $0x38] sm:$0xff]
        %v5725 = vld [vmem:[%s69 + $0x40] sm:$0xff]
        %v5726 = vld [vmem:[%s69 + $0x48] sm:$0xff]
        %v5727 = vld [vmem:[%s69 + $0x50] sm:$0xff]
        %v5728 = vld [vmem:[%s69 + $0x58] sm:$0xff]
        %v5729 = vld [vmem:[%s69 + $0x60] sm:$0xff]
        %v5730 = vld [vmem:[%s69 + $0x68] sm:$0xff]
        %v5731 = vld [vmem:[%s69 + $0x70] sm:$0xff]
        %v5732 = vld [vmem:[%s69 + $0x78] sm:$0xff]
        %v5733 = vld [vmem:[%s69 + $0x80] sm:$0xff]
        %v5734 = vld [vmem:[%s69 + $0x88] sm:$0xff]
        %v5735 = vld [vmem:[%s69 + $0x90] sm:$0xff]
        %v5736 = vld [vmem:[%s69 + $0x98] sm:$0xff]
        %v5737 = vld [vmem:[%s69 + $0xa0] sm:$0xff]
        %v5738 = vld [vmem:[%s69 + $0xa8] sm:$0xff]
        %v5739 = vld [vmem:[%s69 + $0xb0] sm:$0xff]
        %v5740 = vld [vmem:[%s69 + $0xb8] sm:$0xff]
        %v5741 = vld [vmem:[%s69 + $0xc0] sm:$0xff]
        %v5742 = vld [vmem:[%s69 + $0xc8] sm:$0xff]
        %v5743 = vld [vmem:[%s69 + $0xd0] sm:$0xff]
        %v5744 = vld [vmem:[%s69 + $0xd8] sm:$0xff]
        %v5745 = vld [vmem:[%s69 + $0xe0] sm:$0xff]
        %v5746 = vld [vmem:[%s69 + $0xe8] sm:$0xff]
        %v5747 = vld [vmem:[%s69 + $0xf0] sm:$0xff]
        %v5748 = vld [vmem:[%s69 + $0xf8] sm:$0xff]
        %v5749 = vld [vmem:[%s69 + $0x100] sm:$0xff]
        %v5750 = vld [vmem:[%s69 + $0x108] sm:$0xff]
        %v5751 = vld [vmem:[%s69 + $0x110] sm:$0xff]
        %v5752 = vld [vmem:[%s69 + $0x118] sm:$0xff]
        %v5753 = vld [vmem:[%s69 + $0x120] sm:$0xff]
        %v5754 = vld [vmem:[%s69 + $0x128] sm:$0xff]
        %v5755 = vld [vmem:[%s69 + $0x130] sm:$0xff]
        %v5756 = vld [vmem:[%s69 + $0x138] sm:$0xff]
        %v5757 = vld [vmem:[%s69 + $0x140] sm:$0xff]
        %v5758 = vld [vmem:[%s69 + $0x148] sm:$0xff]
        %v5759 = vld [vmem:[%s69 + $0x150] sm:$0xff]
        %v5760 = vld [vmem:[%s69 + $0x158] sm:$0xff]
        %v5761 = vld [vmem:[%s69 + $0x160] sm:$0xff]
        %v5762 = vld [vmem:[%s69 + $0x168] sm:$0xff]
        %v5763 = vld [vmem:[%s69 + $0x170] sm:$0xff]
        %v5764 = vld [vmem:[%s69 + $0x178] sm:$0xff]
        %v5765 = vld [vmem:[%s69 + $0x180] sm:$0xff]
        %v5766 = vld [vmem:[%s69 + $0x188] sm:$0xff]
        %v5767 = vld [vmem:[%s69 + $0x190] sm:$0xff]
        %v5768 = vld [vmem:[%s69 + $0x198] sm:$0xff]
        %v5769 = vld [vmem:[%s69 + $0x1a0] sm:$0xff]
        %v5770 = vld [vmem:[%s69 + $0x1a8] sm:$0xff]
        %v5771 = vld [vmem:[%s69 + $0x1b0] sm:$0xff]
        %v5772 = vld [vmem:[%s69 + $0x1b8] sm:$0xff]
        %v5773 = vld [vmem:[%s69 + $0x1c0] sm:$0xff]
        %v5774 = vld [vmem:[%s69 + $0x1c8] sm:$0xff]
        %v5775 = vld [vmem:[%s69 + $0x1d0] sm:$0xff]
        %v5776 = vld [vmem:[%s69 + $0x1d8] sm:$0xff]
        %v5777 = vld [vmem:[%s69 + $0x1e0] sm:$0xff]
        %v5778 = vld [vmem:[%s69 + $0x1e8] sm:$0xff]
        %v5779 = vld [vmem:[%s69 + $0x1f0] sm:$0xff]
        %v5780 = vld [vmem:[%s69 + $0x1f8] sm:$0xff]
        %v5781 = vld [vmem:[%s69 + $0x200] sm:$0xff]
        %v5782 = vld [vmem:[%s69 + $0x208] sm:$0xff]
        %v5783 = vld [vmem:[%s69 + $0x210] sm:$0xff]
        %v5784 = vld [vmem:[%s69 + $0x218] sm:$0xff]
        %v5785 = vld [vmem:[%s69 + $0x220] sm:$0xff]
        %v5786 = vld [vmem:[%s69 + $0x228] sm:$0xff]
        %v5787 = vld [vmem:[%s69 + $0x230] sm:$0xff]
        %v5788 = vld [vmem:[%s69 + $0x238] sm:$0xff]
        %v5789 = vld [vmem:[%s69 + $0x240] sm:$0xff]
        %v5790 = vld [vmem:[%s69 + $0x248] sm:$0xff]
        %v5791 = vld [vmem:[%s69 + $0x250] sm:$0xff]
        %v5792 = vld [vmem:[%s69 + $0x258] sm:$0xff]
        %v5793 = vld [vmem:[%s69 + $0x260] sm:$0xff]
        %v5794 = vld [vmem:[%s69 + $0x268] sm:$0xff]
        %v5795 = vld [vmem:[%s69 + $0x270] sm:$0xff]
        %v5796 = vld [vmem:[%s69 + $0x278] sm:$0xff]
        %v5797 = vld [vmem:[%s69 + $0x280] sm:$0xff]
        %v5798 = vld [vmem:[%s69 + $0x288] sm:$0xff]
        %v5799 = vld [vmem:[%s69 + $0x290] sm:$0xff]
        %v5800 = vld [vmem:[%s69 + $0x298] sm:$0xff]
        %v5801 = vld [vmem:[%s69 + $0x2a0] sm:$0xff]
        %v5802 = vld [vmem:[%s69 + $0x2a8] sm:$0xff]
        %v5803 = vld [vmem:[%s69 + $0x2b0] sm:$0xff]
        %v5804 = vld [vmem:[%s69 + $0x2b8] sm:$0xff]
        %v5805 = vld [vmem:[%s69 + $0x2c0] sm:$0xff]
        %v5806 = vld [vmem:[%s69 + $0x2c8] sm:$0xff]
        %v5807 = vld [vmem:[%s69 + $0x2d0] sm:$0xff]
        %v5808 = vld [vmem:[%s69 + $0x2d8] sm:$0xff]
        %v5809 = vld [vmem:[%s69 + $0x2e0] sm:$0xff]
        %v5810 = vld [vmem:[%s69 + $0x2e8] sm:$0xff]
        %v5811 = vld [vmem:[%s69 + $0x2f0] sm:$0xff]
        %v5812 = vld [vmem:[%s69 + $0x2f8] sm:$0xff]
        %v5813 = vld [vmem:[%s69 + $0x300] sm:$0xff]
        %v5814 = vld [vmem:[%s69 + $0x308] sm:$0xff]
        %v5815 = vld [vmem:[%s69 + $0x310] sm:$0xff]
        %v5816 = vld [vmem:[%s69 + $0x318] sm:$0xff]
        %v5817 = vld [vmem:[%s69 + $0x320] sm:$0xff]
        %v5818 = vld [vmem:[%s69 + $0x328] sm:$0xff]
        %v5819 = vld [vmem:[%s69 + $0x330] sm:$0xff]
        %v5820 = vld [vmem:[%s69 + $0x338] sm:$0xff]
        %v5821 = vld [vmem:[%s69 + $0x340] sm:$0xff]
        %v5822 = vld [vmem:[%s69 + $0x348] sm:$0xff]
        %v5823 = vld [vmem:[%s69 + $0x350] sm:$0xff]
        %v5824 = vld [vmem:[%s69 + $0x358] sm:$0xff]
        %v5825 = vld [vmem:[%s69 + $0x360] sm:$0xff]
        %v5826 = vld [vmem:[%s69 + $0x368] sm:$0xff]
        %v5827 = vld [vmem:[%s69 + $0x370] sm:$0xff]
        %v5828 = vld [vmem:[%s69 + $0x378] sm:$0xff]
        %v5829 = vld [vmem:[%s69 + $0x380] sm:$0xff]
        %v5830 = vld [vmem:[%s69 + $0x388] sm:$0xff]
        %v5831 = vld [vmem:[#allocation34] sm:$0x7]
        %v5833 = vlaneseq
        %v5834 = vshrl.u32 %v5833, 7
        %v5835 = vsub.s32 0, %v5834
        %v5836 = vrot.slane %v5831, %v5835
        %v5837 = vlaneseq
        %v5838 = vshrl.u32 %v5837, 7
        %v5839 = vsub.s32 1, %v5838
        %v5840 = vrot.slane %v5831, %v5839
        %v5841 = vlaneseq
        %v5842 = vshrl.u32 %v5841, 7
        %v5843 = vsub.s32 2, %v5842
        %v5844 = vrot.slane %v5831, %v5843
        %v5849 = vsel %vm3622, %v5713, 0
        %v5852 = vsel %vm3622, %v5716, 0
        %5854 = vmatprep.subr.mxu0 %v5718
        %5855 = vmatpush1.msra.mxu0 %v5717
        %5856 = vmatprep.subr.mxu0 %v5721
        %5857 = vmatpush1.msra.mxu0 %v5720
        %5858 = vmatprep.subr.mxu0 %v5724
        %5859 = vmatpush1.msra.mxu0 %v5723
        %5860 = vmatprep.subr.mxu0 %v5727
        %5861 = vmatpush1.msra.mxu0 %v5726
        %5862 = vmatprep.subr.mxu0 %v5730
        %5863 = vmatpush1.msra.mxu0 %v5729
        %5864 = vmatprep.subr.mxu0 %v5733
        %5865 = vmatpush1.msra.mxu0 %v5732
        %5866 = vmatprep.subr.mxu0 %v5736
        %5867 = vmatpush1.msra.mxu0 %v5735
        %5868 = vmatprep.subr.mxu0 %v5739
        %5869 = vmatpush1.msra.mxu0 %v5738
        %5870 = vmatprep.subr.mxu0 %v5742
        %5871 = vmatpush1.msra.mxu0 %v5741
        %5872 = vmatprep.subr.mxu0 %v5745
        %5873 = vmatpush1.msra.mxu0 %v5744
        %5874 = vmatprep.subr.mxu0 %v5748
        %5875 = vmatpush1.msra.mxu0 %v5747
        %5876 = vmatprep.subr.mxu0 %v5751
        %5877 = vmatpush1.msra.mxu0 %v5750
        %5878 = vmatprep.subr.mxu0 %v5754
        %5879 = vmatpush1.msra.mxu0 %v5753
        %5880 = vmatprep.subr.mxu0 %v5757
        %5881 = vmatpush1.msra.mxu0 %v5756
        %5882 = vmatprep.subr.mxu0 %v5760
        %5883 = vmatpush1.msra.mxu0 %v5759
        %5884 = vmatprep.subr.mxu0 %v5763
        %5885 = vmatpush1.msra.mxu0 %v5762
        %5886 = vmatprep.subr.mxu0 %v5766
        %5887 = vmatpush1.msra.mxu0 %v5765
        %5888 = vmatprep.subr.mxu0 %v5769
        %5889 = vmatpush1.msra.mxu0 %v5768
        %5890 = vmatprep.subr.mxu0 %v5772
        %5891 = vmatpush1.msra.mxu0 %v5771
        %5892 = vmatprep.subr.mxu0 %v5775
        %5893 = vmatpush1.msra.mxu0 %v5774
        %5894 = vmatprep.subr.mxu0 %v5778
        %5895 = vmatpush1.msra.mxu0 %v5777
        %5896 = vmatprep.subr.mxu0 %v5781
        %5897 = vmatpush1.msra.mxu0 %v5780
        %5898 = vmatprep.subr.mxu0 %v5784
        %5899 = vmatpush1.msra.mxu0 %v5783
        %5900 = vmatprep.subr.mxu0 %v5787
        %5901 = vmatpush1.msra.mxu0 %v5786
        %5902 = vmatprep.subr.mxu0 %v5790
        %5903 = vmatpush1.msra.mxu0 %v5789
        %5904 = vmatprep.subr.mxu0 %v5793
        %5905 = vmatpush1.msra.mxu0 %v5792
        %5906 = vmatprep.subr.mxu0 %v5796
        %5907 = vmatpush1.msra.mxu0 %v5795
        %5908 = vmatprep.subr.mxu0 %v5799
        %5909 = vmatpush1.msra.mxu0 %v5798
        %5910 = vmatprep.subr.mxu0 %v5802
        %5911 = vmatpush1.msra.mxu0 %v5801
        %5912 = vmatprep.subr.mxu0 %v5805
        %5913 = vmatpush1.msra.mxu0 %v5804
        %5914 = vmatprep.subr.mxu0 %v5808
        %5915 = vmatpush1.msra.mxu0 %v5807
        %5916 = vmatprep.subr.mxu0 %v5811
        %5917 = vmatpush1.msra.mxu0 %v5810
        %5918 = vmatprep.mubr.f32.mxu0 %v5712
        %5919 = vmatmul.mubr.f32.gmra.mrb[0].mxu0 %v5711
        %v5920 = vpop.f32.mrb[0].mxu0
        %v5921 = vadd.f32 %v5836, %v5920
        %v5922 = vpop.f32.mrb[0].mxu0
        %v5923 = vadd.f32 %v5840, %v5922
        %5924 = vmatprep.mubr.f32.mxu0 %v5715
        %5925 = vmatmul.mubr.f32.gmra.mrb[0].mxu0 %v5714
        %v5926 = vpop.f32.mrb[0].mxu0
        %v5927 = vadd.f32 %v5836, %v5926
        %v5928 = vpop.f32.mrb[0].mxu0
        %v5929 = vadd.f32 %v5840, %v5928
        %5930 = vdwg.mxu0
        %5931 = vmatprep.subr.mxu0 %v5814
        %5932 = vmatpush1.msra.mxu0 %v5813
        %5933 = vmatprep.subr.mxu0 %v5817
        %5934 = vmatpush1.msra.mxu0 %v5816
        %5935 = vmatprep.subr.mxu0 %v5820
        %5936 = vmatpush1.msra.mxu0 %v5819
        %5937 = vmatprep.subr.mxu0 %v5823
        %5938 = vmatpush1.msra.mxu0 %v5822
        %5939 = vmatprep.subr.mxu0 %v5826
        %5940 = vmatpush1.msra.mxu0 %v5825
        %5941 = vmatprep.subr.mxu0 %v5829
        %5942 = vmatpush1.msra.mxu0 %v5828
        %5943 = vmatprep.subr.mxu0 0.0
        %5944 = vmatpush1.msra.mxu0 0.0
        %5945 = vmatprep.subr.mxu0 0.0
        %5946 = vmatpush1.msra.mxu0 0.0
        %5947 = vmatprep.subr.mxu0 0.0
        %5948 = vmatpush1.msra.mxu0 0.0
        %5949 = vmatprep.subr.mxu0 0.0
        %5950 = vmatpush1.msra.mxu0 0.0
        %5951 = vmatprep.subr.mxu0 0.0
        %5952 = vmatpush1.msra.mxu0 0.0
        %5953 = vmatprep.subr.mxu0 0.0
        %5954 = vmatpush1.msra.mxu0 0.0
        %5955 = vmatprep.subr.mxu0 0.0
        %5956 = vmatpush1.msra.mxu0 0.0
        %5957 = vmatprep.subr.mxu0 0.0
        %5958 = vmatpush1.msra.mxu0 0.0
        %5959 = vmatprep.subr.mxu0 0.0
        %5960 = vmatpush1.msra.mxu0 0.0
        %5961 = vmatprep.subr.mxu0 0.0
        %5962 = vmatpush1.msra.mxu0 0.0
        %5963 = vmatprep.subr.mxu0 0.0
        %5964 = vmatpush1.msra.mxu0 0.0
        %5965 = vmatprep.subr.mxu0 0.0
        %5966 = vmatpush1.msra.mxu0 0.0
        %5967 = vmatprep.subr.mxu0 0.0
        %5968 = vmatpush1.msra.mxu0 0.0
        %5969 = vmatprep.subr.mxu0 0.0
        %5970 = vmatpush1.msra.mxu0 0.0
        %5971 = vmatprep.subr.mxu0 0.0
        %5972 = vmatpush1.msra.mxu0 0.0
        %5973 = vmatprep.subr.mxu0 0.0
        %5974 = vmatpush1.msra.mxu0 0.0
        %5975 = vmatprep.subr.mxu0 0.0
        %5976 = vmatpush1.msra.mxu0 0.0
        %5977 = vmatprep.subr.mxu0 0.0
        %5978 = vmatpush1.msra.mxu0 0.0
        %5979 = vmatprep.subr.mxu0 0.0
        %5980 = vmatpush1.msra.mxu0 0.0
        %5981 = vmatprep.subr.mxu0 0.0
        %5982 = vmatpush1.msra.mxu0 0.0
        %5983 = vmatprep.subr.mxu0 0.0
        %5984 = vmatpush1.msra.mxu0 0.0
        %5985 = vmatprep.subr.mxu0 0.0
        %5986 = vmatpush1.msra.mxu0 0.0
        %5987 = vmatprep.subr.mxu0 0.0
        %5988 = vmatpush1.msra.mxu0 0.0
        %5989 = vmatprep.subr.mxu0 0.0
        %5990 = vmatpush1.msra.mxu0 0.0
        %5991 = vmatprep.subr.mxu0 0.0
        %5992 = vmatpush1.msra.mxu0 0.0
        %5993 = vmatprep.subr.mxu0 0.0
        %5994 = vmatpush1.msra.mxu0 0.0
        %5995 = vmatprep.mubr.f32.mxu0 0.0
        %5996 = vmatmul.mubr.f32.gmra.mrb[0].mxu0 %v5849
        %v5997 = vpop.f32.mrb[0].mxu0
        %v5998 = vadd.f32 %v5921, %v5997
        %v5999 = vpop.f32.mrb[0].mxu0
        %v6000 = vadd.f32 %v5923, %v5999
        %6001 = vmatprep.mubr.f32.mxu0 0.0
        %6002 = vmatmul.mubr.f32.gmra.mrb[0].mxu0 %v5852
        %v6003 = vpop.f32.mrb[0].mxu0
        %v6004 = vadd.f32 %v5927, %v6003
        %v6005 = vpop.f32.mrb[0].mxu0
        %v6006 = vadd.f32 %v5929, %v6005
        %6007 = vdwg.mxu0
        %6008 = vmatprep.subr.mxu0 0.0
        %6009 = vmatpush1.msra.mxu0 %v5719
        %6010 = vmatprep.subr.mxu0 0.0
        %6011 = vmatpush1.msra.mxu0 %v5722
        %6012 = vmatprep.subr.mxu0 0.0
        %6013 = vmatpush1.msra.mxu0 %v5725
        %6014 = vmatprep.subr.mxu0 0.0
        %6015 = vmatpush1.msra.mxu0 %v5728
        %6016 = vmatprep.subr.mxu0 0.0
        %6017 = vmatpush1.msra.mxu0 %v5731
        %6018 = vmatprep.subr.mxu0 0.0
        %6019 = vmatpush1.msra.mxu0 %v5734
        %6020 = vmatprep.subr.mxu0 0.0
        %6021 = vmatpush1.msra.mxu0 %v5737
        %6022 = vmatprep.subr.mxu0 0.0
        %6023 = vmatpush1.msra.mxu0 %v5740
        %6024 = vmatprep.subr.mxu0 0.0
        %6025 = vmatpush1.msra.mxu0 %v5743
        %6026 = vmatprep.subr.mxu0 0.0
        %6027 = vmatpush1.msra.mxu0 %v5746
        %6028 = vmatprep.subr.mxu0 0.0
        %6029 = vmatpush1.msra.mxu0 %v5749
        %6030 = vmatprep.subr.mxu0 0.0
        %6031 = vmatpush1.msra.mxu0 %v5752
        %6032 = vmatprep.subr.mxu0 0.0
        %6033 = vmatpush1.msra.mxu0 %v5755
        %6034 = vmatprep.subr.mxu0 0.0
        %6035 = vmatpush1.msra.mxu0 %v5758
        %6036 = vmatprep.subr.mxu0 0.0
        %6037 = vmatpush1.msra.mxu0 %v5761
        %6038 = vmatprep.subr.mxu0 0.0
        %6039 = vmatpush1.msra.mxu0 %v5764
        %6040 = vmatprep.subr.mxu0 0.0
        %6041 = vmatpush1.msra.mxu0 %v5767
        %6042 = vmatprep.subr.mxu0 0.0
        %6043 = vmatpush1.msra.mxu0 %v5770
        %6044 = vmatprep.subr.mxu0 0.0
        %6045 = vmatpush1.msra.mxu0 %v5773
        %6046 = vmatprep.subr.mxu0 0.0
        %6047 = vmatpush1.msra.mxu0 %v5776
        %6048 = vmatprep.subr.mxu0 0.0
        %6049 = vmatpush1.msra.mxu0 %v5779
        %6050 = vmatprep.subr.mxu0 0.0
        %6051 = vmatpush1.msra.mxu0 %v5782
        %6052 = vmatprep.subr.mxu0 0.0
        %6053 = vmatpush1.msra.mxu0 %v5785
        %6054 = vmatprep.subr.mxu0 0.0
        %6055 = vmatpush1.msra.mxu0 %v5788
        %6056 = vmatprep.subr.mxu0 0.0
        %6057 = vmatpush1.msra.mxu0 %v5791
        %6058 = vmatprep.subr.mxu0 0.0
        %6059 = vmatpush1.msra.mxu0 %v5794
        %6060 = vmatprep.subr.mxu0 0.0
        %6061 = vmatpush1.msra.mxu0 %v5797
        %6062 = vmatprep.subr.mxu0 0.0
        %6063 = vmatpush1.msra.mxu0 %v5800
        %6064 = vmatprep.subr.mxu0 0.0
        %6065 = vmatpush1.msra.mxu0 %v5803
        %6066 = vmatprep.subr.mxu0 0.0
        %6067 = vmatpush1.msra.mxu0 %v5806
        %6068 = vmatprep.subr.mxu0 0.0
        %6069 = vmatpush1.msra.mxu0 %v5809
        %6070 = vmatprep.subr.mxu0 0.0
        %6071 = vmatpush1.msra.mxu0 %v5812
        %6072 = vmatprep.mubr.f32.mxu0 %v5712
        %6073 = vmatmul.mubr.f32.gmra.mrb[0].mxu0 %v5711
        %v6074 = vpop.f32.mrb[0].mxu0
        %v6075 = vadd.f32 %v5844, %v6074
        %v6076 = vpop.f32.mrb[0].mxu0
        %6077 = vmatprep.mubr.f32.mxu0 %v5715
        %6078 = vmatmul.mubr.f32.gmra.mrb[0].mxu0 %v5714
        %v6079 = vpop.f32.mrb[0].mxu0
        %v6080 = vadd.f32 %v5844, %v6079
        %v6081 = vpop.f32.mrb[0].mxu0
        %6082 = vdwg.mxu0
        %6083 = vmatprep.subr.mxu0 0.0
        %6084 = vmatpush1.msra.mxu0 %v5815
        %6085 = vmatprep.subr.mxu0 0.0
        %6086 = vmatpush1.msra.mxu0 %v5818
        %6087 = vmatprep.subr.mxu0 0.0
        %6088 = vmatpush1.msra.mxu0 %v5821
        %6089 = vmatprep.subr.mxu0 0.0
        %6090 = vmatpush1.msra.mxu0 %v5824
        %6091 = vmatprep.subr.mxu0 0.0
        %6092 = vmatpush1.msra.mxu0 %v5827
        %6093 = vmatprep.subr.mxu0 0.0
        %6094 = vmatpush1.msra.mxu0 %v5830
        %6095 = vmatprep.subr.mxu0 0.0
        %6096 = vmatpush1.msra.mxu0 0.0
        %6097 = vmatprep.subr.mxu0 0.0
        %6098 = vmatpush1.msra.mxu0 0.0
        %6099 = vmatprep.subr.mxu0 0.0
        %6100 = vmatpush1.msra.mxu0 0.0
        %6101 = vmatprep.subr.mxu0 0.0
        %6102 = vmatpush1.msra.mxu0 0.0
        %6103 = vmatprep.subr.mxu0 0.0
        %6104 = vmatpush1.msra.mxu0 0.0
        %6105 = vmatprep.subr.mxu0 0.0
        %6106 = vmatpush1.msra.mxu0 0.0
        %6107 = vmatprep.subr.mxu0 0.0
        %6108 = vmatpush1.msra.mxu0 0.0
        %6109 = vmatprep.subr.mxu0 0.0
        %6110 = vmatpush1.msra.mxu0 0.0
        %6111 = vmatprep.subr.mxu0 0.0
        %6112 = vmatpush1.msra.mxu0 0.0
        %6113 = vmatprep.subr.mxu0 0.0
        %6114 = vmatpush1.msra.mxu0 0.0
        %6115 = vmatprep.subr.mxu0 0.0
        %6116 = vmatpush1.msra.mxu0 0.0
        %6117 = vmatprep.subr.mxu0 0.0
        %6118 = vmatpush1.msra.mxu0 0.0
        %6119 = vmatprep.subr.mxu0 0.0
        %6120 = vmatpush1.msra.mxu0 0.0
        %6121 = vmatprep.subr.mxu0 0.0
        %6122 = vmatpush1.msra.mxu0 0.0
        %6123 = vmatprep.subr.mxu0 0.0
        %6124 = vmatpush1.msra.mxu0 0.0
        %6125 = vmatprep.subr.mxu0 0.0
        %6126 = vmatpush1.msra.mxu0 0.0
        %6127 = vmatprep.subr.mxu0 0.0
        %6128 = vmatpush1.msra.mxu0 0.0
        %6129 = vmatprep.subr.mxu0 0.0
        %6130 = vmatpush1.msra.mxu0 0.0
        %6131 = vmatprep.subr.mxu0 0.0
        %6132 = vmatpush1.msra.mxu0 0.0
        %6133 = vmatprep.subr.mxu0 0.0
        %6134 = vmatpush1.msra.mxu0 0.0
        %6135 = vmatprep.subr.mxu0 0.0
        %6136 = vmatpush1.msra.mxu0 0.0
        %6137 = vmatprep.subr.mxu0 0.0
        %6138 = vmatpush1.msra.mxu0 0.0
        %6139 = vmatprep.subr.mxu0 0.0
        %6140 = vmatpush1.msra.mxu0 0.0
        %6141 = vmatprep.subr.mxu0 0.0
        %6142 = vmatpush1.msra.mxu0 0.0
        %6143 = vmatprep.subr.mxu0 0.0
        %6144 = vmatpush1.msra.mxu0 0.0
        %6145 = vmatprep.subr.mxu0 0.0
        %6146 = vmatpush1.msra.mxu0 0.0
        %6147 = vmatprep.mubr.f32.mxu0 0.0
        %6148 = vmatmul.mubr.f32.gmra.mrb[0].mxu0 %v5849
        %v6149 = vpop.f32.mrb[0].mxu0
        %v6150 = vadd.f32 %v6075, %v6149
        %v6151 = vpop.f32.mrb[0].mxu0
        %6152 = vmatprep.mubr.f32.mxu0 0.0
        %6153 = vmatmul.mubr.f32.gmra.mrb[0].mxu0 %v5852
        %v6154 = vpop.f32.mrb[0].mxu0
        %v6155 = vadd.f32 %v6080, %v6154
        %v6156 = vpop.f32.mrb[0].mxu0
        %6157 = vdwg.mxu0
        %v6158 = vmax.f32 %v5998, 0.0
        %v6159 = vmax.f32 %v6000, 0.0
        %v6160 = vmax.f32 %v6150, 0.0
        %v6161 = vmax.f32 %v6004, 0.0
        %v6162 = vmax.f32 %v6006, 0.0
        %v6163 = vmax.f32 %v6155, 0.0
        %v6164 = vld [vmem:[%s73] sm:$0xff]
        %v6165 = vld [vmem:[%s73 + $0x8] sm:$0xff]
        %v6166 = vld [vmem:[%s73 + $0x10] sm:$0xff]
        %v6167 = vld [vmem:[%s73 + $0x18] sm:$0xff]
        %v6168 = vld [vmem:[%s73 + $0x20] sm:$0xff]
        %v6169 = vld [vmem:[%s73 + $0x28] sm:$0xff]
        %v6170 = vld [vmem:[%s73 + $0x30] sm:$0xff]
        %v6171 = vld [vmem:[%s73 + $0x38] sm:$0xff]
        %v6172 = vld [vmem:[%s73 + $0x40] sm:$0xff]
        %v6173 = vld [vmem:[%s73 + $0x48] sm:$0xff]
        %v6174 = vld [vmem:[%s73 + $0x50] sm:$0xff]
        %v6175 = vld [vmem:[%s73 + $0x58] sm:$0xff]
        %v6176 = vld [vmem:[%s73 + $0x60] sm:$0xff]
        %v6177 = vld [vmem:[%s73 + $0x68] sm:$0xff]
        %v6178 = vld [vmem:[%s73 + $0x70] sm:$0xff]
        %v6179 = vld [vmem:[%s73 + $0x78] sm:$0xff]
        %v6180 = vld [vmem:[%s73 + $0x80] sm:$0xff]
        %v6181 = vld [vmem:[%s73 + $0x88] sm:$0xff]
        %v6182 = vld [vmem:[%s73 + $0x90] sm:$0xff]
        %v6183 = vld [vmem:[%s73 + $0x98] sm:$0xff]
        %v6184 = vld [vmem:[%s73 + $0xa0] sm:$0xff]
        %v6185 = vld [vmem:[%s73 + $0xa8] sm:$0xff]
        %v6186 = vld [vmem:[%s73 + $0xb0] sm:$0xff]
        %v6187 = vld [vmem:[%s73 + $0xb8] sm:$0xff]
        %v6188 = vld [vmem:[%s73 + $0xc0] sm:$0xff]
        %v6189 = vld [vmem:[%s73 + $0xc8] sm:$0xff]
        %v6190 = vld [vmem:[%s73 + $0xd0] sm:$0xff]
        %v6191 = vld [vmem:[%s73 + $0xd8] sm:$0xff]
        %v6192 = vld [vmem:[%s73 + $0xe0] sm:$0xff]
        %v6193 = vld [vmem:[%s73 + $0xe8] sm:$0xff]
        %v6194 = vld [vmem:[%s73 + $0xf0] sm:$0xff]
        %v6195 = vld [vmem:[%s73 + $0xf8] sm:$0xff]
        %v6196 = vld [vmem:[%s73 + $0x100] sm:$0xff]
        %v6197 = vld [vmem:[%s73 + $0x108] sm:$0xff]
        %v6198 = vld [vmem:[%s73 + $0x110] sm:$0xff]
        %v6199 = vld [vmem:[%s73 + $0x118] sm:$0xff]
        %v6200 = vld [vmem:[%s73 + $0x120] sm:$0xff]
        %v6201 = vld [vmem:[%s73 + $0x128] sm:$0xff]
        %v6202 = vld [vmem:[#allocation35] sm:$0x1]
        %v6204 = vlaneseq
        %v6205 = vshrl.u32 %v6204, 7
        %v6206 = vsub.s32 0, %v6205
        %v6207 = vrot.slane %v6202, %v6206
        %v6210 = vsel %vm3622, %v6160, 0
        %v6213 = vsel %vm3622, %v6163, 0
        %6215 = vmatprep.subr.mxu0 0.0
        %6216 = vmatpush1.msra.mxu0 %v6164
        %6217 = vmatprep.subr.mxu0 0.0
        %6218 = vmatpush1.msra.mxu0 %v6165
        %6219 = vmatprep.subr.mxu0 0.0
        %6220 = vmatpush1.msra.mxu0 %v6166
        %6221 = vmatprep.subr.mxu0 0.0
        %6222 = vmatpush1.msra.mxu0 %v6167
        %6223 = vmatprep.subr.mxu0 0.0
        %6224 = vmatpush1.msra.mxu0 %v6168
        %6225 = vmatprep.subr.mxu0 0.0
        %6226 = vmatpush1.msra.mxu0 %v6169
        %6227 = vmatprep.subr.mxu0 0.0
        %6228 = vmatpush1.msra.mxu0 %v6170
        %6229 = vmatprep.subr.mxu0 0.0
        %6230 = vmatpush1.msra.mxu0 %v6171
        %6231 = vmatprep.subr.mxu0 0.0
        %6232 = vmatpush1.msra.mxu0 %v6172
        %6233 = vmatprep.subr.mxu0 0.0
        %6234 = vmatpush1.msra.mxu0 %v6173
        %6235 = vmatprep.subr.mxu0 0.0
        %6236 = vmatpush1.msra.mxu0 %v6174
        %6237 = vmatprep.subr.mxu0 0.0
        %6238 = vmatpush1.msra.mxu0 %v6175
        %6239 = vmatprep.subr.mxu0 0.0
        %6240 = vmatpush1.msra.mxu0 %v6176
        %6241 = vmatprep.subr.mxu0 0.0
        %6242 = vmatpush1.msra.mxu0 %v6177
        %6243 = vmatprep.subr.mxu0 0.0
        %6244 = vmatpush1.msra.mxu0 %v6178
        %6245 = vmatprep.subr.mxu0 0.0
        %6246 = vmatpush1.msra.mxu0 %v6179
        %6247 = vmatprep.subr.mxu0 0.0
        %6248 = vmatpush1.msra.mxu0 %v6180
        %6249 = vmatprep.subr.mxu0 0.0
        %6250 = vmatpush1.msra.mxu0 %v6181
        %6251 = vmatprep.subr.mxu0 0.0
        %6252 = vmatpush1.msra.mxu0 %v6182
        %6253 = vmatprep.subr.mxu0 0.0
        %6254 = vmatpush1.msra.mxu0 %v6183
        %6255 = vmatprep.subr.mxu0 0.0
        %6256 = vmatpush1.msra.mxu0 %v6184
        %6257 = vmatprep.subr.mxu0 0.0
        %6258 = vmatpush1.msra.mxu0 %v6185
        %6259 = vmatprep.subr.mxu0 0.0
        %6260 = vmatpush1.msra.mxu0 %v6186
        %6261 = vmatprep.subr.mxu0 0.0
        %6262 = vmatpush1.msra.mxu0 %v6187
        %6263 = vmatprep.subr.mxu0 0.0
        %6264 = vmatpush1.msra.mxu0 %v6188
        %6265 = vmatprep.subr.mxu0 0.0
        %6266 = vmatpush1.msra.mxu0 %v6189
        %6267 = vmatprep.subr.mxu0 0.0
        %6268 = vmatpush1.msra.mxu0 %v6190
        %6269 = vmatprep.subr.mxu0 0.0
        %6270 = vmatpush1.msra.mxu0 %v6191
        %6271 = vmatprep.subr.mxu0 0.0
        %6272 = vmatpush1.msra.mxu0 %v6192
        %6273 = vmatprep.subr.mxu0 0.0
        %6274 = vmatpush1.msra.mxu0 %v6193
        %6275 = vmatprep.subr.mxu0 0.0
        %6276 = vmatpush1.msra.mxu0 %v6194
        %6277 = vmatprep.subr.mxu0 0.0
        %6278 = vmatpush1.msra.mxu0 %v6195
        %6279 = vmatprep.mubr.f32.mxu0 %v6159
        %6280 = vmatmul.mubr.f32.gmra.mrb[0].mxu0 %v6158
        %v6281 = vpop.f32.mrb[0].mxu0
        %v6282 = vadd.f32 %v6207, %v6281
        %v6283 = vpop.f32.mrb[0].mxu0
        %6284 = vmatprep.mubr.f32.mxu0 %v6162
        %6285 = vmatmul.mubr.f32.gmra.mrb[0].mxu0 %v6161
        %v6286 = vpop.f32.mrb[0].mxu0
        %v6287 = vadd.f32 %v6207, %v6286
        %v6288 = vpop.f32.mrb[0].mxu0
        %6289 = vdwg.mxu0
        %6290 = vmatprep.subr.mxu0 0.0
        %6291 = vmatpush1.msra.mxu0 %v6196
        %6292 = vmatprep.subr.mxu0 0.0
        %6293 = vmatpush1.msra.mxu0 %v6197
        %6294 = vmatprep.subr.mxu0 0.0
        %6295 = vmatpush1.msra.mxu0 %v6198
        %6296 = vmatprep.subr.mxu0 0.0
        %6297 = vmatpush1.msra.mxu0 %v6199
        %6298 = vmatprep.subr.mxu0 0.0
        %6299 = vmatpush1.msra.mxu0 %v6200
        %6300 = vmatprep.subr.mxu0 0.0
        %6301 = vmatpush1.msra.mxu0 %v6201
        %6302 = vmatprep.subr.mxu0 0.0
        %6303 = vmatpush1.msra.mxu0 0.0
        %6304 = vmatprep.subr.mxu0 0.0
        %6305 = vmatpush1.msra.mxu0 0.0
        %6306 = vmatprep.subr.mxu0 0.0
        %6307 = vmatpush1.msra.mxu0 0.0
        %6308 = vmatprep.subr.mxu0 0.0
        %6309 = vmatpush1.msra.mxu0 0.0
        %6310 = vmatprep.subr.mxu0 0.0
        %6311 = vmatpush1.msra.mxu0 0.0
        %6312 = vmatprep.subr.mxu0 0.0
        %6313 = vmatpush1.msra.mxu0 0.0
        %6314 = vmatprep.subr.mxu0 0.0
        %6315 = vmatpush1.msra.mxu0 0.0
        %6316 = vmatprep.subr.mxu0 0.0
        %6317 = vmatpush1.msra.mxu0 0.0
        %6318 = vmatprep.subr.mxu0 0.0
        %6319 = vmatpush1.msra.mxu0 0.0
        %6320 = vmatprep.subr.mxu0 0.0
        %6321 = vmatpush1.msra.mxu0 0.0
        %6322 = vmatprep.subr.mxu0 0.0
        %6323 = vmatpush1.msra.mxu0 0.0
        %6324 = vmatprep.subr.mxu0 0.0
        %6325 = vmatpush1.msra.mxu0 0.0
        %6326 = vmatprep.subr.mxu0 0.0
        %6327 = vmatpush1.msra.mxu0 0.0
        %6328 = vmatprep.subr.mxu0 0.0
        %6329 = vmatpush1.msra.mxu0 0.0
        %6330 = vmatprep.subr.mxu0 0.0
        %6331 = vmatpush1.msra.mxu0 0.0
        %6332 = vmatprep.subr.mxu0 0.0
        %6333 = vmatpush1.msra.mxu0 0.0
        %6334 = vmatprep.subr.mxu0 0.0
        %6335 = vmatpush1.msra.mxu0 0.0
        %6336 = vmatprep.subr.mxu0 0.0
        %6337 = vmatpush1.msra.mxu0 0.0
        %6338 = vmatprep.subr.mxu0 0.0
        %6339 = vmatpush1.msra.mxu0 0.0
        %6340 = vmatprep.subr.mxu0 0.0
        %6341 = vmatpush1.msra.mxu0 0.0
        %6342 = vmatprep.subr.mxu0 0.0
        %6343 = vmatpush1.msra.mxu0 0.0
        %6344 = vmatprep.subr.mxu0 0.0
        %6345 = vmatpush1.msra.mxu0 0.0
        %6346 = vmatprep.subr.mxu0 0.0
        %6347 = vmatpush1.msra.mxu0 0.0
        %6348 = vmatprep.subr.mxu0 0.0
        %6349 = vmatpush1.msra.mxu0 0.0
        %6350 = vmatprep.subr.mxu0 0.0
        %6351 = vmatpush1.msra.mxu0 0.0
        %6352 = vmatprep.subr.mxu0 0.0
        %6353 = vmatpush1.msra.mxu0 0.0
        %6354 = vmatprep.mubr.f32.mxu0 0.0
        %6355 = vmatmul.mubr.f32.gmra.mrb[0].mxu0 %v6210
        %v6356 = vpop.f32.mrb[0].mxu0
        %v6357 = vadd.f32 %v6282, %v6356
        %v6358 = vpop.f32.mrb[0].mxu0
        %6359 = vmatprep.mubr.f32.mxu0 0.0
        %6360 = vmatmul.mubr.f32.gmra.mrb[0].mxu0 %v6213
        %v6361 = vpop.f32.mrb[0].mxu0
        %v6362 = vadd.f32 %v6287, %v6361
        %v6363 = vpop.f32.mrb[0].mxu0
        %6364 = vdwg.mxu0
        %vm6365 = vcmask 97280
        %6366 = vst.msk [vmem:[%s1466] sm:$0xff] %vm6365, %v6357
        %6367 = vst.msk [vmem:[%s1466 + $0x8] sm:$0xff] %vm6365, %v6362
        %p6368 = scmp.lt.s32.totalorder %s100, 1
        %s6369 = scalar_select %p6368, %s100, 1
        %s6370 = smul.addr %s6369, 2
        %s6371 = smul.addr %s6370, 8
        %s6372 = scalar_lea.vmem %s77, %s6371
        // Predicated region
        $region261: #{dmstgcn_forward.1} parent=171 // pred_check
          %p6373 = pneg %p926
        $region262: #{dmstgcn_forward.1} parent=171 // pred_check_branch
          %6375 = sbr.rel (%p6373) target = $region264
        $region263: #{dmstgcn_forward.1} parent=171 // pred_region
          _
        $region264: #{dmstgcn_forward.1} parent=171 // pred_fallthru
          _
      $region172: #{dmstgcn_forward.1} parent=5 // pred_fallthru
        _
      %p6376 = scmp.le.s32.totalorder 2, %s95
      // Predicated region
      $region265: #{dmstgcn_forward.1} parent=5 // pred_check
        %p6377 = pneg %p6376
      $region266: #{dmstgcn_forward.1} parent=5 // pred_check_branch
        %6379 = sbr.rel (%p6377) target = $region268
      $region267: #{dmstgcn_forward.1} parent=5 // pred_region
        %s6380 = ssub.s32 %s95, 2
        // Predicated region
        $region269: #{dmstgcn_forward.1} parent=267 // pred_check
          %p6381 = pneg %p932
        $region270: #{dmstgcn_forward.1} parent=267 // pred_check_branch
          %6383 = sbr.rel (%p6381) target = $region272
        $region271: #{dmstgcn_forward.1} parent=267 // pred_region
          %p6384 = scmp.lt.s32.totalorder %s101, 1
          %s6385 = scalar_select %p6384, %s101, 1
          %s6386 = smul.addr %s6385, 2
          %s6387 = smul.addr %s6386, 8
          %s6388 = scalar_lea.vmem %s77, %s6387
        $region272: #{dmstgcn_forward.1} parent=267 // pred_fallthru
          _
      $region268: #{dmstgcn_forward.1} parent=5 // pred_fallthru
        _
    $region6: #{dmstgcn_forward.1} parent=1 // loop_footer
      %s99 = sadd.s32 1, %s95
    $region7: #{dmstgcn_forward.1} parent=1 // loop_footer_branch
      %94 = sbr.rel target = $region3
    $region8: #{dmstgcn_forward.1} parent=1 // loop_exit
      _
    %6389 = vsyncpa [#allocation4], 1
    %s6390 = scalar_lea.sflag [#allocation4], 1
    %6391 = vsyncpa %s6390, 1
    %6392 = vsyncpa [#allocation6], 1
    %6393 = vsyncpa [#allocation9], 1
    %6394 = vsyncpa [#allocation12], 1
    %6395 = vsyncpa [#allocation15], 1
    %6396 = vsyncpa [#allocation18], 1
    %6397 = vsyncpa [#allocation21], 1
    %6398 = vsyncpa [#allocation24], 1
    %6399 = vsyncpa [#allocation27], 1
    %6400 = vsyncpa [#allocation30], 1
    %6401 = vsyncpa [#allocation33], 1
    %6402 = vsyncpa [#allocation36], 1

</llo_original>
